<compile_context>
chip_gen: v7x
topology: tpu7x:2x2x1
jax: 0.10.0
libtpu: 0.0.40
codegen_flags: <defaults>
</compile_context>

<pallas_src>
import functools
import math

import jax
import jax.numpy as jnp
from jax.experimental import pallas as pl
from jax.experimental.pallas import tpu as pltpu

# ----------------------------------------------------------------------------
# Small deterministic config (mirrors SepFlexConv.__init__ arguments)
# ----------------------------------------------------------------------------
DATA_DIM = 2
IN_CHANNELS = 4            # in_channels (C)
HIDDEN_CHANNELS = 8        # net_cfg.hidden_channels (pointwise out channels)
KERNEL_SIZE = 7            # kernel_cfg.kernel_size (K)
KERNEL_NO_LAYERS = 2       # kernel_cfg.kernel_no_layers
KERNEL_HIDDEN_CHANNELS = 16
OMEGA_0 = 10.0
CAUSAL = False             # 2D, non-causal
BATCH = 2
SPATIAL = 16               # H = W
CONV_TYPE = "conv"         # fft branch not taken for these sizes

LANE = 128                 # TPU lane width: W is padded to this for lane-dense work


# ----------------------------------------------------------------------------
# MAGNet kernel network (ConstructMaskedKernel's KernelNet).
# NOTE: the MAGNet class body is not part of the provided module; we implement
# the standard FlexConv anisotropic-Gabor MFN structure with deterministic init.
# TODO(synk): exact MAGNet filter-parameter distributions (gamma sampling /
# omega_0 weight scaling) follow FlexConv in spirit, not a checkpoint.
# ----------------------------------------------------------------------------
def init_magnet_params(key, data_dim, hidden, out_channels, no_layers, omega_0):
    n_filters = no_layers + 1
    keys = jax.random.split(key, 4 * n_filters + no_layers + 1)
    ki = iter(keys)
    params = {"filters": [], "linears": []}
    for l in range(n_filters):
        wf = jax.random.normal(next(ki), (hidden, data_dim), jnp.float32) * (
            omega_0 / math.sqrt(n_filters)
        )
        bf = jax.random.uniform(next(ki), (hidden,), jnp.float32, -math.pi, math.pi)
        mu = jax.random.uniform(next(ki), (hidden, data_dim), jnp.float32, -1.0, 1.0)
        gamma = jnp.abs(jax.random.normal(next(ki), (hidden, data_dim), jnp.float32)) * (
            l + 1.0
        )
        params["filters"].append({"Wf": wf, "bf": bf, "mu": mu, "gamma": gamma})
    for _ in range(no_layers):
        w = jax.random.normal(next(ki), (hidden, hidden), jnp.float32) * math.sqrt(
            1.0 / hidden
        )
        params["linears"].append({"W": w, "b": jnp.zeros((hidden,), jnp.float32)})
    params["Wout"] = jax.random.normal(
        next(ki), (out_channels, hidden), jnp.float32
    ) * math.sqrt(1.0 / hidden)
    params["bout"] = jnp.zeros((out_channels,), jnp.float32)
    return params


def magnet_forward(params, pos):
    """pos: [N, data_dim] -> [N, out_channels]   (MFN with Gabor filters)."""

    def gabor(fp, p):
        lin = p @ fp["Wf"].T + fp["bf"]                           # [N, hidden]
        diff = p[:, None, :] - fp["mu"][None, :, :]               # [N, hidden, d]
        g = jnp.exp(-0.5 * jnp.sum((fp["gamma"][None] * diff) ** 2, axis=-1))
        return g * jnp.sin(lin)

    h = gabor(params["filters"][0], pos)
    for i in range(1, len(params["filters"])):
        lp = params["linears"][i - 1]
        h = gabor(params["filters"][i], pos) * (h @ lp["W"].T + lp["b"])
    return h @ params["Wout"].T + params["bout"]


# ----------------------------------------------------------------------------
# SepFlexConv parameter setup (deterministic, mirrors __init__)
# ----------------------------------------------------------------------------
def init_sepflexconv_params(key):
    k_mag, k_pw = jax.random.split(key)
    magnet = init_magnet_params(
        k_mag, DATA_DIM, KERNEL_HIDDEN_CHANNELS, IN_CHANNELS, KERNEL_NO_LAYERS, OMEGA_0
    )
    # KernelNet.re_weight_output_layer: rescale by sqrt(1/(C * K**data_dim)).
    magnet["Wout"] = magnet["Wout"] * math.sqrt(
        1.0 / (IN_CHANNELS * KERNEL_SIZE**DATA_DIM)
    )
    # pointwise 1x1 conv: kaiming_normal_ weight (fan_in = C), zero bias
    pw_w_torch = jax.random.normal(
        k_pw, (HIDDEN_CHANNELS, IN_CHANNELS), jnp.float32
    ) * math.sqrt(2.0 / IN_CHANNELS)
    return {
        "magnet": magnet,
        # non-causal -> mask mean 0; learnable width init 0.075 per data dim
        "mask_mean": (jnp.ones if CAUSAL else jnp.zeros)((DATA_DIM,), jnp.float32),
        "mask_sigma": jnp.full((DATA_DIM,), 0.075, jnp.float32),
        "dw_bias": jnp.zeros((IN_CHANNELS,), jnp.float32),   # self.bias (filled 0.0)
        "pw_w": pw_w_torch.T,                                 # [C, O]
        "pw_b": jnp.zeros((HIDDEN_CHANNELS,), jnp.float32),
    }


def create_coordinates(kernel_size, data_dim):
    """[-1, 1] grid of relative positions -> [K, K, data_dim] (2-D case)."""
    assert data_dim == 2
    v = jnp.linspace(-1.0, 1.0, kernel_size, dtype=jnp.float32)
    yy, xx = jnp.meshgrid(v, v, indexing="ij")
    return jnp.stack([yy, xx], axis=-1)       # [K, K, 2]


def _tensorcores_per_chip() -> int:
    """v7x has 2 TensorCores per chip (parallel grid axes shard across them);
    v5e/v6e have 1, where a per-batch grid is just serial loop overhead."""
    try:
        kind = jax.devices()[0].device_kind.lower()
    except Exception:
        return 1
    return 2 if "7" in kind else 1


# ----------------------------------------------------------------------------
# Pallas kernel: depthwise "same" cross-correlation + pointwise 1x1 conv.
# Layout inside the kernel (per batch element):
#   x_ref[b] : (C, HPAD, 128)   padded input planes, W on the lane axis
#   o_ref[b] : (O, H, 128)      output planes; valid columns live at lanes
#                               [K-1, K-1+W) and are cropped in the wrapper.
# Weights / biases are SMEM scalars (masked kernel, pointwise weight, fused
# bias), so the vector path never broadcasts per-tap constants.
# ----------------------------------------------------------------------------
def _sepflexconv_kernel(
    mk_ref,   # SMEM (K*K*C,) masked kernel, flattened (i, j, c) row-major
    pw_ref,   # SMEM (C*O,)   pointwise weight, flattened (c, o) row-major
    bf_ref,   # SMEM (O,)     fused bias: dw_bias @ pw_w + pw_b
    x_ref,    # VMEM (NB, C, HPAD, 128)
    o_ref,    # VMEM (NB, O, H, 128)
    *,
    NB, H, K, C, O,
):
    for b in range(NB):
        x = x_ref[b]                                   # (C, HPAD, 128)

        # Hoisted row slices: one per row offset i, shared by all lane shifts.
        xi = [x[:, i:i + H, :] for i in range(K)]      # K x (C, H, 128)

        # --- depthwise cross-correlation ----------------------------------
        # out[h, w+K-1] = sum_{i,j} x[h+i, w+j] * mk[i, j]
        # Factored so the XLU lane roll happens once per (column j, channel c)
        # partial sum instead of once per (i, j) tap:
        #   dw[c] = sum_j roll( sum_i xi[i][c] * mk[i, j, c], K-1-j )
        # VPU FMA count unchanged (K*K per channel plane); rolls cut ~7x.
        dw = [None] * C
        for j in range(K):
            s = K - 1 - j
            for c in range(C):
                # K-tap weighted row sum: vector * SMEM-scalar FMAs on the VPU
                p = xi[0][c] * mk_ref[j * C + c]
                for i in range(1, K):
                    p = p + xi[i][c] * mk_ref[(i * K + j) * C + c]
                pr = p if s == 0 else pltpu.roll(p, s, axis=1)   # lane shift (XLU)
                dw[c] = pr if dw[c] is None else dw[c] + pr

        # --- pointwise (1x1) conv: C broadcast-FMAs per output channel (VPU)
        # (MXU would be <1% utilized at K=4, N=8; depthwise bias is fused
        #  into bf_ref in the wrapper, removing the extra (H,W,C) bias pass.)
        for oc in range(O):
            y = dw[0] * pw_ref[oc]
            for c in range(1, C):
                y = y + dw[c] * pw_ref[c * O + oc]
            o_ref[b, oc] = (y + bf_ref[oc]).astype(o_ref.dtype)   # full-lane store


def sep_flex_conv_forward(x_nchw, params):
    """SepFlexConv.forward.  x_nchw: [B, C, H, W] -> [B, hidden_channels, H, W]."""
    B, C, H, W = x_nchw.shape
    K = KERNEL_SIZE
    O = HIDDEN_CHANNELS
    pad = K // 2
    assert W + K - 1 <= LANE, "single-lane-tile W assumed at these sizes"
    HPAD = ((H + K - 1 + 7) // 8) * 8                  # 24: full sublane tiles

    # ---- kernel construction (glue): MAGNet + Gaussian mask, fused biases
    pos = create_coordinates(K, DATA_DIM)                        # [K, K, 2]
    conv_kernel = magnet_forward(params["magnet"], pos.reshape(K * K, DATA_DIM))
    conv_kernel = conv_kernel.reshape(K, K, C)                   # [K, K, C]
    mean = params["mask_mean"].reshape(1, 1, DATA_DIM)
    sig = params["mask_sigma"].reshape(1, 1, DATA_DIM)
    mask = jnp.exp(-0.5 * jnp.sum((pos - mean) ** 2 / (sig**2 + 1e-8), axis=-1))
    mk = conv_kernel * mask[:, :, None]                          # masked kernel
    mk_flat = mk.reshape(-1)                                     # (K*K*C,)

    pw_w = params["pw_w"]                                        # (C, O)
    bias_fused = params["dw_bias"] @ pw_w + params["pw_b"]       # (O,)

    # ---- layout glue: keep NCHW, zero-pad H to HPAD rows and W to 128 lanes
    xp = jnp.pad(
        x_nchw,
        ((0, 0), (0, 0), (pad, HPAD - H - pad), (pad, LANE - W - pad)),
    )

    # ---- grid: fold batch on 1-TC chips (v5e/v6e); 2-way parallel on v7x
    tc = _tensorcores_per_chip()
    if tc > 1 and B % tc == 0:
        grid_b, NB = B, 1          # one batch element per TensorCore
    else:
        grid_b, NB = 1, B          # single grid step, batch unrolled in-kernel

    # NOTE (scaling, v7x): for larger SPATIAL/BATCH, tile H in multiples of 8
    # with a K-1 halo instead of whole-image blocks, and budget VMEM against
    # 64 MiB (set pltpu.CompilerParams(vmem_limit_bytes=...)).
    kernel = functools.partial(_sepflexconv_kernel, NB=NB, H=H, K=K, C=C, O=O)
    out_full = pl.pallas_call(
        kernel,
        out_shape=jax.ShapeDtypeStruct((B, O, H, LANE), jnp.float32),
        grid=(grid_b,),
        in_specs=[
            pl.BlockSpec(memory_space=pltpu.MemorySpace.SMEM),     # masked kernel
            pl.BlockSpec(memory_space=pltpu.MemorySpace.SMEM),     # pointwise weight
            pl.BlockSpec(memory_space=pltpu.MemorySpace.SMEM),     # fused bias
            pl.BlockSpec((NB, C, HPAD, LANE), lambda g: (g, 0, 0, 0)),
        ],
        out_specs=pl.BlockSpec((NB, O, H, LANE), lambda g: (g, 0, 0, 0)),
        compiler_params=pltpu.CompilerParams(dimension_semantics=("parallel",)),
    )(mk_flat, pw_w.reshape(-1), bias_fused, xp)

    # valid output columns sit at lanes [K-1, K-1+W); crop (pure XLA glue).
    return out_full[:, :, :, K - 1:K - 1 + W]                    # NCHW


# ----------------------------------------------------------------------------
# Pure-JAX reference (same math) used as a silent correctness check
# ----------------------------------------------------------------------------
def _reference(x_nchw, params):
    B, C, H, W = x_nchw.shape
    K = KERNEL_SIZE
    pos = create_coordinates(K, DATA_DIM)
    ck = magnet_forward(params["magnet"], pos.reshape(K * K, DATA_DIM)).reshape(K, K, C)
    mean = params["mask_mean"].reshape(1, 1, DATA_DIM)
    sig = params["mask_sigma"].reshape(1, 1, DATA_DIM)
    mask = jnp.exp(-0.5 * jnp.sum((pos - mean) ** 2 / (sig**2 + 1e-8), axis=-1))
    mk = ck * mask[:, :, None]                                # [K, K, C]
    dw = jax.lax.conv_general_dilated(
        x_nchw,
        jnp.transpose(mk, (2, 0, 1))[:, None],                # [C, 1, K, K]
        window_strides=(1, 1),
        padding="SAME",
        dimension_numbers=("NCHW", "OIHW", "NCHW"),
        feature_group_count=C,
        precision=jax.lax.Precision.HIGHEST,
    ) + params["dw_bias"][None, :, None, None]
    pw = jnp.einsum(
        "co,bchw->bohw", params["pw_w"], dw, precision=jax.lax.Precision.HIGHEST
    ) + params["pw_b"][None, :, None, None]
    return pw


if __name__ == "__main__":
    key = jax.random.PRNGKey(0)
    k_x, k_p = jax.random.split(key)
    x = jax.random.normal(k_x, (BATCH, IN_CHANNELS, SPATIAL, SPATIAL), jnp.float32)
    params = init_sepflexconv_params(k_p)

    out = jax.block_until_ready(sep_flex_conv_forward(x, params))
    assert out.shape == (BATCH, HIDDEN_CHANNELS, SPATIAL, SPATIAL)
    assert bool(jnp.all(jnp.isfinite(out)))

    ref = jax.block_until_ready(_reference(x, params))
    assert bool(jnp.allclose(out, ref, rtol=1e-3, atol=1e-3))

    print("KERNEL_OK")
</pallas_src>

<mosaic_0001>
module attributes {stable_mosaic.version = 11 : i64} {
  func.func @_sepflexconv_kernel(%arg0: i32, %arg1: memref<196xf32, #tpu.memory_space<smem>>, %arg2: memref<32xf32, #tpu.memory_space<smem>>, %arg3: memref<8xf32, #tpu.memory_space<smem>>, %arg4: memref<2x4x24x128xf32, #tpu.memory_space<vmem>>, %arg5: memref<2x8x16x128xf32, #tpu.memory_space<vmem>>) attributes {dimension_semantics = [#tpu.dimension_semantics<parallel>], iteration_bounds = array<i64: 1>, scalar_prefetch = 0 : i64, scratch_operands = 0 : i64, tpu.core_type = #tpu.core_type<tc>, window_params = [{transform_indices = @transform_0, window_bounds = array<i64: 196>}, {transform_indices = @transform_1, window_bounds = array<i64: 32>}, {transform_indices = @transform_2, window_bounds = array<i64: 8>}, {transform_indices = @transform_3, window_bounds = array<i64: 2, 4, 24, 128>}, {transform_indices = @transform_4, window_bounds = array<i64: 2, 8, 16, 128>}]} {
    %c0 = arith.constant 0 : index
    %c0_0 = arith.constant 0 : index
    %c0_1 = arith.constant 0 : index
    %c0_2 = arith.constant 0 : index
    %0 = vector.load %arg4[%c0, %c0_0, %c0_1, %c0_2] : memref<2x4x24x128xf32, #tpu.memory_space<vmem>>, vector<1x4x24x128xf32>
    %1 = vector.shape_cast %0 : vector<1x4x24x128xf32> to vector<4x24x128xf32>
    %2 = vector.extract_strided_slice %1 {offsets = [0, 0, 0], sizes = [4, 16, 128], strides = [1, 1, 1]} : vector<4x24x128xf32> to vector<4x16x128xf32>
    %3 = vector.extract_strided_slice %1 {offsets = [0, 1, 0], sizes = [4, 16, 128], strides = [1, 1, 1]} : vector<4x24x128xf32> to vector<4x16x128xf32>
    %4 = vector.extract_strided_slice %1 {offsets = [0, 2, 0], sizes = [4, 16, 128], strides = [1, 1, 1]} : vector<4x24x128xf32> to vector<4x16x128xf32>
    %5 = vector.extract_strided_slice %1 {offsets = [0, 3, 0], sizes = [4, 16, 128], strides = [1, 1, 1]} : vector<4x24x128xf32> to vector<4x16x128xf32>
    %6 = vector.extract_strided_slice %1 {offsets = [0, 4, 0], sizes = [4, 16, 128], strides = [1, 1, 1]} : vector<4x24x128xf32> to vector<4x16x128xf32>
    %7 = vector.extract_strided_slice %1 {offsets = [0, 5, 0], sizes = [4, 16, 128], strides = [1, 1, 1]} : vector<4x24x128xf32> to vector<4x16x128xf32>
    %8 = vector.extract_strided_slice %1 {offsets = [0, 6, 0], sizes = [4, 16, 128], strides = [1, 1, 1]} : vector<4x24x128xf32> to vector<4x16x128xf32>
    %9 = vector.extract_strided_slice %2 {offsets = [0, 0, 0], sizes = [1, 16, 128], strides = [1, 1, 1]} : vector<4x16x128xf32> to vector<1x16x128xf32>
    %10 = vector.shape_cast %9 : vector<1x16x128xf32> to vector<16x128xf32>
    %c0_3 = arith.constant 0 : index
    %11 = memref.load %arg1[%c0_3] : memref<196xf32, #tpu.memory_space<smem>>
    %12 = vector.broadcast %11 : f32 to vector<16x128xf32>
    %13 = arith.mulf %10, %12 : vector<16x128xf32>
    %14 = vector.extract_strided_slice %3 {offsets = [0, 0, 0], sizes = [1, 16, 128], strides = [1, 1, 1]} : vector<4x16x128xf32> to vector<1x16x128xf32>
    %15 = vector.shape_cast %14 : vector<1x16x128xf32> to vector<16x128xf32>
    %c28 = arith.constant 28 : index
    %16 = memref.load %arg1[%c28] : memref<196xf32, #tpu.memory_space<smem>>
    %17 = vector.broadcast %16 : f32 to vector<16x128xf32>
    %18 = arith.mulf %15, %17 : vector<16x128xf32>
    %19 = arith.addf %13, %18 : vector<16x128xf32>
    %20 = vector.extract_strided_slice %4 {offsets = [0, 0, 0], sizes = [1, 16, 128], strides = [1, 1, 1]} : vector<4x16x128xf32> to vector<1x16x128xf32>
    %21 = vector.shape_cast %20 : vector<1x16x128xf32> to vector<16x128xf32>
    %c56 = arith.constant 56 : index
    %22 = memref.load %arg1[%c56] : memref<196xf32, #tpu.memory_space<smem>>
    %23 = vector.broadcast %22 : f32 to vector<16x128xf32>
    %24 = arith.mulf %21, %23 : vector<16x128xf32>
    %25 = arith.addf %19, %24 : vector<16x128xf32>
    %26 = vector.extract_strided_slice %5 {offsets = [0, 0, 0], sizes = [1, 16, 128], strides = [1, 1, 1]} : vector<4x16x128xf32> to vector<1x16x128xf32>
    %27 = vector.shape_cast %26 : vector<1x16x128xf32> to vector<16x128xf32>
    %c84 = arith.constant 84 : index
    %28 = memref.load %arg1[%c84] : memref<196xf32, #tpu.memory_space<smem>>
    %29 = vector.broadcast %28 : f32 to vector<16x128xf32>
    %30 = arith.mulf %27, %29 : vector<16x128xf32>
    %31 = arith.addf %25, %30 : vector<16x128xf32>
    %32 = vector.extract_strided_slice %6 {offsets = [0, 0, 0], sizes = [1, 16, 128], strides = [1, 1, 1]} : vector<4x16x128xf32> to vector<1x16x128xf32>
    %33 = vector.shape_cast %32 : vector<1x16x128xf32> to vector<16x128xf32>
    %c112 = arith.constant 112 : index
    %34 = memref.load %arg1[%c112] : memref<196xf32, #tpu.memory_space<smem>>
    %35 = vector.broadcast %34 : f32 to vector<16x128xf32>
    %36 = arith.mulf %33, %35 : vector<16x128xf32>
    %37 = arith.addf %31, %36 : vector<16x128xf32>
    %38 = vector.extract_strided_slice %7 {offsets = [0, 0, 0], sizes = [1, 16, 128], strides = [1, 1, 1]} : vector<4x16x128xf32> to vector<1x16x128xf32>
    %39 = vector.shape_cast %38 : vector<1x16x128xf32> to vector<16x128xf32>
    %c140 = arith.constant 140 : index
    %40 = memref.load %arg1[%c140] : memref<196xf32, #tpu.memory_space<smem>>
    %41 = vector.broadcast %40 : f32 to vector<16x128xf32>
    %42 = arith.mulf %39, %41 : vector<16x128xf32>
    %43 = arith.addf %37, %42 : vector<16x128xf32>
    %44 = vector.extract_strided_slice %8 {offsets = [0, 0, 0], sizes = [1, 16, 128], strides = [1, 1, 1]} : vector<4x16x128xf32> to vector<1x16x128xf32>
    %45 = vector.shape_cast %44 : vector<1x16x128xf32> to vector<16x128xf32>
    %c168 = arith.constant 168 : index
    %46 = memref.load %arg1[%c168] : memref<196xf32, #tpu.memory_space<smem>>
    %47 = vector.broadcast %46 : f32 to vector<16x128xf32>
    %48 = arith.mulf %45, %47 : vector<16x128xf32>
    %49 = arith.addf %43, %48 : vector<16x128xf32>
    %c6_i32 = arith.constant 6 : i32
    %50 = tpu.dynamic_rotate %49 by %c6_i32 dim 1 : vector<16x128xf32>, i32 -> vector<16x128xf32>
    %51 = vector.extract_strided_slice %2 {offsets = [1, 0, 0], sizes = [1, 16, 128], strides = [1, 1, 1]} : vector<4x16x128xf32> to vector<1x16x128xf32>
    %52 = vector.shape_cast %51 : vector<1x16x128xf32> to vector<16x128xf32>
    %c1 = arith.constant 1 : index
    %53 = memref.load %arg1[%c1] : memref<196xf32, #tpu.memory_space<smem>>
    %54 = vector.broadcast %53 : f32 to vector<16x128xf32>
    %55 = arith.mulf %52, %54 : vector<16x128xf32>
    %56 = vector.extract_strided_slice %3 {offsets = [1, 0, 0], sizes = [1, 16, 128], strides = [1, 1, 1]} : vector<4x16x128xf32> to vector<1x16x128xf32>
    %57 = vector.shape_cast %56 : vector<1x16x128xf32> to vector<16x128xf32>
    %c29 = arith.constant 29 : index
    %58 = memref.load %arg1[%c29] : memref<196xf32, #tpu.memory_space<smem>>
    %59 = vector.broadcast %58 : f32 to vector<16x128xf32>
    %60 = arith.mulf %57, %59 : vector<16x128xf32>
    %61 = arith.addf %55, %60 : vector<16x128xf32>
    %62 = vector.extract_strided_slice %4 {offsets = [1, 0, 0], sizes = [1, 16, 128], strides = [1, 1, 1]} : vector<4x16x128xf32> to vector<1x16x128xf32>
    %63 = vector.shape_cast %62 : vector<1x16x128xf32> to vector<16x128xf32>
    %c57 = arith.constant 57 : index
    %64 = memref.load %arg1[%c57] : memref<196xf32, #tpu.memory_space<smem>>
    %65 = vector.broadcast %64 : f32 to vector<16x128xf32>
    %66 = arith.mulf %63, %65 : vector<16x128xf32>
    %67 = arith.addf %61, %66 : vector<16x128xf32>
    %68 = vector.extract_strided_slice %5 {offsets = [1, 0, 0], sizes = [1, 16, 128], strides = [1, 1, 1]} : vector<4x16x128xf32> to vector<1x16x128xf32>
    %69 = vector.shape_cast %68 : vector<1x16x128xf32> to vector<16x128xf32>
    %c85 = arith.constant 85 : index
    %70 = memref.load %arg1[%c85] : memref<196xf32, #tpu.memory_space<smem>>
    %71 = vector.broadcast %70 : f32 to vector<16x128xf32>
    %72 = arith.mulf %69, %71 : vector<16x128xf32>
    %73 = arith.addf %67, %72 : vector<16x128xf32>
    %74 = vector.extract_strided_slice %6 {offsets = [1, 0, 0], sizes = [1, 16, 128], strides = [1, 1, 1]} : vector<4x16x128xf32> to vector<1x16x128xf32>
    %75 = vector.shape_cast %74 : vector<1x16x128xf32> to vector<16x128xf32>
    %c113 = arith.constant 113 : index
    %76 = memref.load %arg1[%c113] : memref<196xf32, #tpu.memory_space<smem>>
    %77 = vector.broadcast %76 : f32 to vector<16x128xf32>
    %78 = arith.mulf %75, %77 : vector<16x128xf32>
    %79 = arith.addf %73, %78 : vector<16x128xf32>
    %80 = vector.extract_strided_slice %7 {offsets = [1, 0, 0], sizes = [1, 16, 128], strides = [1, 1, 1]} : vector<4x16x128xf32> to vector<1x16x128xf32>
    %81 = vector.shape_cast %80 : vector<1x16x128xf32> to vector<16x128xf32>
    %c141 = arith.constant 141 : index
    %82 = memref.load %arg1[%c141] : memref<196xf32, #tpu.memory_space<smem>>
    %83 = vector.broadcast %82 : f32 to vector<16x128xf32>
    %84 = arith.mulf %81, %83 : vector<16x128xf32>
    %85 = arith.addf %79, %84 : vector<16x128xf32>
    %86 = vector.extract_strided_slice %8 {offsets = [1, 0, 0], sizes = [1, 16, 128], strides = [1, 1, 1]} : vector<4x16x128xf32> to vector<1x16x128xf32>
    %87 = vector.shape_cast %86 : vector<1x16x128xf32> to vector<16x128xf32>
    %c169 = arith.constant 169 : index
    %88 = memref.load %arg1[%c169] : memref<196xf32, #tpu.memory_space<smem>>
    %89 = vector.broadcast %88 : f32 to vector<16x128xf32>
    %90 = arith.mulf %87, %89 : vector<16x128xf32>
    %91 = arith.addf %85, %90 : vector<16x128xf32>
    %c6_i32_4 = arith.constant 6 : i32
    %92 = tpu.dynamic_rotate %91 by %c6_i32_4 dim 1 : vector<16x128xf32>, i32 -> vector<16x128xf32>
    %93 = vector.extract_strided_slice %2 {offsets = [2, 0, 0], sizes = [1, 16, 128], strides = [1, 1, 1]} : vector<4x16x128xf32> to vector<1x16x128xf32>
    %94 = vector.shape_cast %93 : vector<1x16x128xf32> to vector<16x128xf32>
    %c2 = arith.constant 2 : index
    %95 = memref.load %arg1[%c2] : memref<196xf32, #tpu.memory_space<smem>>
    %96 = vector.broadcast %95 : f32 to vector<16x128xf32>
    %97 = arith.mulf %94, %96 : vector<16x128xf32>
    %98 = vector.extract_strided_slice %3 {offsets = [2, 0, 0], sizes = [1, 16, 128], strides = [1, 1, 1]} : vector<4x16x128xf32> to vector<1x16x128xf32>
    %99 = vector.shape_cast %98 : vector<1x16x128xf32> to vector<16x128xf32>
    %c30 = arith.constant 30 : index
    %100 = memref.load %arg1[%c30] : memref<196xf32, #tpu.memory_space<smem>>
    %101 = vector.broadcast %100 : f32 to vector<16x128xf32>
    %102 = arith.mulf %99, %101 : vector<16x128xf32>
    %103 = arith.addf %97, %102 : vector<16x128xf32>
    %104 = vector.extract_strided_slice %4 {offsets = [2, 0, 0], sizes = [1, 16, 128], strides = [1, 1, 1]} : vector<4x16x128xf32> to vector<1x16x128xf32>
    %105 = vector.shape_cast %104 : vector<1x16x128xf32> to vector<16x128xf32>
    %c58 = arith.constant 58 : index
    %106 = memref.load %arg1[%c58] : memref<196xf32, #tpu.memory_space<smem>>
    %107 = vector.broadcast %106 : f32 to vector<16x128xf32>
    %108 = arith.mulf %105, %107 : vector<16x128xf32>
    %109 = arith.addf %103, %108 : vector<16x128xf32>
    %110 = vector.extract_strided_slice %5 {offsets = [2, 0, 0], sizes = [1, 16, 128], strides = [1, 1, 1]} : vector<4x16x128xf32> to vector<1x16x128xf32>
    %111 = vector.shape_cast %110 : vector<1x16x128xf32> to vector<16x128xf32>
    %c86 = arith.constant 86 : index
    %112 = memref.load %arg1[%c86] : memref<196xf32, #tpu.memory_space<smem>>
    %113 = vector.broadcast %112 : f32 to vector<16x128xf32>
    %114 = arith.mulf %111, %113 : vector<16x128xf32>
    %115 = arith.addf %109, %114 : vector<16x128xf32>
    %116 = vector.extract_strided_slice %6 {offsets = [2, 0, 0], sizes = [1, 16, 128], strides = [1, 1, 1]} : vector<4x16x128xf32> to vector<1x16x128xf32>
    %117 = vector.shape_cast %116 : vector<1x16x128xf32> to vector<16x128xf32>
    %c114 = arith.constant 114 : index
    %118 = memref.load %arg1[%c114] : memref<196xf32, #tpu.memory_space<smem>>
    %119 = vector.broadcast %118 : f32 to vector<16x128xf32>
    %120 = arith.mulf %117, %119 : vector<16x128xf32>
    %121 = arith.addf %115, %120 : vector<16x128xf32>
    %122 = vector.extract_strided_slice %7 {offsets = [2, 0, 0], sizes = [1, 16, 128], strides = [1, 1, 1]} : vector<4x16x128xf32> to vector<1x16x128xf32>
    %123 = vector.shape_cast %122 : vector<1x16x128xf32> to vector<16x128xf32>
    %c142 = arith.constant 142 : index
    %124 = memref.load %arg1[%c142] : memref<196xf32, #tpu.memory_space<smem>>
    %125 = vector.broadcast %124 : f32 to vector<16x128xf32>
    %126 = arith.mulf %123, %125 : vector<16x128xf32>
    %127 = arith.addf %121, %126 : vector<16x128xf32>
    %128 = vector.extract_strided_slice %8 {offsets = [2, 0, 0], sizes = [1, 16, 128], strides = [1, 1, 1]} : vector<4x16x128xf32> to vector<1x16x128xf32>
    %129 = vector.shape_cast %128 : vector<1x16x128xf32> to vector<16x128xf32>
    %c170 = arith.constant 170 : index
    %130 = memref.load %arg1[%c170] : memref<196xf32, #tpu.memory_space<smem>>
    %131 = vector.broadcast %130 : f32 to vector<16x128xf32>
    %132 = arith.mulf %129, %131 : vector<16x128xf32>
    %133 = arith.addf %127, %132 : vector<16x128xf32>
    %c6_i32_5 = arith.constant 6 : i32
    %134 = tpu.dynamic_rotate %133 by %c6_i32_5 dim 1 : vector<16x128xf32>, i32 -> vector<16x128xf32>
    %135 = vector.extract_strided_slice %2 {offsets = [3, 0, 0], sizes = [1, 16, 128], strides = [1, 1, 1]} : vector<4x16x128xf32> to vector<1x16x128xf32>
    %136 = vector.shape_cast %135 : vector<1x16x128xf32> to vector<16x128xf32>
    %c3 = arith.constant 3 : index
    %137 = memref.load %arg1[%c3] : memref<196xf32, #tpu.memory_space<smem>>
    %138 = vector.broadcast %137 : f32 to vector<16x128xf32>
    %139 = arith.mulf %136, %138 : vector<16x128xf32>
    %140 = vector.extract_strided_slice %3 {offsets = [3, 0, 0], sizes = [1, 16, 128], strides = [1, 1, 1]} : vector<4x16x128xf32> to vector<1x16x128xf32>
    %141 = vector.shape_cast %140 : vector<1x16x128xf32> to vector<16x128xf32>
    %c31 = arith.constant 31 : index
    %142 = memref.load %arg1[%c31] : memref<196xf32, #tpu.memory_space<smem>>
    %143 = vector.broadcast %142 : f32 to vector<16x128xf32>
    %144 = arith.mulf %141, %143 : vector<16x128xf32>
    %145 = arith.addf %139, %144 : vector<16x128xf32>
    %146 = vector.extract_strided_slice %4 {offsets = [3, 0, 0], sizes = [1, 16, 128], strides = [1, 1, 1]} : vector<4x16x128xf32> to vector<1x16x128xf32>
    %147 = vector.shape_cast %146 : vector<1x16x128xf32> to vector<16x128xf32>
    %c59 = arith.constant 59 : index
    %148 = memref.load %arg1[%c59] : memref<196xf32, #tpu.memory_space<smem>>
    %149 = vector.broadcast %148 : f32 to vector<16x128xf32>
    %150 = arith.mulf %147, %149 : vector<16x128xf32>
    %151 = arith.addf %145, %150 : vector<16x128xf32>
    %152 = vector.extract_strided_slice %5 {offsets = [3, 0, 0], sizes = [1, 16, 128], strides = [1, 1, 1]} : vector<4x16x128xf32> to vector<1x16x128xf32>
    %153 = vector.shape_cast %152 : vector<1x16x128xf32> to vector<16x128xf32>
    %c87 = arith.constant 87 : index
    %154 = memref.load %arg1[%c87] : memref<196xf32, #tpu.memory_space<smem>>
    %155 = vector.broadcast %154 : f32 to vector<16x128xf32>
    %156 = arith.mulf %153, %155 : vector<16x128xf32>
    %157 = arith.addf %151, %156 : vector<16x128xf32>
    %158 = vector.extract_strided_slice %6 {offsets = [3, 0, 0], sizes = [1, 16, 128], strides = [1, 1, 1]} : vector<4x16x128xf32> to vector<1x16x128xf32>
    %159 = vector.shape_cast %158 : vector<1x16x128xf32> to vector<16x128xf32>
    %c115 = arith.constant 115 : index
    %160 = memref.load %arg1[%c115] : memref<196xf32, #tpu.memory_space<smem>>
    %161 = vector.broadcast %160 : f32 to vector<16x128xf32>
    %162 = arith.mulf %159, %161 : vector<16x128xf32>
    %163 = arith.addf %157, %162 : vector<16x128xf32>
    %164 = vector.extract_strided_slice %7 {offsets = [3, 0, 0], sizes = [1, 16, 128], strides = [1, 1, 1]} : vector<4x16x128xf32> to vector<1x16x128xf32>
    %165 = vector.shape_cast %164 : vector<1x16x128xf32> to vector<16x128xf32>
    %c143 = arith.constant 143 : index
    %166 = memref.load %arg1[%c143] : memref<196xf32, #tpu.memory_space<smem>>
    %167 = vector.broadcast %166 : f32 to vector<16x128xf32>
    %168 = arith.mulf %165, %167 : vector<16x128xf32>
    %169 = arith.addf %163, %168 : vector<16x128xf32>
    %170 = vector.extract_strided_slice %8 {offsets = [3, 0, 0], sizes = [1, 16, 128], strides = [1, 1, 1]} : vector<4x16x128xf32> to vector<1x16x128xf32>
    %171 = vector.shape_cast %170 : vector<1x16x128xf32> to vector<16x128xf32>
    %c171 = arith.constant 171 : index
    %172 = memref.load %arg1[%c171] : memref<196xf32, #tpu.memory_space<smem>>
    %173 = vector.broadcast %172 : f32 to vector<16x128xf32>
    %174 = arith.mulf %171, %173 : vector<16x128xf32>
    %175 = arith.addf %169, %174 : vector<16x128xf32>
    %c6_i32_6 = arith.constant 6 : i32
    %176 = tpu.dynamic_rotate %175 by %c6_i32_6 dim 1 : vector<16x128xf32>, i32 -> vector<16x128xf32>
    %177 = vector.extract_strided_slice %2 {offsets = [0, 0, 0], sizes = [1, 16, 128], strides = [1, 1, 1]} : vector<4x16x128xf32> to vector<1x16x128xf32>
    %178 = vector.shape_cast %177 : vector<1x16x128xf32> to vector<16x128xf32>
    %c4 = arith.constant 4 : index
    %179 = memref.load %arg1[%c4] : memref<196xf32, #tpu.memory_space<smem>>
    %180 = vector.broadcast %179 : f32 to vector<16x128xf32>
    %181 = arith.mulf %178, %180 : vector<16x128xf32>
    %182 = vector.extract_strided_slice %3 {offsets = [0, 0, 0], sizes = [1, 16, 128], strides = [1, 1, 1]} : vector<4x16x128xf32> to vector<1x16x128xf32>
    %183 = vector.shape_cast %182 : vector<1x16x128xf32> to vector<16x128xf32>
    %c32 = arith.constant 32 : index
    %184 = memref.load %arg1[%c32] : memref<196xf32, #tpu.memory_space<smem>>
    %185 = vector.broadcast %184 : f32 to vector<16x128xf32>
    %186 = arith.mulf %183, %185 : vector<16x128xf32>
    %187 = arith.addf %181, %186 : vector<16x128xf32>
    %188 = vector.extract_strided_slice %4 {offsets = [0, 0, 0], sizes = [1, 16, 128], strides = [1, 1, 1]} : vector<4x16x128xf32> to vector<1x16x128xf32>
    %189 = vector.shape_cast %188 : vector<1x16x128xf32> to vector<16x128xf32>
    %c60 = arith.constant 60 : index
    %190 = memref.load %arg1[%c60] : memref<196xf32, #tpu.memory_space<smem>>
    %191 = vector.broadcast %190 : f32 to vector<16x128xf32>
    %192 = arith.mulf %189, %191 : vector<16x128xf32>
    %193 = arith.addf %187, %192 : vector<16x128xf32>
    %194 = vector.extract_strided_slice %5 {offsets = [0, 0, 0], sizes = [1, 16, 128], strides = [1, 1, 1]} : vector<4x16x128xf32> to vector<1x16x128xf32>
    %195 = vector.shape_cast %194 : vector<1x16x128xf32> to vector<16x128xf32>
    %c88 = arith.constant 88 : index
    %196 = memref.load %arg1[%c88] : memref<196xf32, #tpu.memory_space<smem>>
    %197 = vector.broadcast %196 : f32 to vector<16x128xf32>
    %198 = arith.mulf %195, %197 : vector<16x128xf32>
    %199 = arith.addf %193, %198 : vector<16x128xf32>
    %200 = vector.extract_strided_slice %6 {offsets = [0, 0, 0], sizes = [1, 16, 128], strides = [1, 1, 1]} : vector<4x16x128xf32> to vector<1x16x128xf32>
    %201 = vector.shape_cast %200 : vector<1x16x128xf32> to vector<16x128xf32>
    %c116 = arith.constant 116 : index
    %202 = memref.load %arg1[%c116] : memref<196xf32, #tpu.memory_space<smem>>
    %203 = vector.broadcast %202 : f32 to vector<16x128xf32>
    %204 = arith.mulf %201, %203 : vector<16x128xf32>
    %205 = arith.addf %199, %204 : vector<16x128xf32>
    %206 = vector.extract_strided_slice %7 {offsets = [0, 0, 0], sizes = [1, 16, 128], strides = [1, 1, 1]} : vector<4x16x128xf32> to vector<1x16x128xf32>
    %207 = vector.shape_cast %206 : vector<1x16x128xf32> to vector<16x128xf32>
    %c144 = arith.constant 144 : index
    %208 = memref.load %arg1[%c144] : memref<196xf32, #tpu.memory_space<smem>>
    %209 = vector.broadcast %208 : f32 to vector<16x128xf32>
    %210 = arith.mulf %207, %209 : vector<16x128xf32>
    %211 = arith.addf %205, %210 : vector<16x128xf32>
    %212 = vector.extract_strided_slice %8 {offsets = [0, 0, 0], sizes = [1, 16, 128], strides = [1, 1, 1]} : vector<4x16x128xf32> to vector<1x16x128xf32>
    %213 = vector.shape_cast %212 : vector<1x16x128xf32> to vector<16x128xf32>
    %c172 = arith.constant 172 : index
    %214 = memref.load %arg1[%c172] : memref<196xf32, #tpu.memory_space<smem>>
    %215 = vector.broadcast %214 : f32 to vector<16x128xf32>
    %216 = arith.mulf %213, %215 : vector<16x128xf32>
    %217 = arith.addf %211, %216 : vector<16x128xf32>
    %c5_i32 = arith.constant 5 : i32
    %218 = tpu.dynamic_rotate %217 by %c5_i32 dim 1 : vector<16x128xf32>, i32 -> vector<16x128xf32>
    %219 = arith.addf %50, %218 : vector<16x128xf32>
    %220 = vector.extract_strided_slice %2 {offsets = [1, 0, 0], sizes = [1, 16, 128], strides = [1, 1, 1]} : vector<4x16x128xf32> to vector<1x16x128xf32>
    %221 = vector.shape_cast %220 : vector<1x16x128xf32> to vector<16x128xf32>
    %c5 = arith.constant 5 : index
    %222 = memref.load %arg1[%c5] : memref<196xf32, #tpu.memory_space<smem>>
    %223 = vector.broadcast %222 : f32 to vector<16x128xf32>
    %224 = arith.mulf %221, %223 : vector<16x128xf32>
    %225 = vector.extract_strided_slice %3 {offsets = [1, 0, 0], sizes = [1, 16, 128], strides = [1, 1, 1]} : vector<4x16x128xf32> to vector<1x16x128xf32>
    %226 = vector.shape_cast %225 : vector<1x16x128xf32> to vector<16x128xf32>
    %c33 = arith.constant 33 : index
    %227 = memref.load %arg1[%c33] : memref<196xf32, #tpu.memory_space<smem>>
    %228 = vector.broadcast %227 : f32 to vector<16x128xf32>
    %229 = arith.mulf %226, %228 : vector<16x128xf32>
    %230 = arith.addf %224, %229 : vector<16x128xf32>
    %231 = vector.extract_strided_slice %4 {offsets = [1, 0, 0], sizes = [1, 16, 128], strides = [1, 1, 1]} : vector<4x16x128xf32> to vector<1x16x128xf32>
    %232 = vector.shape_cast %231 : vector<1x16x128xf32> to vector<16x128xf32>
    %c61 = arith.constant 61 : index
    %233 = memref.load %arg1[%c61] : memref<196xf32, #tpu.memory_space<smem>>
    %234 = vector.broadcast %233 : f32 to vector<16x128xf32>
    %235 = arith.mulf %232, %234 : vector<16x128xf32>
    %236 = arith.addf %230, %235 : vector<16x128xf32>
    %237 = vector.extract_strided_slice %5 {offsets = [1, 0, 0], sizes = [1, 16, 128], strides = [1, 1, 1]} : vector<4x16x128xf32> to vector<1x16x128xf32>
    %238 = vector.shape_cast %237 : vector<1x16x128xf32> to vector<16x128xf32>
    %c89 = arith.constant 89 : index
    %239 = memref.load %arg1[%c89] : memref<196xf32, #tpu.memory_space<smem>>
    %240 = vector.broadcast %239 : f32 to vector<16x128xf32>
    %241 = arith.mulf %238, %240 : vector<16x128xf32>
    %242 = arith.addf %236, %241 : vector<16x128xf32>
    %243 = vector.extract_strided_slice %6 {offsets = [1, 0, 0], sizes = [1, 16, 128], strides = [1, 1, 1]} : vector<4x16x128xf32> to vector<1x16x128xf32>
    %244 = vector.shape_cast %243 : vector<1x16x128xf32> to vector<16x128xf32>
    %c117 = arith.constant 117 : index
    %245 = memref.load %arg1[%c117] : memref<196xf32, #tpu.memory_space<smem>>
    %246 = vector.broadcast %245 : f32 to vector<16x128xf32>
    %247 = arith.mulf %244, %246 : vector<16x128xf32>
    %248 = arith.addf %242, %247 : vector<16x128xf32>
    %249 = vector.extract_strided_slice %7 {offsets = [1, 0, 0], sizes = [1, 16, 128], strides = [1, 1, 1]} : vector<4x16x128xf32> to vector<1x16x128xf32>
    %250 = vector.shape_cast %249 : vector<1x16x128xf32> to vector<16x128xf32>
    %c145 = arith.constant 145 : index
    %251 = memref.load %arg1[%c145] : memref<196xf32, #tpu.memory_space<smem>>
    %252 = vector.broadcast %251 : f32 to vector<16x128xf32>
    %253 = arith.mulf %250, %252 : vector<16x128xf32>
    %254 = arith.addf %248, %253 : vector<16x128xf32>
    %255 = vector.extract_strided_slice %8 {offsets = [1, 0, 0], sizes = [1, 16, 128], strides = [1, 1, 1]} : vector<4x16x128xf32> to vector<1x16x128xf32>
    %256 = vector.shape_cast %255 : vector<1x16x128xf32> to vector<16x128xf32>
    %c173 = arith.constant 173 : index
    %257 = memref.load %arg1[%c173] : memref<196xf32, #tpu.memory_space<smem>>
    %258 = vector.broadcast %257 : f32 to vector<16x128xf32>
    %259 = arith.mulf %256, %258 : vector<16x128xf32>
    %260 = arith.addf %254, %259 : vector<16x128xf32>
    %c5_i32_7 = arith.constant 5 : i32
    %261 = tpu.dynamic_rotate %260 by %c5_i32_7 dim 1 : vector<16x128xf32>, i32 -> vector<16x128xf32>
    %262 = arith.addf %92, %261 : vector<16x128xf32>
    %263 = vector.extract_strided_slice %2 {offsets = [2, 0, 0], sizes = [1, 16, 128], strides = [1, 1, 1]} : vector<4x16x128xf32> to vector<1x16x128xf32>
    %264 = vector.shape_cast %263 : vector<1x16x128xf32> to vector<16x128xf32>
    %c6 = arith.constant 6 : index
    %265 = memref.load %arg1[%c6] : memref<196xf32, #tpu.memory_space<smem>>
    %266 = vector.broadcast %265 : f32 to vector<16x128xf32>
    %267 = arith.mulf %264, %266 : vector<16x128xf32>
    %268 = vector.extract_strided_slice %3 {offsets = [2, 0, 0], sizes = [1, 16, 128], strides = [1, 1, 1]} : vector<4x16x128xf32> to vector<1x16x128xf32>
    %269 = vector.shape_cast %268 : vector<1x16x128xf32> to vector<16x128xf32>
    %c34 = arith.constant 34 : index
    %270 = memref.load %arg1[%c34] : memref<196xf32, #tpu.memory_space<smem>>
    %271 = vector.broadcast %270 : f32 to vector<16x128xf32>
    %272 = arith.mulf %269, %271 : vector<16x128xf32>
    %273 = arith.addf %267, %272 : vector<16x128xf32>
    %274 = vector.extract_strided_slice %4 {offsets = [2, 0, 0], sizes = [1, 16, 128], strides = [1, 1, 1]} : vector<4x16x128xf32> to vector<1x16x128xf32>
    %275 = vector.shape_cast %274 : vector<1x16x128xf32> to vector<16x128xf32>
    %c62 = arith.constant 62 : index
    %276 = memref.load %arg1[%c62] : memref<196xf32, #tpu.memory_space<smem>>
    %277 = vector.broadcast %276 : f32 to vector<16x128xf32>
    %278 = arith.mulf %275, %277 : vector<16x128xf32>
    %279 = arith.addf %273, %278 : vector<16x128xf32>
    %280 = vector.extract_strided_slice %5 {offsets = [2, 0, 0], sizes = [1, 16, 128], strides = [1, 1, 1]} : vector<4x16x128xf32> to vector<1x16x128xf32>
    %281 = vector.shape_cast %280 : vector<1x16x128xf32> to vector<16x128xf32>
    %c90 = arith.constant 90 : index
    %282 = memref.load %arg1[%c90] : memref<196xf32, #tpu.memory_space<smem>>
    %283 = vector.broadcast %282 : f32 to vector<16x128xf32>
    %284 = arith.mulf %281, %283 : vector<16x128xf32>
    %285 = arith.addf %279, %284 : vector<16x128xf32>
    %286 = vector.extract_strided_slice %6 {offsets = [2, 0, 0], sizes = [1, 16, 128], strides = [1, 1, 1]} : vector<4x16x128xf32> to vector<1x16x128xf32>
    %287 = vector.shape_cast %286 : vector<1x16x128xf32> to vector<16x128xf32>
    %c118 = arith.constant 118 : index
    %288 = memref.load %arg1[%c118] : memref<196xf32, #tpu.memory_space<smem>>
    %289 = vector.broadcast %288 : f32 to vector<16x128xf32>
    %290 = arith.mulf %287, %289 : vector<16x128xf32>
    %291 = arith.addf %285, %290 : vector<16x128xf32>
    %292 = vector.extract_strided_slice %7 {offsets = [2, 0, 0], sizes = [1, 16, 128], strides = [1, 1, 1]} : vector<4x16x128xf32> to vector<1x16x128xf32>
    %293 = vector.shape_cast %292 : vector<1x16x128xf32> to vector<16x128xf32>
    %c146 = arith.constant 146 : index
    %294 = memref.load %arg1[%c146] : memref<196xf32, #tpu.memory_space<smem>>
    %295 = vector.broadcast %294 : f32 to vector<16x128xf32>
    %296 = arith.mulf %293, %295 : vector<16x128xf32>
    %297 = arith.addf %291, %296 : vector<16x128xf32>
    %298 = vector.extract_strided_slice %8 {offsets = [2, 0, 0], sizes = [1, 16, 128], strides = [1, 1, 1]} : vector<4x16x128xf32> to vector<1x16x128xf32>
    %299 = vector.shape_cast %298 : vector<1x16x128xf32> to vector<16x128xf32>
    %c174 = arith.constant 174 : index
    %300 = memref.load %arg1[%c174] : memref<196xf32, #tpu.memory_space<smem>>
    %301 = vector.broadcast %300 : f32 to vector<16x128xf32>
    %302 = arith.mulf %299, %301 : vector<16x128xf32>
    %303 = arith.addf %297, %302 : vector<16x128xf32>
    %c5_i32_8 = arith.constant 5 : i32
    %304 = tpu.dynamic_rotate %303 by %c5_i32_8 dim 1 : vector<16x128xf32>, i32 -> vector<16x128xf32>
    %305 = arith.addf %134, %304 : vector<16x128xf32>
    %306 = vector.extract_strided_slice %2 {offsets = [3, 0, 0], sizes = [1, 16, 128], strides = [1, 1, 1]} : vector<4x16x128xf32> to vector<1x16x128xf32>
    %307 = vector.shape_cast %306 : vector<1x16x128xf32> to vector<16x128xf32>
    %c7 = arith.constant 7 : index
    %308 = memref.load %arg1[%c7] : memref<196xf32, #tpu.memory_space<smem>>
    %309 = vector.broadcast %308 : f32 to vector<16x128xf32>
    %310 = arith.mulf %307, %309 : vector<16x128xf32>
    %311 = vector.extract_strided_slice %3 {offsets = [3, 0, 0], sizes = [1, 16, 128], strides = [1, 1, 1]} : vector<4x16x128xf32> to vector<1x16x128xf32>
    %312 = vector.shape_cast %311 : vector<1x16x128xf32> to vector<16x128xf32>
    %c35 = arith.constant 35 : index
    %313 = memref.load %arg1[%c35] : memref<196xf32, #tpu.memory_space<smem>>
    %314 = vector.broadcast %313 : f32 to vector<16x128xf32>
    %315 = arith.mulf %312, %314 : vector<16x128xf32>
    %316 = arith.addf %310, %315 : vector<16x128xf32>
    %317 = vector.extract_strided_slice %4 {offsets = [3, 0, 0], sizes = [1, 16, 128], strides = [1, 1, 1]} : vector<4x16x128xf32> to vector<1x16x128xf32>
    %318 = vector.shape_cast %317 : vector<1x16x128xf32> to vector<16x128xf32>
    %c63 = arith.constant 63 : index
    %319 = memref.load %arg1[%c63] : memref<196xf32, #tpu.memory_space<smem>>
    %320 = vector.broadcast %319 : f32 to vector<16x128xf32>
    %321 = arith.mulf %318, %320 : vector<16x128xf32>
    %322 = arith.addf %316, %321 : vector<16x128xf32>
    %323 = vector.extract_strided_slice %5 {offsets = [3, 0, 0], sizes = [1, 16, 128], strides = [1, 1, 1]} : vector<4x16x128xf32> to vector<1x16x128xf32>
    %324 = vector.shape_cast %323 : vector<1x16x128xf32> to vector<16x128xf32>
    %c91 = arith.constant 91 : index
    %325 = memref.load %arg1[%c91] : memref<196xf32, #tpu.memory_space<smem>>
    %326 = vector.broadcast %325 : f32 to vector<16x128xf32>
    %327 = arith.mulf %324, %326 : vector<16x128xf32>
    %328 = arith.addf %322, %327 : vector<16x128xf32>
    %329 = vector.extract_strided_slice %6 {offsets = [3, 0, 0], sizes = [1, 16, 128], strides = [1, 1, 1]} : vector<4x16x128xf32> to vector<1x16x128xf32>
    %330 = vector.shape_cast %329 : vector<1x16x128xf32> to vector<16x128xf32>
    %c119 = arith.constant 119 : index
    %331 = memref.load %arg1[%c119] : memref<196xf32, #tpu.memory_space<smem>>
    %332 = vector.broadcast %331 : f32 to vector<16x128xf32>
    %333 = arith.mulf %330, %332 : vector<16x128xf32>
    %334 = arith.addf %328, %333 : vector<16x128xf32>
    %335 = vector.extract_strided_slice %7 {offsets = [3, 0, 0], sizes = [1, 16, 128], strides = [1, 1, 1]} : vector<4x16x128xf32> to vector<1x16x128xf32>
    %336 = vector.shape_cast %335 : vector<1x16x128xf32> to vector<16x128xf32>
    %c147 = arith.constant 147 : index
    %337 = memref.load %arg1[%c147] : memref<196xf32, #tpu.memory_space<smem>>
    %338 = vector.broadcast %337 : f32 to vector<16x128xf32>
    %339 = arith.mulf %336, %338 : vector<16x128xf32>
    %340 = arith.addf %334, %339 : vector<16x128xf32>
    %341 = vector.extract_strided_slice %8 {offsets = [3, 0, 0], sizes = [1, 16, 128], strides = [1, 1, 1]} : vector<4x16x128xf32> to vector<1x16x128xf32>
    %342 = vector.shape_cast %341 : vector<1x16x128xf32> to vector<16x128xf32>
    %c175 = arith.constant 175 : index
    %343 = memref.load %arg1[%c175] : memref<196xf32, #tpu.memory_space<smem>>
    %344 = vector.broadcast %343 : f32 to vector<16x128xf32>
    %345 = arith.mulf %342, %344 : vector<16x128xf32>
    %346 = arith.addf %340, %345 : vector<16x128xf32>
    %c5_i32_9 = arith.constant 5 : i32
    %347 = tpu.dynamic_rotate %346 by %c5_i32_9 dim 1 : vector<16x128xf32>, i32 -> vector<16x128xf32>
    %348 = arith.addf %176, %347 : vector<16x128xf32>
    %349 = vector.extract_strided_slice %2 {offsets = [0, 0, 0], sizes = [1, 16, 128], strides = [1, 1, 1]} : vector<4x16x128xf32> to vector<1x16x128xf32>
    %350 = vector.shape_cast %349 : vector<1x16x128xf32> to vector<16x128xf32>
    %c8 = arith.constant 8 : index
    %351 = memref.load %arg1[%c8] : memref<196xf32, #tpu.memory_space<smem>>
    %352 = vector.broadcast %351 : f32 to vector<16x128xf32>
    %353 = arith.mulf %350, %352 : vector<16x128xf32>
    %354 = vector.extract_strided_slice %3 {offsets = [0, 0, 0], sizes = [1, 16, 128], strides = [1, 1, 1]} : vector<4x16x128xf32> to vector<1x16x128xf32>
    %355 = vector.shape_cast %354 : vector<1x16x128xf32> to vector<16x128xf32>
    %c36 = arith.constant 36 : index
    %356 = memref.load %arg1[%c36] : memref<196xf32, #tpu.memory_space<smem>>
    %357 = vector.broadcast %356 : f32 to vector<16x128xf32>
    %358 = arith.mulf %355, %357 : vector<16x128xf32>
    %359 = arith.addf %353, %358 : vector<16x128xf32>
    %360 = vector.extract_strided_slice %4 {offsets = [0, 0, 0], sizes = [1, 16, 128], strides = [1, 1, 1]} : vector<4x16x128xf32> to vector<1x16x128xf32>
    %361 = vector.shape_cast %360 : vector<1x16x128xf32> to vector<16x128xf32>
    %c64 = arith.constant 64 : index
    %362 = memref.load %arg1[%c64] : memref<196xf32, #tpu.memory_space<smem>>
    %363 = vector.broadcast %362 : f32 to vector<16x128xf32>
    %364 = arith.mulf %361, %363 : vector<16x128xf32>
    %365 = arith.addf %359, %364 : vector<16x128xf32>
    %366 = vector.extract_strided_slice %5 {offsets = [0, 0, 0], sizes = [1, 16, 128], strides = [1, 1, 1]} : vector<4x16x128xf32> to vector<1x16x128xf32>
    %367 = vector.shape_cast %366 : vector<1x16x128xf32> to vector<16x128xf32>
    %c92 = arith.constant 92 : index
    %368 = memref.load %arg1[%c92] : memref<196xf32, #tpu.memory_space<smem>>
    %369 = vector.broadcast %368 : f32 to vector<16x128xf32>
    %370 = arith.mulf %367, %369 : vector<16x128xf32>
    %371 = arith.addf %365, %370 : vector<16x128xf32>
    %372 = vector.extract_strided_slice %6 {offsets = [0, 0, 0], sizes = [1, 16, 128], strides = [1, 1, 1]} : vector<4x16x128xf32> to vector<1x16x128xf32>
    %373 = vector.shape_cast %372 : vector<1x16x128xf32> to vector<16x128xf32>
    %c120 = arith.constant 120 : index
    %374 = memref.load %arg1[%c120] : memref<196xf32, #tpu.memory_space<smem>>
    %375 = vector.broadcast %374 : f32 to vector<16x128xf32>
    %376 = arith.mulf %373, %375 : vector<16x128xf32>
    %377 = arith.addf %371, %376 : vector<16x128xf32>
    %378 = vector.extract_strided_slice %7 {offsets = [0, 0, 0], sizes = [1, 16, 128], strides = [1, 1, 1]} : vector<4x16x128xf32> to vector<1x16x128xf32>
    %379 = vector.shape_cast %378 : vector<1x16x128xf32> to vector<16x128xf32>
    %c148 = arith.constant 148 : index
    %380 = memref.load %arg1[%c148] : memref<196xf32, #tpu.memory_space<smem>>
    %381 = vector.broadcast %380 : f32 to vector<16x128xf32>
    %382 = arith.mulf %379, %381 : vector<16x128xf32>
    %383 = arith.addf %377, %382 : vector<16x128xf32>
    %384 = vector.extract_strided_slice %8 {offsets = [0, 0, 0], sizes = [1, 16, 128], strides = [1, 1, 1]} : vector<4x16x128xf32> to vector<1x16x128xf32>
    %385 = vector.shape_cast %384 : vector<1x16x128xf32> to vector<16x128xf32>
    %c176 = arith.constant 176 : index
    %386 = memref.load %arg1[%c176] : memref<196xf32, #tpu.memory_space<smem>>
    %387 = vector.broadcast %386 : f32 to vector<16x128xf32>
    %388 = arith.mulf %385, %387 : vector<16x128xf32>
    %389 = arith.addf %383, %388 : vector<16x128xf32>
    %c4_i32 = arith.constant 4 : i32
    %390 = tpu.dynamic_rotate %389 by %c4_i32 dim 1 : vector<16x128xf32>, i32 -> vector<16x128xf32>
    %391 = arith.addf %219, %390 : vector<16x128xf32>
    %392 = vector.extract_strided_slice %2 {offsets = [1, 0, 0], sizes = [1, 16, 128], strides = [1, 1, 1]} : vector<4x16x128xf32> to vector<1x16x128xf32>
    %393 = vector.shape_cast %392 : vector<1x16x128xf32> to vector<16x128xf32>
    %c9 = arith.constant 9 : index
    %394 = memref.load %arg1[%c9] : memref<196xf32, #tpu.memory_space<smem>>
    %395 = vector.broadcast %394 : f32 to vector<16x128xf32>
    %396 = arith.mulf %393, %395 : vector<16x128xf32>
    %397 = vector.extract_strided_slice %3 {offsets = [1, 0, 0], sizes = [1, 16, 128], strides = [1, 1, 1]} : vector<4x16x128xf32> to vector<1x16x128xf32>
    %398 = vector.shape_cast %397 : vector<1x16x128xf32> to vector<16x128xf32>
    %c37 = arith.constant 37 : index
    %399 = memref.load %arg1[%c37] : memref<196xf32, #tpu.memory_space<smem>>
    %400 = vector.broadcast %399 : f32 to vector<16x128xf32>
    %401 = arith.mulf %398, %400 : vector<16x128xf32>
    %402 = arith.addf %396, %401 : vector<16x128xf32>
    %403 = vector.extract_strided_slice %4 {offsets = [1, 0, 0], sizes = [1, 16, 128], strides = [1, 1, 1]} : vector<4x16x128xf32> to vector<1x16x128xf32>
    %404 = vector.shape_cast %403 : vector<1x16x128xf32> to vector<16x128xf32>
    %c65 = arith.constant 65 : index
    %405 = memref.load %arg1[%c65] : memref<196xf32, #tpu.memory_space<smem>>
    %406 = vector.broadcast %405 : f32 to vector<16x128xf32>
    %407 = arith.mulf %404, %406 : vector<16x128xf32>
    %408 = arith.addf %402, %407 : vector<16x128xf32>
    %409 = vector.extract_strided_slice %5 {offsets = [1, 0, 0], sizes = [1, 16, 128], strides = [1, 1, 1]} : vector<4x16x128xf32> to vector<1x16x128xf32>
    %410 = vector.shape_cast %409 : vector<1x16x128xf32> to vector<16x128xf32>
    %c93 = arith.constant 93 : index
    %411 = memref.load %arg1[%c93] : memref<196xf32, #tpu.memory_space<smem>>
    %412 = vector.broadcast %411 : f32 to vector<16x128xf32>
    %413 = arith.mulf %410, %412 : vector<16x128xf32>
    %414 = arith.addf %408, %413 : vector<16x128xf32>
    %415 = vector.extract_strided_slice %6 {offsets = [1, 0, 0], sizes = [1, 16, 128], strides = [1, 1, 1]} : vector<4x16x128xf32> to vector<1x16x128xf32>
    %416 = vector.shape_cast %415 : vector<1x16x128xf32> to vector<16x128xf32>
    %c121 = arith.constant 121 : index
    %417 = memref.load %arg1[%c121] : memref<196xf32, #tpu.memory_space<smem>>
    %418 = vector.broadcast %417 : f32 to vector<16x128xf32>
    %419 = arith.mulf %416, %418 : vector<16x128xf32>
    %420 = arith.addf %414, %419 : vector<16x128xf32>
    %421 = vector.extract_strided_slice %7 {offsets = [1, 0, 0], sizes = [1, 16, 128], strides = [1, 1, 1]} : vector<4x16x128xf32> to vector<1x16x128xf32>
    %422 = vector.shape_cast %421 : vector<1x16x128xf32> to vector<16x128xf32>
    %c149 = arith.constant 149 : index
    %423 = memref.load %arg1[%c149] : memref<196xf32, #tpu.memory_space<smem>>
    %424 = vector.broadcast %423 : f32 to vector<16x128xf32>
    %425 = arith.mulf %422, %424 : vector<16x128xf32>
    %426 = arith.addf %420, %425 : vector<16x128xf32>
    %427 = vector.extract_strided_slice %8 {offsets = [1, 0, 0], sizes = [1, 16, 128], strides = [1, 1, 1]} : vector<4x16x128xf32> to vector<1x16x128xf32>
    %428 = vector.shape_cast %427 : vector<1x16x128xf32> to vector<16x128xf32>
    %c177 = arith.constant 177 : index
    %429 = memref.load %arg1[%c177] : memref<196xf32, #tpu.memory_space<smem>>
    %430 = vector.broadcast %429 : f32 to vector<16x128xf32>
    %431 = arith.mulf %428, %430 : vector<16x128xf32>
    %432 = arith.addf %426, %431 : vector<16x128xf32>
    %c4_i32_10 = arith.constant 4 : i32
    %433 = tpu.dynamic_rotate %432 by %c4_i32_10 dim 1 : vector<16x128xf32>, i32 -> vector<16x128xf32>
    %434 = arith.addf %262, %433 : vector<16x128xf32>
    %435 = vector.extract_strided_slice %2 {offsets = [2, 0, 0], sizes = [1, 16, 128], strides = [1, 1, 1]} : vector<4x16x128xf32> to vector<1x16x128xf32>
    %436 = vector.shape_cast %435 : vector<1x16x128xf32> to vector<16x128xf32>
    %c10 = arith.constant 10 : index
    %437 = memref.load %arg1[%c10] : memref<196xf32, #tpu.memory_space<smem>>
    %438 = vector.broadcast %437 : f32 to vector<16x128xf32>
    %439 = arith.mulf %436, %438 : vector<16x128xf32>
    %440 = vector.extract_strided_slice %3 {offsets = [2, 0, 0], sizes = [1, 16, 128], strides = [1, 1, 1]} : vector<4x16x128xf32> to vector<1x16x128xf32>
    %441 = vector.shape_cast %440 : vector<1x16x128xf32> to vector<16x128xf32>
    %c38 = arith.constant 38 : index
    %442 = memref.load %arg1[%c38] : memref<196xf32, #tpu.memory_space<smem>>
    %443 = vector.broadcast %442 : f32 to vector<16x128xf32>
    %444 = arith.mulf %441, %443 : vector<16x128xf32>
    %445 = arith.addf %439, %444 : vector<16x128xf32>
    %446 = vector.extract_strided_slice %4 {offsets = [2, 0, 0], sizes = [1, 16, 128], strides = [1, 1, 1]} : vector<4x16x128xf32> to vector<1x16x128xf32>
    %447 = vector.shape_cast %446 : vector<1x16x128xf32> to vector<16x128xf32>
    %c66 = arith.constant 66 : index
    %448 = memref.load %arg1[%c66] : memref<196xf32, #tpu.memory_space<smem>>
    %449 = vector.broadcast %448 : f32 to vector<16x128xf32>
    %450 = arith.mulf %447, %449 : vector<16x128xf32>
    %451 = arith.addf %445, %450 : vector<16x128xf32>
    %452 = vector.extract_strided_slice %5 {offsets = [2, 0, 0], sizes = [1, 16, 128], strides = [1, 1, 1]} : vector<4x16x128xf32> to vector<1x16x128xf32>
    %453 = vector.shape_cast %452 : vector<1x16x128xf32> to vector<16x128xf32>
    %c94 = arith.constant 94 : index
    %454 = memref.load %arg1[%c94] : memref<196xf32, #tpu.memory_space<smem>>
    %455 = vector.broadcast %454 : f32 to vector<16x128xf32>
    %456 = arith.mulf %453, %455 : vector<16x128xf32>
    %457 = arith.addf %451, %456 : vector<16x128xf32>
    %458 = vector.extract_strided_slice %6 {offsets = [2, 0, 0], sizes = [1, 16, 128], strides = [1, 1, 1]} : vector<4x16x128xf32> to vector<1x16x128xf32>
    %459 = vector.shape_cast %458 : vector<1x16x128xf32> to vector<16x128xf32>
    %c122 = arith.constant 122 : index
    %460 = memref.load %arg1[%c122] : memref<196xf32, #tpu.memory_space<smem>>
    %461 = vector.broadcast %460 : f32 to vector<16x128xf32>
    %462 = arith.mulf %459, %461 : vector<16x128xf32>
    %463 = arith.addf %457, %462 : vector<16x128xf32>
    %464 = vector.extract_strided_slice %7 {offsets = [2, 0, 0], sizes = [1, 16, 128], strides = [1, 1, 1]} : vector<4x16x128xf32> to vector<1x16x128xf32>
    %465 = vector.shape_cast %464 : vector<1x16x128xf32> to vector<16x128xf32>
    %c150 = arith.constant 150 : index
    %466 = memref.load %arg1[%c150] : memref<196xf32, #tpu.memory_space<smem>>
    %467 = vector.broadcast %466 : f32 to vector<16x128xf32>
    %468 = arith.mulf %465, %467 : vector<16x128xf32>
    %469 = arith.addf %463, %468 : vector<16x128xf32>
    %470 = vector.extract_strided_slice %8 {offsets = [2, 0, 0], sizes = [1, 16, 128], strides = [1, 1, 1]} : vector<4x16x128xf32> to vector<1x16x128xf32>
    %471 = vector.shape_cast %470 : vector<1x16x128xf32> to vector<16x128xf32>
    %c178 = arith.constant 178 : index
    %472 = memref.load %arg1[%c178] : memref<196xf32, #tpu.memory_space<smem>>
    %473 = vector.broadcast %472 : f32 to vector<16x128xf32>
    %474 = arith.mulf %471, %473 : vector<16x128xf32>
    %475 = arith.addf %469, %474 : vector<16x128xf32>
    %c4_i32_11 = arith.constant 4 : i32
    %476 = tpu.dynamic_rotate %475 by %c4_i32_11 dim 1 : vector<16x128xf32>, i32 -> vector<16x128xf32>
    %477 = arith.addf %305, %476 : vector<16x128xf32>
    %478 = vector.extract_strided_slice %2 {offsets = [3, 0, 0], sizes = [1, 16, 128], strides = [1, 1, 1]} : vector<4x16x128xf32> to vector<1x16x128xf32>
    %479 = vector.shape_cast %478 : vector<1x16x128xf32> to vector<16x128xf32>
    %c11 = arith.constant 11 : index
    %480 = memref.load %arg1[%c11] : memref<196xf32, #tpu.memory_space<smem>>
    %481 = vector.broadcast %480 : f32 to vector<16x128xf32>
    %482 = arith.mulf %479, %481 : vector<16x128xf32>
    %483 = vector.extract_strided_slice %3 {offsets = [3, 0, 0], sizes = [1, 16, 128], strides = [1, 1, 1]} : vector<4x16x128xf32> to vector<1x16x128xf32>
    %484 = vector.shape_cast %483 : vector<1x16x128xf32> to vector<16x128xf32>
    %c39 = arith.constant 39 : index
    %485 = memref.load %arg1[%c39] : memref<196xf32, #tpu.memory_space<smem>>
    %486 = vector.broadcast %485 : f32 to vector<16x128xf32>
    %487 = arith.mulf %484, %486 : vector<16x128xf32>
    %488 = arith.addf %482, %487 : vector<16x128xf32>
    %489 = vector.extract_strided_slice %4 {offsets = [3, 0, 0], sizes = [1, 16, 128], strides = [1, 1, 1]} : vector<4x16x128xf32> to vector<1x16x128xf32>
    %490 = vector.shape_cast %489 : vector<1x16x128xf32> to vector<16x128xf32>
    %c67 = arith.constant 67 : index
    %491 = memref.load %arg1[%c67] : memref<196xf32, #tpu.memory_space<smem>>
    %492 = vector.broadcast %491 : f32 to vector<16x128xf32>
    %493 = arith.mulf %490, %492 : vector<16x128xf32>
    %494 = arith.addf %488, %493 : vector<16x128xf32>
    %495 = vector.extract_strided_slice %5 {offsets = [3, 0, 0], sizes = [1, 16, 128], strides = [1, 1, 1]} : vector<4x16x128xf32> to vector<1x16x128xf32>
    %496 = vector.shape_cast %495 : vector<1x16x128xf32> to vector<16x128xf32>
    %c95 = arith.constant 95 : index
    %497 = memref.load %arg1[%c95] : memref<196xf32, #tpu.memory_space<smem>>
    %498 = vector.broadcast %497 : f32 to vector<16x128xf32>
    %499 = arith.mulf %496, %498 : vector<16x128xf32>
    %500 = arith.addf %494, %499 : vector<16x128xf32>
    %501 = vector.extract_strided_slice %6 {offsets = [3, 0, 0], sizes = [1, 16, 128], strides = [1, 1, 1]} : vector<4x16x128xf32> to vector<1x16x128xf32>
    %502 = vector.shape_cast %501 : vector<1x16x128xf32> to vector<16x128xf32>
    %c123 = arith.constant 123 : index
    %503 = memref.load %arg1[%c123] : memref<196xf32, #tpu.memory_space<smem>>
    %504 = vector.broadcast %503 : f32 to vector<16x128xf32>
    %505 = arith.mulf %502, %504 : vector<16x128xf32>
    %506 = arith.addf %500, %505 : vector<16x128xf32>
    %507 = vector.extract_strided_slice %7 {offsets = [3, 0, 0], sizes = [1, 16, 128], strides = [1, 1, 1]} : vector<4x16x128xf32> to vector<1x16x128xf32>
    %508 = vector.shape_cast %507 : vector<1x16x128xf32> to vector<16x128xf32>
    %c151 = arith.constant 151 : index
    %509 = memref.load %arg1[%c151] : memref<196xf32, #tpu.memory_space<smem>>
    %510 = vector.broadcast %509 : f32 to vector<16x128xf32>
    %511 = arith.mulf %508, %510 : vector<16x128xf32>
    %512 = arith.addf %506, %511 : vector<16x128xf32>
    %513 = vector.extract_strided_slice %8 {offsets = [3, 0, 0], sizes = [1, 16, 128], strides = [1, 1, 1]} : vector<4x16x128xf32> to vector<1x16x128xf32>
    %514 = vector.shape_cast %513 : vector<1x16x128xf32> to vector<16x128xf32>
    %c179 = arith.constant 179 : index
    %515 = memref.load %arg1[%c179] : memref<196xf32, #tpu.memory_space<smem>>
    %516 = vector.broadcast %515 : f32 to vector<16x128xf32>
    %517 = arith.mulf %514, %516 : vector<16x128xf32>
    %518 = arith.addf %512, %517 : vector<16x128xf32>
    %c4_i32_12 = arith.constant 4 : i32
    %519 = tpu.dynamic_rotate %518 by %c4_i32_12 dim 1 : vector<16x128xf32>, i32 -> vector<16x128xf32>
    %520 = arith.addf %348, %519 : vector<16x128xf32>
    %521 = vector.extract_strided_slice %2 {offsets = [0, 0, 0], sizes = [1, 16, 128], strides = [1, 1, 1]} : vector<4x16x128xf32> to vector<1x16x128xf32>
    %522 = vector.shape_cast %521 : vector<1x16x128xf32> to vector<16x128xf32>
    %c12 = arith.constant 12 : index
    %523 = memref.load %arg1[%c12] : memref<196xf32, #tpu.memory_space<smem>>
    %524 = vector.broadcast %523 : f32 to vector<16x128xf32>
    %525 = arith.mulf %522, %524 : vector<16x128xf32>
    %526 = vector.extract_strided_slice %3 {offsets = [0, 0, 0], sizes = [1, 16, 128], strides = [1, 1, 1]} : vector<4x16x128xf32> to vector<1x16x128xf32>
    %527 = vector.shape_cast %526 : vector<1x16x128xf32> to vector<16x128xf32>
    %c40 = arith.constant 40 : index
    %528 = memref.load %arg1[%c40] : memref<196xf32, #tpu.memory_space<smem>>
    %529 = vector.broadcast %528 : f32 to vector<16x128xf32>
    %530 = arith.mulf %527, %529 : vector<16x128xf32>
    %531 = arith.addf %525, %530 : vector<16x128xf32>
    %532 = vector.extract_strided_slice %4 {offsets = [0, 0, 0], sizes = [1, 16, 128], strides = [1, 1, 1]} : vector<4x16x128xf32> to vector<1x16x128xf32>
    %533 = vector.shape_cast %532 : vector<1x16x128xf32> to vector<16x128xf32>
    %c68 = arith.constant 68 : index
    %534 = memref.load %arg1[%c68] : memref<196xf32, #tpu.memory_space<smem>>
    %535 = vector.broadcast %534 : f32 to vector<16x128xf32>
    %536 = arith.mulf %533, %535 : vector<16x128xf32>
    %537 = arith.addf %531, %536 : vector<16x128xf32>
    %538 = vector.extract_strided_slice %5 {offsets = [0, 0, 0], sizes = [1, 16, 128], strides = [1, 1, 1]} : vector<4x16x128xf32> to vector<1x16x128xf32>
    %539 = vector.shape_cast %538 : vector<1x16x128xf32> to vector<16x128xf32>
    %c96 = arith.constant 96 : index
    %540 = memref.load %arg1[%c96] : memref<196xf32, #tpu.memory_space<smem>>
    %541 = vector.broadcast %540 : f32 to vector<16x128xf32>
    %542 = arith.mulf %539, %541 : vector<16x128xf32>
    %543 = arith.addf %537, %542 : vector<16x128xf32>
    %544 = vector.extract_strided_slice %6 {offsets = [0, 0, 0], sizes = [1, 16, 128], strides = [1, 1, 1]} : vector<4x16x128xf32> to vector<1x16x128xf32>
    %545 = vector.shape_cast %544 : vector<1x16x128xf32> to vector<16x128xf32>
    %c124 = arith.constant 124 : index
    %546 = memref.load %arg1[%c124] : memref<196xf32, #tpu.memory_space<smem>>
    %547 = vector.broadcast %546 : f32 to vector<16x128xf32>
    %548 = arith.mulf %545, %547 : vector<16x128xf32>
    %549 = arith.addf %543, %548 : vector<16x128xf32>
    %550 = vector.extract_strided_slice %7 {offsets = [0, 0, 0], sizes = [1, 16, 128], strides = [1, 1, 1]} : vector<4x16x128xf32> to vector<1x16x128xf32>
    %551 = vector.shape_cast %550 : vector<1x16x128xf32> to vector<16x128xf32>
    %c152 = arith.constant 152 : index
    %552 = memref.load %arg1[%c152] : memref<196xf32, #tpu.memory_space<smem>>
    %553 = vector.broadcast %552 : f32 to vector<16x128xf32>
    %554 = arith.mulf %551, %553 : vector<16x128xf32>
    %555 = arith.addf %549, %554 : vector<16x128xf32>
    %556 = vector.extract_strided_slice %8 {offsets = [0, 0, 0], sizes = [1, 16, 128], strides = [1, 1, 1]} : vector<4x16x128xf32> to vector<1x16x128xf32>
    %557 = vector.shape_cast %556 : vector<1x16x128xf32> to vector<16x128xf32>
    %c180 = arith.constant 180 : index
    %558 = memref.load %arg1[%c180] : memref<196xf32, #tpu.memory_space<smem>>
    %559 = vector.broadcast %558 : f32 to vector<16x128xf32>
    %560 = arith.mulf %557, %559 : vector<16x128xf32>
    %561 = arith.addf %555, %560 : vector<16x128xf32>
    %c3_i32 = arith.constant 3 : i32
    %562 = tpu.dynamic_rotate %561 by %c3_i32 dim 1 : vector<16x128xf32>, i32 -> vector<16x128xf32>
    %563 = arith.addf %391, %562 : vector<16x128xf32>
    %564 = vector.extract_strided_slice %2 {offsets = [1, 0, 0], sizes = [1, 16, 128], strides = [1, 1, 1]} : vector<4x16x128xf32> to vector<1x16x128xf32>
    %565 = vector.shape_cast %564 : vector<1x16x128xf32> to vector<16x128xf32>
    %c13 = arith.constant 13 : index
    %566 = memref.load %arg1[%c13] : memref<196xf32, #tpu.memory_space<smem>>
    %567 = vector.broadcast %566 : f32 to vector<16x128xf32>
    %568 = arith.mulf %565, %567 : vector<16x128xf32>
    %569 = vector.extract_strided_slice %3 {offsets = [1, 0, 0], sizes = [1, 16, 128], strides = [1, 1, 1]} : vector<4x16x128xf32> to vector<1x16x128xf32>
    %570 = vector.shape_cast %569 : vector<1x16x128xf32> to vector<16x128xf32>
    %c41 = arith.constant 41 : index
    %571 = memref.load %arg1[%c41] : memref<196xf32, #tpu.memory_space<smem>>
    %572 = vector.broadcast %571 : f32 to vector<16x128xf32>
    %573 = arith.mulf %570, %572 : vector<16x128xf32>
    %574 = arith.addf %568, %573 : vector<16x128xf32>
    %575 = vector.extract_strided_slice %4 {offsets = [1, 0, 0], sizes = [1, 16, 128], strides = [1, 1, 1]} : vector<4x16x128xf32> to vector<1x16x128xf32>
    %576 = vector.shape_cast %575 : vector<1x16x128xf32> to vector<16x128xf32>
    %c69 = arith.constant 69 : index
    %577 = memref.load %arg1[%c69] : memref<196xf32, #tpu.memory_space<smem>>
    %578 = vector.broadcast %577 : f32 to vector<16x128xf32>
    %579 = arith.mulf %576, %578 : vector<16x128xf32>
    %580 = arith.addf %574, %579 : vector<16x128xf32>
    %581 = vector.extract_strided_slice %5 {offsets = [1, 0, 0], sizes = [1, 16, 128], strides = [1, 1, 1]} : vector<4x16x128xf32> to vector<1x16x128xf32>
    %582 = vector.shape_cast %581 : vector<1x16x128xf32> to vector<16x128xf32>
    %c97 = arith.constant 97 : index
    %583 = memref.load %arg1[%c97] : memref<196xf32, #tpu.memory_space<smem>>
    %584 = vector.broadcast %583 : f32 to vector<16x128xf32>
    %585 = arith.mulf %582, %584 : vector<16x128xf32>
    %586 = arith.addf %580, %585 : vector<16x128xf32>
    %587 = vector.extract_strided_slice %6 {offsets = [1, 0, 0], sizes = [1, 16, 128], strides = [1, 1, 1]} : vector<4x16x128xf32> to vector<1x16x128xf32>
    %588 = vector.shape_cast %587 : vector<1x16x128xf32> to vector<16x128xf32>
    %c125 = arith.constant 125 : index
    %589 = memref.load %arg1[%c125] : memref<196xf32, #tpu.memory_space<smem>>
    %590 = vector.broadcast %589 : f32 to vector<16x128xf32>
    %591 = arith.mulf %588, %590 : vector<16x128xf32>
    %592 = arith.addf %586, %591 : vector<16x128xf32>
    %593 = vector.extract_strided_slice %7 {offsets = [1, 0, 0], sizes = [1, 16, 128], strides = [1, 1, 1]} : vector<4x16x128xf32> to vector<1x16x128xf32>
    %594 = vector.shape_cast %593 : vector<1x16x128xf32> to vector<16x128xf32>
    %c153 = arith.constant 153 : index
    %595 = memref.load %arg1[%c153] : memref<196xf32, #tpu.memory_space<smem>>
    %596 = vector.broadcast %595 : f32 to vector<16x128xf32>
    %597 = arith.mulf %594, %596 : vector<16x128xf32>
    %598 = arith.addf %592, %597 : vector<16x128xf32>
    %599 = vector.extract_strided_slice %8 {offsets = [1, 0, 0], sizes = [1, 16, 128], strides = [1, 1, 1]} : vector<4x16x128xf32> to vector<1x16x128xf32>
    %600 = vector.shape_cast %599 : vector<1x16x128xf32> to vector<16x128xf32>
    %c181 = arith.constant 181 : index
    %601 = memref.load %arg1[%c181] : memref<196xf32, #tpu.memory_space<smem>>
    %602 = vector.broadcast %601 : f32 to vector<16x128xf32>
    %603 = arith.mulf %600, %602 : vector<16x128xf32>
    %604 = arith.addf %598, %603 : vector<16x128xf32>
    %c3_i32_13 = arith.constant 3 : i32
    %605 = tpu.dynamic_rotate %604 by %c3_i32_13 dim 1 : vector<16x128xf32>, i32 -> vector<16x128xf32>
    %606 = arith.addf %434, %605 : vector<16x128xf32>
    %607 = vector.extract_strided_slice %2 {offsets = [2, 0, 0], sizes = [1, 16, 128], strides = [1, 1, 1]} : vector<4x16x128xf32> to vector<1x16x128xf32>
    %608 = vector.shape_cast %607 : vector<1x16x128xf32> to vector<16x128xf32>
    %c14 = arith.constant 14 : index
    %609 = memref.load %arg1[%c14] : memref<196xf32, #tpu.memory_space<smem>>
    %610 = vector.broadcast %609 : f32 to vector<16x128xf32>
    %611 = arith.mulf %608, %610 : vector<16x128xf32>
    %612 = vector.extract_strided_slice %3 {offsets = [2, 0, 0], sizes = [1, 16, 128], strides = [1, 1, 1]} : vector<4x16x128xf32> to vector<1x16x128xf32>
    %613 = vector.shape_cast %612 : vector<1x16x128xf32> to vector<16x128xf32>
    %c42 = arith.constant 42 : index
    %614 = memref.load %arg1[%c42] : memref<196xf32, #tpu.memory_space<smem>>
    %615 = vector.broadcast %614 : f32 to vector<16x128xf32>
    %616 = arith.mulf %613, %615 : vector<16x128xf32>
    %617 = arith.addf %611, %616 : vector<16x128xf32>
    %618 = vector.extract_strided_slice %4 {offsets = [2, 0, 0], sizes = [1, 16, 128], strides = [1, 1, 1]} : vector<4x16x128xf32> to vector<1x16x128xf32>
    %619 = vector.shape_cast %618 : vector<1x16x128xf32> to vector<16x128xf32>
    %c70 = arith.constant 70 : index
    %620 = memref.load %arg1[%c70] : memref<196xf32, #tpu.memory_space<smem>>
    %621 = vector.broadcast %620 : f32 to vector<16x128xf32>
    %622 = arith.mulf %619, %621 : vector<16x128xf32>
    %623 = arith.addf %617, %622 : vector<16x128xf32>
    %624 = vector.extract_strided_slice %5 {offsets = [2, 0, 0], sizes = [1, 16, 128], strides = [1, 1, 1]} : vector<4x16x128xf32> to vector<1x16x128xf32>
    %625 = vector.shape_cast %624 : vector<1x16x128xf32> to vector<16x128xf32>
    %c98 = arith.constant 98 : index
    %626 = memref.load %arg1[%c98] : memref<196xf32, #tpu.memory_space<smem>>
    %627 = vector.broadcast %626 : f32 to vector<16x128xf32>
    %628 = arith.mulf %625, %627 : vector<16x128xf32>
    %629 = arith.addf %623, %628 : vector<16x128xf32>
    %630 = vector.extract_strided_slice %6 {offsets = [2, 0, 0], sizes = [1, 16, 128], strides = [1, 1, 1]} : vector<4x16x128xf32> to vector<1x16x128xf32>
    %631 = vector.shape_cast %630 : vector<1x16x128xf32> to vector<16x128xf32>
    %c126 = arith.constant 126 : index
    %632 = memref.load %arg1[%c126] : memref<196xf32, #tpu.memory_space<smem>>
    %633 = vector.broadcast %632 : f32 to vector<16x128xf32>
    %634 = arith.mulf %631, %633 : vector<16x128xf32>
    %635 = arith.addf %629, %634 : vector<16x128xf32>
    %636 = vector.extract_strided_slice %7 {offsets = [2, 0, 0], sizes = [1, 16, 128], strides = [1, 1, 1]} : vector<4x16x128xf32> to vector<1x16x128xf32>
    %637 = vector.shape_cast %636 : vector<1x16x128xf32> to vector<16x128xf32>
    %c154 = arith.constant 154 : index
    %638 = memref.load %arg1[%c154] : memref<196xf32, #tpu.memory_space<smem>>
    %639 = vector.broadcast %638 : f32 to vector<16x128xf32>
    %640 = arith.mulf %637, %639 : vector<16x128xf32>
    %641 = arith.addf %635, %640 : vector<16x128xf32>
    %642 = vector.extract_strided_slice %8 {offsets = [2, 0, 0], sizes = [1, 16, 128], strides = [1, 1, 1]} : vector<4x16x128xf32> to vector<1x16x128xf32>
    %643 = vector.shape_cast %642 : vector<1x16x128xf32> to vector<16x128xf32>
    %c182 = arith.constant 182 : index
    %644 = memref.load %arg1[%c182] : memref<196xf32, #tpu.memory_space<smem>>
    %645 = vector.broadcast %644 : f32 to vector<16x128xf32>
    %646 = arith.mulf %643, %645 : vector<16x128xf32>
    %647 = arith.addf %641, %646 : vector<16x128xf32>
    %c3_i32_14 = arith.constant 3 : i32
    %648 = tpu.dynamic_rotate %647 by %c3_i32_14 dim 1 : vector<16x128xf32>, i32 -> vector<16x128xf32>
    %649 = arith.addf %477, %648 : vector<16x128xf32>
    %650 = vector.extract_strided_slice %2 {offsets = [3, 0, 0], sizes = [1, 16, 128], strides = [1, 1, 1]} : vector<4x16x128xf32> to vector<1x16x128xf32>
    %651 = vector.shape_cast %650 : vector<1x16x128xf32> to vector<16x128xf32>
    %c15 = arith.constant 15 : index
    %652 = memref.load %arg1[%c15] : memref<196xf32, #tpu.memory_space<smem>>
    %653 = vector.broadcast %652 : f32 to vector<16x128xf32>
    %654 = arith.mulf %651, %653 : vector<16x128xf32>
    %655 = vector.extract_strided_slice %3 {offsets = [3, 0, 0], sizes = [1, 16, 128], strides = [1, 1, 1]} : vector<4x16x128xf32> to vector<1x16x128xf32>
    %656 = vector.shape_cast %655 : vector<1x16x128xf32> to vector<16x128xf32>
    %c43 = arith.constant 43 : index
    %657 = memref.load %arg1[%c43] : memref<196xf32, #tpu.memory_space<smem>>
    %658 = vector.broadcast %657 : f32 to vector<16x128xf32>
    %659 = arith.mulf %656, %658 : vector<16x128xf32>
    %660 = arith.addf %654, %659 : vector<16x128xf32>
    %661 = vector.extract_strided_slice %4 {offsets = [3, 0, 0], sizes = [1, 16, 128], strides = [1, 1, 1]} : vector<4x16x128xf32> to vector<1x16x128xf32>
    %662 = vector.shape_cast %661 : vector<1x16x128xf32> to vector<16x128xf32>
    %c71 = arith.constant 71 : index
    %663 = memref.load %arg1[%c71] : memref<196xf32, #tpu.memory_space<smem>>
    %664 = vector.broadcast %663 : f32 to vector<16x128xf32>
    %665 = arith.mulf %662, %664 : vector<16x128xf32>
    %666 = arith.addf %660, %665 : vector<16x128xf32>
    %667 = vector.extract_strided_slice %5 {offsets = [3, 0, 0], sizes = [1, 16, 128], strides = [1, 1, 1]} : vector<4x16x128xf32> to vector<1x16x128xf32>
    %668 = vector.shape_cast %667 : vector<1x16x128xf32> to vector<16x128xf32>
    %c99 = arith.constant 99 : index
    %669 = memref.load %arg1[%c99] : memref<196xf32, #tpu.memory_space<smem>>
    %670 = vector.broadcast %669 : f32 to vector<16x128xf32>
    %671 = arith.mulf %668, %670 : vector<16x128xf32>
    %672 = arith.addf %666, %671 : vector<16x128xf32>
    %673 = vector.extract_strided_slice %6 {offsets = [3, 0, 0], sizes = [1, 16, 128], strides = [1, 1, 1]} : vector<4x16x128xf32> to vector<1x16x128xf32>
    %674 = vector.shape_cast %673 : vector<1x16x128xf32> to vector<16x128xf32>
    %c127 = arith.constant 127 : index
    %675 = memref.load %arg1[%c127] : memref<196xf32, #tpu.memory_space<smem>>
    %676 = vector.broadcast %675 : f32 to vector<16x128xf32>
    %677 = arith.mulf %674, %676 : vector<16x128xf32>
    %678 = arith.addf %672, %677 : vector<16x128xf32>
    %679 = vector.extract_strided_slice %7 {offsets = [3, 0, 0], sizes = [1, 16, 128], strides = [1, 1, 1]} : vector<4x16x128xf32> to vector<1x16x128xf32>
    %680 = vector.shape_cast %679 : vector<1x16x128xf32> to vector<16x128xf32>
    %c155 = arith.constant 155 : index
    %681 = memref.load %arg1[%c155] : memref<196xf32, #tpu.memory_space<smem>>
    %682 = vector.broadcast %681 : f32 to vector<16x128xf32>
    %683 = arith.mulf %680, %682 : vector<16x128xf32>
    %684 = arith.addf %678, %683 : vector<16x128xf32>
    %685 = vector.extract_strided_slice %8 {offsets = [3, 0, 0], sizes = [1, 16, 128], strides = [1, 1, 1]} : vector<4x16x128xf32> to vector<1x16x128xf32>
    %686 = vector.shape_cast %685 : vector<1x16x128xf32> to vector<16x128xf32>
    %c183 = arith.constant 183 : index
    %687 = memref.load %arg1[%c183] : memref<196xf32, #tpu.memory_space<smem>>
    %688 = vector.broadcast %687 : f32 to vector<16x128xf32>
    %689 = arith.mulf %686, %688 : vector<16x128xf32>
    %690 = arith.addf %684, %689 : vector<16x128xf32>
    %c3_i32_15 = arith.constant 3 : i32
    %691 = tpu.dynamic_rotate %690 by %c3_i32_15 dim 1 : vector<16x128xf32>, i32 -> vector<16x128xf32>
    %692 = arith.addf %520, %691 : vector<16x128xf32>
    %693 = vector.extract_strided_slice %2 {offsets = [0, 0, 0], sizes = [1, 16, 128], strides = [1, 1, 1]} : vector<4x16x128xf32> to vector<1x16x128xf32>
    %694 = vector.shape_cast %693 : vector<1x16x128xf32> to vector<16x128xf32>
    %c16 = arith.constant 16 : index
    %695 = memref.load %arg1[%c16] : memref<196xf32, #tpu.memory_space<smem>>
    %696 = vector.broadcast %695 : f32 to vector<16x128xf32>
    %697 = arith.mulf %694, %696 : vector<16x128xf32>
    %698 = vector.extract_strided_slice %3 {offsets = [0, 0, 0], sizes = [1, 16, 128], strides = [1, 1, 1]} : vector<4x16x128xf32> to vector<1x16x128xf32>
    %699 = vector.shape_cast %698 : vector<1x16x128xf32> to vector<16x128xf32>
    %c44 = arith.constant 44 : index
    %700 = memref.load %arg1[%c44] : memref<196xf32, #tpu.memory_space<smem>>
    %701 = vector.broadcast %700 : f32 to vector<16x128xf32>
    %702 = arith.mulf %699, %701 : vector<16x128xf32>
    %703 = arith.addf %697, %702 : vector<16x128xf32>
    %704 = vector.extract_strided_slice %4 {offsets = [0, 0, 0], sizes = [1, 16, 128], strides = [1, 1, 1]} : vector<4x16x128xf32> to vector<1x16x128xf32>
    %705 = vector.shape_cast %704 : vector<1x16x128xf32> to vector<16x128xf32>
    %c72 = arith.constant 72 : index
    %706 = memref.load %arg1[%c72] : memref<196xf32, #tpu.memory_space<smem>>
    %707 = vector.broadcast %706 : f32 to vector<16x128xf32>
    %708 = arith.mulf %705, %707 : vector<16x128xf32>
    %709 = arith.addf %703, %708 : vector<16x128xf32>
    %710 = vector.extract_strided_slice %5 {offsets = [0, 0, 0], sizes = [1, 16, 128], strides = [1, 1, 1]} : vector<4x16x128xf32> to vector<1x16x128xf32>
    %711 = vector.shape_cast %710 : vector<1x16x128xf32> to vector<16x128xf32>
    %c100 = arith.constant 100 : index
    %712 = memref.load %arg1[%c100] : memref<196xf32, #tpu.memory_space<smem>>
    %713 = vector.broadcast %712 : f32 to vector<16x128xf32>
    %714 = arith.mulf %711, %713 : vector<16x128xf32>
    %715 = arith.addf %709, %714 : vector<16x128xf32>
    %716 = vector.extract_strided_slice %6 {offsets = [0, 0, 0], sizes = [1, 16, 128], strides = [1, 1, 1]} : vector<4x16x128xf32> to vector<1x16x128xf32>
    %717 = vector.shape_cast %716 : vector<1x16x128xf32> to vector<16x128xf32>
    %c128 = arith.constant 128 : index
    %718 = memref.load %arg1[%c128] : memref<196xf32, #tpu.memory_space<smem>>
    %719 = vector.broadcast %718 : f32 to vector<16x128xf32>
    %720 = arith.mulf %717, %719 : vector<16x128xf32>
    %721 = arith.addf %715, %720 : vector<16x128xf32>
    %722 = vector.extract_strided_slice %7 {offsets = [0, 0, 0], sizes = [1, 16, 128], strides = [1, 1, 1]} : vector<4x16x128xf32> to vector<1x16x128xf32>
    %723 = vector.shape_cast %722 : vector<1x16x128xf32> to vector<16x128xf32>
    %c156 = arith.constant 156 : index
    %724 = memref.load %arg1[%c156] : memref<196xf32, #tpu.memory_space<smem>>
    %725 = vector.broadcast %724 : f32 to vector<16x128xf32>
    %726 = arith.mulf %723, %725 : vector<16x128xf32>
    %727 = arith.addf %721, %726 : vector<16x128xf32>
    %728 = vector.extract_strided_slice %8 {offsets = [0, 0, 0], sizes = [1, 16, 128], strides = [1, 1, 1]} : vector<4x16x128xf32> to vector<1x16x128xf32>
    %729 = vector.shape_cast %728 : vector<1x16x128xf32> to vector<16x128xf32>
    %c184 = arith.constant 184 : index
    %730 = memref.load %arg1[%c184] : memref<196xf32, #tpu.memory_space<smem>>
    %731 = vector.broadcast %730 : f32 to vector<16x128xf32>
    %732 = arith.mulf %729, %731 : vector<16x128xf32>
    %733 = arith.addf %727, %732 : vector<16x128xf32>
    %c2_i32 = arith.constant 2 : i32
    %734 = tpu.dynamic_rotate %733 by %c2_i32 dim 1 : vector<16x128xf32>, i32 -> vector<16x128xf32>
    %735 = arith.addf %563, %734 : vector<16x128xf32>
    %736 = vector.extract_strided_slice %2 {offsets = [1, 0, 0], sizes = [1, 16, 128], strides = [1, 1, 1]} : vector<4x16x128xf32> to vector<1x16x128xf32>
    %737 = vector.shape_cast %736 : vector<1x16x128xf32> to vector<16x128xf32>
    %c17 = arith.constant 17 : index
    %738 = memref.load %arg1[%c17] : memref<196xf32, #tpu.memory_space<smem>>
    %739 = vector.broadcast %738 : f32 to vector<16x128xf32>
    %740 = arith.mulf %737, %739 : vector<16x128xf32>
    %741 = vector.extract_strided_slice %3 {offsets = [1, 0, 0], sizes = [1, 16, 128], strides = [1, 1, 1]} : vector<4x16x128xf32> to vector<1x16x128xf32>
    %742 = vector.shape_cast %741 : vector<1x16x128xf32> to vector<16x128xf32>
    %c45 = arith.constant 45 : index
    %743 = memref.load %arg1[%c45] : memref<196xf32, #tpu.memory_space<smem>>
    %744 = vector.broadcast %743 : f32 to vector<16x128xf32>
    %745 = arith.mulf %742, %744 : vector<16x128xf32>
    %746 = arith.addf %740, %745 : vector<16x128xf32>
    %747 = vector.extract_strided_slice %4 {offsets = [1, 0, 0], sizes = [1, 16, 128], strides = [1, 1, 1]} : vector<4x16x128xf32> to vector<1x16x128xf32>
    %748 = vector.shape_cast %747 : vector<1x16x128xf32> to vector<16x128xf32>
    %c73 = arith.constant 73 : index
    %749 = memref.load %arg1[%c73] : memref<196xf32, #tpu.memory_space<smem>>
    %750 = vector.broadcast %749 : f32 to vector<16x128xf32>
    %751 = arith.mulf %748, %750 : vector<16x128xf32>
    %752 = arith.addf %746, %751 : vector<16x128xf32>
    %753 = vector.extract_strided_slice %5 {offsets = [1, 0, 0], sizes = [1, 16, 128], strides = [1, 1, 1]} : vector<4x16x128xf32> to vector<1x16x128xf32>
    %754 = vector.shape_cast %753 : vector<1x16x128xf32> to vector<16x128xf32>
    %c101 = arith.constant 101 : index
    %755 = memref.load %arg1[%c101] : memref<196xf32, #tpu.memory_space<smem>>
    %756 = vector.broadcast %755 : f32 to vector<16x128xf32>
    %757 = arith.mulf %754, %756 : vector<16x128xf32>
    %758 = arith.addf %752, %757 : vector<16x128xf32>
    %759 = vector.extract_strided_slice %6 {offsets = [1, 0, 0], sizes = [1, 16, 128], strides = [1, 1, 1]} : vector<4x16x128xf32> to vector<1x16x128xf32>
    %760 = vector.shape_cast %759 : vector<1x16x128xf32> to vector<16x128xf32>
    %c129 = arith.constant 129 : index
    %761 = memref.load %arg1[%c129] : memref<196xf32, #tpu.memory_space<smem>>
    %762 = vector.broadcast %761 : f32 to vector<16x128xf32>
    %763 = arith.mulf %760, %762 : vector<16x128xf32>
    %764 = arith.addf %758, %763 : vector<16x128xf32>
    %765 = vector.extract_strided_slice %7 {offsets = [1, 0, 0], sizes = [1, 16, 128], strides = [1, 1, 1]} : vector<4x16x128xf32> to vector<1x16x128xf32>
    %766 = vector.shape_cast %765 : vector<1x16x128xf32> to vector<16x128xf32>
    %c157 = arith.constant 157 : index
    %767 = memref.load %arg1[%c157] : memref<196xf32, #tpu.memory_space<smem>>
    %768 = vector.broadcast %767 : f32 to vector<16x128xf32>
    %769 = arith.mulf %766, %768 : vector<16x128xf32>
    %770 = arith.addf %764, %769 : vector<16x128xf32>
    %771 = vector.extract_strided_slice %8 {offsets = [1, 0, 0], sizes = [1, 16, 128], strides = [1, 1, 1]} : vector<4x16x128xf32> to vector<1x16x128xf32>
    %772 = vector.shape_cast %771 : vector<1x16x128xf32> to vector<16x128xf32>
    %c185 = arith.constant 185 : index
    %773 = memref.load %arg1[%c185] : memref<196xf32, #tpu.memory_space<smem>>
    %774 = vector.broadcast %773 : f32 to vector<16x128xf32>
    %775 = arith.mulf %772, %774 : vector<16x128xf32>
    %776 = arith.addf %770, %775 : vector<16x128xf32>
    %c2_i32_16 = arith.constant 2 : i32
    %777 = tpu.dynamic_rotate %776 by %c2_i32_16 dim 1 : vector<16x128xf32>, i32 -> vector<16x128xf32>
    %778 = arith.addf %606, %777 : vector<16x128xf32>
    %779 = vector.extract_strided_slice %2 {offsets = [2, 0, 0], sizes = [1, 16, 128], strides = [1, 1, 1]} : vector<4x16x128xf32> to vector<1x16x128xf32>
    %780 = vector.shape_cast %779 : vector<1x16x128xf32> to vector<16x128xf32>
    %c18 = arith.constant 18 : index
    %781 = memref.load %arg1[%c18] : memref<196xf32, #tpu.memory_space<smem>>
    %782 = vector.broadcast %781 : f32 to vector<16x128xf32>
    %783 = arith.mulf %780, %782 : vector<16x128xf32>
    %784 = vector.extract_strided_slice %3 {offsets = [2, 0, 0], sizes = [1, 16, 128], strides = [1, 1, 1]} : vector<4x16x128xf32> to vector<1x16x128xf32>
    %785 = vector.shape_cast %784 : vector<1x16x128xf32> to vector<16x128xf32>
    %c46 = arith.constant 46 : index
    %786 = memref.load %arg1[%c46] : memref<196xf32, #tpu.memory_space<smem>>
    %787 = vector.broadcast %786 : f32 to vector<16x128xf32>
    %788 = arith.mulf %785, %787 : vector<16x128xf32>
    %789 = arith.addf %783, %788 : vector<16x128xf32>
    %790 = vector.extract_strided_slice %4 {offsets = [2, 0, 0], sizes = [1, 16, 128], strides = [1, 1, 1]} : vector<4x16x128xf32> to vector<1x16x128xf32>
    %791 = vector.shape_cast %790 : vector<1x16x128xf32> to vector<16x128xf32>
    %c74 = arith.constant 74 : index
    %792 = memref.load %arg1[%c74] : memref<196xf32, #tpu.memory_space<smem>>
    %793 = vector.broadcast %792 : f32 to vector<16x128xf32>
    %794 = arith.mulf %791, %793 : vector<16x128xf32>
    %795 = arith.addf %789, %794 : vector<16x128xf32>
    %796 = vector.extract_strided_slice %5 {offsets = [2, 0, 0], sizes = [1, 16, 128], strides = [1, 1, 1]} : vector<4x16x128xf32> to vector<1x16x128xf32>
    %797 = vector.shape_cast %796 : vector<1x16x128xf32> to vector<16x128xf32>
    %c102 = arith.constant 102 : index
    %798 = memref.load %arg1[%c102] : memref<196xf32, #tpu.memory_space<smem>>
    %799 = vector.broadcast %798 : f32 to vector<16x128xf32>
    %800 = arith.mulf %797, %799 : vector<16x128xf32>
    %801 = arith.addf %795, %800 : vector<16x128xf32>
    %802 = vector.extract_strided_slice %6 {offsets = [2, 0, 0], sizes = [1, 16, 128], strides = [1, 1, 1]} : vector<4x16x128xf32> to vector<1x16x128xf32>
    %803 = vector.shape_cast %802 : vector<1x16x128xf32> to vector<16x128xf32>
    %c130 = arith.constant 130 : index
    %804 = memref.load %arg1[%c130] : memref<196xf32, #tpu.memory_space<smem>>
    %805 = vector.broadcast %804 : f32 to vector<16x128xf32>
    %806 = arith.mulf %803, %805 : vector<16x128xf32>
    %807 = arith.addf %801, %806 : vector<16x128xf32>
    %808 = vector.extract_strided_slice %7 {offsets = [2, 0, 0], sizes = [1, 16, 128], strides = [1, 1, 1]} : vector<4x16x128xf32> to vector<1x16x128xf32>
    %809 = vector.shape_cast %808 : vector<1x16x128xf32> to vector<16x128xf32>
    %c158 = arith.constant 158 : index
    %810 = memref.load %arg1[%c158] : memref<196xf32, #tpu.memory_space<smem>>
    %811 = vector.broadcast %810 : f32 to vector<16x128xf32>
    %812 = arith.mulf %809, %811 : vector<16x128xf32>
    %813 = arith.addf %807, %812 : vector<16x128xf32>
    %814 = vector.extract_strided_slice %8 {offsets = [2, 0, 0], sizes = [1, 16, 128], strides = [1, 1, 1]} : vector<4x16x128xf32> to vector<1x16x128xf32>
    %815 = vector.shape_cast %814 : vector<1x16x128xf32> to vector<16x128xf32>
    %c186 = arith.constant 186 : index
    %816 = memref.load %arg1[%c186] : memref<196xf32, #tpu.memory_space<smem>>
    %817 = vector.broadcast %816 : f32 to vector<16x128xf32>
    %818 = arith.mulf %815, %817 : vector<16x128xf32>
    %819 = arith.addf %813, %818 : vector<16x128xf32>
    %c2_i32_17 = arith.constant 2 : i32
    %820 = tpu.dynamic_rotate %819 by %c2_i32_17 dim 1 : vector<16x128xf32>, i32 -> vector<16x128xf32>
    %821 = arith.addf %649, %820 : vector<16x128xf32>
    %822 = vector.extract_strided_slice %2 {offsets = [3, 0, 0], sizes = [1, 16, 128], strides = [1, 1, 1]} : vector<4x16x128xf32> to vector<1x16x128xf32>
    %823 = vector.shape_cast %822 : vector<1x16x128xf32> to vector<16x128xf32>
    %c19 = arith.constant 19 : index
    %824 = memref.load %arg1[%c19] : memref<196xf32, #tpu.memory_space<smem>>
    %825 = vector.broadcast %824 : f32 to vector<16x128xf32>
    %826 = arith.mulf %823, %825 : vector<16x128xf32>
    %827 = vector.extract_strided_slice %3 {offsets = [3, 0, 0], sizes = [1, 16, 128], strides = [1, 1, 1]} : vector<4x16x128xf32> to vector<1x16x128xf32>
    %828 = vector.shape_cast %827 : vector<1x16x128xf32> to vector<16x128xf32>
    %c47 = arith.constant 47 : index
    %829 = memref.load %arg1[%c47] : memref<196xf32, #tpu.memory_space<smem>>
    %830 = vector.broadcast %829 : f32 to vector<16x128xf32>
    %831 = arith.mulf %828, %830 : vector<16x128xf32>
    %832 = arith.addf %826, %831 : vector<16x128xf32>
    %833 = vector.extract_strided_slice %4 {offsets = [3, 0, 0], sizes = [1, 16, 128], strides = [1, 1, 1]} : vector<4x16x128xf32> to vector<1x16x128xf32>
    %834 = vector.shape_cast %833 : vector<1x16x128xf32> to vector<16x128xf32>
    %c75 = arith.constant 75 : index
    %835 = memref.load %arg1[%c75] : memref<196xf32, #tpu.memory_space<smem>>
    %836 = vector.broadcast %835 : f32 to vector<16x128xf32>
    %837 = arith.mulf %834, %836 : vector<16x128xf32>
    %838 = arith.addf %832, %837 : vector<16x128xf32>
    %839 = vector.extract_strided_slice %5 {offsets = [3, 0, 0], sizes = [1, 16, 128], strides = [1, 1, 1]} : vector<4x16x128xf32> to vector<1x16x128xf32>
    %840 = vector.shape_cast %839 : vector<1x16x128xf32> to vector<16x128xf32>
    %c103 = arith.constant 103 : index
    %841 = memref.load %arg1[%c103] : memref<196xf32, #tpu.memory_space<smem>>
    %842 = vector.broadcast %841 : f32 to vector<16x128xf32>
    %843 = arith.mulf %840, %842 : vector<16x128xf32>
    %844 = arith.addf %838, %843 : vector<16x128xf32>
    %845 = vector.extract_strided_slice %6 {offsets = [3, 0, 0], sizes = [1, 16, 128], strides = [1, 1, 1]} : vector<4x16x128xf32> to vector<1x16x128xf32>
    %846 = vector.shape_cast %845 : vector<1x16x128xf32> to vector<16x128xf32>
    %c131 = arith.constant 131 : index
    %847 = memref.load %arg1[%c131] : memref<196xf32, #tpu.memory_space<smem>>
    %848 = vector.broadcast %847 : f32 to vector<16x128xf32>
    %849 = arith.mulf %846, %848 : vector<16x128xf32>
    %850 = arith.addf %844, %849 : vector<16x128xf32>
    %851 = vector.extract_strided_slice %7 {offsets = [3, 0, 0], sizes = [1, 16, 128], strides = [1, 1, 1]} : vector<4x16x128xf32> to vector<1x16x128xf32>
    %852 = vector.shape_cast %851 : vector<1x16x128xf32> to vector<16x128xf32>
    %c159 = arith.constant 159 : index
    %853 = memref.load %arg1[%c159] : memref<196xf32, #tpu.memory_space<smem>>
    %854 = vector.broadcast %853 : f32 to vector<16x128xf32>
    %855 = arith.mulf %852, %854 : vector<16x128xf32>
    %856 = arith.addf %850, %855 : vector<16x128xf32>
    %857 = vector.extract_strided_slice %8 {offsets = [3, 0, 0], sizes = [1, 16, 128], strides = [1, 1, 1]} : vector<4x16x128xf32> to vector<1x16x128xf32>
    %858 = vector.shape_cast %857 : vector<1x16x128xf32> to vector<16x128xf32>
    %c187 = arith.constant 187 : index
    %859 = memref.load %arg1[%c187] : memref<196xf32, #tpu.memory_space<smem>>
    %860 = vector.broadcast %859 : f32 to vector<16x128xf32>
    %861 = arith.mulf %858, %860 : vector<16x128xf32>
    %862 = arith.addf %856, %861 : vector<16x128xf32>
    %c2_i32_18 = arith.constant 2 : i32
    %863 = tpu.dynamic_rotate %862 by %c2_i32_18 dim 1 : vector<16x128xf32>, i32 -> vector<16x128xf32>
    %864 = arith.addf %692, %863 : vector<16x128xf32>
    %865 = vector.extract_strided_slice %2 {offsets = [0, 0, 0], sizes = [1, 16, 128], strides = [1, 1, 1]} : vector<4x16x128xf32> to vector<1x16x128xf32>
    %866 = vector.shape_cast %865 : vector<1x16x128xf32> to vector<16x128xf32>
    %c20 = arith.constant 20 : index
    %867 = memref.load %arg1[%c20] : memref<196xf32, #tpu.memory_space<smem>>
    %868 = vector.broadcast %867 : f32 to vector<16x128xf32>
    %869 = arith.mulf %866, %868 : vector<16x128xf32>
    %870 = vector.extract_strided_slice %3 {offsets = [0, 0, 0], sizes = [1, 16, 128], strides = [1, 1, 1]} : vector<4x16x128xf32> to vector<1x16x128xf32>
    %871 = vector.shape_cast %870 : vector<1x16x128xf32> to vector<16x128xf32>
    %c48 = arith.constant 48 : index
    %872 = memref.load %arg1[%c48] : memref<196xf32, #tpu.memory_space<smem>>
    %873 = vector.broadcast %872 : f32 to vector<16x128xf32>
    %874 = arith.mulf %871, %873 : vector<16x128xf32>
    %875 = arith.addf %869, %874 : vector<16x128xf32>
    %876 = vector.extract_strided_slice %4 {offsets = [0, 0, 0], sizes = [1, 16, 128], strides = [1, 1, 1]} : vector<4x16x128xf32> to vector<1x16x128xf32>
    %877 = vector.shape_cast %876 : vector<1x16x128xf32> to vector<16x128xf32>
    %c76 = arith.constant 76 : index
    %878 = memref.load %arg1[%c76] : memref<196xf32, #tpu.memory_space<smem>>
    %879 = vector.broadcast %878 : f32 to vector<16x128xf32>
    %880 = arith.mulf %877, %879 : vector<16x128xf32>
    %881 = arith.addf %875, %880 : vector<16x128xf32>
    %882 = vector.extract_strided_slice %5 {offsets = [0, 0, 0], sizes = [1, 16, 128], strides = [1, 1, 1]} : vector<4x16x128xf32> to vector<1x16x128xf32>
    %883 = vector.shape_cast %882 : vector<1x16x128xf32> to vector<16x128xf32>
    %c104 = arith.constant 104 : index
    %884 = memref.load %arg1[%c104] : memref<196xf32, #tpu.memory_space<smem>>
    %885 = vector.broadcast %884 : f32 to vector<16x128xf32>
    %886 = arith.mulf %883, %885 : vector<16x128xf32>
    %887 = arith.addf %881, %886 : vector<16x128xf32>
    %888 = vector.extract_strided_slice %6 {offsets = [0, 0, 0], sizes = [1, 16, 128], strides = [1, 1, 1]} : vector<4x16x128xf32> to vector<1x16x128xf32>
    %889 = vector.shape_cast %888 : vector<1x16x128xf32> to vector<16x128xf32>
    %c132 = arith.constant 132 : index
    %890 = memref.load %arg1[%c132] : memref<196xf32, #tpu.memory_space<smem>>
    %891 = vector.broadcast %890 : f32 to vector<16x128xf32>
    %892 = arith.mulf %889, %891 : vector<16x128xf32>
    %893 = arith.addf %887, %892 : vector<16x128xf32>
    %894 = vector.extract_strided_slice %7 {offsets = [0, 0, 0], sizes = [1, 16, 128], strides = [1, 1, 1]} : vector<4x16x128xf32> to vector<1x16x128xf32>
    %895 = vector.shape_cast %894 : vector<1x16x128xf32> to vector<16x128xf32>
    %c160 = arith.constant 160 : index
    %896 = memref.load %arg1[%c160] : memref<196xf32, #tpu.memory_space<smem>>
    %897 = vector.broadcast %896 : f32 to vector<16x128xf32>
    %898 = arith.mulf %895, %897 : vector<16x128xf32>
    %899 = arith.addf %893, %898 : vector<16x128xf32>
    %900 = vector.extract_strided_slice %8 {offsets = [0, 0, 0], sizes = [1, 16, 128], strides = [1, 1, 1]} : vector<4x16x128xf32> to vector<1x16x128xf32>
    %901 = vector.shape_cast %900 : vector<1x16x128xf32> to vector<16x128xf32>
    %c188 = arith.constant 188 : index
    %902 = memref.load %arg1[%c188] : memref<196xf32, #tpu.memory_space<smem>>
    %903 = vector.broadcast %902 : f32 to vector<16x128xf32>
    %904 = arith.mulf %901, %903 : vector<16x128xf32>
    %905 = arith.addf %899, %904 : vector<16x128xf32>
    %c1_i32 = arith.constant 1 : i32
    %906 = tpu.dynamic_rotate %905 by %c1_i32 dim 1 : vector<16x128xf32>, i32 -> vector<16x128xf32>
    %907 = arith.addf %735, %906 : vector<16x128xf32>
    %908 = vector.extract_strided_slice %2 {offsets = [1, 0, 0], sizes = [1, 16, 128], strides = [1, 1, 1]} : vector<4x16x128xf32> to vector<1x16x128xf32>
    %909 = vector.shape_cast %908 : vector<1x16x128xf32> to vector<16x128xf32>
    %c21 = arith.constant 21 : index
    %910 = memref.load %arg1[%c21] : memref<196xf32, #tpu.memory_space<smem>>
    %911 = vector.broadcast %910 : f32 to vector<16x128xf32>
    %912 = arith.mulf %909, %911 : vector<16x128xf32>
    %913 = vector.extract_strided_slice %3 {offsets = [1, 0, 0], sizes = [1, 16, 128], strides = [1, 1, 1]} : vector<4x16x128xf32> to vector<1x16x128xf32>
    %914 = vector.shape_cast %913 : vector<1x16x128xf32> to vector<16x128xf32>
    %c49 = arith.constant 49 : index
    %915 = memref.load %arg1[%c49] : memref<196xf32, #tpu.memory_space<smem>>
    %916 = vector.broadcast %915 : f32 to vector<16x128xf32>
    %917 = arith.mulf %914, %916 : vector<16x128xf32>
    %918 = arith.addf %912, %917 : vector<16x128xf32>
    %919 = vector.extract_strided_slice %4 {offsets = [1, 0, 0], sizes = [1, 16, 128], strides = [1, 1, 1]} : vector<4x16x128xf32> to vector<1x16x128xf32>
    %920 = vector.shape_cast %919 : vector<1x16x128xf32> to vector<16x128xf32>
    %c77 = arith.constant 77 : index
    %921 = memref.load %arg1[%c77] : memref<196xf32, #tpu.memory_space<smem>>
    %922 = vector.broadcast %921 : f32 to vector<16x128xf32>
    %923 = arith.mulf %920, %922 : vector<16x128xf32>
    %924 = arith.addf %918, %923 : vector<16x128xf32>
    %925 = vector.extract_strided_slice %5 {offsets = [1, 0, 0], sizes = [1, 16, 128], strides = [1, 1, 1]} : vector<4x16x128xf32> to vector<1x16x128xf32>
    %926 = vector.shape_cast %925 : vector<1x16x128xf32> to vector<16x128xf32>
    %c105 = arith.constant 105 : index
    %927 = memref.load %arg1[%c105] : memref<196xf32, #tpu.memory_space<smem>>
    %928 = vector.broadcast %927 : f32 to vector<16x128xf32>
    %929 = arith.mulf %926, %928 : vector<16x128xf32>
    %930 = arith.addf %924, %929 : vector<16x128xf32>
    %931 = vector.extract_strided_slice %6 {offsets = [1, 0, 0], sizes = [1, 16, 128], strides = [1, 1, 1]} : vector<4x16x128xf32> to vector<1x16x128xf32>
    %932 = vector.shape_cast %931 : vector<1x16x128xf32> to vector<16x128xf32>
    %c133 = arith.constant 133 : index
    %933 = memref.load %arg1[%c133] : memref<196xf32, #tpu.memory_space<smem>>
    %934 = vector.broadcast %933 : f32 to vector<16x128xf32>
    %935 = arith.mulf %932, %934 : vector<16x128xf32>
    %936 = arith.addf %930, %935 : vector<16x128xf32>
    %937 = vector.extract_strided_slice %7 {offsets = [1, 0, 0], sizes = [1, 16, 128], strides = [1, 1, 1]} : vector<4x16x128xf32> to vector<1x16x128xf32>
    %938 = vector.shape_cast %937 : vector<1x16x128xf32> to vector<16x128xf32>
    %c161 = arith.constant 161 : index
    %939 = memref.load %arg1[%c161] : memref<196xf32, #tpu.memory_space<smem>>
    %940 = vector.broadcast %939 : f32 to vector<16x128xf32>
    %941 = arith.mulf %938, %940 : vector<16x128xf32>
    %942 = arith.addf %936, %941 : vector<16x128xf32>
    %943 = vector.extract_strided_slice %8 {offsets = [1, 0, 0], sizes = [1, 16, 128], strides = [1, 1, 1]} : vector<4x16x128xf32> to vector<1x16x128xf32>
    %944 = vector.shape_cast %943 : vector<1x16x128xf32> to vector<16x128xf32>
    %c189 = arith.constant 189 : index
    %945 = memref.load %arg1[%c189] : memref<196xf32, #tpu.memory_space<smem>>
    %946 = vector.broadcast %945 : f32 to vector<16x128xf32>
    %947 = arith.mulf %944, %946 : vector<16x128xf32>
    %948 = arith.addf %942, %947 : vector<16x128xf32>
    %c1_i32_19 = arith.constant 1 : i32
    %949 = tpu.dynamic_rotate %948 by %c1_i32_19 dim 1 : vector<16x128xf32>, i32 -> vector<16x128xf32>
    %950 = arith.addf %778, %949 : vector<16x128xf32>
    %951 = vector.extract_strided_slice %2 {offsets = [2, 0, 0], sizes = [1, 16, 128], strides = [1, 1, 1]} : vector<4x16x128xf32> to vector<1x16x128xf32>
    %952 = vector.shape_cast %951 : vector<1x16x128xf32> to vector<16x128xf32>
    %c22 = arith.constant 22 : index
    %953 = memref.load %arg1[%c22] : memref<196xf32, #tpu.memory_space<smem>>
    %954 = vector.broadcast %953 : f32 to vector<16x128xf32>
    %955 = arith.mulf %952, %954 : vector<16x128xf32>
    %956 = vector.extract_strided_slice %3 {offsets = [2, 0, 0], sizes = [1, 16, 128], strides = [1, 1, 1]} : vector<4x16x128xf32> to vector<1x16x128xf32>
    %957 = vector.shape_cast %956 : vector<1x16x128xf32> to vector<16x128xf32>
    %c50 = arith.constant 50 : index
    %958 = memref.load %arg1[%c50] : memref<196xf32, #tpu.memory_space<smem>>
    %959 = vector.broadcast %958 : f32 to vector<16x128xf32>
    %960 = arith.mulf %957, %959 : vector<16x128xf32>
    %961 = arith.addf %955, %960 : vector<16x128xf32>
    %962 = vector.extract_strided_slice %4 {offsets = [2, 0, 0], sizes = [1, 16, 128], strides = [1, 1, 1]} : vector<4x16x128xf32> to vector<1x16x128xf32>
    %963 = vector.shape_cast %962 : vector<1x16x128xf32> to vector<16x128xf32>
    %c78 = arith.constant 78 : index
    %964 = memref.load %arg1[%c78] : memref<196xf32, #tpu.memory_space<smem>>
    %965 = vector.broadcast %964 : f32 to vector<16x128xf32>
    %966 = arith.mulf %963, %965 : vector<16x128xf32>
    %967 = arith.addf %961, %966 : vector<16x128xf32>
    %968 = vector.extract_strided_slice %5 {offsets = [2, 0, 0], sizes = [1, 16, 128], strides = [1, 1, 1]} : vector<4x16x128xf32> to vector<1x16x128xf32>
    %969 = vector.shape_cast %968 : vector<1x16x128xf32> to vector<16x128xf32>
    %c106 = arith.constant 106 : index
    %970 = memref.load %arg1[%c106] : memref<196xf32, #tpu.memory_space<smem>>
    %971 = vector.broadcast %970 : f32 to vector<16x128xf32>
    %972 = arith.mulf %969, %971 : vector<16x128xf32>
    %973 = arith.addf %967, %972 : vector<16x128xf32>
    %974 = vector.extract_strided_slice %6 {offsets = [2, 0, 0], sizes = [1, 16, 128], strides = [1, 1, 1]} : vector<4x16x128xf32> to vector<1x16x128xf32>
    %975 = vector.shape_cast %974 : vector<1x16x128xf32> to vector<16x128xf32>
    %c134 = arith.constant 134 : index
    %976 = memref.load %arg1[%c134] : memref<196xf32, #tpu.memory_space<smem>>
    %977 = vector.broadcast %976 : f32 to vector<16x128xf32>
    %978 = arith.mulf %975, %977 : vector<16x128xf32>
    %979 = arith.addf %973, %978 : vector<16x128xf32>
    %980 = vector.extract_strided_slice %7 {offsets = [2, 0, 0], sizes = [1, 16, 128], strides = [1, 1, 1]} : vector<4x16x128xf32> to vector<1x16x128xf32>
    %981 = vector.shape_cast %980 : vector<1x16x128xf32> to vector<16x128xf32>
    %c162 = arith.constant 162 : index
    %982 = memref.load %arg1[%c162] : memref<196xf32, #tpu.memory_space<smem>>
    %983 = vector.broadcast %982 : f32 to vector<16x128xf32>
    %984 = arith.mulf %981, %983 : vector<16x128xf32>
    %985 = arith.addf %979, %984 : vector<16x128xf32>
    %986 = vector.extract_strided_slice %8 {offsets = [2, 0, 0], sizes = [1, 16, 128], strides = [1, 1, 1]} : vector<4x16x128xf32> to vector<1x16x128xf32>
    %987 = vector.shape_cast %986 : vector<1x16x128xf32> to vector<16x128xf32>
    %c190 = arith.constant 190 : index
    %988 = memref.load %arg1[%c190] : memref<196xf32, #tpu.memory_space<smem>>
    %989 = vector.broadcast %988 : f32 to vector<16x128xf32>
    %990 = arith.mulf %987, %989 : vector<16x128xf32>
    %991 = arith.addf %985, %990 : vector<16x128xf32>
    %c1_i32_20 = arith.constant 1 : i32
    %992 = tpu.dynamic_rotate %991 by %c1_i32_20 dim 1 : vector<16x128xf32>, i32 -> vector<16x128xf32>
    %993 = arith.addf %821, %992 : vector<16x128xf32>
    %994 = vector.extract_strided_slice %2 {offsets = [3, 0, 0], sizes = [1, 16, 128], strides = [1, 1, 1]} : vector<4x16x128xf32> to vector<1x16x128xf32>
    %995 = vector.shape_cast %994 : vector<1x16x128xf32> to vector<16x128xf32>
    %c23 = arith.constant 23 : index
    %996 = memref.load %arg1[%c23] : memref<196xf32, #tpu.memory_space<smem>>
    %997 = vector.broadcast %996 : f32 to vector<16x128xf32>
    %998 = arith.mulf %995, %997 : vector<16x128xf32>
    %999 = vector.extract_strided_slice %3 {offsets = [3, 0, 0], sizes = [1, 16, 128], strides = [1, 1, 1]} : vector<4x16x128xf32> to vector<1x16x128xf32>
    %1000 = vector.shape_cast %999 : vector<1x16x128xf32> to vector<16x128xf32>
    %c51 = arith.constant 51 : index
    %1001 = memref.load %arg1[%c51] : memref<196xf32, #tpu.memory_space<smem>>
    %1002 = vector.broadcast %1001 : f32 to vector<16x128xf32>
    %1003 = arith.mulf %1000, %1002 : vector<16x128xf32>
    %1004 = arith.addf %998, %1003 : vector<16x128xf32>
    %1005 = vector.extract_strided_slice %4 {offsets = [3, 0, 0], sizes = [1, 16, 128], strides = [1, 1, 1]} : vector<4x16x128xf32> to vector<1x16x128xf32>
    %1006 = vector.shape_cast %1005 : vector<1x16x128xf32> to vector<16x128xf32>
    %c79 = arith.constant 79 : index
    %1007 = memref.load %arg1[%c79] : memref<196xf32, #tpu.memory_space<smem>>
    %1008 = vector.broadcast %1007 : f32 to vector<16x128xf32>
    %1009 = arith.mulf %1006, %1008 : vector<16x128xf32>
    %1010 = arith.addf %1004, %1009 : vector<16x128xf32>
    %1011 = vector.extract_strided_slice %5 {offsets = [3, 0, 0], sizes = [1, 16, 128], strides = [1, 1, 1]} : vector<4x16x128xf32> to vector<1x16x128xf32>
    %1012 = vector.shape_cast %1011 : vector<1x16x128xf32> to vector<16x128xf32>
    %c107 = arith.constant 107 : index
    %1013 = memref.load %arg1[%c107] : memref<196xf32, #tpu.memory_space<smem>>
    %1014 = vector.broadcast %1013 : f32 to vector<16x128xf32>
    %1015 = arith.mulf %1012, %1014 : vector<16x128xf32>
    %1016 = arith.addf %1010, %1015 : vector<16x128xf32>
    %1017 = vector.extract_strided_slice %6 {offsets = [3, 0, 0], sizes = [1, 16, 128], strides = [1, 1, 1]} : vector<4x16x128xf32> to vector<1x16x128xf32>
    %1018 = vector.shape_cast %1017 : vector<1x16x128xf32> to vector<16x128xf32>
    %c135 = arith.constant 135 : index
    %1019 = memref.load %arg1[%c135] : memref<196xf32, #tpu.memory_space<smem>>
    %1020 = vector.broadcast %1019 : f32 to vector<16x128xf32>
    %1021 = arith.mulf %1018, %1020 : vector<16x128xf32>
    %1022 = arith.addf %1016, %1021 : vector<16x128xf32>
    %1023 = vector.extract_strided_slice %7 {offsets = [3, 0, 0], sizes = [1, 16, 128], strides = [1, 1, 1]} : vector<4x16x128xf32> to vector<1x16x128xf32>
    %1024 = vector.shape_cast %1023 : vector<1x16x128xf32> to vector<16x128xf32>
    %c163 = arith.constant 163 : index
    %1025 = memref.load %arg1[%c163] : memref<196xf32, #tpu.memory_space<smem>>
    %1026 = vector.broadcast %1025 : f32 to vector<16x128xf32>
    %1027 = arith.mulf %1024, %1026 : vector<16x128xf32>
    %1028 = arith.addf %1022, %1027 : vector<16x128xf32>
    %1029 = vector.extract_strided_slice %8 {offsets = [3, 0, 0], sizes = [1, 16, 128], strides = [1, 1, 1]} : vector<4x16x128xf32> to vector<1x16x128xf32>
    %1030 = vector.shape_cast %1029 : vector<1x16x128xf32> to vector<16x128xf32>
    %c191 = arith.constant 191 : index
    %1031 = memref.load %arg1[%c191] : memref<196xf32, #tpu.memory_space<smem>>
    %1032 = vector.broadcast %1031 : f32 to vector<16x128xf32>
    %1033 = arith.mulf %1030, %1032 : vector<16x128xf32>
    %1034 = arith.addf %1028, %1033 : vector<16x128xf32>
    %c1_i32_21 = arith.constant 1 : i32
    %1035 = tpu.dynamic_rotate %1034 by %c1_i32_21 dim 1 : vector<16x128xf32>, i32 -> vector<16x128xf32>
    %1036 = arith.addf %864, %1035 : vector<16x128xf32>
    %1037 = vector.extract_strided_slice %2 {offsets = [0, 0, 0], sizes = [1, 16, 128], strides = [1, 1, 1]} : vector<4x16x128xf32> to vector<1x16x128xf32>
    %1038 = vector.shape_cast %1037 : vector<1x16x128xf32> to vector<16x128xf32>
    %c24 = arith.constant 24 : index
    %1039 = memref.load %arg1[%c24] : memref<196xf32, #tpu.memory_space<smem>>
    %1040 = vector.broadcast %1039 : f32 to vector<16x128xf32>
    %1041 = arith.mulf %1038, %1040 : vector<16x128xf32>
    %1042 = vector.extract_strided_slice %3 {offsets = [0, 0, 0], sizes = [1, 16, 128], strides = [1, 1, 1]} : vector<4x16x128xf32> to vector<1x16x128xf32>
    %1043 = vector.shape_cast %1042 : vector<1x16x128xf32> to vector<16x128xf32>
    %c52 = arith.constant 52 : index
    %1044 = memref.load %arg1[%c52] : memref<196xf32, #tpu.memory_space<smem>>
    %1045 = vector.broadcast %1044 : f32 to vector<16x128xf32>
    %1046 = arith.mulf %1043, %1045 : vector<16x128xf32>
    %1047 = arith.addf %1041, %1046 : vector<16x128xf32>
    %1048 = vector.extract_strided_slice %4 {offsets = [0, 0, 0], sizes = [1, 16, 128], strides = [1, 1, 1]} : vector<4x16x128xf32> to vector<1x16x128xf32>
    %1049 = vector.shape_cast %1048 : vector<1x16x128xf32> to vector<16x128xf32>
    %c80 = arith.constant 80 : index
    %1050 = memref.load %arg1[%c80] : memref<196xf32, #tpu.memory_space<smem>>
    %1051 = vector.broadcast %1050 : f32 to vector<16x128xf32>
    %1052 = arith.mulf %1049, %1051 : vector<16x128xf32>
    %1053 = arith.addf %1047, %1052 : vector<16x128xf32>
    %1054 = vector.extract_strided_slice %5 {offsets = [0, 0, 0], sizes = [1, 16, 128], strides = [1, 1, 1]} : vector<4x16x128xf32> to vector<1x16x128xf32>
    %1055 = vector.shape_cast %1054 : vector<1x16x128xf32> to vector<16x128xf32>
    %c108 = arith.constant 108 : index
    %1056 = memref.load %arg1[%c108] : memref<196xf32, #tpu.memory_space<smem>>
    %1057 = vector.broadcast %1056 : f32 to vector<16x128xf32>
    %1058 = arith.mulf %1055, %1057 : vector<16x128xf32>
    %1059 = arith.addf %1053, %1058 : vector<16x128xf32>
    %1060 = vector.extract_strided_slice %6 {offsets = [0, 0, 0], sizes = [1, 16, 128], strides = [1, 1, 1]} : vector<4x16x128xf32> to vector<1x16x128xf32>
    %1061 = vector.shape_cast %1060 : vector<1x16x128xf32> to vector<16x128xf32>
    %c136 = arith.constant 136 : index
    %1062 = memref.load %arg1[%c136] : memref<196xf32, #tpu.memory_space<smem>>
    %1063 = vector.broadcast %1062 : f32 to vector<16x128xf32>
    %1064 = arith.mulf %1061, %1063 : vector<16x128xf32>
    %1065 = arith.addf %1059, %1064 : vector<16x128xf32>
    %1066 = vector.extract_strided_slice %7 {offsets = [0, 0, 0], sizes = [1, 16, 128], strides = [1, 1, 1]} : vector<4x16x128xf32> to vector<1x16x128xf32>
    %1067 = vector.shape_cast %1066 : vector<1x16x128xf32> to vector<16x128xf32>
    %c164 = arith.constant 164 : index
    %1068 = memref.load %arg1[%c164] : memref<196xf32, #tpu.memory_space<smem>>
    %1069 = vector.broadcast %1068 : f32 to vector<16x128xf32>
    %1070 = arith.mulf %1067, %1069 : vector<16x128xf32>
    %1071 = arith.addf %1065, %1070 : vector<16x128xf32>
    %1072 = vector.extract_strided_slice %8 {offsets = [0, 0, 0], sizes = [1, 16, 128], strides = [1, 1, 1]} : vector<4x16x128xf32> to vector<1x16x128xf32>
    %1073 = vector.shape_cast %1072 : vector<1x16x128xf32> to vector<16x128xf32>
    %c192 = arith.constant 192 : index
    %1074 = memref.load %arg1[%c192] : memref<196xf32, #tpu.memory_space<smem>>
    %1075 = vector.broadcast %1074 : f32 to vector<16x128xf32>
    %1076 = arith.mulf %1073, %1075 : vector<16x128xf32>
    %1077 = arith.addf %1071, %1076 : vector<16x128xf32>
    %1078 = arith.addf %907, %1077 : vector<16x128xf32>
    %1079 = vector.extract_strided_slice %2 {offsets = [1, 0, 0], sizes = [1, 16, 128], strides = [1, 1, 1]} : vector<4x16x128xf32> to vector<1x16x128xf32>
    %1080 = vector.shape_cast %1079 : vector<1x16x128xf32> to vector<16x128xf32>
    %c25 = arith.constant 25 : index
    %1081 = memref.load %arg1[%c25] : memref<196xf32, #tpu.memory_space<smem>>
    %1082 = vector.broadcast %1081 : f32 to vector<16x128xf32>
    %1083 = arith.mulf %1080, %1082 : vector<16x128xf32>
    %1084 = vector.extract_strided_slice %3 {offsets = [1, 0, 0], sizes = [1, 16, 128], strides = [1, 1, 1]} : vector<4x16x128xf32> to vector<1x16x128xf32>
    %1085 = vector.shape_cast %1084 : vector<1x16x128xf32> to vector<16x128xf32>
    %c53 = arith.constant 53 : index
    %1086 = memref.load %arg1[%c53] : memref<196xf32, #tpu.memory_space<smem>>
    %1087 = vector.broadcast %1086 : f32 to vector<16x128xf32>
    %1088 = arith.mulf %1085, %1087 : vector<16x128xf32>
    %1089 = arith.addf %1083, %1088 : vector<16x128xf32>
    %1090 = vector.extract_strided_slice %4 {offsets = [1, 0, 0], sizes = [1, 16, 128], strides = [1, 1, 1]} : vector<4x16x128xf32> to vector<1x16x128xf32>
    %1091 = vector.shape_cast %1090 : vector<1x16x128xf32> to vector<16x128xf32>
    %c81 = arith.constant 81 : index
    %1092 = memref.load %arg1[%c81] : memref<196xf32, #tpu.memory_space<smem>>
    %1093 = vector.broadcast %1092 : f32 to vector<16x128xf32>
    %1094 = arith.mulf %1091, %1093 : vector<16x128xf32>
    %1095 = arith.addf %1089, %1094 : vector<16x128xf32>
    %1096 = vector.extract_strided_slice %5 {offsets = [1, 0, 0], sizes = [1, 16, 128], strides = [1, 1, 1]} : vector<4x16x128xf32> to vector<1x16x128xf32>
    %1097 = vector.shape_cast %1096 : vector<1x16x128xf32> to vector<16x128xf32>
    %c109 = arith.constant 109 : index
    %1098 = memref.load %arg1[%c109] : memref<196xf32, #tpu.memory_space<smem>>
    %1099 = vector.broadcast %1098 : f32 to vector<16x128xf32>
    %1100 = arith.mulf %1097, %1099 : vector<16x128xf32>
    %1101 = arith.addf %1095, %1100 : vector<16x128xf32>
    %1102 = vector.extract_strided_slice %6 {offsets = [1, 0, 0], sizes = [1, 16, 128], strides = [1, 1, 1]} : vector<4x16x128xf32> to vector<1x16x128xf32>
    %1103 = vector.shape_cast %1102 : vector<1x16x128xf32> to vector<16x128xf32>
    %c137 = arith.constant 137 : index
    %1104 = memref.load %arg1[%c137] : memref<196xf32, #tpu.memory_space<smem>>
    %1105 = vector.broadcast %1104 : f32 to vector<16x128xf32>
    %1106 = arith.mulf %1103, %1105 : vector<16x128xf32>
    %1107 = arith.addf %1101, %1106 : vector<16x128xf32>
    %1108 = vector.extract_strided_slice %7 {offsets = [1, 0, 0], sizes = [1, 16, 128], strides = [1, 1, 1]} : vector<4x16x128xf32> to vector<1x16x128xf32>
    %1109 = vector.shape_cast %1108 : vector<1x16x128xf32> to vector<16x128xf32>
    %c165 = arith.constant 165 : index
    %1110 = memref.load %arg1[%c165] : memref<196xf32, #tpu.memory_space<smem>>
    %1111 = vector.broadcast %1110 : f32 to vector<16x128xf32>
    %1112 = arith.mulf %1109, %1111 : vector<16x128xf32>
    %1113 = arith.addf %1107, %1112 : vector<16x128xf32>
    %1114 = vector.extract_strided_slice %8 {offsets = [1, 0, 0], sizes = [1, 16, 128], strides = [1, 1, 1]} : vector<4x16x128xf32> to vector<1x16x128xf32>
    %1115 = vector.shape_cast %1114 : vector<1x16x128xf32> to vector<16x128xf32>
    %c193 = arith.constant 193 : index
    %1116 = memref.load %arg1[%c193] : memref<196xf32, #tpu.memory_space<smem>>
    %1117 = vector.broadcast %1116 : f32 to vector<16x128xf32>
    %1118 = arith.mulf %1115, %1117 : vector<16x128xf32>
    %1119 = arith.addf %1113, %1118 : vector<16x128xf32>
    %1120 = arith.addf %950, %1119 : vector<16x128xf32>
    %1121 = vector.extract_strided_slice %2 {offsets = [2, 0, 0], sizes = [1, 16, 128], strides = [1, 1, 1]} : vector<4x16x128xf32> to vector<1x16x128xf32>
    %1122 = vector.shape_cast %1121 : vector<1x16x128xf32> to vector<16x128xf32>
    %c26 = arith.constant 26 : index
    %1123 = memref.load %arg1[%c26] : memref<196xf32, #tpu.memory_space<smem>>
    %1124 = vector.broadcast %1123 : f32 to vector<16x128xf32>
    %1125 = arith.mulf %1122, %1124 : vector<16x128xf32>
    %1126 = vector.extract_strided_slice %3 {offsets = [2, 0, 0], sizes = [1, 16, 128], strides = [1, 1, 1]} : vector<4x16x128xf32> to vector<1x16x128xf32>
    %1127 = vector.shape_cast %1126 : vector<1x16x128xf32> to vector<16x128xf32>
    %c54 = arith.constant 54 : index
    %1128 = memref.load %arg1[%c54] : memref<196xf32, #tpu.memory_space<smem>>
    %1129 = vector.broadcast %1128 : f32 to vector<16x128xf32>
    %1130 = arith.mulf %1127, %1129 : vector<16x128xf32>
    %1131 = arith.addf %1125, %1130 : vector<16x128xf32>
    %1132 = vector.extract_strided_slice %4 {offsets = [2, 0, 0], sizes = [1, 16, 128], strides = [1, 1, 1]} : vector<4x16x128xf32> to vector<1x16x128xf32>
    %1133 = vector.shape_cast %1132 : vector<1x16x128xf32> to vector<16x128xf32>
    %c82 = arith.constant 82 : index
    %1134 = memref.load %arg1[%c82] : memref<196xf32, #tpu.memory_space<smem>>
    %1135 = vector.broadcast %1134 : f32 to vector<16x128xf32>
    %1136 = arith.mulf %1133, %1135 : vector<16x128xf32>
    %1137 = arith.addf %1131, %1136 : vector<16x128xf32>
    %1138 = vector.extract_strided_slice %5 {offsets = [2, 0, 0], sizes = [1, 16, 128], strides = [1, 1, 1]} : vector<4x16x128xf32> to vector<1x16x128xf32>
    %1139 = vector.shape_cast %1138 : vector<1x16x128xf32> to vector<16x128xf32>
    %c110 = arith.constant 110 : index
    %1140 = memref.load %arg1[%c110] : memref<196xf32, #tpu.memory_space<smem>>
    %1141 = vector.broadcast %1140 : f32 to vector<16x128xf32>
    %1142 = arith.mulf %1139, %1141 : vector<16x128xf32>
    %1143 = arith.addf %1137, %1142 : vector<16x128xf32>
    %1144 = vector.extract_strided_slice %6 {offsets = [2, 0, 0], sizes = [1, 16, 128], strides = [1, 1, 1]} : vector<4x16x128xf32> to vector<1x16x128xf32>
    %1145 = vector.shape_cast %1144 : vector<1x16x128xf32> to vector<16x128xf32>
    %c138 = arith.constant 138 : index
    %1146 = memref.load %arg1[%c138] : memref<196xf32, #tpu.memory_space<smem>>
    %1147 = vector.broadcast %1146 : f32 to vector<16x128xf32>
    %1148 = arith.mulf %1145, %1147 : vector<16x128xf32>
    %1149 = arith.addf %1143, %1148 : vector<16x128xf32>
    %1150 = vector.extract_strided_slice %7 {offsets = [2, 0, 0], sizes = [1, 16, 128], strides = [1, 1, 1]} : vector<4x16x128xf32> to vector<1x16x128xf32>
    %1151 = vector.shape_cast %1150 : vector<1x16x128xf32> to vector<16x128xf32>
    %c166 = arith.constant 166 : index
    %1152 = memref.load %arg1[%c166] : memref<196xf32, #tpu.memory_space<smem>>
    %1153 = vector.broadcast %1152 : f32 to vector<16x128xf32>
    %1154 = arith.mulf %1151, %1153 : vector<16x128xf32>
    %1155 = arith.addf %1149, %1154 : vector<16x128xf32>
    %1156 = vector.extract_strided_slice %8 {offsets = [2, 0, 0], sizes = [1, 16, 128], strides = [1, 1, 1]} : vector<4x16x128xf32> to vector<1x16x128xf32>
    %1157 = vector.shape_cast %1156 : vector<1x16x128xf32> to vector<16x128xf32>
    %c194 = arith.constant 194 : index
    %1158 = memref.load %arg1[%c194] : memref<196xf32, #tpu.memory_space<smem>>
    %1159 = vector.broadcast %1158 : f32 to vector<16x128xf32>
    %1160 = arith.mulf %1157, %1159 : vector<16x128xf32>
    %1161 = arith.addf %1155, %1160 : vector<16x128xf32>
    %1162 = arith.addf %993, %1161 : vector<16x128xf32>
    %1163 = vector.extract_strided_slice %2 {offsets = [3, 0, 0], sizes = [1, 16, 128], strides = [1, 1, 1]} : vector<4x16x128xf32> to vector<1x16x128xf32>
    %1164 = vector.shape_cast %1163 : vector<1x16x128xf32> to vector<16x128xf32>
    %c27 = arith.constant 27 : index
    %1165 = memref.load %arg1[%c27] : memref<196xf32, #tpu.memory_space<smem>>
    %1166 = vector.broadcast %1165 : f32 to vector<16x128xf32>
    %1167 = arith.mulf %1164, %1166 : vector<16x128xf32>
    %1168 = vector.extract_strided_slice %3 {offsets = [3, 0, 0], sizes = [1, 16, 128], strides = [1, 1, 1]} : vector<4x16x128xf32> to vector<1x16x128xf32>
    %1169 = vector.shape_cast %1168 : vector<1x16x128xf32> to vector<16x128xf32>
    %c55 = arith.constant 55 : index
    %1170 = memref.load %arg1[%c55] : memref<196xf32, #tpu.memory_space<smem>>
    %1171 = vector.broadcast %1170 : f32 to vector<16x128xf32>
    %1172 = arith.mulf %1169, %1171 : vector<16x128xf32>
    %1173 = arith.addf %1167, %1172 : vector<16x128xf32>
    %1174 = vector.extract_strided_slice %4 {offsets = [3, 0, 0], sizes = [1, 16, 128], strides = [1, 1, 1]} : vector<4x16x128xf32> to vector<1x16x128xf32>
    %1175 = vector.shape_cast %1174 : vector<1x16x128xf32> to vector<16x128xf32>
    %c83 = arith.constant 83 : index
    %1176 = memref.load %arg1[%c83] : memref<196xf32, #tpu.memory_space<smem>>
    %1177 = vector.broadcast %1176 : f32 to vector<16x128xf32>
    %1178 = arith.mulf %1175, %1177 : vector<16x128xf32>
    %1179 = arith.addf %1173, %1178 : vector<16x128xf32>
    %1180 = vector.extract_strided_slice %5 {offsets = [3, 0, 0], sizes = [1, 16, 128], strides = [1, 1, 1]} : vector<4x16x128xf32> to vector<1x16x128xf32>
    %1181 = vector.shape_cast %1180 : vector<1x16x128xf32> to vector<16x128xf32>
    %c111 = arith.constant 111 : index
    %1182 = memref.load %arg1[%c111] : memref<196xf32, #tpu.memory_space<smem>>
    %1183 = vector.broadcast %1182 : f32 to vector<16x128xf32>
    %1184 = arith.mulf %1181, %1183 : vector<16x128xf32>
    %1185 = arith.addf %1179, %1184 : vector<16x128xf32>
    %1186 = vector.extract_strided_slice %6 {offsets = [3, 0, 0], sizes = [1, 16, 128], strides = [1, 1, 1]} : vector<4x16x128xf32> to vector<1x16x128xf32>
    %1187 = vector.shape_cast %1186 : vector<1x16x128xf32> to vector<16x128xf32>
    %c139 = arith.constant 139 : index
    %1188 = memref.load %arg1[%c139] : memref<196xf32, #tpu.memory_space<smem>>
    %1189 = vector.broadcast %1188 : f32 to vector<16x128xf32>
    %1190 = arith.mulf %1187, %1189 : vector<16x128xf32>
    %1191 = arith.addf %1185, %1190 : vector<16x128xf32>
    %1192 = vector.extract_strided_slice %7 {offsets = [3, 0, 0], sizes = [1, 16, 128], strides = [1, 1, 1]} : vector<4x16x128xf32> to vector<1x16x128xf32>
    %1193 = vector.shape_cast %1192 : vector<1x16x128xf32> to vector<16x128xf32>
    %c167 = arith.constant 167 : index
    %1194 = memref.load %arg1[%c167] : memref<196xf32, #tpu.memory_space<smem>>
    %1195 = vector.broadcast %1194 : f32 to vector<16x128xf32>
    %1196 = arith.mulf %1193, %1195 : vector<16x128xf32>
    %1197 = arith.addf %1191, %1196 : vector<16x128xf32>
    %1198 = vector.extract_strided_slice %8 {offsets = [3, 0, 0], sizes = [1, 16, 128], strides = [1, 1, 1]} : vector<4x16x128xf32> to vector<1x16x128xf32>
    %1199 = vector.shape_cast %1198 : vector<1x16x128xf32> to vector<16x128xf32>
    %c195 = arith.constant 195 : index
    %1200 = memref.load %arg1[%c195] : memref<196xf32, #tpu.memory_space<smem>>
    %1201 = vector.broadcast %1200 : f32 to vector<16x128xf32>
    %1202 = arith.mulf %1199, %1201 : vector<16x128xf32>
    %1203 = arith.addf %1197, %1202 : vector<16x128xf32>
    %1204 = arith.addf %1036, %1203 : vector<16x128xf32>
    %c0_22 = arith.constant 0 : index
    %1205 = memref.load %arg2[%c0_22] : memref<32xf32, #tpu.memory_space<smem>>
    %1206 = vector.broadcast %1205 : f32 to vector<16x128xf32>
    %1207 = arith.mulf %1078, %1206 : vector<16x128xf32>
    %c8_23 = arith.constant 8 : index
    %1208 = memref.load %arg2[%c8_23] : memref<32xf32, #tpu.memory_space<smem>>
    %1209 = vector.broadcast %1208 : f32 to vector<16x128xf32>
    %1210 = arith.mulf %1120, %1209 : vector<16x128xf32>
    %1211 = arith.addf %1207, %1210 : vector<16x128xf32>
    %c16_24 = arith.constant 16 : index
    %1212 = memref.load %arg2[%c16_24] : memref<32xf32, #tpu.memory_space<smem>>
    %1213 = vector.broadcast %1212 : f32 to vector<16x128xf32>
    %1214 = arith.mulf %1162, %1213 : vector<16x128xf32>
    %1215 = arith.addf %1211, %1214 : vector<16x128xf32>
    %c24_25 = arith.constant 24 : index
    %1216 = memref.load %arg2[%c24_25] : memref<32xf32, #tpu.memory_space<smem>>
    %1217 = vector.broadcast %1216 : f32 to vector<16x128xf32>
    %1218 = arith.mulf %1204, %1217 : vector<16x128xf32>
    %1219 = arith.addf %1215, %1218 : vector<16x128xf32>
    %c0_26 = arith.constant 0 : index
    %1220 = memref.load %arg3[%c0_26] : memref<8xf32, #tpu.memory_space<smem>>
    %1221 = vector.broadcast %1220 : f32 to vector<16x128xf32>
    %1222 = arith.addf %1219, %1221 : vector<16x128xf32>
    %c0_27 = arith.constant 0 : index
    %c0_28 = arith.constant 0 : index
    %c0_29 = arith.constant 0 : index
    %c0_30 = arith.constant 0 : index
    %1223 = vector.load %arg5[%c0_27, %c0_28, %c0_29, %c0_30] : memref<2x8x16x128xf32, #tpu.memory_space<vmem>>, vector<1x1x16x128xf32>
    %1224 = vector.shape_cast %1223 : vector<1x1x16x128xf32> to vector<16x128xf32>
    %1225 = vector.shape_cast %1222 : vector<16x128xf32> to vector<1x1x16x128xf32>
    tpu.vector_store %arg5[%c0_27, %c0_28, %c0_29, %c0_30], %1225 {strides = array<i32>} : memref<2x8x16x128xf32, #tpu.memory_space<vmem>>, vector<1x1x16x128xf32>,
    %c1_31 = arith.constant 1 : index
    %1226 = memref.load %arg2[%c1_31] : memref<32xf32, #tpu.memory_space<smem>>
    %1227 = vector.broadcast %1226 : f32 to vector<16x128xf32>
    %1228 = arith.mulf %1078, %1227 : vector<16x128xf32>
    %c9_32 = arith.constant 9 : index
    %1229 = memref.load %arg2[%c9_32] : memref<32xf32, #tpu.memory_space<smem>>
    %1230 = vector.broadcast %1229 : f32 to vector<16x128xf32>
    %1231 = arith.mulf %1120, %1230 : vector<16x128xf32>
    %1232 = arith.addf %1228, %1231 : vector<16x128xf32>
    %c17_33 = arith.constant 17 : index
    %1233 = memref.load %arg2[%c17_33] : memref<32xf32, #tpu.memory_space<smem>>
    %1234 = vector.broadcast %1233 : f32 to vector<16x128xf32>
    %1235 = arith.mulf %1162, %1234 : vector<16x128xf32>
    %1236 = arith.addf %1232, %1235 : vector<16x128xf32>
    %c25_34 = arith.constant 25 : index
    %1237 = memref.load %arg2[%c25_34] : memref<32xf32, #tpu.memory_space<smem>>
    %1238 = vector.broadcast %1237 : f32 to vector<16x128xf32>
    %1239 = arith.mulf %1204, %1238 : vector<16x128xf32>
    %1240 = arith.addf %1236, %1239 : vector<16x128xf32>
    %c1_35 = arith.constant 1 : index
    %1241 = memref.load %arg3[%c1_35] : memref<8xf32, #tpu.memory_space<smem>>
    %1242 = vector.broadcast %1241 : f32 to vector<16x128xf32>
    %1243 = arith.addf %1240, %1242 : vector<16x128xf32>
    %c0_36 = arith.constant 0 : index
    %c1_37 = arith.constant 1 : index
    %c0_38 = arith.constant 0 : index
    %c0_39 = arith.constant 0 : index
    %1244 = vector.load %arg5[%c0_36, %c1_37, %c0_38, %c0_39] : memref<2x8x16x128xf32, #tpu.memory_space<vmem>>, vector<1x1x16x128xf32>
    %1245 = vector.shape_cast %1244 : vector<1x1x16x128xf32> to vector<16x128xf32>
    %1246 = vector.shape_cast %1243 : vector<16x128xf32> to vector<1x1x16x128xf32>
    tpu.vector_store %arg5[%c0_36, %c1_37, %c0_38, %c0_39], %1246 {strides = array<i32>} : memref<2x8x16x128xf32, #tpu.memory_space<vmem>>, vector<1x1x16x128xf32>,
    %c2_40 = arith.constant 2 : index
    %1247 = memref.load %arg2[%c2_40] : memref<32xf32, #tpu.memory_space<smem>>
    %1248 = vector.broadcast %1247 : f32 to vector<16x128xf32>
    %1249 = arith.mulf %1078, %1248 : vector<16x128xf32>
    %c10_41 = arith.constant 10 : index
    %1250 = memref.load %arg2[%c10_41] : memref<32xf32, #tpu.memory_space<smem>>
    %1251 = vector.broadcast %1250 : f32 to vector<16x128xf32>
    %1252 = arith.mulf %1120, %1251 : vector<16x128xf32>
    %1253 = arith.addf %1249, %1252 : vector<16x128xf32>
    %c18_42 = arith.constant 18 : index
    %1254 = memref.load %arg2[%c18_42] : memref<32xf32, #tpu.memory_space<smem>>
    %1255 = vector.broadcast %1254 : f32 to vector<16x128xf32>
    %1256 = arith.mulf %1162, %1255 : vector<16x128xf32>
    %1257 = arith.addf %1253, %1256 : vector<16x128xf32>
    %c26_43 = arith.constant 26 : index
    %1258 = memref.load %arg2[%c26_43] : memref<32xf32, #tpu.memory_space<smem>>
    %1259 = vector.broadcast %1258 : f32 to vector<16x128xf32>
    %1260 = arith.mulf %1204, %1259 : vector<16x128xf32>
    %1261 = arith.addf %1257, %1260 : vector<16x128xf32>
    %c2_44 = arith.constant 2 : index
    %1262 = memref.load %arg3[%c2_44] : memref<8xf32, #tpu.memory_space<smem>>
    %1263 = vector.broadcast %1262 : f32 to vector<16x128xf32>
    %1264 = arith.addf %1261, %1263 : vector<16x128xf32>
    %c0_45 = arith.constant 0 : index
    %c2_46 = arith.constant 2 : index
    %c0_47 = arith.constant 0 : index
    %c0_48 = arith.constant 0 : index
    %1265 = vector.load %arg5[%c0_45, %c2_46, %c0_47, %c0_48] : memref<2x8x16x128xf32, #tpu.memory_space<vmem>>, vector<1x1x16x128xf32>
    %1266 = vector.shape_cast %1265 : vector<1x1x16x128xf32> to vector<16x128xf32>
    %1267 = vector.shape_cast %1264 : vector<16x128xf32> to vector<1x1x16x128xf32>
    tpu.vector_store %arg5[%c0_45, %c2_46, %c0_47, %c0_48], %1267 {strides = array<i32>} : memref<2x8x16x128xf32, #tpu.memory_space<vmem>>, vector<1x1x16x128xf32>,
    %c3_49 = arith.constant 3 : index
    %1268 = memref.load %arg2[%c3_49] : memref<32xf32, #tpu.memory_space<smem>>
    %1269 = vector.broadcast %1268 : f32 to vector<16x128xf32>
    %1270 = arith.mulf %1078, %1269 : vector<16x128xf32>
    %c11_50 = arith.constant 11 : index
    %1271 = memref.load %arg2[%c11_50] : memref<32xf32, #tpu.memory_space<smem>>
    %1272 = vector.broadcast %1271 : f32 to vector<16x128xf32>
    %1273 = arith.mulf %1120, %1272 : vector<16x128xf32>
    %1274 = arith.addf %1270, %1273 : vector<16x128xf32>
    %c19_51 = arith.constant 19 : index
    %1275 = memref.load %arg2[%c19_51] : memref<32xf32, #tpu.memory_space<smem>>
    %1276 = vector.broadcast %1275 : f32 to vector<16x128xf32>
    %1277 = arith.mulf %1162, %1276 : vector<16x128xf32>
    %1278 = arith.addf %1274, %1277 : vector<16x128xf32>
    %c27_52 = arith.constant 27 : index
    %1279 = memref.load %arg2[%c27_52] : memref<32xf32, #tpu.memory_space<smem>>
    %1280 = vector.broadcast %1279 : f32 to vector<16x128xf32>
    %1281 = arith.mulf %1204, %1280 : vector<16x128xf32>
    %1282 = arith.addf %1278, %1281 : vector<16x128xf32>
    %c3_53 = arith.constant 3 : index
    %1283 = memref.load %arg3[%c3_53] : memref<8xf32, #tpu.memory_space<smem>>
    %1284 = vector.broadcast %1283 : f32 to vector<16x128xf32>
    %1285 = arith.addf %1282, %1284 : vector<16x128xf32>
    %c0_54 = arith.constant 0 : index
    %c3_55 = arith.constant 3 : index
    %c0_56 = arith.constant 0 : index
    %c0_57 = arith.constant 0 : index
    %1286 = vector.load %arg5[%c0_54, %c3_55, %c0_56, %c0_57] : memref<2x8x16x128xf32, #tpu.memory_space<vmem>>, vector<1x1x16x128xf32>
    %1287 = vector.shape_cast %1286 : vector<1x1x16x128xf32> to vector<16x128xf32>
    %1288 = vector.shape_cast %1285 : vector<16x128xf32> to vector<1x1x16x128xf32>
    tpu.vector_store %arg5[%c0_54, %c3_55, %c0_56, %c0_57], %1288 {strides = array<i32>} : memref<2x8x16x128xf32, #tpu.memory_space<vmem>>, vector<1x1x16x128xf32>,
    %c4_58 = arith.constant 4 : index
    %1289 = memref.load %arg2[%c4_58] : memref<32xf32, #tpu.memory_space<smem>>
    %1290 = vector.broadcast %1289 : f32 to vector<16x128xf32>
    %1291 = arith.mulf %1078, %1290 : vector<16x128xf32>
    %c12_59 = arith.constant 12 : index
    %1292 = memref.load %arg2[%c12_59] : memref<32xf32, #tpu.memory_space<smem>>
    %1293 = vector.broadcast %1292 : f32 to vector<16x128xf32>
    %1294 = arith.mulf %1120, %1293 : vector<16x128xf32>
    %1295 = arith.addf %1291, %1294 : vector<16x128xf32>
    %c20_60 = arith.constant 20 : index
    %1296 = memref.load %arg2[%c20_60] : memref<32xf32, #tpu.memory_space<smem>>
    %1297 = vector.broadcast %1296 : f32 to vector<16x128xf32>
    %1298 = arith.mulf %1162, %1297 : vector<16x128xf32>
    %1299 = arith.addf %1295, %1298 : vector<16x128xf32>
    %c28_61 = arith.constant 28 : index
    %1300 = memref.load %arg2[%c28_61] : memref<32xf32, #tpu.memory_space<smem>>
    %1301 = vector.broadcast %1300 : f32 to vector<16x128xf32>
    %1302 = arith.mulf %1204, %1301 : vector<16x128xf32>
    %1303 = arith.addf %1299, %1302 : vector<16x128xf32>
    %c4_62 = arith.constant 4 : index
    %1304 = memref.load %arg3[%c4_62] : memref<8xf32, #tpu.memory_space<smem>>
    %1305 = vector.broadcast %1304 : f32 to vector<16x128xf32>
    %1306 = arith.addf %1303, %1305 : vector<16x128xf32>
    %c0_63 = arith.constant 0 : index
    %c4_64 = arith.constant 4 : index
    %c0_65 = arith.constant 0 : index
    %c0_66 = arith.constant 0 : index
    %1307 = vector.load %arg5[%c0_63, %c4_64, %c0_65, %c0_66] : memref<2x8x16x128xf32, #tpu.memory_space<vmem>>, vector<1x1x16x128xf32>
    %1308 = vector.shape_cast %1307 : vector<1x1x16x128xf32> to vector<16x128xf32>
    %1309 = vector.shape_cast %1306 : vector<16x128xf32> to vector<1x1x16x128xf32>
    tpu.vector_store %arg5[%c0_63, %c4_64, %c0_65, %c0_66], %1309 {strides = array<i32>} : memref<2x8x16x128xf32, #tpu.memory_space<vmem>>, vector<1x1x16x128xf32>,
    %c5_67 = arith.constant 5 : index
    %1310 = memref.load %arg2[%c5_67] : memref<32xf32, #tpu.memory_space<smem>>
    %1311 = vector.broadcast %1310 : f32 to vector<16x128xf32>
    %1312 = arith.mulf %1078, %1311 : vector<16x128xf32>
    %c13_68 = arith.constant 13 : index
    %1313 = memref.load %arg2[%c13_68] : memref<32xf32, #tpu.memory_space<smem>>
    %1314 = vector.broadcast %1313 : f32 to vector<16x128xf32>
    %1315 = arith.mulf %1120, %1314 : vector<16x128xf32>
    %1316 = arith.addf %1312, %1315 : vector<16x128xf32>
    %c21_69 = arith.constant 21 : index
    %1317 = memref.load %arg2[%c21_69] : memref<32xf32, #tpu.memory_space<smem>>
    %1318 = vector.broadcast %1317 : f32 to vector<16x128xf32>
    %1319 = arith.mulf %1162, %1318 : vector<16x128xf32>
    %1320 = arith.addf %1316, %1319 : vector<16x128xf32>
    %c29_70 = arith.constant 29 : index
    %1321 = memref.load %arg2[%c29_70] : memref<32xf32, #tpu.memory_space<smem>>
    %1322 = vector.broadcast %1321 : f32 to vector<16x128xf32>
    %1323 = arith.mulf %1204, %1322 : vector<16x128xf32>
    %1324 = arith.addf %1320, %1323 : vector<16x128xf32>
    %c5_71 = arith.constant 5 : index
    %1325 = memref.load %arg3[%c5_71] : memref<8xf32, #tpu.memory_space<smem>>
    %1326 = vector.broadcast %1325 : f32 to vector<16x128xf32>
    %1327 = arith.addf %1324, %1326 : vector<16x128xf32>
    %c0_72 = arith.constant 0 : index
    %c5_73 = arith.constant 5 : index
    %c0_74 = arith.constant 0 : index
    %c0_75 = arith.constant 0 : index
    %1328 = vector.load %arg5[%c0_72, %c5_73, %c0_74, %c0_75] : memref<2x8x16x128xf32, #tpu.memory_space<vmem>>, vector<1x1x16x128xf32>
    %1329 = vector.shape_cast %1328 : vector<1x1x16x128xf32> to vector<16x128xf32>
    %1330 = vector.shape_cast %1327 : vector<16x128xf32> to vector<1x1x16x128xf32>
    tpu.vector_store %arg5[%c0_72, %c5_73, %c0_74, %c0_75], %1330 {strides = array<i32>} : memref<2x8x16x128xf32, #tpu.memory_space<vmem>>, vector<1x1x16x128xf32>,
    %c6_76 = arith.constant 6 : index
    %1331 = memref.load %arg2[%c6_76] : memref<32xf32, #tpu.memory_space<smem>>
    %1332 = vector.broadcast %1331 : f32 to vector<16x128xf32>
    %1333 = arith.mulf %1078, %1332 : vector<16x128xf32>
    %c14_77 = arith.constant 14 : index
    %1334 = memref.load %arg2[%c14_77] : memref<32xf32, #tpu.memory_space<smem>>
    %1335 = vector.broadcast %1334 : f32 to vector<16x128xf32>
    %1336 = arith.mulf %1120, %1335 : vector<16x128xf32>
    %1337 = arith.addf %1333, %1336 : vector<16x128xf32>
    %c22_78 = arith.constant 22 : index
    %1338 = memref.load %arg2[%c22_78] : memref<32xf32, #tpu.memory_space<smem>>
    %1339 = vector.broadcast %1338 : f32 to vector<16x128xf32>
    %1340 = arith.mulf %1162, %1339 : vector<16x128xf32>
    %1341 = arith.addf %1337, %1340 : vector<16x128xf32>
    %c30_79 = arith.constant 30 : index
    %1342 = memref.load %arg2[%c30_79] : memref<32xf32, #tpu.memory_space<smem>>
    %1343 = vector.broadcast %1342 : f32 to vector<16x128xf32>
    %1344 = arith.mulf %1204, %1343 : vector<16x128xf32>
    %1345 = arith.addf %1341, %1344 : vector<16x128xf32>
    %c6_80 = arith.constant 6 : index
    %1346 = memref.load %arg3[%c6_80] : memref<8xf32, #tpu.memory_space<smem>>
    %1347 = vector.broadcast %1346 : f32 to vector<16x128xf32>
    %1348 = arith.addf %1345, %1347 : vector<16x128xf32>
    %c0_81 = arith.constant 0 : index
    %c6_82 = arith.constant 6 : index
    %c0_83 = arith.constant 0 : index
    %c0_84 = arith.constant 0 : index
    %1349 = vector.load %arg5[%c0_81, %c6_82, %c0_83, %c0_84] : memref<2x8x16x128xf32, #tpu.memory_space<vmem>>, vector<1x1x16x128xf32>
    %1350 = vector.shape_cast %1349 : vector<1x1x16x128xf32> to vector<16x128xf32>
    %1351 = vector.shape_cast %1348 : vector<16x128xf32> to vector<1x1x16x128xf32>
    tpu.vector_store %arg5[%c0_81, %c6_82, %c0_83, %c0_84], %1351 {strides = array<i32>} : memref<2x8x16x128xf32, #tpu.memory_space<vmem>>, vector<1x1x16x128xf32>,
    %c7_85 = arith.constant 7 : index
    %1352 = memref.load %arg2[%c7_85] : memref<32xf32, #tpu.memory_space<smem>>
    %1353 = vector.broadcast %1352 : f32 to vector<16x128xf32>
    %1354 = arith.mulf %1078, %1353 : vector<16x128xf32>
    %c15_86 = arith.constant 15 : index
    %1355 = memref.load %arg2[%c15_86] : memref<32xf32, #tpu.memory_space<smem>>
    %1356 = vector.broadcast %1355 : f32 to vector<16x128xf32>
    %1357 = arith.mulf %1120, %1356 : vector<16x128xf32>
    %1358 = arith.addf %1354, %1357 : vector<16x128xf32>
    %c23_87 = arith.constant 23 : index
    %1359 = memref.load %arg2[%c23_87] : memref<32xf32, #tpu.memory_space<smem>>
    %1360 = vector.broadcast %1359 : f32 to vector<16x128xf32>
    %1361 = arith.mulf %1162, %1360 : vector<16x128xf32>
    %1362 = arith.addf %1358, %1361 : vector<16x128xf32>
    %c31_88 = arith.constant 31 : index
    %1363 = memref.load %arg2[%c31_88] : memref<32xf32, #tpu.memory_space<smem>>
    %1364 = vector.broadcast %1363 : f32 to vector<16x128xf32>
    %1365 = arith.mulf %1204, %1364 : vector<16x128xf32>
    %1366 = arith.addf %1362, %1365 : vector<16x128xf32>
    %c7_89 = arith.constant 7 : index
    %1367 = memref.load %arg3[%c7_89] : memref<8xf32, #tpu.memory_space<smem>>
    %1368 = vector.broadcast %1367 : f32 to vector<16x128xf32>
    %1369 = arith.addf %1366, %1368 : vector<16x128xf32>
    %c0_90 = arith.constant 0 : index
    %c7_91 = arith.constant 7 : index
    %c0_92 = arith.constant 0 : index
    %c0_93 = arith.constant 0 : index
    %1370 = vector.load %arg5[%c0_90, %c7_91, %c0_92, %c0_93] : memref<2x8x16x128xf32, #tpu.memory_space<vmem>>, vector<1x1x16x128xf32>
    %1371 = vector.shape_cast %1370 : vector<1x1x16x128xf32> to vector<16x128xf32>
    %1372 = vector.shape_cast %1369 : vector<16x128xf32> to vector<1x1x16x128xf32>
    tpu.vector_store %arg5[%c0_90, %c7_91, %c0_92, %c0_93], %1372 {strides = array<i32>} : memref<2x8x16x128xf32, #tpu.memory_space<vmem>>, vector<1x1x16x128xf32>,
    %c1_94 = arith.constant 1 : index
    %c0_95 = arith.constant 0 : index
    %c0_96 = arith.constant 0 : index
    %c0_97 = arith.constant 0 : index
    %1373 = vector.load %arg4[%c1_94, %c0_95, %c0_96, %c0_97] : memref<2x4x24x128xf32, #tpu.memory_space<vmem>>, vector<1x4x24x128xf32>
    %1374 = vector.shape_cast %1373 : vector<1x4x24x128xf32> to vector<4x24x128xf32>
    %1375 = vector.extract_strided_slice %1374 {offsets = [0, 0, 0], sizes = [4, 16, 128], strides = [1, 1, 1]} : vector<4x24x128xf32> to vector<4x16x128xf32>
    %1376 = vector.extract_strided_slice %1374 {offsets = [0, 1, 0], sizes = [4, 16, 128], strides = [1, 1, 1]} : vector<4x24x128xf32> to vector<4x16x128xf32>
    %1377 = vector.extract_strided_slice %1374 {offsets = [0, 2, 0], sizes = [4, 16, 128], strides = [1, 1, 1]} : vector<4x24x128xf32> to vector<4x16x128xf32>
    %1378 = vector.extract_strided_slice %1374 {offsets = [0, 3, 0], sizes = [4, 16, 128], strides = [1, 1, 1]} : vector<4x24x128xf32> to vector<4x16x128xf32>
    %1379 = vector.extract_strided_slice %1374 {offsets = [0, 4, 0], sizes = [4, 16, 128], strides = [1, 1, 1]} : vector<4x24x128xf32> to vector<4x16x128xf32>
    %1380 = vector.extract_strided_slice %1374 {offsets = [0, 5, 0], sizes = [4, 16, 128], strides = [1, 1, 1]} : vector<4x24x128xf32> to vector<4x16x128xf32>
    %1381 = vector.extract_strided_slice %1374 {offsets = [0, 6, 0], sizes = [4, 16, 128], strides = [1, 1, 1]} : vector<4x24x128xf32> to vector<4x16x128xf32>
    %1382 = vector.extract_strided_slice %1375 {offsets = [0, 0, 0], sizes = [1, 16, 128], strides = [1, 1, 1]} : vector<4x16x128xf32> to vector<1x16x128xf32>
    %1383 = vector.shape_cast %1382 : vector<1x16x128xf32> to vector<16x128xf32>
    %c0_98 = arith.constant 0 : index
    %1384 = memref.load %arg1[%c0_98] : memref<196xf32, #tpu.memory_space<smem>>
    %1385 = vector.broadcast %1384 : f32 to vector<16x128xf32>
    %1386 = arith.mulf %1383, %1385 : vector<16x128xf32>
    %1387 = vector.extract_strided_slice %1376 {offsets = [0, 0, 0], sizes = [1, 16, 128], strides = [1, 1, 1]} : vector<4x16x128xf32> to vector<1x16x128xf32>
    %1388 = vector.shape_cast %1387 : vector<1x16x128xf32> to vector<16x128xf32>
    %c28_99 = arith.constant 28 : index
    %1389 = memref.load %arg1[%c28_99] : memref<196xf32, #tpu.memory_space<smem>>
    %1390 = vector.broadcast %1389 : f32 to vector<16x128xf32>
    %1391 = arith.mulf %1388, %1390 : vector<16x128xf32>
    %1392 = arith.addf %1386, %1391 : vector<16x128xf32>
    %1393 = vector.extract_strided_slice %1377 {offsets = [0, 0, 0], sizes = [1, 16, 128], strides = [1, 1, 1]} : vector<4x16x128xf32> to vector<1x16x128xf32>
    %1394 = vector.shape_cast %1393 : vector<1x16x128xf32> to vector<16x128xf32>
    %c56_100 = arith.constant 56 : index
    %1395 = memref.load %arg1[%c56_100] : memref<196xf32, #tpu.memory_space<smem>>
    %1396 = vector.broadcast %1395 : f32 to vector<16x128xf32>
    %1397 = arith.mulf %1394, %1396 : vector<16x128xf32>
    %1398 = arith.addf %1392, %1397 : vector<16x128xf32>
    %1399 = vector.extract_strided_slice %1378 {offsets = [0, 0, 0], sizes = [1, 16, 128], strides = [1, 1, 1]} : vector<4x16x128xf32> to vector<1x16x128xf32>
    %1400 = vector.shape_cast %1399 : vector<1x16x128xf32> to vector<16x128xf32>
    %c84_101 = arith.constant 84 : index
    %1401 = memref.load %arg1[%c84_101] : memref<196xf32, #tpu.memory_space<smem>>
    %1402 = vector.broadcast %1401 : f32 to vector<16x128xf32>
    %1403 = arith.mulf %1400, %1402 : vector<16x128xf32>
    %1404 = arith.addf %1398, %1403 : vector<16x128xf32>
    %1405 = vector.extract_strided_slice %1379 {offsets = [0, 0, 0], sizes = [1, 16, 128], strides = [1, 1, 1]} : vector<4x16x128xf32> to vector<1x16x128xf32>
    %1406 = vector.shape_cast %1405 : vector<1x16x128xf32> to vector<16x128xf32>
    %c112_102 = arith.constant 112 : index
    %1407 = memref.load %arg1[%c112_102] : memref<196xf32, #tpu.memory_space<smem>>
    %1408 = vector.broadcast %1407 : f32 to vector<16x128xf32>
    %1409 = arith.mulf %1406, %1408 : vector<16x128xf32>
    %1410 = arith.addf %1404, %1409 : vector<16x128xf32>
    %1411 = vector.extract_strided_slice %1380 {offsets = [0, 0, 0], sizes = [1, 16, 128], strides = [1, 1, 1]} : vector<4x16x128xf32> to vector<1x16x128xf32>
    %1412 = vector.shape_cast %1411 : vector<1x16x128xf32> to vector<16x128xf32>
    %c140_103 = arith.constant 140 : index
    %1413 = memref.load %arg1[%c140_103] : memref<196xf32, #tpu.memory_space<smem>>
    %1414 = vector.broadcast %1413 : f32 to vector<16x128xf32>
    %1415 = arith.mulf %1412, %1414 : vector<16x128xf32>
    %1416 = arith.addf %1410, %1415 : vector<16x128xf32>
    %1417 = vector.extract_strided_slice %1381 {offsets = [0, 0, 0], sizes = [1, 16, 128], strides = [1, 1, 1]} : vector<4x16x128xf32> to vector<1x16x128xf32>
    %1418 = vector.shape_cast %1417 : vector<1x16x128xf32> to vector<16x128xf32>
    %c168_104 = arith.constant 168 : index
    %1419 = memref.load %arg1[%c168_104] : memref<196xf32, #tpu.memory_space<smem>>
    %1420 = vector.broadcast %1419 : f32 to vector<16x128xf32>
    %1421 = arith.mulf %1418, %1420 : vector<16x128xf32>
    %1422 = arith.addf %1416, %1421 : vector<16x128xf32>
    %c6_i32_105 = arith.constant 6 : i32
    %1423 = tpu.dynamic_rotate %1422 by %c6_i32_105 dim 1 : vector<16x128xf32>, i32 -> vector<16x128xf32>
    %1424 = vector.extract_strided_slice %1375 {offsets = [1, 0, 0], sizes = [1, 16, 128], strides = [1, 1, 1]} : vector<4x16x128xf32> to vector<1x16x128xf32>
    %1425 = vector.shape_cast %1424 : vector<1x16x128xf32> to vector<16x128xf32>
    %c1_106 = arith.constant 1 : index
    %1426 = memref.load %arg1[%c1_106] : memref<196xf32, #tpu.memory_space<smem>>
    %1427 = vector.broadcast %1426 : f32 to vector<16x128xf32>
    %1428 = arith.mulf %1425, %1427 : vector<16x128xf32>
    %1429 = vector.extract_strided_slice %1376 {offsets = [1, 0, 0], sizes = [1, 16, 128], strides = [1, 1, 1]} : vector<4x16x128xf32> to vector<1x16x128xf32>
    %1430 = vector.shape_cast %1429 : vector<1x16x128xf32> to vector<16x128xf32>
    %c29_107 = arith.constant 29 : index
    %1431 = memref.load %arg1[%c29_107] : memref<196xf32, #tpu.memory_space<smem>>
    %1432 = vector.broadcast %1431 : f32 to vector<16x128xf32>
    %1433 = arith.mulf %1430, %1432 : vector<16x128xf32>
    %1434 = arith.addf %1428, %1433 : vector<16x128xf32>
    %1435 = vector.extract_strided_slice %1377 {offsets = [1, 0, 0], sizes = [1, 16, 128], strides = [1, 1, 1]} : vector<4x16x128xf32> to vector<1x16x128xf32>
    %1436 = vector.shape_cast %1435 : vector<1x16x128xf32> to vector<16x128xf32>
    %c57_108 = arith.constant 57 : index
    %1437 = memref.load %arg1[%c57_108] : memref<196xf32, #tpu.memory_space<smem>>
    %1438 = vector.broadcast %1437 : f32 to vector<16x128xf32>
    %1439 = arith.mulf %1436, %1438 : vector<16x128xf32>
    %1440 = arith.addf %1434, %1439 : vector<16x128xf32>
    %1441 = vector.extract_strided_slice %1378 {offsets = [1, 0, 0], sizes = [1, 16, 128], strides = [1, 1, 1]} : vector<4x16x128xf32> to vector<1x16x128xf32>
    %1442 = vector.shape_cast %1441 : vector<1x16x128xf32> to vector<16x128xf32>
    %c85_109 = arith.constant 85 : index
    %1443 = memref.load %arg1[%c85_109] : memref<196xf32, #tpu.memory_space<smem>>
    %1444 = vector.broadcast %1443 : f32 to vector<16x128xf32>
    %1445 = arith.mulf %1442, %1444 : vector<16x128xf32>
    %1446 = arith.addf %1440, %1445 : vector<16x128xf32>
    %1447 = vector.extract_strided_slice %1379 {offsets = [1, 0, 0], sizes = [1, 16, 128], strides = [1, 1, 1]} : vector<4x16x128xf32> to vector<1x16x128xf32>
    %1448 = vector.shape_cast %1447 : vector<1x16x128xf32> to vector<16x128xf32>
    %c113_110 = arith.constant 113 : index
    %1449 = memref.load %arg1[%c113_110] : memref<196xf32, #tpu.memory_space<smem>>
    %1450 = vector.broadcast %1449 : f32 to vector<16x128xf32>
    %1451 = arith.mulf %1448, %1450 : vector<16x128xf32>
    %1452 = arith.addf %1446, %1451 : vector<16x128xf32>
    %1453 = vector.extract_strided_slice %1380 {offsets = [1, 0, 0], sizes = [1, 16, 128], strides = [1, 1, 1]} : vector<4x16x128xf32> to vector<1x16x128xf32>
    %1454 = vector.shape_cast %1453 : vector<1x16x128xf32> to vector<16x128xf32>
    %c141_111 = arith.constant 141 : index
    %1455 = memref.load %arg1[%c141_111] : memref<196xf32, #tpu.memory_space<smem>>
    %1456 = vector.broadcast %1455 : f32 to vector<16x128xf32>
    %1457 = arith.mulf %1454, %1456 : vector<16x128xf32>
    %1458 = arith.addf %1452, %1457 : vector<16x128xf32>
    %1459 = vector.extract_strided_slice %1381 {offsets = [1, 0, 0], sizes = [1, 16, 128], strides = [1, 1, 1]} : vector<4x16x128xf32> to vector<1x16x128xf32>
    %1460 = vector.shape_cast %1459 : vector<1x16x128xf32> to vector<16x128xf32>
    %c169_112 = arith.constant 169 : index
    %1461 = memref.load %arg1[%c169_112] : memref<196xf32, #tpu.memory_space<smem>>
    %1462 = vector.broadcast %1461 : f32 to vector<16x128xf32>
    %1463 = arith.mulf %1460, %1462 : vector<16x128xf32>
    %1464 = arith.addf %1458, %1463 : vector<16x128xf32>
    %c6_i32_113 = arith.constant 6 : i32
    %1465 = tpu.dynamic_rotate %1464 by %c6_i32_113 dim 1 : vector<16x128xf32>, i32 -> vector<16x128xf32>
    %1466 = vector.extract_strided_slice %1375 {offsets = [2, 0, 0], sizes = [1, 16, 128], strides = [1, 1, 1]} : vector<4x16x128xf32> to vector<1x16x128xf32>
    %1467 = vector.shape_cast %1466 : vector<1x16x128xf32> to vector<16x128xf32>
    %c2_114 = arith.constant 2 : index
    %1468 = memref.load %arg1[%c2_114] : memref<196xf32, #tpu.memory_space<smem>>
    %1469 = vector.broadcast %1468 : f32 to vector<16x128xf32>
    %1470 = arith.mulf %1467, %1469 : vector<16x128xf32>
    %1471 = vector.extract_strided_slice %1376 {offsets = [2, 0, 0], sizes = [1, 16, 128], strides = [1, 1, 1]} : vector<4x16x128xf32> to vector<1x16x128xf32>
    %1472 = vector.shape_cast %1471 : vector<1x16x128xf32> to vector<16x128xf32>
    %c30_115 = arith.constant 30 : index
    %1473 = memref.load %arg1[%c30_115] : memref<196xf32, #tpu.memory_space<smem>>
    %1474 = vector.broadcast %1473 : f32 to vector<16x128xf32>
    %1475 = arith.mulf %1472, %1474 : vector<16x128xf32>
    %1476 = arith.addf %1470, %1475 : vector<16x128xf32>
    %1477 = vector.extract_strided_slice %1377 {offsets = [2, 0, 0], sizes = [1, 16, 128], strides = [1, 1, 1]} : vector<4x16x128xf32> to vector<1x16x128xf32>
    %1478 = vector.shape_cast %1477 : vector<1x16x128xf32> to vector<16x128xf32>
    %c58_116 = arith.constant 58 : index
    %1479 = memref.load %arg1[%c58_116] : memref<196xf32, #tpu.memory_space<smem>>
    %1480 = vector.broadcast %1479 : f32 to vector<16x128xf32>
    %1481 = arith.mulf %1478, %1480 : vector<16x128xf32>
    %1482 = arith.addf %1476, %1481 : vector<16x128xf32>
    %1483 = vector.extract_strided_slice %1378 {offsets = [2, 0, 0], sizes = [1, 16, 128], strides = [1, 1, 1]} : vector<4x16x128xf32> to vector<1x16x128xf32>
    %1484 = vector.shape_cast %1483 : vector<1x16x128xf32> to vector<16x128xf32>
    %c86_117 = arith.constant 86 : index
    %1485 = memref.load %arg1[%c86_117] : memref<196xf32, #tpu.memory_space<smem>>
    %1486 = vector.broadcast %1485 : f32 to vector<16x128xf32>
    %1487 = arith.mulf %1484, %1486 : vector<16x128xf32>
    %1488 = arith.addf %1482, %1487 : vector<16x128xf32>
    %1489 = vector.extract_strided_slice %1379 {offsets = [2, 0, 0], sizes = [1, 16, 128], strides = [1, 1, 1]} : vector<4x16x128xf32> to vector<1x16x128xf32>
    %1490 = vector.shape_cast %1489 : vector<1x16x128xf32> to vector<16x128xf32>
    %c114_118 = arith.constant 114 : index
    %1491 = memref.load %arg1[%c114_118] : memref<196xf32, #tpu.memory_space<smem>>
    %1492 = vector.broadcast %1491 : f32 to vector<16x128xf32>
    %1493 = arith.mulf %1490, %1492 : vector<16x128xf32>
    %1494 = arith.addf %1488, %1493 : vector<16x128xf32>
    %1495 = vector.extract_strided_slice %1380 {offsets = [2, 0, 0], sizes = [1, 16, 128], strides = [1, 1, 1]} : vector<4x16x128xf32> to vector<1x16x128xf32>
    %1496 = vector.shape_cast %1495 : vector<1x16x128xf32> to vector<16x128xf32>
    %c142_119 = arith.constant 142 : index
    %1497 = memref.load %arg1[%c142_119] : memref<196xf32, #tpu.memory_space<smem>>
    %1498 = vector.broadcast %1497 : f32 to vector<16x128xf32>
    %1499 = arith.mulf %1496, %1498 : vector<16x128xf32>
    %1500 = arith.addf %1494, %1499 : vector<16x128xf32>
    %1501 = vector.extract_strided_slice %1381 {offsets = [2, 0, 0], sizes = [1, 16, 128], strides = [1, 1, 1]} : vector<4x16x128xf32> to vector<1x16x128xf32>
    %1502 = vector.shape_cast %1501 : vector<1x16x128xf32> to vector<16x128xf32>
    %c170_120 = arith.constant 170 : index
    %1503 = memref.load %arg1[%c170_120] : memref<196xf32, #tpu.memory_space<smem>>
    %1504 = vector.broadcast %1503 : f32 to vector<16x128xf32>
    %1505 = arith.mulf %1502, %1504 : vector<16x128xf32>
    %1506 = arith.addf %1500, %1505 : vector<16x128xf32>
    %c6_i32_121 = arith.constant 6 : i32
    %1507 = tpu.dynamic_rotate %1506 by %c6_i32_121 dim 1 : vector<16x128xf32>, i32 -> vector<16x128xf32>
    %1508 = vector.extract_strided_slice %1375 {offsets = [3, 0, 0], sizes = [1, 16, 128], strides = [1, 1, 1]} : vector<4x16x128xf32> to vector<1x16x128xf32>
    %1509 = vector.shape_cast %1508 : vector<1x16x128xf32> to vector<16x128xf32>
    %c3_122 = arith.constant 3 : index
    %1510 = memref.load %arg1[%c3_122] : memref<196xf32, #tpu.memory_space<smem>>
    %1511 = vector.broadcast %1510 : f32 to vector<16x128xf32>
    %1512 = arith.mulf %1509, %1511 : vector<16x128xf32>
    %1513 = vector.extract_strided_slice %1376 {offsets = [3, 0, 0], sizes = [1, 16, 128], strides = [1, 1, 1]} : vector<4x16x128xf32> to vector<1x16x128xf32>
    %1514 = vector.shape_cast %1513 : vector<1x16x128xf32> to vector<16x128xf32>
    %c31_123 = arith.constant 31 : index
    %1515 = memref.load %arg1[%c31_123] : memref<196xf32, #tpu.memory_space<smem>>
    %1516 = vector.broadcast %1515 : f32 to vector<16x128xf32>
    %1517 = arith.mulf %1514, %1516 : vector<16x128xf32>
    %1518 = arith.addf %1512, %1517 : vector<16x128xf32>
    %1519 = vector.extract_strided_slice %1377 {offsets = [3, 0, 0], sizes = [1, 16, 128], strides = [1, 1, 1]} : vector<4x16x128xf32> to vector<1x16x128xf32>
    %1520 = vector.shape_cast %1519 : vector<1x16x128xf32> to vector<16x128xf32>
    %c59_124 = arith.constant 59 : index
    %1521 = memref.load %arg1[%c59_124] : memref<196xf32, #tpu.memory_space<smem>>
    %1522 = vector.broadcast %1521 : f32 to vector<16x128xf32>
    %1523 = arith.mulf %1520, %1522 : vector<16x128xf32>
    %1524 = arith.addf %1518, %1523 : vector<16x128xf32>
    %1525 = vector.extract_strided_slice %1378 {offsets = [3, 0, 0], sizes = [1, 16, 128], strides = [1, 1, 1]} : vector<4x16x128xf32> to vector<1x16x128xf32>
    %1526 = vector.shape_cast %1525 : vector<1x16x128xf32> to vector<16x128xf32>
    %c87_125 = arith.constant 87 : index
    %1527 = memref.load %arg1[%c87_125] : memref<196xf32, #tpu.memory_space<smem>>
    %1528 = vector.broadcast %1527 : f32 to vector<16x128xf32>
    %1529 = arith.mulf %1526, %1528 : vector<16x128xf32>
    %1530 = arith.addf %1524, %1529 : vector<16x128xf32>
    %1531 = vector.extract_strided_slice %1379 {offsets = [3, 0, 0], sizes = [1, 16, 128], strides = [1, 1, 1]} : vector<4x16x128xf32> to vector<1x16x128xf32>
    %1532 = vector.shape_cast %1531 : vector<1x16x128xf32> to vector<16x128xf32>
    %c115_126 = arith.constant 115 : index
    %1533 = memref.load %arg1[%c115_126] : memref<196xf32, #tpu.memory_space<smem>>
    %1534 = vector.broadcast %1533 : f32 to vector<16x128xf32>
    %1535 = arith.mulf %1532, %1534 : vector<16x128xf32>
    %1536 = arith.addf %1530, %1535 : vector<16x128xf32>
    %1537 = vector.extract_strided_slice %1380 {offsets = [3, 0, 0], sizes = [1, 16, 128], strides = [1, 1, 1]} : vector<4x16x128xf32> to vector<1x16x128xf32>
    %1538 = vector.shape_cast %1537 : vector<1x16x128xf32> to vector<16x128xf32>
    %c143_127 = arith.constant 143 : index
    %1539 = memref.load %arg1[%c143_127] : memref<196xf32, #tpu.memory_space<smem>>
    %1540 = vector.broadcast %1539 : f32 to vector<16x128xf32>
    %1541 = arith.mulf %1538, %1540 : vector<16x128xf32>
    %1542 = arith.addf %1536, %1541 : vector<16x128xf32>
    %1543 = vector.extract_strided_slice %1381 {offsets = [3, 0, 0], sizes = [1, 16, 128], strides = [1, 1, 1]} : vector<4x16x128xf32> to vector<1x16x128xf32>
    %1544 = vector.shape_cast %1543 : vector<1x16x128xf32> to vector<16x128xf32>
    %c171_128 = arith.constant 171 : index
    %1545 = memref.load %arg1[%c171_128] : memref<196xf32, #tpu.memory_space<smem>>
    %1546 = vector.broadcast %1545 : f32 to vector<16x128xf32>
    %1547 = arith.mulf %1544, %1546 : vector<16x128xf32>
    %1548 = arith.addf %1542, %1547 : vector<16x128xf32>
    %c6_i32_129 = arith.constant 6 : i32
    %1549 = tpu.dynamic_rotate %1548 by %c6_i32_129 dim 1 : vector<16x128xf32>, i32 -> vector<16x128xf32>
    %1550 = vector.extract_strided_slice %1375 {offsets = [0, 0, 0], sizes = [1, 16, 128], strides = [1, 1, 1]} : vector<4x16x128xf32> to vector<1x16x128xf32>
    %1551 = vector.shape_cast %1550 : vector<1x16x128xf32> to vector<16x128xf32>
    %c4_130 = arith.constant 4 : index
    %1552 = memref.load %arg1[%c4_130] : memref<196xf32, #tpu.memory_space<smem>>
    %1553 = vector.broadcast %1552 : f32 to vector<16x128xf32>
    %1554 = arith.mulf %1551, %1553 : vector<16x128xf32>
    %1555 = vector.extract_strided_slice %1376 {offsets = [0, 0, 0], sizes = [1, 16, 128], strides = [1, 1, 1]} : vector<4x16x128xf32> to vector<1x16x128xf32>
    %1556 = vector.shape_cast %1555 : vector<1x16x128xf32> to vector<16x128xf32>
    %c32_131 = arith.constant 32 : index
    %1557 = memref.load %arg1[%c32_131] : memref<196xf32, #tpu.memory_space<smem>>
    %1558 = vector.broadcast %1557 : f32 to vector<16x128xf32>
    %1559 = arith.mulf %1556, %1558 : vector<16x128xf32>
    %1560 = arith.addf %1554, %1559 : vector<16x128xf32>
    %1561 = vector.extract_strided_slice %1377 {offsets = [0, 0, 0], sizes = [1, 16, 128], strides = [1, 1, 1]} : vector<4x16x128xf32> to vector<1x16x128xf32>
    %1562 = vector.shape_cast %1561 : vector<1x16x128xf32> to vector<16x128xf32>
    %c60_132 = arith.constant 60 : index
    %1563 = memref.load %arg1[%c60_132] : memref<196xf32, #tpu.memory_space<smem>>
    %1564 = vector.broadcast %1563 : f32 to vector<16x128xf32>
    %1565 = arith.mulf %1562, %1564 : vector<16x128xf32>
    %1566 = arith.addf %1560, %1565 : vector<16x128xf32>
    %1567 = vector.extract_strided_slice %1378 {offsets = [0, 0, 0], sizes = [1, 16, 128], strides = [1, 1, 1]} : vector<4x16x128xf32> to vector<1x16x128xf32>
    %1568 = vector.shape_cast %1567 : vector<1x16x128xf32> to vector<16x128xf32>
    %c88_133 = arith.constant 88 : index
    %1569 = memref.load %arg1[%c88_133] : memref<196xf32, #tpu.memory_space<smem>>
    %1570 = vector.broadcast %1569 : f32 to vector<16x128xf32>
    %1571 = arith.mulf %1568, %1570 : vector<16x128xf32>
    %1572 = arith.addf %1566, %1571 : vector<16x128xf32>
    %1573 = vector.extract_strided_slice %1379 {offsets = [0, 0, 0], sizes = [1, 16, 128], strides = [1, 1, 1]} : vector<4x16x128xf32> to vector<1x16x128xf32>
    %1574 = vector.shape_cast %1573 : vector<1x16x128xf32> to vector<16x128xf32>
    %c116_134 = arith.constant 116 : index
    %1575 = memref.load %arg1[%c116_134] : memref<196xf32, #tpu.memory_space<smem>>
    %1576 = vector.broadcast %1575 : f32 to vector<16x128xf32>
    %1577 = arith.mulf %1574, %1576 : vector<16x128xf32>
    %1578 = arith.addf %1572, %1577 : vector<16x128xf32>
    %1579 = vector.extract_strided_slice %1380 {offsets = [0, 0, 0], sizes = [1, 16, 128], strides = [1, 1, 1]} : vector<4x16x128xf32> to vector<1x16x128xf32>
    %1580 = vector.shape_cast %1579 : vector<1x16x128xf32> to vector<16x128xf32>
    %c144_135 = arith.constant 144 : index
    %1581 = memref.load %arg1[%c144_135] : memref<196xf32, #tpu.memory_space<smem>>
    %1582 = vector.broadcast %1581 : f32 to vector<16x128xf32>
    %1583 = arith.mulf %1580, %1582 : vector<16x128xf32>
    %1584 = arith.addf %1578, %1583 : vector<16x128xf32>
    %1585 = vector.extract_strided_slice %1381 {offsets = [0, 0, 0], sizes = [1, 16, 128], strides = [1, 1, 1]} : vector<4x16x128xf32> to vector<1x16x128xf32>
    %1586 = vector.shape_cast %1585 : vector<1x16x128xf32> to vector<16x128xf32>
    %c172_136 = arith.constant 172 : index
    %1587 = memref.load %arg1[%c172_136] : memref<196xf32, #tpu.memory_space<smem>>
    %1588 = vector.broadcast %1587 : f32 to vector<16x128xf32>
    %1589 = arith.mulf %1586, %1588 : vector<16x128xf32>
    %1590 = arith.addf %1584, %1589 : vector<16x128xf32>
    %c5_i32_137 = arith.constant 5 : i32
    %1591 = tpu.dynamic_rotate %1590 by %c5_i32_137 dim 1 : vector<16x128xf32>, i32 -> vector<16x128xf32>
    %1592 = arith.addf %1423, %1591 : vector<16x128xf32>
    %1593 = vector.extract_strided_slice %1375 {offsets = [1, 0, 0], sizes = [1, 16, 128], strides = [1, 1, 1]} : vector<4x16x128xf32> to vector<1x16x128xf32>
    %1594 = vector.shape_cast %1593 : vector<1x16x128xf32> to vector<16x128xf32>
    %c5_138 = arith.constant 5 : index
    %1595 = memref.load %arg1[%c5_138] : memref<196xf32, #tpu.memory_space<smem>>
    %1596 = vector.broadcast %1595 : f32 to vector<16x128xf32>
    %1597 = arith.mulf %1594, %1596 : vector<16x128xf32>
    %1598 = vector.extract_strided_slice %1376 {offsets = [1, 0, 0], sizes = [1, 16, 128], strides = [1, 1, 1]} : vector<4x16x128xf32> to vector<1x16x128xf32>
    %1599 = vector.shape_cast %1598 : vector<1x16x128xf32> to vector<16x128xf32>
    %c33_139 = arith.constant 33 : index
    %1600 = memref.load %arg1[%c33_139] : memref<196xf32, #tpu.memory_space<smem>>
    %1601 = vector.broadcast %1600 : f32 to vector<16x128xf32>
    %1602 = arith.mulf %1599, %1601 : vector<16x128xf32>
    %1603 = arith.addf %1597, %1602 : vector<16x128xf32>
    %1604 = vector.extract_strided_slice %1377 {offsets = [1, 0, 0], sizes = [1, 16, 128], strides = [1, 1, 1]} : vector<4x16x128xf32> to vector<1x16x128xf32>
    %1605 = vector.shape_cast %1604 : vector<1x16x128xf32> to vector<16x128xf32>
    %c61_140 = arith.constant 61 : index
    %1606 = memref.load %arg1[%c61_140] : memref<196xf32, #tpu.memory_space<smem>>
    %1607 = vector.broadcast %1606 : f32 to vector<16x128xf32>
    %1608 = arith.mulf %1605, %1607 : vector<16x128xf32>
    %1609 = arith.addf %1603, %1608 : vector<16x128xf32>
    %1610 = vector.extract_strided_slice %1378 {offsets = [1, 0, 0], sizes = [1, 16, 128], strides = [1, 1, 1]} : vector<4x16x128xf32> to vector<1x16x128xf32>
    %1611 = vector.shape_cast %1610 : vector<1x16x128xf32> to vector<16x128xf32>
    %c89_141 = arith.constant 89 : index
    %1612 = memref.load %arg1[%c89_141] : memref<196xf32, #tpu.memory_space<smem>>
    %1613 = vector.broadcast %1612 : f32 to vector<16x128xf32>
    %1614 = arith.mulf %1611, %1613 : vector<16x128xf32>
    %1615 = arith.addf %1609, %1614 : vector<16x128xf32>
    %1616 = vector.extract_strided_slice %1379 {offsets = [1, 0, 0], sizes = [1, 16, 128], strides = [1, 1, 1]} : vector<4x16x128xf32> to vector<1x16x128xf32>
    %1617 = vector.shape_cast %1616 : vector<1x16x128xf32> to vector<16x128xf32>
    %c117_142 = arith.constant 117 : index
    %1618 = memref.load %arg1[%c117_142] : memref<196xf32, #tpu.memory_space<smem>>
    %1619 = vector.broadcast %1618 : f32 to vector<16x128xf32>
    %1620 = arith.mulf %1617, %1619 : vector<16x128xf32>
    %1621 = arith.addf %1615, %1620 : vector<16x128xf32>
    %1622 = vector.extract_strided_slice %1380 {offsets = [1, 0, 0], sizes = [1, 16, 128], strides = [1, 1, 1]} : vector<4x16x128xf32> to vector<1x16x128xf32>
    %1623 = vector.shape_cast %1622 : vector<1x16x128xf32> to vector<16x128xf32>
    %c145_143 = arith.constant 145 : index
    %1624 = memref.load %arg1[%c145_143] : memref<196xf32, #tpu.memory_space<smem>>
    %1625 = vector.broadcast %1624 : f32 to vector<16x128xf32>
    %1626 = arith.mulf %1623, %1625 : vector<16x128xf32>
    %1627 = arith.addf %1621, %1626 : vector<16x128xf32>
    %1628 = vector.extract_strided_slice %1381 {offsets = [1, 0, 0], sizes = [1, 16, 128], strides = [1, 1, 1]} : vector<4x16x128xf32> to vector<1x16x128xf32>
    %1629 = vector.shape_cast %1628 : vector<1x16x128xf32> to vector<16x128xf32>
    %c173_144 = arith.constant 173 : index
    %1630 = memref.load %arg1[%c173_144] : memref<196xf32, #tpu.memory_space<smem>>
    %1631 = vector.broadcast %1630 : f32 to vector<16x128xf32>
    %1632 = arith.mulf %1629, %1631 : vector<16x128xf32>
    %1633 = arith.addf %1627, %1632 : vector<16x128xf32>
    %c5_i32_145 = arith.constant 5 : i32
    %1634 = tpu.dynamic_rotate %1633 by %c5_i32_145 dim 1 : vector<16x128xf32>, i32 -> vector<16x128xf32>
    %1635 = arith.addf %1465, %1634 : vector<16x128xf32>
    %1636 = vector.extract_strided_slice %1375 {offsets = [2, 0, 0], sizes = [1, 16, 128], strides = [1, 1, 1]} : vector<4x16x128xf32> to vector<1x16x128xf32>
    %1637 = vector.shape_cast %1636 : vector<1x16x128xf32> to vector<16x128xf32>
    %c6_146 = arith.constant 6 : index
    %1638 = memref.load %arg1[%c6_146] : memref<196xf32, #tpu.memory_space<smem>>
    %1639 = vector.broadcast %1638 : f32 to vector<16x128xf32>
    %1640 = arith.mulf %1637, %1639 : vector<16x128xf32>
    %1641 = vector.extract_strided_slice %1376 {offsets = [2, 0, 0], sizes = [1, 16, 128], strides = [1, 1, 1]} : vector<4x16x128xf32> to vector<1x16x128xf32>
    %1642 = vector.shape_cast %1641 : vector<1x16x128xf32> to vector<16x128xf32>
    %c34_147 = arith.constant 34 : index
    %1643 = memref.load %arg1[%c34_147] : memref<196xf32, #tpu.memory_space<smem>>
    %1644 = vector.broadcast %1643 : f32 to vector<16x128xf32>
    %1645 = arith.mulf %1642, %1644 : vector<16x128xf32>
    %1646 = arith.addf %1640, %1645 : vector<16x128xf32>
    %1647 = vector.extract_strided_slice %1377 {offsets = [2, 0, 0], sizes = [1, 16, 128], strides = [1, 1, 1]} : vector<4x16x128xf32> to vector<1x16x128xf32>
    %1648 = vector.shape_cast %1647 : vector<1x16x128xf32> to vector<16x128xf32>
    %c62_148 = arith.constant 62 : index
    %1649 = memref.load %arg1[%c62_148] : memref<196xf32, #tpu.memory_space<smem>>
    %1650 = vector.broadcast %1649 : f32 to vector<16x128xf32>
    %1651 = arith.mulf %1648, %1650 : vector<16x128xf32>
    %1652 = arith.addf %1646, %1651 : vector<16x128xf32>
    %1653 = vector.extract_strided_slice %1378 {offsets = [2, 0, 0], sizes = [1, 16, 128], strides = [1, 1, 1]} : vector<4x16x128xf32> to vector<1x16x128xf32>
    %1654 = vector.shape_cast %1653 : vector<1x16x128xf32> to vector<16x128xf32>
    %c90_149 = arith.constant 90 : index
    %1655 = memref.load %arg1[%c90_149] : memref<196xf32, #tpu.memory_space<smem>>
    %1656 = vector.broadcast %1655 : f32 to vector<16x128xf32>
    %1657 = arith.mulf %1654, %1656 : vector<16x128xf32>
    %1658 = arith.addf %1652, %1657 : vector<16x128xf32>
    %1659 = vector.extract_strided_slice %1379 {offsets = [2, 0, 0], sizes = [1, 16, 128], strides = [1, 1, 1]} : vector<4x16x128xf32> to vector<1x16x128xf32>
    %1660 = vector.shape_cast %1659 : vector<1x16x128xf32> to vector<16x128xf32>
    %c118_150 = arith.constant 118 : index
    %1661 = memref.load %arg1[%c118_150] : memref<196xf32, #tpu.memory_space<smem>>
    %1662 = vector.broadcast %1661 : f32 to vector<16x128xf32>
    %1663 = arith.mulf %1660, %1662 : vector<16x128xf32>
    %1664 = arith.addf %1658, %1663 : vector<16x128xf32>
    %1665 = vector.extract_strided_slice %1380 {offsets = [2, 0, 0], sizes = [1, 16, 128], strides = [1, 1, 1]} : vector<4x16x128xf32> to vector<1x16x128xf32>
    %1666 = vector.shape_cast %1665 : vector<1x16x128xf32> to vector<16x128xf32>
    %c146_151 = arith.constant 146 : index
    %1667 = memref.load %arg1[%c146_151] : memref<196xf32, #tpu.memory_space<smem>>
    %1668 = vector.broadcast %1667 : f32 to vector<16x128xf32>
    %1669 = arith.mulf %1666, %1668 : vector<16x128xf32>
    %1670 = arith.addf %1664, %1669 : vector<16x128xf32>
    %1671 = vector.extract_strided_slice %1381 {offsets = [2, 0, 0], sizes = [1, 16, 128], strides = [1, 1, 1]} : vector<4x16x128xf32> to vector<1x16x128xf32>
    %1672 = vector.shape_cast %1671 : vector<1x16x128xf32> to vector<16x128xf32>
    %c174_152 = arith.constant 174 : index
    %1673 = memref.load %arg1[%c174_152] : memref<196xf32, #tpu.memory_space<smem>>
    %1674 = vector.broadcast %1673 : f32 to vector<16x128xf32>
    %1675 = arith.mulf %1672, %1674 : vector<16x128xf32>
    %1676 = arith.addf %1670, %1675 : vector<16x128xf32>
    %c5_i32_153 = arith.constant 5 : i32
    %1677 = tpu.dynamic_rotate %1676 by %c5_i32_153 dim 1 : vector<16x128xf32>, i32 -> vector<16x128xf32>
    %1678 = arith.addf %1507, %1677 : vector<16x128xf32>
    %1679 = vector.extract_strided_slice %1375 {offsets = [3, 0, 0], sizes = [1, 16, 128], strides = [1, 1, 1]} : vector<4x16x128xf32> to vector<1x16x128xf32>
    %1680 = vector.shape_cast %1679 : vector<1x16x128xf32> to vector<16x128xf32>
    %c7_154 = arith.constant 7 : index
    %1681 = memref.load %arg1[%c7_154] : memref<196xf32, #tpu.memory_space<smem>>
    %1682 = vector.broadcast %1681 : f32 to vector<16x128xf32>
    %1683 = arith.mulf %1680, %1682 : vector<16x128xf32>
    %1684 = vector.extract_strided_slice %1376 {offsets = [3, 0, 0], sizes = [1, 16, 128], strides = [1, 1, 1]} : vector<4x16x128xf32> to vector<1x16x128xf32>
    %1685 = vector.shape_cast %1684 : vector<1x16x128xf32> to vector<16x128xf32>
    %c35_155 = arith.constant 35 : index
    %1686 = memref.load %arg1[%c35_155] : memref<196xf32, #tpu.memory_space<smem>>
    %1687 = vector.broadcast %1686 : f32 to vector<16x128xf32>
    %1688 = arith.mulf %1685, %1687 : vector<16x128xf32>
    %1689 = arith.addf %1683, %1688 : vector<16x128xf32>
    %1690 = vector.extract_strided_slice %1377 {offsets = [3, 0, 0], sizes = [1, 16, 128], strides = [1, 1, 1]} : vector<4x16x128xf32> to vector<1x16x128xf32>
    %1691 = vector.shape_cast %1690 : vector<1x16x128xf32> to vector<16x128xf32>
    %c63_156 = arith.constant 63 : index
    %1692 = memref.load %arg1[%c63_156] : memref<196xf32, #tpu.memory_space<smem>>
    %1693 = vector.broadcast %1692 : f32 to vector<16x128xf32>
    %1694 = arith.mulf %1691, %1693 : vector<16x128xf32>
    %1695 = arith.addf %1689, %1694 : vector<16x128xf32>
    %1696 = vector.extract_strided_slice %1378 {offsets = [3, 0, 0], sizes = [1, 16, 128], strides = [1, 1, 1]} : vector<4x16x128xf32> to vector<1x16x128xf32>
    %1697 = vector.shape_cast %1696 : vector<1x16x128xf32> to vector<16x128xf32>
    %c91_157 = arith.constant 91 : index
    %1698 = memref.load %arg1[%c91_157] : memref<196xf32, #tpu.memory_space<smem>>
    %1699 = vector.broadcast %1698 : f32 to vector<16x128xf32>
    %1700 = arith.mulf %1697, %1699 : vector<16x128xf32>
    %1701 = arith.addf %1695, %1700 : vector<16x128xf32>
    %1702 = vector.extract_strided_slice %1379 {offsets = [3, 0, 0], sizes = [1, 16, 128], strides = [1, 1, 1]} : vector<4x16x128xf32> to vector<1x16x128xf32>
    %1703 = vector.shape_cast %1702 : vector<1x16x128xf32> to vector<16x128xf32>
    %c119_158 = arith.constant 119 : index
    %1704 = memref.load %arg1[%c119_158] : memref<196xf32, #tpu.memory_space<smem>>
    %1705 = vector.broadcast %1704 : f32 to vector<16x128xf32>
    %1706 = arith.mulf %1703, %1705 : vector<16x128xf32>
    %1707 = arith.addf %1701, %1706 : vector<16x128xf32>
    %1708 = vector.extract_strided_slice %1380 {offsets = [3, 0, 0], sizes = [1, 16, 128], strides = [1, 1, 1]} : vector<4x16x128xf32> to vector<1x16x128xf32>
    %1709 = vector.shape_cast %1708 : vector<1x16x128xf32> to vector<16x128xf32>
    %c147_159 = arith.constant 147 : index
    %1710 = memref.load %arg1[%c147_159] : memref<196xf32, #tpu.memory_space<smem>>
    %1711 = vector.broadcast %1710 : f32 to vector<16x128xf32>
    %1712 = arith.mulf %1709, %1711 : vector<16x128xf32>
    %1713 = arith.addf %1707, %1712 : vector<16x128xf32>
    %1714 = vector.extract_strided_slice %1381 {offsets = [3, 0, 0], sizes = [1, 16, 128], strides = [1, 1, 1]} : vector<4x16x128xf32> to vector<1x16x128xf32>
    %1715 = vector.shape_cast %1714 : vector<1x16x128xf32> to vector<16x128xf32>
    %c175_160 = arith.constant 175 : index
    %1716 = memref.load %arg1[%c175_160] : memref<196xf32, #tpu.memory_space<smem>>
    %1717 = vector.broadcast %1716 : f32 to vector<16x128xf32>
    %1718 = arith.mulf %1715, %1717 : vector<16x128xf32>
    %1719 = arith.addf %1713, %1718 : vector<16x128xf32>
    %c5_i32_161 = arith.constant 5 : i32
    %1720 = tpu.dynamic_rotate %1719 by %c5_i32_161 dim 1 : vector<16x128xf32>, i32 -> vector<16x128xf32>
    %1721 = arith.addf %1549, %1720 : vector<16x128xf32>
    %1722 = vector.extract_strided_slice %1375 {offsets = [0, 0, 0], sizes = [1, 16, 128], strides = [1, 1, 1]} : vector<4x16x128xf32> to vector<1x16x128xf32>
    %1723 = vector.shape_cast %1722 : vector<1x16x128xf32> to vector<16x128xf32>
    %c8_162 = arith.constant 8 : index
    %1724 = memref.load %arg1[%c8_162] : memref<196xf32, #tpu.memory_space<smem>>
    %1725 = vector.broadcast %1724 : f32 to vector<16x128xf32>
    %1726 = arith.mulf %1723, %1725 : vector<16x128xf32>
    %1727 = vector.extract_strided_slice %1376 {offsets = [0, 0, 0], sizes = [1, 16, 128], strides = [1, 1, 1]} : vector<4x16x128xf32> to vector<1x16x128xf32>
    %1728 = vector.shape_cast %1727 : vector<1x16x128xf32> to vector<16x128xf32>
    %c36_163 = arith.constant 36 : index
    %1729 = memref.load %arg1[%c36_163] : memref<196xf32, #tpu.memory_space<smem>>
    %1730 = vector.broadcast %1729 : f32 to vector<16x128xf32>
    %1731 = arith.mulf %1728, %1730 : vector<16x128xf32>
    %1732 = arith.addf %1726, %1731 : vector<16x128xf32>
    %1733 = vector.extract_strided_slice %1377 {offsets = [0, 0, 0], sizes = [1, 16, 128], strides = [1, 1, 1]} : vector<4x16x128xf32> to vector<1x16x128xf32>
    %1734 = vector.shape_cast %1733 : vector<1x16x128xf32> to vector<16x128xf32>
    %c64_164 = arith.constant 64 : index
    %1735 = memref.load %arg1[%c64_164] : memref<196xf32, #tpu.memory_space<smem>>
    %1736 = vector.broadcast %1735 : f32 to vector<16x128xf32>
    %1737 = arith.mulf %1734, %1736 : vector<16x128xf32>
    %1738 = arith.addf %1732, %1737 : vector<16x128xf32>
    %1739 = vector.extract_strided_slice %1378 {offsets = [0, 0, 0], sizes = [1, 16, 128], strides = [1, 1, 1]} : vector<4x16x128xf32> to vector<1x16x128xf32>
    %1740 = vector.shape_cast %1739 : vector<1x16x128xf32> to vector<16x128xf32>
    %c92_165 = arith.constant 92 : index
    %1741 = memref.load %arg1[%c92_165] : memref<196xf32, #tpu.memory_space<smem>>
    %1742 = vector.broadcast %1741 : f32 to vector<16x128xf32>
    %1743 = arith.mulf %1740, %1742 : vector<16x128xf32>
    %1744 = arith.addf %1738, %1743 : vector<16x128xf32>
    %1745 = vector.extract_strided_slice %1379 {offsets = [0, 0, 0], sizes = [1, 16, 128], strides = [1, 1, 1]} : vector<4x16x128xf32> to vector<1x16x128xf32>
    %1746 = vector.shape_cast %1745 : vector<1x16x128xf32> to vector<16x128xf32>
    %c120_166 = arith.constant 120 : index
    %1747 = memref.load %arg1[%c120_166] : memref<196xf32, #tpu.memory_space<smem>>
    %1748 = vector.broadcast %1747 : f32 to vector<16x128xf32>
    %1749 = arith.mulf %1746, %1748 : vector<16x128xf32>
    %1750 = arith.addf %1744, %1749 : vector<16x128xf32>
    %1751 = vector.extract_strided_slice %1380 {offsets = [0, 0, 0], sizes = [1, 16, 128], strides = [1, 1, 1]} : vector<4x16x128xf32> to vector<1x16x128xf32>
    %1752 = vector.shape_cast %1751 : vector<1x16x128xf32> to vector<16x128xf32>
    %c148_167 = arith.constant 148 : index
    %1753 = memref.load %arg1[%c148_167] : memref<196xf32, #tpu.memory_space<smem>>
    %1754 = vector.broadcast %1753 : f32 to vector<16x128xf32>
    %1755 = arith.mulf %1752, %1754 : vector<16x128xf32>
    %1756 = arith.addf %1750, %1755 : vector<16x128xf32>
    %1757 = vector.extract_strided_slice %1381 {offsets = [0, 0, 0], sizes = [1, 16, 128], strides = [1, 1, 1]} : vector<4x16x128xf32> to vector<1x16x128xf32>
    %1758 = vector.shape_cast %1757 : vector<1x16x128xf32> to vector<16x128xf32>
    %c176_168 = arith.constant 176 : index
    %1759 = memref.load %arg1[%c176_168] : memref<196xf32, #tpu.memory_space<smem>>
    %1760 = vector.broadcast %1759 : f32 to vector<16x128xf32>
    %1761 = arith.mulf %1758, %1760 : vector<16x128xf32>
    %1762 = arith.addf %1756, %1761 : vector<16x128xf32>
    %c4_i32_169 = arith.constant 4 : i32
    %1763 = tpu.dynamic_rotate %1762 by %c4_i32_169 dim 1 : vector<16x128xf32>, i32 -> vector<16x128xf32>
    %1764 = arith.addf %1592, %1763 : vector<16x128xf32>
    %1765 = vector.extract_strided_slice %1375 {offsets = [1, 0, 0], sizes = [1, 16, 128], strides = [1, 1, 1]} : vector<4x16x128xf32> to vector<1x16x128xf32>
    %1766 = vector.shape_cast %1765 : vector<1x16x128xf32> to vector<16x128xf32>
    %c9_170 = arith.constant 9 : index
    %1767 = memref.load %arg1[%c9_170] : memref<196xf32, #tpu.memory_space<smem>>
    %1768 = vector.broadcast %1767 : f32 to vector<16x128xf32>
    %1769 = arith.mulf %1766, %1768 : vector<16x128xf32>
    %1770 = vector.extract_strided_slice %1376 {offsets = [1, 0, 0], sizes = [1, 16, 128], strides = [1, 1, 1]} : vector<4x16x128xf32> to vector<1x16x128xf32>
    %1771 = vector.shape_cast %1770 : vector<1x16x128xf32> to vector<16x128xf32>
    %c37_171 = arith.constant 37 : index
    %1772 = memref.load %arg1[%c37_171] : memref<196xf32, #tpu.memory_space<smem>>
    %1773 = vector.broadcast %1772 : f32 to vector<16x128xf32>
    %1774 = arith.mulf %1771, %1773 : vector<16x128xf32>
    %1775 = arith.addf %1769, %1774 : vector<16x128xf32>
    %1776 = vector.extract_strided_slice %1377 {offsets = [1, 0, 0], sizes = [1, 16, 128], strides = [1, 1, 1]} : vector<4x16x128xf32> to vector<1x16x128xf32>
    %1777 = vector.shape_cast %1776 : vector<1x16x128xf32> to vector<16x128xf32>
    %c65_172 = arith.constant 65 : index
    %1778 = memref.load %arg1[%c65_172] : memref<196xf32, #tpu.memory_space<smem>>
    %1779 = vector.broadcast %1778 : f32 to vector<16x128xf32>
    %1780 = arith.mulf %1777, %1779 : vector<16x128xf32>
    %1781 = arith.addf %1775, %1780 : vector<16x128xf32>
    %1782 = vector.extract_strided_slice %1378 {offsets = [1, 0, 0], sizes = [1, 16, 128], strides = [1, 1, 1]} : vector<4x16x128xf32> to vector<1x16x128xf32>
    %1783 = vector.shape_cast %1782 : vector<1x16x128xf32> to vector<16x128xf32>
    %c93_173 = arith.constant 93 : index
    %1784 = memref.load %arg1[%c93_173] : memref<196xf32, #tpu.memory_space<smem>>
    %1785 = vector.broadcast %1784 : f32 to vector<16x128xf32>
    %1786 = arith.mulf %1783, %1785 : vector<16x128xf32>
    %1787 = arith.addf %1781, %1786 : vector<16x128xf32>
    %1788 = vector.extract_strided_slice %1379 {offsets = [1, 0, 0], sizes = [1, 16, 128], strides = [1, 1, 1]} : vector<4x16x128xf32> to vector<1x16x128xf32>
    %1789 = vector.shape_cast %1788 : vector<1x16x128xf32> to vector<16x128xf32>
    %c121_174 = arith.constant 121 : index
    %1790 = memref.load %arg1[%c121_174] : memref<196xf32, #tpu.memory_space<smem>>
    %1791 = vector.broadcast %1790 : f32 to vector<16x128xf32>
    %1792 = arith.mulf %1789, %1791 : vector<16x128xf32>
    %1793 = arith.addf %1787, %1792 : vector<16x128xf32>
    %1794 = vector.extract_strided_slice %1380 {offsets = [1, 0, 0], sizes = [1, 16, 128], strides = [1, 1, 1]} : vector<4x16x128xf32> to vector<1x16x128xf32>
    %1795 = vector.shape_cast %1794 : vector<1x16x128xf32> to vector<16x128xf32>
    %c149_175 = arith.constant 149 : index
    %1796 = memref.load %arg1[%c149_175] : memref<196xf32, #tpu.memory_space<smem>>
    %1797 = vector.broadcast %1796 : f32 to vector<16x128xf32>
    %1798 = arith.mulf %1795, %1797 : vector<16x128xf32>
    %1799 = arith.addf %1793, %1798 : vector<16x128xf32>
    %1800 = vector.extract_strided_slice %1381 {offsets = [1, 0, 0], sizes = [1, 16, 128], strides = [1, 1, 1]} : vector<4x16x128xf32> to vector<1x16x128xf32>
    %1801 = vector.shape_cast %1800 : vector<1x16x128xf32> to vector<16x128xf32>
    %c177_176 = arith.constant 177 : index
    %1802 = memref.load %arg1[%c177_176] : memref<196xf32, #tpu.memory_space<smem>>
    %1803 = vector.broadcast %1802 : f32 to vector<16x128xf32>
    %1804 = arith.mulf %1801, %1803 : vector<16x128xf32>
    %1805 = arith.addf %1799, %1804 : vector<16x128xf32>
    %c4_i32_177 = arith.constant 4 : i32
    %1806 = tpu.dynamic_rotate %1805 by %c4_i32_177 dim 1 : vector<16x128xf32>, i32 -> vector<16x128xf32>
    %1807 = arith.addf %1635, %1806 : vector<16x128xf32>
    %1808 = vector.extract_strided_slice %1375 {offsets = [2, 0, 0], sizes = [1, 16, 128], strides = [1, 1, 1]} : vector<4x16x128xf32> to vector<1x16x128xf32>
    %1809 = vector.shape_cast %1808 : vector<1x16x128xf32> to vector<16x128xf32>
    %c10_178 = arith.constant 10 : index
    %1810 = memref.load %arg1[%c10_178] : memref<196xf32, #tpu.memory_space<smem>>
    %1811 = vector.broadcast %1810 : f32 to vector<16x128xf32>
    %1812 = arith.mulf %1809, %1811 : vector<16x128xf32>
    %1813 = vector.extract_strided_slice %1376 {offsets = [2, 0, 0], sizes = [1, 16, 128], strides = [1, 1, 1]} : vector<4x16x128xf32> to vector<1x16x128xf32>
    %1814 = vector.shape_cast %1813 : vector<1x16x128xf32> to vector<16x128xf32>
    %c38_179 = arith.constant 38 : index
    %1815 = memref.load %arg1[%c38_179] : memref<196xf32, #tpu.memory_space<smem>>
    %1816 = vector.broadcast %1815 : f32 to vector<16x128xf32>
    %1817 = arith.mulf %1814, %1816 : vector<16x128xf32>
    %1818 = arith.addf %1812, %1817 : vector<16x128xf32>
    %1819 = vector.extract_strided_slice %1377 {offsets = [2, 0, 0], sizes = [1, 16, 128], strides = [1, 1, 1]} : vector<4x16x128xf32> to vector<1x16x128xf32>
    %1820 = vector.shape_cast %1819 : vector<1x16x128xf32> to vector<16x128xf32>
    %c66_180 = arith.constant 66 : index
    %1821 = memref.load %arg1[%c66_180] : memref<196xf32, #tpu.memory_space<smem>>
    %1822 = vector.broadcast %1821 : f32 to vector<16x128xf32>
    %1823 = arith.mulf %1820, %1822 : vector<16x128xf32>
    %1824 = arith.addf %1818, %1823 : vector<16x128xf32>
    %1825 = vector.extract_strided_slice %1378 {offsets = [2, 0, 0], sizes = [1, 16, 128], strides = [1, 1, 1]} : vector<4x16x128xf32> to vector<1x16x128xf32>
    %1826 = vector.shape_cast %1825 : vector<1x16x128xf32> to vector<16x128xf32>
    %c94_181 = arith.constant 94 : index
    %1827 = memref.load %arg1[%c94_181] : memref<196xf32, #tpu.memory_space<smem>>
    %1828 = vector.broadcast %1827 : f32 to vector<16x128xf32>
    %1829 = arith.mulf %1826, %1828 : vector<16x128xf32>
    %1830 = arith.addf %1824, %1829 : vector<16x128xf32>
    %1831 = vector.extract_strided_slice %1379 {offsets = [2, 0, 0], sizes = [1, 16, 128], strides = [1, 1, 1]} : vector<4x16x128xf32> to vector<1x16x128xf32>
    %1832 = vector.shape_cast %1831 : vector<1x16x128xf32> to vector<16x128xf32>
    %c122_182 = arith.constant 122 : index
    %1833 = memref.load %arg1[%c122_182] : memref<196xf32, #tpu.memory_space<smem>>
    %1834 = vector.broadcast %1833 : f32 to vector<16x128xf32>
    %1835 = arith.mulf %1832, %1834 : vector<16x128xf32>
    %1836 = arith.addf %1830, %1835 : vector<16x128xf32>
    %1837 = vector.extract_strided_slice %1380 {offsets = [2, 0, 0], sizes = [1, 16, 128], strides = [1, 1, 1]} : vector<4x16x128xf32> to vector<1x16x128xf32>
    %1838 = vector.shape_cast %1837 : vector<1x16x128xf32> to vector<16x128xf32>
    %c150_183 = arith.constant 150 : index
    %1839 = memref.load %arg1[%c150_183] : memref<196xf32, #tpu.memory_space<smem>>
    %1840 = vector.broadcast %1839 : f32 to vector<16x128xf32>
    %1841 = arith.mulf %1838, %1840 : vector<16x128xf32>
    %1842 = arith.addf %1836, %1841 : vector<16x128xf32>
    %1843 = vector.extract_strided_slice %1381 {offsets = [2, 0, 0], sizes = [1, 16, 128], strides = [1, 1, 1]} : vector<4x16x128xf32> to vector<1x16x128xf32>
    %1844 = vector.shape_cast %1843 : vector<1x16x128xf32> to vector<16x128xf32>
    %c178_184 = arith.constant 178 : index
    %1845 = memref.load %arg1[%c178_184] : memref<196xf32, #tpu.memory_space<smem>>
    %1846 = vector.broadcast %1845 : f32 to vector<16x128xf32>
    %1847 = arith.mulf %1844, %1846 : vector<16x128xf32>
    %1848 = arith.addf %1842, %1847 : vector<16x128xf32>
    %c4_i32_185 = arith.constant 4 : i32
    %1849 = tpu.dynamic_rotate %1848 by %c4_i32_185 dim 1 : vector<16x128xf32>, i32 -> vector<16x128xf32>
    %1850 = arith.addf %1678, %1849 : vector<16x128xf32>
    %1851 = vector.extract_strided_slice %1375 {offsets = [3, 0, 0], sizes = [1, 16, 128], strides = [1, 1, 1]} : vector<4x16x128xf32> to vector<1x16x128xf32>
    %1852 = vector.shape_cast %1851 : vector<1x16x128xf32> to vector<16x128xf32>
    %c11_186 = arith.constant 11 : index
    %1853 = memref.load %arg1[%c11_186] : memref<196xf32, #tpu.memory_space<smem>>
    %1854 = vector.broadcast %1853 : f32 to vector<16x128xf32>
    %1855 = arith.mulf %1852, %1854 : vector<16x128xf32>
    %1856 = vector.extract_strided_slice %1376 {offsets = [3, 0, 0], sizes = [1, 16, 128], strides = [1, 1, 1]} : vector<4x16x128xf32> to vector<1x16x128xf32>
    %1857 = vector.shape_cast %1856 : vector<1x16x128xf32> to vector<16x128xf32>
    %c39_187 = arith.constant 39 : index
    %1858 = memref.load %arg1[%c39_187] : memref<196xf32, #tpu.memory_space<smem>>
    %1859 = vector.broadcast %1858 : f32 to vector<16x128xf32>
    %1860 = arith.mulf %1857, %1859 : vector<16x128xf32>
    %1861 = arith.addf %1855, %1860 : vector<16x128xf32>
    %1862 = vector.extract_strided_slice %1377 {offsets = [3, 0, 0], sizes = [1, 16, 128], strides = [1, 1, 1]} : vector<4x16x128xf32> to vector<1x16x128xf32>
    %1863 = vector.shape_cast %1862 : vector<1x16x128xf32> to vector<16x128xf32>
    %c67_188 = arith.constant 67 : index
    %1864 = memref.load %arg1[%c67_188] : memref<196xf32, #tpu.memory_space<smem>>
    %1865 = vector.broadcast %1864 : f32 to vector<16x128xf32>
    %1866 = arith.mulf %1863, %1865 : vector<16x128xf32>
    %1867 = arith.addf %1861, %1866 : vector<16x128xf32>
    %1868 = vector.extract_strided_slice %1378 {offsets = [3, 0, 0], sizes = [1, 16, 128], strides = [1, 1, 1]} : vector<4x16x128xf32> to vector<1x16x128xf32>
    %1869 = vector.shape_cast %1868 : vector<1x16x128xf32> to vector<16x128xf32>
    %c95_189 = arith.constant 95 : index
    %1870 = memref.load %arg1[%c95_189] : memref<196xf32, #tpu.memory_space<smem>>
    %1871 = vector.broadcast %1870 : f32 to vector<16x128xf32>
    %1872 = arith.mulf %1869, %1871 : vector<16x128xf32>
    %1873 = arith.addf %1867, %1872 : vector<16x128xf32>
    %1874 = vector.extract_strided_slice %1379 {offsets = [3, 0, 0], sizes = [1, 16, 128], strides = [1, 1, 1]} : vector<4x16x128xf32> to vector<1x16x128xf32>
    %1875 = vector.shape_cast %1874 : vector<1x16x128xf32> to vector<16x128xf32>
    %c123_190 = arith.constant 123 : index
    %1876 = memref.load %arg1[%c123_190] : memref<196xf32, #tpu.memory_space<smem>>
    %1877 = vector.broadcast %1876 : f32 to vector<16x128xf32>
    %1878 = arith.mulf %1875, %1877 : vector<16x128xf32>
    %1879 = arith.addf %1873, %1878 : vector<16x128xf32>
    %1880 = vector.extract_strided_slice %1380 {offsets = [3, 0, 0], sizes = [1, 16, 128], strides = [1, 1, 1]} : vector<4x16x128xf32> to vector<1x16x128xf32>
    %1881 = vector.shape_cast %1880 : vector<1x16x128xf32> to vector<16x128xf32>
    %c151_191 = arith.constant 151 : index
    %1882 = memref.load %arg1[%c151_191] : memref<196xf32, #tpu.memory_space<smem>>
    %1883 = vector.broadcast %1882 : f32 to vector<16x128xf32>
    %1884 = arith.mulf %1881, %1883 : vector<16x128xf32>
    %1885 = arith.addf %1879, %1884 : vector<16x128xf32>
    %1886 = vector.extract_strided_slice %1381 {offsets = [3, 0, 0], sizes = [1, 16, 128], strides = [1, 1, 1]} : vector<4x16x128xf32> to vector<1x16x128xf32>
    %1887 = vector.shape_cast %1886 : vector<1x16x128xf32> to vector<16x128xf32>
    %c179_192 = arith.constant 179 : index
    %1888 = memref.load %arg1[%c179_192] : memref<196xf32, #tpu.memory_space<smem>>
    %1889 = vector.broadcast %1888 : f32 to vector<16x128xf32>
    %1890 = arith.mulf %1887, %1889 : vector<16x128xf32>
    %1891 = arith.addf %1885, %1890 : vector<16x128xf32>
    %c4_i32_193 = arith.constant 4 : i32
    %1892 = tpu.dynamic_rotate %1891 by %c4_i32_193 dim 1 : vector<16x128xf32>, i32 -> vector<16x128xf32>
    %1893 = arith.addf %1721, %1892 : vector<16x128xf32>
    %1894 = vector.extract_strided_slice %1375 {offsets = [0, 0, 0], sizes = [1, 16, 128], strides = [1, 1, 1]} : vector<4x16x128xf32> to vector<1x16x128xf32>
    %1895 = vector.shape_cast %1894 : vector<1x16x128xf32> to vector<16x128xf32>
    %c12_194 = arith.constant 12 : index
    %1896 = memref.load %arg1[%c12_194] : memref<196xf32, #tpu.memory_space<smem>>
    %1897 = vector.broadcast %1896 : f32 to vector<16x128xf32>
    %1898 = arith.mulf %1895, %1897 : vector<16x128xf32>
    %1899 = vector.extract_strided_slice %1376 {offsets = [0, 0, 0], sizes = [1, 16, 128], strides = [1, 1, 1]} : vector<4x16x128xf32> to vector<1x16x128xf32>
    %1900 = vector.shape_cast %1899 : vector<1x16x128xf32> to vector<16x128xf32>
    %c40_195 = arith.constant 40 : index
    %1901 = memref.load %arg1[%c40_195] : memref<196xf32, #tpu.memory_space<smem>>
    %1902 = vector.broadcast %1901 : f32 to vector<16x128xf32>
    %1903 = arith.mulf %1900, %1902 : vector<16x128xf32>
    %1904 = arith.addf %1898, %1903 : vector<16x128xf32>
    %1905 = vector.extract_strided_slice %1377 {offsets = [0, 0, 0], sizes = [1, 16, 128], strides = [1, 1, 1]} : vector<4x16x128xf32> to vector<1x16x128xf32>
    %1906 = vector.shape_cast %1905 : vector<1x16x128xf32> to vector<16x128xf32>
    %c68_196 = arith.constant 68 : index
    %1907 = memref.load %arg1[%c68_196] : memref<196xf32, #tpu.memory_space<smem>>
    %1908 = vector.broadcast %1907 : f32 to vector<16x128xf32>
    %1909 = arith.mulf %1906, %1908 : vector<16x128xf32>
    %1910 = arith.addf %1904, %1909 : vector<16x128xf32>
    %1911 = vector.extract_strided_slice %1378 {offsets = [0, 0, 0], sizes = [1, 16, 128], strides = [1, 1, 1]} : vector<4x16x128xf32> to vector<1x16x128xf32>
    %1912 = vector.shape_cast %1911 : vector<1x16x128xf32> to vector<16x128xf32>
    %c96_197 = arith.constant 96 : index
    %1913 = memref.load %arg1[%c96_197] : memref<196xf32, #tpu.memory_space<smem>>
    %1914 = vector.broadcast %1913 : f32 to vector<16x128xf32>
    %1915 = arith.mulf %1912, %1914 : vector<16x128xf32>
    %1916 = arith.addf %1910, %1915 : vector<16x128xf32>
    %1917 = vector.extract_strided_slice %1379 {offsets = [0, 0, 0], sizes = [1, 16, 128], strides = [1, 1, 1]} : vector<4x16x128xf32> to vector<1x16x128xf32>
    %1918 = vector.shape_cast %1917 : vector<1x16x128xf32> to vector<16x128xf32>
    %c124_198 = arith.constant 124 : index
    %1919 = memref.load %arg1[%c124_198] : memref<196xf32, #tpu.memory_space<smem>>
    %1920 = vector.broadcast %1919 : f32 to vector<16x128xf32>
    %1921 = arith.mulf %1918, %1920 : vector<16x128xf32>
    %1922 = arith.addf %1916, %1921 : vector<16x128xf32>
    %1923 = vector.extract_strided_slice %1380 {offsets = [0, 0, 0], sizes = [1, 16, 128], strides = [1, 1, 1]} : vector<4x16x128xf32> to vector<1x16x128xf32>
    %1924 = vector.shape_cast %1923 : vector<1x16x128xf32> to vector<16x128xf32>
    %c152_199 = arith.constant 152 : index
    %1925 = memref.load %arg1[%c152_199] : memref<196xf32, #tpu.memory_space<smem>>
    %1926 = vector.broadcast %1925 : f32 to vector<16x128xf32>
    %1927 = arith.mulf %1924, %1926 : vector<16x128xf32>
    %1928 = arith.addf %1922, %1927 : vector<16x128xf32>
    %1929 = vector.extract_strided_slice %1381 {offsets = [0, 0, 0], sizes = [1, 16, 128], strides = [1, 1, 1]} : vector<4x16x128xf32> to vector<1x16x128xf32>
    %1930 = vector.shape_cast %1929 : vector<1x16x128xf32> to vector<16x128xf32>
    %c180_200 = arith.constant 180 : index
    %1931 = memref.load %arg1[%c180_200] : memref<196xf32, #tpu.memory_space<smem>>
    %1932 = vector.broadcast %1931 : f32 to vector<16x128xf32>
    %1933 = arith.mulf %1930, %1932 : vector<16x128xf32>
    %1934 = arith.addf %1928, %1933 : vector<16x128xf32>
    %c3_i32_201 = arith.constant 3 : i32
    %1935 = tpu.dynamic_rotate %1934 by %c3_i32_201 dim 1 : vector<16x128xf32>, i32 -> vector<16x128xf32>
    %1936 = arith.addf %1764, %1935 : vector<16x128xf32>
    %1937 = vector.extract_strided_slice %1375 {offsets = [1, 0, 0], sizes = [1, 16, 128], strides = [1, 1, 1]} : vector<4x16x128xf32> to vector<1x16x128xf32>
    %1938 = vector.shape_cast %1937 : vector<1x16x128xf32> to vector<16x128xf32>
    %c13_202 = arith.constant 13 : index
    %1939 = memref.load %arg1[%c13_202] : memref<196xf32, #tpu.memory_space<smem>>
    %1940 = vector.broadcast %1939 : f32 to vector<16x128xf32>
    %1941 = arith.mulf %1938, %1940 : vector<16x128xf32>
    %1942 = vector.extract_strided_slice %1376 {offsets = [1, 0, 0], sizes = [1, 16, 128], strides = [1, 1, 1]} : vector<4x16x128xf32> to vector<1x16x128xf32>
    %1943 = vector.shape_cast %1942 : vector<1x16x128xf32> to vector<16x128xf32>
    %c41_203 = arith.constant 41 : index
    %1944 = memref.load %arg1[%c41_203] : memref<196xf32, #tpu.memory_space<smem>>
    %1945 = vector.broadcast %1944 : f32 to vector<16x128xf32>
    %1946 = arith.mulf %1943, %1945 : vector<16x128xf32>
    %1947 = arith.addf %1941, %1946 : vector<16x128xf32>
    %1948 = vector.extract_strided_slice %1377 {offsets = [1, 0, 0], sizes = [1, 16, 128], strides = [1, 1, 1]} : vector<4x16x128xf32> to vector<1x16x128xf32>
    %1949 = vector.shape_cast %1948 : vector<1x16x128xf32> to vector<16x128xf32>
    %c69_204 = arith.constant 69 : index
    %1950 = memref.load %arg1[%c69_204] : memref<196xf32, #tpu.memory_space<smem>>
    %1951 = vector.broadcast %1950 : f32 to vector<16x128xf32>
    %1952 = arith.mulf %1949, %1951 : vector<16x128xf32>
    %1953 = arith.addf %1947, %1952 : vector<16x128xf32>
    %1954 = vector.extract_strided_slice %1378 {offsets = [1, 0, 0], sizes = [1, 16, 128], strides = [1, 1, 1]} : vector<4x16x128xf32> to vector<1x16x128xf32>
    %1955 = vector.shape_cast %1954 : vector<1x16x128xf32> to vector<16x128xf32>
    %c97_205 = arith.constant 97 : index
    %1956 = memref.load %arg1[%c97_205] : memref<196xf32, #tpu.memory_space<smem>>
    %1957 = vector.broadcast %1956 : f32 to vector<16x128xf32>
    %1958 = arith.mulf %1955, %1957 : vector<16x128xf32>
    %1959 = arith.addf %1953, %1958 : vector<16x128xf32>
    %1960 = vector.extract_strided_slice %1379 {offsets = [1, 0, 0], sizes = [1, 16, 128], strides = [1, 1, 1]} : vector<4x16x128xf32> to vector<1x16x128xf32>
    %1961 = vector.shape_cast %1960 : vector<1x16x128xf32> to vector<16x128xf32>
    %c125_206 = arith.constant 125 : index
    %1962 = memref.load %arg1[%c125_206] : memref<196xf32, #tpu.memory_space<smem>>
    %1963 = vector.broadcast %1962 : f32 to vector<16x128xf32>
    %1964 = arith.mulf %1961, %1963 : vector<16x128xf32>
    %1965 = arith.addf %1959, %1964 : vector<16x128xf32>
    %1966 = vector.extract_strided_slice %1380 {offsets = [1, 0, 0], sizes = [1, 16, 128], strides = [1, 1, 1]} : vector<4x16x128xf32> to vector<1x16x128xf32>
    %1967 = vector.shape_cast %1966 : vector<1x16x128xf32> to vector<16x128xf32>
    %c153_207 = arith.constant 153 : index
    %1968 = memref.load %arg1[%c153_207] : memref<196xf32, #tpu.memory_space<smem>>
    %1969 = vector.broadcast %1968 : f32 to vector<16x128xf32>
    %1970 = arith.mulf %1967, %1969 : vector<16x128xf32>
    %1971 = arith.addf %1965, %1970 : vector<16x128xf32>
    %1972 = vector.extract_strided_slice %1381 {offsets = [1, 0, 0], sizes = [1, 16, 128], strides = [1, 1, 1]} : vector<4x16x128xf32> to vector<1x16x128xf32>
    %1973 = vector.shape_cast %1972 : vector<1x16x128xf32> to vector<16x128xf32>
    %c181_208 = arith.constant 181 : index
    %1974 = memref.load %arg1[%c181_208] : memref<196xf32, #tpu.memory_space<smem>>
    %1975 = vector.broadcast %1974 : f32 to vector<16x128xf32>
    %1976 = arith.mulf %1973, %1975 : vector<16x128xf32>
    %1977 = arith.addf %1971, %1976 : vector<16x128xf32>
    %c3_i32_209 = arith.constant 3 : i32
    %1978 = tpu.dynamic_rotate %1977 by %c3_i32_209 dim 1 : vector<16x128xf32>, i32 -> vector<16x128xf32>
    %1979 = arith.addf %1807, %1978 : vector<16x128xf32>
    %1980 = vector.extract_strided_slice %1375 {offsets = [2, 0, 0], sizes = [1, 16, 128], strides = [1, 1, 1]} : vector<4x16x128xf32> to vector<1x16x128xf32>
    %1981 = vector.shape_cast %1980 : vector<1x16x128xf32> to vector<16x128xf32>
    %c14_210 = arith.constant 14 : index
    %1982 = memref.load %arg1[%c14_210] : memref<196xf32, #tpu.memory_space<smem>>
    %1983 = vector.broadcast %1982 : f32 to vector<16x128xf32>
    %1984 = arith.mulf %1981, %1983 : vector<16x128xf32>
    %1985 = vector.extract_strided_slice %1376 {offsets = [2, 0, 0], sizes = [1, 16, 128], strides = [1, 1, 1]} : vector<4x16x128xf32> to vector<1x16x128xf32>
    %1986 = vector.shape_cast %1985 : vector<1x16x128xf32> to vector<16x128xf32>
    %c42_211 = arith.constant 42 : index
    %1987 = memref.load %arg1[%c42_211] : memref<196xf32, #tpu.memory_space<smem>>
    %1988 = vector.broadcast %1987 : f32 to vector<16x128xf32>
    %1989 = arith.mulf %1986, %1988 : vector<16x128xf32>
    %1990 = arith.addf %1984, %1989 : vector<16x128xf32>
    %1991 = vector.extract_strided_slice %1377 {offsets = [2, 0, 0], sizes = [1, 16, 128], strides = [1, 1, 1]} : vector<4x16x128xf32> to vector<1x16x128xf32>
    %1992 = vector.shape_cast %1991 : vector<1x16x128xf32> to vector<16x128xf32>
    %c70_212 = arith.constant 70 : index
    %1993 = memref.load %arg1[%c70_212] : memref<196xf32, #tpu.memory_space<smem>>
    %1994 = vector.broadcast %1993 : f32 to vector<16x128xf32>
    %1995 = arith.mulf %1992, %1994 : vector<16x128xf32>
    %1996 = arith.addf %1990, %1995 : vector<16x128xf32>
    %1997 = vector.extract_strided_slice %1378 {offsets = [2, 0, 0], sizes = [1, 16, 128], strides = [1, 1, 1]} : vector<4x16x128xf32> to vector<1x16x128xf32>
    %1998 = vector.shape_cast %1997 : vector<1x16x128xf32> to vector<16x128xf32>
    %c98_213 = arith.constant 98 : index
    %1999 = memref.load %arg1[%c98_213] : memref<196xf32, #tpu.memory_space<smem>>
    %2000 = vector.broadcast %1999 : f32 to vector<16x128xf32>
    %2001 = arith.mulf %1998, %2000 : vector<16x128xf32>
    %2002 = arith.addf %1996, %2001 : vector<16x128xf32>
    %2003 = vector.extract_strided_slice %1379 {offsets = [2, 0, 0], sizes = [1, 16, 128], strides = [1, 1, 1]} : vector<4x16x128xf32> to vector<1x16x128xf32>
    %2004 = vector.shape_cast %2003 : vector<1x16x128xf32> to vector<16x128xf32>
    %c126_214 = arith.constant 126 : index
    %2005 = memref.load %arg1[%c126_214] : memref<196xf32, #tpu.memory_space<smem>>
    %2006 = vector.broadcast %2005 : f32 to vector<16x128xf32>
    %2007 = arith.mulf %2004, %2006 : vector<16x128xf32>
    %2008 = arith.addf %2002, %2007 : vector<16x128xf32>
    %2009 = vector.extract_strided_slice %1380 {offsets = [2, 0, 0], sizes = [1, 16, 128], strides = [1, 1, 1]} : vector<4x16x128xf32> to vector<1x16x128xf32>
    %2010 = vector.shape_cast %2009 : vector<1x16x128xf32> to vector<16x128xf32>
    %c154_215 = arith.constant 154 : index
    %2011 = memref.load %arg1[%c154_215] : memref<196xf32, #tpu.memory_space<smem>>
    %2012 = vector.broadcast %2011 : f32 to vector<16x128xf32>
    %2013 = arith.mulf %2010, %2012 : vector<16x128xf32>
    %2014 = arith.addf %2008, %2013 : vector<16x128xf32>
    %2015 = vector.extract_strided_slice %1381 {offsets = [2, 0, 0], sizes = [1, 16, 128], strides = [1, 1, 1]} : vector<4x16x128xf32> to vector<1x16x128xf32>
    %2016 = vector.shape_cast %2015 : vector<1x16x128xf32> to vector<16x128xf32>
    %c182_216 = arith.constant 182 : index
    %2017 = memref.load %arg1[%c182_216] : memref<196xf32, #tpu.memory_space<smem>>
    %2018 = vector.broadcast %2017 : f32 to vector<16x128xf32>
    %2019 = arith.mulf %2016, %2018 : vector<16x128xf32>
    %2020 = arith.addf %2014, %2019 : vector<16x128xf32>
    %c3_i32_217 = arith.constant 3 : i32
    %2021 = tpu.dynamic_rotate %2020 by %c3_i32_217 dim 1 : vector<16x128xf32>, i32 -> vector<16x128xf32>
    %2022 = arith.addf %1850, %2021 : vector<16x128xf32>
    %2023 = vector.extract_strided_slice %1375 {offsets = [3, 0, 0], sizes = [1, 16, 128], strides = [1, 1, 1]} : vector<4x16x128xf32> to vector<1x16x128xf32>
    %2024 = vector.shape_cast %2023 : vector<1x16x128xf32> to vector<16x128xf32>
    %c15_218 = arith.constant 15 : index
    %2025 = memref.load %arg1[%c15_218] : memref<196xf32, #tpu.memory_space<smem>>
    %2026 = vector.broadcast %2025 : f32 to vector<16x128xf32>
    %2027 = arith.mulf %2024, %2026 : vector<16x128xf32>
    %2028 = vector.extract_strided_slice %1376 {offsets = [3, 0, 0], sizes = [1, 16, 128], strides = [1, 1, 1]} : vector<4x16x128xf32> to vector<1x16x128xf32>
    %2029 = vector.shape_cast %2028 : vector<1x16x128xf32> to vector<16x128xf32>
    %c43_219 = arith.constant 43 : index
    %2030 = memref.load %arg1[%c43_219] : memref<196xf32, #tpu.memory_space<smem>>
    %2031 = vector.broadcast %2030 : f32 to vector<16x128xf32>
    %2032 = arith.mulf %2029, %2031 : vector<16x128xf32>
    %2033 = arith.addf %2027, %2032 : vector<16x128xf32>
    %2034 = vector.extract_strided_slice %1377 {offsets = [3, 0, 0], sizes = [1, 16, 128], strides = [1, 1, 1]} : vector<4x16x128xf32> to vector<1x16x128xf32>
    %2035 = vector.shape_cast %2034 : vector<1x16x128xf32> to vector<16x128xf32>
    %c71_220 = arith.constant 71 : index
    %2036 = memref.load %arg1[%c71_220] : memref<196xf32, #tpu.memory_space<smem>>
    %2037 = vector.broadcast %2036 : f32 to vector<16x128xf32>
    %2038 = arith.mulf %2035, %2037 : vector<16x128xf32>
    %2039 = arith.addf %2033, %2038 : vector<16x128xf32>
    %2040 = vector.extract_strided_slice %1378 {offsets = [3, 0, 0], sizes = [1, 16, 128], strides = [1, 1, 1]} : vector<4x16x128xf32> to vector<1x16x128xf32>
    %2041 = vector.shape_cast %2040 : vector<1x16x128xf32> to vector<16x128xf32>
    %c99_221 = arith.constant 99 : index
    %2042 = memref.load %arg1[%c99_221] : memref<196xf32, #tpu.memory_space<smem>>
    %2043 = vector.broadcast %2042 : f32 to vector<16x128xf32>
    %2044 = arith.mulf %2041, %2043 : vector<16x128xf32>
    %2045 = arith.addf %2039, %2044 : vector<16x128xf32>
    %2046 = vector.extract_strided_slice %1379 {offsets = [3, 0, 0], sizes = [1, 16, 128], strides = [1, 1, 1]} : vector<4x16x128xf32> to vector<1x16x128xf32>
    %2047 = vector.shape_cast %2046 : vector<1x16x128xf32> to vector<16x128xf32>
    %c127_222 = arith.constant 127 : index
    %2048 = memref.load %arg1[%c127_222] : memref<196xf32, #tpu.memory_space<smem>>
    %2049 = vector.broadcast %2048 : f32 to vector<16x128xf32>
    %2050 = arith.mulf %2047, %2049 : vector<16x128xf32>
    %2051 = arith.addf %2045, %2050 : vector<16x128xf32>
    %2052 = vector.extract_strided_slice %1380 {offsets = [3, 0, 0], sizes = [1, 16, 128], strides = [1, 1, 1]} : vector<4x16x128xf32> to vector<1x16x128xf32>
    %2053 = vector.shape_cast %2052 : vector<1x16x128xf32> to vector<16x128xf32>
    %c155_223 = arith.constant 155 : index
    %2054 = memref.load %arg1[%c155_223] : memref<196xf32, #tpu.memory_space<smem>>
    %2055 = vector.broadcast %2054 : f32 to vector<16x128xf32>
    %2056 = arith.mulf %2053, %2055 : vector<16x128xf32>
    %2057 = arith.addf %2051, %2056 : vector<16x128xf32>
    %2058 = vector.extract_strided_slice %1381 {offsets = [3, 0, 0], sizes = [1, 16, 128], strides = [1, 1, 1]} : vector<4x16x128xf32> to vector<1x16x128xf32>
    %2059 = vector.shape_cast %2058 : vector<1x16x128xf32> to vector<16x128xf32>
    %c183_224 = arith.constant 183 : index
    %2060 = memref.load %arg1[%c183_224] : memref<196xf32, #tpu.memory_space<smem>>
    %2061 = vector.broadcast %2060 : f32 to vector<16x128xf32>
    %2062 = arith.mulf %2059, %2061 : vector<16x128xf32>
    %2063 = arith.addf %2057, %2062 : vector<16x128xf32>
    %c3_i32_225 = arith.constant 3 : i32
    %2064 = tpu.dynamic_rotate %2063 by %c3_i32_225 dim 1 : vector<16x128xf32>, i32 -> vector<16x128xf32>
    %2065 = arith.addf %1893, %2064 : vector<16x128xf32>
    %2066 = vector.extract_strided_slice %1375 {offsets = [0, 0, 0], sizes = [1, 16, 128], strides = [1, 1, 1]} : vector<4x16x128xf32> to vector<1x16x128xf32>
    %2067 = vector.shape_cast %2066 : vector<1x16x128xf32> to vector<16x128xf32>
    %c16_226 = arith.constant 16 : index
    %2068 = memref.load %arg1[%c16_226] : memref<196xf32, #tpu.memory_space<smem>>
    %2069 = vector.broadcast %2068 : f32 to vector<16x128xf32>
    %2070 = arith.mulf %2067, %2069 : vector<16x128xf32>
    %2071 = vector.extract_strided_slice %1376 {offsets = [0, 0, 0], sizes = [1, 16, 128], strides = [1, 1, 1]} : vector<4x16x128xf32> to vector<1x16x128xf32>
    %2072 = vector.shape_cast %2071 : vector<1x16x128xf32> to vector<16x128xf32>
    %c44_227 = arith.constant 44 : index
    %2073 = memref.load %arg1[%c44_227] : memref<196xf32, #tpu.memory_space<smem>>
    %2074 = vector.broadcast %2073 : f32 to vector<16x128xf32>
    %2075 = arith.mulf %2072, %2074 : vector<16x128xf32>
    %2076 = arith.addf %2070, %2075 : vector<16x128xf32>
    %2077 = vector.extract_strided_slice %1377 {offsets = [0, 0, 0], sizes = [1, 16, 128], strides = [1, 1, 1]} : vector<4x16x128xf32> to vector<1x16x128xf32>
    %2078 = vector.shape_cast %2077 : vector<1x16x128xf32> to vector<16x128xf32>
    %c72_228 = arith.constant 72 : index
    %2079 = memref.load %arg1[%c72_228] : memref<196xf32, #tpu.memory_space<smem>>
    %2080 = vector.broadcast %2079 : f32 to vector<16x128xf32>
    %2081 = arith.mulf %2078, %2080 : vector<16x128xf32>
    %2082 = arith.addf %2076, %2081 : vector<16x128xf32>
    %2083 = vector.extract_strided_slice %1378 {offsets = [0, 0, 0], sizes = [1, 16, 128], strides = [1, 1, 1]} : vector<4x16x128xf32> to vector<1x16x128xf32>
    %2084 = vector.shape_cast %2083 : vector<1x16x128xf32> to vector<16x128xf32>
    %c100_229 = arith.constant 100 : index
    %2085 = memref.load %arg1[%c100_229] : memref<196xf32, #tpu.memory_space<smem>>
    %2086 = vector.broadcast %2085 : f32 to vector<16x128xf32>
    %2087 = arith.mulf %2084, %2086 : vector<16x128xf32>
    %2088 = arith.addf %2082, %2087 : vector<16x128xf32>
    %2089 = vector.extract_strided_slice %1379 {offsets = [0, 0, 0], sizes = [1, 16, 128], strides = [1, 1, 1]} : vector<4x16x128xf32> to vector<1x16x128xf32>
    %2090 = vector.shape_cast %2089 : vector<1x16x128xf32> to vector<16x128xf32>
    %c128_230 = arith.constant 128 : index
    %2091 = memref.load %arg1[%c128_230] : memref<196xf32, #tpu.memory_space<smem>>
    %2092 = vector.broadcast %2091 : f32 to vector<16x128xf32>
    %2093 = arith.mulf %2090, %2092 : vector<16x128xf32>
    %2094 = arith.addf %2088, %2093 : vector<16x128xf32>
    %2095 = vector.extract_strided_slice %1380 {offsets = [0, 0, 0], sizes = [1, 16, 128], strides = [1, 1, 1]} : vector<4x16x128xf32> to vector<1x16x128xf32>
    %2096 = vector.shape_cast %2095 : vector<1x16x128xf32> to vector<16x128xf32>
    %c156_231 = arith.constant 156 : index
    %2097 = memref.load %arg1[%c156_231] : memref<196xf32, #tpu.memory_space<smem>>
    %2098 = vector.broadcast %2097 : f32 to vector<16x128xf32>
    %2099 = arith.mulf %2096, %2098 : vector<16x128xf32>
    %2100 = arith.addf %2094, %2099 : vector<16x128xf32>
    %2101 = vector.extract_strided_slice %1381 {offsets = [0, 0, 0], sizes = [1, 16, 128], strides = [1, 1, 1]} : vector<4x16x128xf32> to vector<1x16x128xf32>
    %2102 = vector.shape_cast %2101 : vector<1x16x128xf32> to vector<16x128xf32>
    %c184_232 = arith.constant 184 : index
    %2103 = memref.load %arg1[%c184_232] : memref<196xf32, #tpu.memory_space<smem>>
    %2104 = vector.broadcast %2103 : f32 to vector<16x128xf32>
    %2105 = arith.mulf %2102, %2104 : vector<16x128xf32>
    %2106 = arith.addf %2100, %2105 : vector<16x128xf32>
    %c2_i32_233 = arith.constant 2 : i32
    %2107 = tpu.dynamic_rotate %2106 by %c2_i32_233 dim 1 : vector<16x128xf32>, i32 -> vector<16x128xf32>
    %2108 = arith.addf %1936, %2107 : vector<16x128xf32>
    %2109 = vector.extract_strided_slice %1375 {offsets = [1, 0, 0], sizes = [1, 16, 128], strides = [1, 1, 1]} : vector<4x16x128xf32> to vector<1x16x128xf32>
    %2110 = vector.shape_cast %2109 : vector<1x16x128xf32> to vector<16x128xf32>
    %c17_234 = arith.constant 17 : index
    %2111 = memref.load %arg1[%c17_234] : memref<196xf32, #tpu.memory_space<smem>>
    %2112 = vector.broadcast %2111 : f32 to vector<16x128xf32>
    %2113 = arith.mulf %2110, %2112 : vector<16x128xf32>
    %2114 = vector.extract_strided_slice %1376 {offsets = [1, 0, 0], sizes = [1, 16, 128], strides = [1, 1, 1]} : vector<4x16x128xf32> to vector<1x16x128xf32>
    %2115 = vector.shape_cast %2114 : vector<1x16x128xf32> to vector<16x128xf32>
    %c45_235 = arith.constant 45 : index
    %2116 = memref.load %arg1[%c45_235] : memref<196xf32, #tpu.memory_space<smem>>
    %2117 = vector.broadcast %2116 : f32 to vector<16x128xf32>
    %2118 = arith.mulf %2115, %2117 : vector<16x128xf32>
    %2119 = arith.addf %2113, %2118 : vector<16x128xf32>
    %2120 = vector.extract_strided_slice %1377 {offsets = [1, 0, 0], sizes = [1, 16, 128], strides = [1, 1, 1]} : vector<4x16x128xf32> to vector<1x16x128xf32>
    %2121 = vector.shape_cast %2120 : vector<1x16x128xf32> to vector<16x128xf32>
    %c73_236 = arith.constant 73 : index
    %2122 = memref.load %arg1[%c73_236] : memref<196xf32, #tpu.memory_space<smem>>
    %2123 = vector.broadcast %2122 : f32 to vector<16x128xf32>
    %2124 = arith.mulf %2121, %2123 : vector<16x128xf32>
    %2125 = arith.addf %2119, %2124 : vector<16x128xf32>
    %2126 = vector.extract_strided_slice %1378 {offsets = [1, 0, 0], sizes = [1, 16, 128], strides = [1, 1, 1]} : vector<4x16x128xf32> to vector<1x16x128xf32>
    %2127 = vector.shape_cast %2126 : vector<1x16x128xf32> to vector<16x128xf32>
    %c101_237 = arith.constant 101 : index
    %2128 = memref.load %arg1[%c101_237] : memref<196xf32, #tpu.memory_space<smem>>
    %2129 = vector.broadcast %2128 : f32 to vector<16x128xf32>
    %2130 = arith.mulf %2127, %2129 : vector<16x128xf32>
    %2131 = arith.addf %2125, %2130 : vector<16x128xf32>
    %2132 = vector.extract_strided_slice %1379 {offsets = [1, 0, 0], sizes = [1, 16, 128], strides = [1, 1, 1]} : vector<4x16x128xf32> to vector<1x16x128xf32>
    %2133 = vector.shape_cast %2132 : vector<1x16x128xf32> to vector<16x128xf32>
    %c129_238 = arith.constant 129 : index
    %2134 = memref.load %arg1[%c129_238] : memref<196xf32, #tpu.memory_space<smem>>
    %2135 = vector.broadcast %2134 : f32 to vector<16x128xf32>
    %2136 = arith.mulf %2133, %2135 : vector<16x128xf32>
    %2137 = arith.addf %2131, %2136 : vector<16x128xf32>
    %2138 = vector.extract_strided_slice %1380 {offsets = [1, 0, 0], sizes = [1, 16, 128], strides = [1, 1, 1]} : vector<4x16x128xf32> to vector<1x16x128xf32>
    %2139 = vector.shape_cast %2138 : vector<1x16x128xf32> to vector<16x128xf32>
    %c157_239 = arith.constant 157 : index
    %2140 = memref.load %arg1[%c157_239] : memref<196xf32, #tpu.memory_space<smem>>
    %2141 = vector.broadcast %2140 : f32 to vector<16x128xf32>
    %2142 = arith.mulf %2139, %2141 : vector<16x128xf32>
    %2143 = arith.addf %2137, %2142 : vector<16x128xf32>
    %2144 = vector.extract_strided_slice %1381 {offsets = [1, 0, 0], sizes = [1, 16, 128], strides = [1, 1, 1]} : vector<4x16x128xf32> to vector<1x16x128xf32>
    %2145 = vector.shape_cast %2144 : vector<1x16x128xf32> to vector<16x128xf32>
    %c185_240 = arith.constant 185 : index
    %2146 = memref.load %arg1[%c185_240] : memref<196xf32, #tpu.memory_space<smem>>
    %2147 = vector.broadcast %2146 : f32 to vector<16x128xf32>
    %2148 = arith.mulf %2145, %2147 : vector<16x128xf32>
    %2149 = arith.addf %2143, %2148 : vector<16x128xf32>
    %c2_i32_241 = arith.constant 2 : i32
    %2150 = tpu.dynamic_rotate %2149 by %c2_i32_241 dim 1 : vector<16x128xf32>, i32 -> vector<16x128xf32>
    %2151 = arith.addf %1979, %2150 : vector<16x128xf32>
    %2152 = vector.extract_strided_slice %1375 {offsets = [2, 0, 0], sizes = [1, 16, 128], strides = [1, 1, 1]} : vector<4x16x128xf32> to vector<1x16x128xf32>
    %2153 = vector.shape_cast %2152 : vector<1x16x128xf32> to vector<16x128xf32>
    %c18_242 = arith.constant 18 : index
    %2154 = memref.load %arg1[%c18_242] : memref<196xf32, #tpu.memory_space<smem>>
    %2155 = vector.broadcast %2154 : f32 to vector<16x128xf32>
    %2156 = arith.mulf %2153, %2155 : vector<16x128xf32>
    %2157 = vector.extract_strided_slice %1376 {offsets = [2, 0, 0], sizes = [1, 16, 128], strides = [1, 1, 1]} : vector<4x16x128xf32> to vector<1x16x128xf32>
    %2158 = vector.shape_cast %2157 : vector<1x16x128xf32> to vector<16x128xf32>
    %c46_243 = arith.constant 46 : index
    %2159 = memref.load %arg1[%c46_243] : memref<196xf32, #tpu.memory_space<smem>>
    %2160 = vector.broadcast %2159 : f32 to vector<16x128xf32>
    %2161 = arith.mulf %2158, %2160 : vector<16x128xf32>
    %2162 = arith.addf %2156, %2161 : vector<16x128xf32>
    %2163 = vector.extract_strided_slice %1377 {offsets = [2, 0, 0], sizes = [1, 16, 128], strides = [1, 1, 1]} : vector<4x16x128xf32> to vector<1x16x128xf32>
    %2164 = vector.shape_cast %2163 : vector<1x16x128xf32> to vector<16x128xf32>
    %c74_244 = arith.constant 74 : index
    %2165 = memref.load %arg1[%c74_244] : memref<196xf32, #tpu.memory_space<smem>>
    %2166 = vector.broadcast %2165 : f32 to vector<16x128xf32>
    %2167 = arith.mulf %2164, %2166 : vector<16x128xf32>
    %2168 = arith.addf %2162, %2167 : vector<16x128xf32>
    %2169 = vector.extract_strided_slice %1378 {offsets = [2, 0, 0], sizes = [1, 16, 128], strides = [1, 1, 1]} : vector<4x16x128xf32> to vector<1x16x128xf32>
    %2170 = vector.shape_cast %2169 : vector<1x16x128xf32> to vector<16x128xf32>
    %c102_245 = arith.constant 102 : index
    %2171 = memref.load %arg1[%c102_245] : memref<196xf32, #tpu.memory_space<smem>>
    %2172 = vector.broadcast %2171 : f32 to vector<16x128xf32>
    %2173 = arith.mulf %2170, %2172 : vector<16x128xf32>
    %2174 = arith.addf %2168, %2173 : vector<16x128xf32>
    %2175 = vector.extract_strided_slice %1379 {offsets = [2, 0, 0], sizes = [1, 16, 128], strides = [1, 1, 1]} : vector<4x16x128xf32> to vector<1x16x128xf32>
    %2176 = vector.shape_cast %2175 : vector<1x16x128xf32> to vector<16x128xf32>
    %c130_246 = arith.constant 130 : index
    %2177 = memref.load %arg1[%c130_246] : memref<196xf32, #tpu.memory_space<smem>>
    %2178 = vector.broadcast %2177 : f32 to vector<16x128xf32>
    %2179 = arith.mulf %2176, %2178 : vector<16x128xf32>
    %2180 = arith.addf %2174, %2179 : vector<16x128xf32>
    %2181 = vector.extract_strided_slice %1380 {offsets = [2, 0, 0], sizes = [1, 16, 128], strides = [1, 1, 1]} : vector<4x16x128xf32> to vector<1x16x128xf32>
    %2182 = vector.shape_cast %2181 : vector<1x16x128xf32> to vector<16x128xf32>
    %c158_247 = arith.constant 158 : index
    %2183 = memref.load %arg1[%c158_247] : memref<196xf32, #tpu.memory_space<smem>>
    %2184 = vector.broadcast %2183 : f32 to vector<16x128xf32>
    %2185 = arith.mulf %2182, %2184 : vector<16x128xf32>
    %2186 = arith.addf %2180, %2185 : vector<16x128xf32>
    %2187 = vector.extract_strided_slice %1381 {offsets = [2, 0, 0], sizes = [1, 16, 128], strides = [1, 1, 1]} : vector<4x16x128xf32> to vector<1x16x128xf32>
    %2188 = vector.shape_cast %2187 : vector<1x16x128xf32> to vector<16x128xf32>
    %c186_248 = arith.constant 186 : index
    %2189 = memref.load %arg1[%c186_248] : memref<196xf32, #tpu.memory_space<smem>>
    %2190 = vector.broadcast %2189 : f32 to vector<16x128xf32>
    %2191 = arith.mulf %2188, %2190 : vector<16x128xf32>
    %2192 = arith.addf %2186, %2191 : vector<16x128xf32>
    %c2_i32_249 = arith.constant 2 : i32
    %2193 = tpu.dynamic_rotate %2192 by %c2_i32_249 dim 1 : vector<16x128xf32>, i32 -> vector<16x128xf32>
    %2194 = arith.addf %2022, %2193 : vector<16x128xf32>
    %2195 = vector.extract_strided_slice %1375 {offsets = [3, 0, 0], sizes = [1, 16, 128], strides = [1, 1, 1]} : vector<4x16x128xf32> to vector<1x16x128xf32>
    %2196 = vector.shape_cast %2195 : vector<1x16x128xf32> to vector<16x128xf32>
    %c19_250 = arith.constant 19 : index
    %2197 = memref.load %arg1[%c19_250] : memref<196xf32, #tpu.memory_space<smem>>
    %2198 = vector.broadcast %2197 : f32 to vector<16x128xf32>
    %2199 = arith.mulf %2196, %2198 : vector<16x128xf32>
    %2200 = vector.extract_strided_slice %1376 {offsets = [3, 0, 0], sizes = [1, 16, 128], strides = [1, 1, 1]} : vector<4x16x128xf32> to vector<1x16x128xf32>
    %2201 = vector.shape_cast %2200 : vector<1x16x128xf32> to vector<16x128xf32>
    %c47_251 = arith.constant 47 : index
    %2202 = memref.load %arg1[%c47_251] : memref<196xf32, #tpu.memory_space<smem>>
    %2203 = vector.broadcast %2202 : f32 to vector<16x128xf32>
    %2204 = arith.mulf %2201, %2203 : vector<16x128xf32>
    %2205 = arith.addf %2199, %2204 : vector<16x128xf32>
    %2206 = vector.extract_strided_slice %1377 {offsets = [3, 0, 0], sizes = [1, 16, 128], strides = [1, 1, 1]} : vector<4x16x128xf32> to vector<1x16x128xf32>
    %2207 = vector.shape_cast %2206 : vector<1x16x128xf32> to vector<16x128xf32>
    %c75_252 = arith.constant 75 : index
    %2208 = memref.load %arg1[%c75_252] : memref<196xf32, #tpu.memory_space<smem>>
    %2209 = vector.broadcast %2208 : f32 to vector<16x128xf32>
    %2210 = arith.mulf %2207, %2209 : vector<16x128xf32>
    %2211 = arith.addf %2205, %2210 : vector<16x128xf32>
    %2212 = vector.extract_strided_slice %1378 {offsets = [3, 0, 0], sizes = [1, 16, 128], strides = [1, 1, 1]} : vector<4x16x128xf32> to vector<1x16x128xf32>
    %2213 = vector.shape_cast %2212 : vector<1x16x128xf32> to vector<16x128xf32>
    %c103_253 = arith.constant 103 : index
    %2214 = memref.load %arg1[%c103_253] : memref<196xf32, #tpu.memory_space<smem>>
    %2215 = vector.broadcast %2214 : f32 to vector<16x128xf32>
    %2216 = arith.mulf %2213, %2215 : vector<16x128xf32>
    %2217 = arith.addf %2211, %2216 : vector<16x128xf32>
    %2218 = vector.extract_strided_slice %1379 {offsets = [3, 0, 0], sizes = [1, 16, 128], strides = [1, 1, 1]} : vector<4x16x128xf32> to vector<1x16x128xf32>
    %2219 = vector.shape_cast %2218 : vector<1x16x128xf32> to vector<16x128xf32>
    %c131_254 = arith.constant 131 : index
    %2220 = memref.load %arg1[%c131_254] : memref<196xf32, #tpu.memory_space<smem>>
    %2221 = vector.broadcast %2220 : f32 to vector<16x128xf32>
    %2222 = arith.mulf %2219, %2221 : vector<16x128xf32>
    %2223 = arith.addf %2217, %2222 : vector<16x128xf32>
    %2224 = vector.extract_strided_slice %1380 {offsets = [3, 0, 0], sizes = [1, 16, 128], strides = [1, 1, 1]} : vector<4x16x128xf32> to vector<1x16x128xf32>
    %2225 = vector.shape_cast %2224 : vector<1x16x128xf32> to vector<16x128xf32>
    %c159_255 = arith.constant 159 : index
    %2226 = memref.load %arg1[%c159_255] : memref<196xf32, #tpu.memory_space<smem>>
    %2227 = vector.broadcast %2226 : f32 to vector<16x128xf32>
    %2228 = arith.mulf %2225, %2227 : vector<16x128xf32>
    %2229 = arith.addf %2223, %2228 : vector<16x128xf32>
    %2230 = vector.extract_strided_slice %1381 {offsets = [3, 0, 0], sizes = [1, 16, 128], strides = [1, 1, 1]} : vector<4x16x128xf32> to vector<1x16x128xf32>
    %2231 = vector.shape_cast %2230 : vector<1x16x128xf32> to vector<16x128xf32>
    %c187_256 = arith.constant 187 : index
    %2232 = memref.load %arg1[%c187_256] : memref<196xf32, #tpu.memory_space<smem>>
    %2233 = vector.broadcast %2232 : f32 to vector<16x128xf32>
    %2234 = arith.mulf %2231, %2233 : vector<16x128xf32>
    %2235 = arith.addf %2229, %2234 : vector<16x128xf32>
    %c2_i32_257 = arith.constant 2 : i32
    %2236 = tpu.dynamic_rotate %2235 by %c2_i32_257 dim 1 : vector<16x128xf32>, i32 -> vector<16x128xf32>
    %2237 = arith.addf %2065, %2236 : vector<16x128xf32>
    %2238 = vector.extract_strided_slice %1375 {offsets = [0, 0, 0], sizes = [1, 16, 128], strides = [1, 1, 1]} : vector<4x16x128xf32> to vector<1x16x128xf32>
    %2239 = vector.shape_cast %2238 : vector<1x16x128xf32> to vector<16x128xf32>
    %c20_258 = arith.constant 20 : index
    %2240 = memref.load %arg1[%c20_258] : memref<196xf32, #tpu.memory_space<smem>>
    %2241 = vector.broadcast %2240 : f32 to vector<16x128xf32>
    %2242 = arith.mulf %2239, %2241 : vector<16x128xf32>
    %2243 = vector.extract_strided_slice %1376 {offsets = [0, 0, 0], sizes = [1, 16, 128], strides = [1, 1, 1]} : vector<4x16x128xf32> to vector<1x16x128xf32>
    %2244 = vector.shape_cast %2243 : vector<1x16x128xf32> to vector<16x128xf32>
    %c48_259 = arith.constant 48 : index
    %2245 = memref.load %arg1[%c48_259] : memref<196xf32, #tpu.memory_space<smem>>
    %2246 = vector.broadcast %2245 : f32 to vector<16x128xf32>
    %2247 = arith.mulf %2244, %2246 : vector<16x128xf32>
    %2248 = arith.addf %2242, %2247 : vector<16x128xf32>
    %2249 = vector.extract_strided_slice %1377 {offsets = [0, 0, 0], sizes = [1, 16, 128], strides = [1, 1, 1]} : vector<4x16x128xf32> to vector<1x16x128xf32>
    %2250 = vector.shape_cast %2249 : vector<1x16x128xf32> to vector<16x128xf32>
    %c76_260 = arith.constant 76 : index
    %2251 = memref.load %arg1[%c76_260] : memref<196xf32, #tpu.memory_space<smem>>
    %2252 = vector.broadcast %2251 : f32 to vector<16x128xf32>
    %2253 = arith.mulf %2250, %2252 : vector<16x128xf32>
    %2254 = arith.addf %2248, %2253 : vector<16x128xf32>
    %2255 = vector.extract_strided_slice %1378 {offsets = [0, 0, 0], sizes = [1, 16, 128], strides = [1, 1, 1]} : vector<4x16x128xf32> to vector<1x16x128xf32>
    %2256 = vector.shape_cast %2255 : vector<1x16x128xf32> to vector<16x128xf32>
    %c104_261 = arith.constant 104 : index
    %2257 = memref.load %arg1[%c104_261] : memref<196xf32, #tpu.memory_space<smem>>
    %2258 = vector.broadcast %2257 : f32 to vector<16x128xf32>
    %2259 = arith.mulf %2256, %2258 : vector<16x128xf32>
    %2260 = arith.addf %2254, %2259 : vector<16x128xf32>
    %2261 = vector.extract_strided_slice %1379 {offsets = [0, 0, 0], sizes = [1, 16, 128], strides = [1, 1, 1]} : vector<4x16x128xf32> to vector<1x16x128xf32>
    %2262 = vector.shape_cast %2261 : vector<1x16x128xf32> to vector<16x128xf32>
    %c132_262 = arith.constant 132 : index
    %2263 = memref.load %arg1[%c132_262] : memref<196xf32, #tpu.memory_space<smem>>
    %2264 = vector.broadcast %2263 : f32 to vector<16x128xf32>
    %2265 = arith.mulf %2262, %2264 : vector<16x128xf32>
    %2266 = arith.addf %2260, %2265 : vector<16x128xf32>
    %2267 = vector.extract_strided_slice %1380 {offsets = [0, 0, 0], sizes = [1, 16, 128], strides = [1, 1, 1]} : vector<4x16x128xf32> to vector<1x16x128xf32>
    %2268 = vector.shape_cast %2267 : vector<1x16x128xf32> to vector<16x128xf32>
    %c160_263 = arith.constant 160 : index
    %2269 = memref.load %arg1[%c160_263] : memref<196xf32, #tpu.memory_space<smem>>
    %2270 = vector.broadcast %2269 : f32 to vector<16x128xf32>
    %2271 = arith.mulf %2268, %2270 : vector<16x128xf32>
    %2272 = arith.addf %2266, %2271 : vector<16x128xf32>
    %2273 = vector.extract_strided_slice %1381 {offsets = [0, 0, 0], sizes = [1, 16, 128], strides = [1, 1, 1]} : vector<4x16x128xf32> to vector<1x16x128xf32>
    %2274 = vector.shape_cast %2273 : vector<1x16x128xf32> to vector<16x128xf32>
    %c188_264 = arith.constant 188 : index
    %2275 = memref.load %arg1[%c188_264] : memref<196xf32, #tpu.memory_space<smem>>
    %2276 = vector.broadcast %2275 : f32 to vector<16x128xf32>
    %2277 = arith.mulf %2274, %2276 : vector<16x128xf32>
    %2278 = arith.addf %2272, %2277 : vector<16x128xf32>
    %c1_i32_265 = arith.constant 1 : i32
    %2279 = tpu.dynamic_rotate %2278 by %c1_i32_265 dim 1 : vector<16x128xf32>, i32 -> vector<16x128xf32>
    %2280 = arith.addf %2108, %2279 : vector<16x128xf32>
    %2281 = vector.extract_strided_slice %1375 {offsets = [1, 0, 0], sizes = [1, 16, 128], strides = [1, 1, 1]} : vector<4x16x128xf32> to vector<1x16x128xf32>
    %2282 = vector.shape_cast %2281 : vector<1x16x128xf32> to vector<16x128xf32>
    %c21_266 = arith.constant 21 : index
    %2283 = memref.load %arg1[%c21_266] : memref<196xf32, #tpu.memory_space<smem>>
    %2284 = vector.broadcast %2283 : f32 to vector<16x128xf32>
    %2285 = arith.mulf %2282, %2284 : vector<16x128xf32>
    %2286 = vector.extract_strided_slice %1376 {offsets = [1, 0, 0], sizes = [1, 16, 128], strides = [1, 1, 1]} : vector<4x16x128xf32> to vector<1x16x128xf32>
    %2287 = vector.shape_cast %2286 : vector<1x16x128xf32> to vector<16x128xf32>
    %c49_267 = arith.constant 49 : index
    %2288 = memref.load %arg1[%c49_267] : memref<196xf32, #tpu.memory_space<smem>>
    %2289 = vector.broadcast %2288 : f32 to vector<16x128xf32>
    %2290 = arith.mulf %2287, %2289 : vector<16x128xf32>
    %2291 = arith.addf %2285, %2290 : vector<16x128xf32>
    %2292 = vector.extract_strided_slice %1377 {offsets = [1, 0, 0], sizes = [1, 16, 128], strides = [1, 1, 1]} : vector<4x16x128xf32> to vector<1x16x128xf32>
    %2293 = vector.shape_cast %2292 : vector<1x16x128xf32> to vector<16x128xf32>
    %c77_268 = arith.constant 77 : index
    %2294 = memref.load %arg1[%c77_268] : memref<196xf32, #tpu.memory_space<smem>>
    %2295 = vector.broadcast %2294 : f32 to vector<16x128xf32>
    %2296 = arith.mulf %2293, %2295 : vector<16x128xf32>
    %2297 = arith.addf %2291, %2296 : vector<16x128xf32>
    %2298 = vector.extract_strided_slice %1378 {offsets = [1, 0, 0], sizes = [1, 16, 128], strides = [1, 1, 1]} : vector<4x16x128xf32> to vector<1x16x128xf32>
    %2299 = vector.shape_cast %2298 : vector<1x16x128xf32> to vector<16x128xf32>
    %c105_269 = arith.constant 105 : index
    %2300 = memref.load %arg1[%c105_269] : memref<196xf32, #tpu.memory_space<smem>>
    %2301 = vector.broadcast %2300 : f32 to vector<16x128xf32>
    %2302 = arith.mulf %2299, %2301 : vector<16x128xf32>
    %2303 = arith.addf %2297, %2302 : vector<16x128xf32>
    %2304 = vector.extract_strided_slice %1379 {offsets = [1, 0, 0], sizes = [1, 16, 128], strides = [1, 1, 1]} : vector<4x16x128xf32> to vector<1x16x128xf32>
    %2305 = vector.shape_cast %2304 : vector<1x16x128xf32> to vector<16x128xf32>
    %c133_270 = arith.constant 133 : index
    %2306 = memref.load %arg1[%c133_270] : memref<196xf32, #tpu.memory_space<smem>>
    %2307 = vector.broadcast %2306 : f32 to vector<16x128xf32>
    %2308 = arith.mulf %2305, %2307 : vector<16x128xf32>
    %2309 = arith.addf %2303, %2308 : vector<16x128xf32>
    %2310 = vector.extract_strided_slice %1380 {offsets = [1, 0, 0], sizes = [1, 16, 128], strides = [1, 1, 1]} : vector<4x16x128xf32> to vector<1x16x128xf32>
    %2311 = vector.shape_cast %2310 : vector<1x16x128xf32> to vector<16x128xf32>
    %c161_271 = arith.constant 161 : index
    %2312 = memref.load %arg1[%c161_271] : memref<196xf32, #tpu.memory_space<smem>>
    %2313 = vector.broadcast %2312 : f32 to vector<16x128xf32>
    %2314 = arith.mulf %2311, %2313 : vector<16x128xf32>
    %2315 = arith.addf %2309, %2314 : vector<16x128xf32>
    %2316 = vector.extract_strided_slice %1381 {offsets = [1, 0, 0], sizes = [1, 16, 128], strides = [1, 1, 1]} : vector<4x16x128xf32> to vector<1x16x128xf32>
    %2317 = vector.shape_cast %2316 : vector<1x16x128xf32> to vector<16x128xf32>
    %c189_272 = arith.constant 189 : index
    %2318 = memref.load %arg1[%c189_272] : memref<196xf32, #tpu.memory_space<smem>>
    %2319 = vector.broadcast %2318 : f32 to vector<16x128xf32>
    %2320 = arith.mulf %2317, %2319 : vector<16x128xf32>
    %2321 = arith.addf %2315, %2320 : vector<16x128xf32>
    %c1_i32_273 = arith.constant 1 : i32
    %2322 = tpu.dynamic_rotate %2321 by %c1_i32_273 dim 1 : vector<16x128xf32>, i32 -> vector<16x128xf32>
    %2323 = arith.addf %2151, %2322 : vector<16x128xf32>
    %2324 = vector.extract_strided_slice %1375 {offsets = [2, 0, 0], sizes = [1, 16, 128], strides = [1, 1, 1]} : vector<4x16x128xf32> to vector<1x16x128xf32>
    %2325 = vector.shape_cast %2324 : vector<1x16x128xf32> to vector<16x128xf32>
    %c22_274 = arith.constant 22 : index
    %2326 = memref.load %arg1[%c22_274] : memref<196xf32, #tpu.memory_space<smem>>
    %2327 = vector.broadcast %2326 : f32 to vector<16x128xf32>
    %2328 = arith.mulf %2325, %2327 : vector<16x128xf32>
    %2329 = vector.extract_strided_slice %1376 {offsets = [2, 0, 0], sizes = [1, 16, 128], strides = [1, 1, 1]} : vector<4x16x128xf32> to vector<1x16x128xf32>
    %2330 = vector.shape_cast %2329 : vector<1x16x128xf32> to vector<16x128xf32>
    %c50_275 = arith.constant 50 : index
    %2331 = memref.load %arg1[%c50_275] : memref<196xf32, #tpu.memory_space<smem>>
    %2332 = vector.broadcast %2331 : f32 to vector<16x128xf32>
    %2333 = arith.mulf %2330, %2332 : vector<16x128xf32>
    %2334 = arith.addf %2328, %2333 : vector<16x128xf32>
    %2335 = vector.extract_strided_slice %1377 {offsets = [2, 0, 0], sizes = [1, 16, 128], strides = [1, 1, 1]} : vector<4x16x128xf32> to vector<1x16x128xf32>
    %2336 = vector.shape_cast %2335 : vector<1x16x128xf32> to vector<16x128xf32>
    %c78_276 = arith.constant 78 : index
    %2337 = memref.load %arg1[%c78_276] : memref<196xf32, #tpu.memory_space<smem>>
    %2338 = vector.broadcast %2337 : f32 to vector<16x128xf32>
    %2339 = arith.mulf %2336, %2338 : vector<16x128xf32>
    %2340 = arith.addf %2334, %2339 : vector<16x128xf32>
    %2341 = vector.extract_strided_slice %1378 {offsets = [2, 0, 0], sizes = [1, 16, 128], strides = [1, 1, 1]} : vector<4x16x128xf32> to vector<1x16x128xf32>
    %2342 = vector.shape_cast %2341 : vector<1x16x128xf32> to vector<16x128xf32>
    %c106_277 = arith.constant 106 : index
    %2343 = memref.load %arg1[%c106_277] : memref<196xf32, #tpu.memory_space<smem>>
    %2344 = vector.broadcast %2343 : f32 to vector<16x128xf32>
    %2345 = arith.mulf %2342, %2344 : vector<16x128xf32>
    %2346 = arith.addf %2340, %2345 : vector<16x128xf32>
    %2347 = vector.extract_strided_slice %1379 {offsets = [2, 0, 0], sizes = [1, 16, 128], strides = [1, 1, 1]} : vector<4x16x128xf32> to vector<1x16x128xf32>
    %2348 = vector.shape_cast %2347 : vector<1x16x128xf32> to vector<16x128xf32>
    %c134_278 = arith.constant 134 : index
    %2349 = memref.load %arg1[%c134_278] : memref<196xf32, #tpu.memory_space<smem>>
    %2350 = vector.broadcast %2349 : f32 to vector<16x128xf32>
    %2351 = arith.mulf %2348, %2350 : vector<16x128xf32>
    %2352 = arith.addf %2346, %2351 : vector<16x128xf32>
    %2353 = vector.extract_strided_slice %1380 {offsets = [2, 0, 0], sizes = [1, 16, 128], strides = [1, 1, 1]} : vector<4x16x128xf32> to vector<1x16x128xf32>
    %2354 = vector.shape_cast %2353 : vector<1x16x128xf32> to vector<16x128xf32>
    %c162_279 = arith.constant 162 : index
    %2355 = memref.load %arg1[%c162_279] : memref<196xf32, #tpu.memory_space<smem>>
    %2356 = vector.broadcast %2355 : f32 to vector<16x128xf32>
    %2357 = arith.mulf %2354, %2356 : vector<16x128xf32>
    %2358 = arith.addf %2352, %2357 : vector<16x128xf32>
    %2359 = vector.extract_strided_slice %1381 {offsets = [2, 0, 0], sizes = [1, 16, 128], strides = [1, 1, 1]} : vector<4x16x128xf32> to vector<1x16x128xf32>
    %2360 = vector.shape_cast %2359 : vector<1x16x128xf32> to vector<16x128xf32>
    %c190_280 = arith.constant 190 : index
    %2361 = memref.load %arg1[%c190_280] : memref<196xf32, #tpu.memory_space<smem>>
    %2362 = vector.broadcast %2361 : f32 to vector<16x128xf32>
    %2363 = arith.mulf %2360, %2362 : vector<16x128xf32>
    %2364 = arith.addf %2358, %2363 : vector<16x128xf32>
    %c1_i32_281 = arith.constant 1 : i32
    %2365 = tpu.dynamic_rotate %2364 by %c1_i32_281 dim 1 : vector<16x128xf32>, i32 -> vector<16x128xf32>
    %2366 = arith.addf %2194, %2365 : vector<16x128xf32>
    %2367 = vector.extract_strided_slice %1375 {offsets = [3, 0, 0], sizes = [1, 16, 128], strides = [1, 1, 1]} : vector<4x16x128xf32> to vector<1x16x128xf32>
    %2368 = vector.shape_cast %2367 : vector<1x16x128xf32> to vector<16x128xf32>
    %c23_282 = arith.constant 23 : index
    %2369 = memref.load %arg1[%c23_282] : memref<196xf32, #tpu.memory_space<smem>>
    %2370 = vector.broadcast %2369 : f32 to vector<16x128xf32>
    %2371 = arith.mulf %2368, %2370 : vector<16x128xf32>
    %2372 = vector.extract_strided_slice %1376 {offsets = [3, 0, 0], sizes = [1, 16, 128], strides = [1, 1, 1]} : vector<4x16x128xf32> to vector<1x16x128xf32>
    %2373 = vector.shape_cast %2372 : vector<1x16x128xf32> to vector<16x128xf32>
    %c51_283 = arith.constant 51 : index
    %2374 = memref.load %arg1[%c51_283] : memref<196xf32, #tpu.memory_space<smem>>
    %2375 = vector.broadcast %2374 : f32 to vector<16x128xf32>
    %2376 = arith.mulf %2373, %2375 : vector<16x128xf32>
    %2377 = arith.addf %2371, %2376 : vector<16x128xf32>
    %2378 = vector.extract_strided_slice %1377 {offsets = [3, 0, 0], sizes = [1, 16, 128], strides = [1, 1, 1]} : vector<4x16x128xf32> to vector<1x16x128xf32>
    %2379 = vector.shape_cast %2378 : vector<1x16x128xf32> to vector<16x128xf32>
    %c79_284 = arith.constant 79 : index
    %2380 = memref.load %arg1[%c79_284] : memref<196xf32, #tpu.memory_space<smem>>
    %2381 = vector.broadcast %2380 : f32 to vector<16x128xf32>
    %2382 = arith.mulf %2379, %2381 : vector<16x128xf32>
    %2383 = arith.addf %2377, %2382 : vector<16x128xf32>
    %2384 = vector.extract_strided_slice %1378 {offsets = [3, 0, 0], sizes = [1, 16, 128], strides = [1, 1, 1]} : vector<4x16x128xf32> to vector<1x16x128xf32>
    %2385 = vector.shape_cast %2384 : vector<1x16x128xf32> to vector<16x128xf32>
    %c107_285 = arith.constant 107 : index
    %2386 = memref.load %arg1[%c107_285] : memref<196xf32, #tpu.memory_space<smem>>
    %2387 = vector.broadcast %2386 : f32 to vector<16x128xf32>
    %2388 = arith.mulf %2385, %2387 : vector<16x128xf32>
    %2389 = arith.addf %2383, %2388 : vector<16x128xf32>
    %2390 = vector.extract_strided_slice %1379 {offsets = [3, 0, 0], sizes = [1, 16, 128], strides = [1, 1, 1]} : vector<4x16x128xf32> to vector<1x16x128xf32>
    %2391 = vector.shape_cast %2390 : vector<1x16x128xf32> to vector<16x128xf32>
    %c135_286 = arith.constant 135 : index
    %2392 = memref.load %arg1[%c135_286] : memref<196xf32, #tpu.memory_space<smem>>
    %2393 = vector.broadcast %2392 : f32 to vector<16x128xf32>
    %2394 = arith.mulf %2391, %2393 : vector<16x128xf32>
    %2395 = arith.addf %2389, %2394 : vector<16x128xf32>
    %2396 = vector.extract_strided_slice %1380 {offsets = [3, 0, 0], sizes = [1, 16, 128], strides = [1, 1, 1]} : vector<4x16x128xf32> to vector<1x16x128xf32>
    %2397 = vector.shape_cast %2396 : vector<1x16x128xf32> to vector<16x128xf32>
    %c163_287 = arith.constant 163 : index
    %2398 = memref.load %arg1[%c163_287] : memref<196xf32, #tpu.memory_space<smem>>
    %2399 = vector.broadcast %2398 : f32 to vector<16x128xf32>
    %2400 = arith.mulf %2397, %2399 : vector<16x128xf32>
    %2401 = arith.addf %2395, %2400 : vector<16x128xf32>
    %2402 = vector.extract_strided_slice %1381 {offsets = [3, 0, 0], sizes = [1, 16, 128], strides = [1, 1, 1]} : vector<4x16x128xf32> to vector<1x16x128xf32>
    %2403 = vector.shape_cast %2402 : vector<1x16x128xf32> to vector<16x128xf32>
    %c191_288 = arith.constant 191 : index
    %2404 = memref.load %arg1[%c191_288] : memref<196xf32, #tpu.memory_space<smem>>
    %2405 = vector.broadcast %2404 : f32 to vector<16x128xf32>
    %2406 = arith.mulf %2403, %2405 : vector<16x128xf32>
    %2407 = arith.addf %2401, %2406 : vector<16x128xf32>
    %c1_i32_289 = arith.constant 1 : i32
    %2408 = tpu.dynamic_rotate %2407 by %c1_i32_289 dim 1 : vector<16x128xf32>, i32 -> vector<16x128xf32>
    %2409 = arith.addf %2237, %2408 : vector<16x128xf32>
    %2410 = vector.extract_strided_slice %1375 {offsets = [0, 0, 0], sizes = [1, 16, 128], strides = [1, 1, 1]} : vector<4x16x128xf32> to vector<1x16x128xf32>
    %2411 = vector.shape_cast %2410 : vector<1x16x128xf32> to vector<16x128xf32>
    %c24_290 = arith.constant 24 : index
    %2412 = memref.load %arg1[%c24_290] : memref<196xf32, #tpu.memory_space<smem>>
    %2413 = vector.broadcast %2412 : f32 to vector<16x128xf32>
    %2414 = arith.mulf %2411, %2413 : vector<16x128xf32>
    %2415 = vector.extract_strided_slice %1376 {offsets = [0, 0, 0], sizes = [1, 16, 128], strides = [1, 1, 1]} : vector<4x16x128xf32> to vector<1x16x128xf32>
    %2416 = vector.shape_cast %2415 : vector<1x16x128xf32> to vector<16x128xf32>
    %c52_291 = arith.constant 52 : index
    %2417 = memref.load %arg1[%c52_291] : memref<196xf32, #tpu.memory_space<smem>>
    %2418 = vector.broadcast %2417 : f32 to vector<16x128xf32>
    %2419 = arith.mulf %2416, %2418 : vector<16x128xf32>
    %2420 = arith.addf %2414, %2419 : vector<16x128xf32>
    %2421 = vector.extract_strided_slice %1377 {offsets = [0, 0, 0], sizes = [1, 16, 128], strides = [1, 1, 1]} : vector<4x16x128xf32> to vector<1x16x128xf32>
    %2422 = vector.shape_cast %2421 : vector<1x16x128xf32> to vector<16x128xf32>
    %c80_292 = arith.constant 80 : index
    %2423 = memref.load %arg1[%c80_292] : memref<196xf32, #tpu.memory_space<smem>>
    %2424 = vector.broadcast %2423 : f32 to vector<16x128xf32>
    %2425 = arith.mulf %2422, %2424 : vector<16x128xf32>
    %2426 = arith.addf %2420, %2425 : vector<16x128xf32>
    %2427 = vector.extract_strided_slice %1378 {offsets = [0, 0, 0], sizes = [1, 16, 128], strides = [1, 1, 1]} : vector<4x16x128xf32> to vector<1x16x128xf32>
    %2428 = vector.shape_cast %2427 : vector<1x16x128xf32> to vector<16x128xf32>
    %c108_293 = arith.constant 108 : index
    %2429 = memref.load %arg1[%c108_293] : memref<196xf32, #tpu.memory_space<smem>>
    %2430 = vector.broadcast %2429 : f32 to vector<16x128xf32>
    %2431 = arith.mulf %2428, %2430 : vector<16x128xf32>
    %2432 = arith.addf %2426, %2431 : vector<16x128xf32>
    %2433 = vector.extract_strided_slice %1379 {offsets = [0, 0, 0], sizes = [1, 16, 128], strides = [1, 1, 1]} : vector<4x16x128xf32> to vector<1x16x128xf32>
    %2434 = vector.shape_cast %2433 : vector<1x16x128xf32> to vector<16x128xf32>
    %c136_294 = arith.constant 136 : index
    %2435 = memref.load %arg1[%c136_294] : memref<196xf32, #tpu.memory_space<smem>>
    %2436 = vector.broadcast %2435 : f32 to vector<16x128xf32>
    %2437 = arith.mulf %2434, %2436 : vector<16x128xf32>
    %2438 = arith.addf %2432, %2437 : vector<16x128xf32>
    %2439 = vector.extract_strided_slice %1380 {offsets = [0, 0, 0], sizes = [1, 16, 128], strides = [1, 1, 1]} : vector<4x16x128xf32> to vector<1x16x128xf32>
    %2440 = vector.shape_cast %2439 : vector<1x16x128xf32> to vector<16x128xf32>
    %c164_295 = arith.constant 164 : index
    %2441 = memref.load %arg1[%c164_295] : memref<196xf32, #tpu.memory_space<smem>>
    %2442 = vector.broadcast %2441 : f32 to vector<16x128xf32>
    %2443 = arith.mulf %2440, %2442 : vector<16x128xf32>
    %2444 = arith.addf %2438, %2443 : vector<16x128xf32>
    %2445 = vector.extract_strided_slice %1381 {offsets = [0, 0, 0], sizes = [1, 16, 128], strides = [1, 1, 1]} : vector<4x16x128xf32> to vector<1x16x128xf32>
    %2446 = vector.shape_cast %2445 : vector<1x16x128xf32> to vector<16x128xf32>
    %c192_296 = arith.constant 192 : index
    %2447 = memref.load %arg1[%c192_296] : memref<196xf32, #tpu.memory_space<smem>>
    %2448 = vector.broadcast %2447 : f32 to vector<16x128xf32>
    %2449 = arith.mulf %2446, %2448 : vector<16x128xf32>
    %2450 = arith.addf %2444, %2449 : vector<16x128xf32>
    %2451 = arith.addf %2280, %2450 : vector<16x128xf32>
    %2452 = vector.extract_strided_slice %1375 {offsets = [1, 0, 0], sizes = [1, 16, 128], strides = [1, 1, 1]} : vector<4x16x128xf32> to vector<1x16x128xf32>
    %2453 = vector.shape_cast %2452 : vector<1x16x128xf32> to vector<16x128xf32>
    %c25_297 = arith.constant 25 : index
    %2454 = memref.load %arg1[%c25_297] : memref<196xf32, #tpu.memory_space<smem>>
    %2455 = vector.broadcast %2454 : f32 to vector<16x128xf32>
    %2456 = arith.mulf %2453, %2455 : vector<16x128xf32>
    %2457 = vector.extract_strided_slice %1376 {offsets = [1, 0, 0], sizes = [1, 16, 128], strides = [1, 1, 1]} : vector<4x16x128xf32> to vector<1x16x128xf32>
    %2458 = vector.shape_cast %2457 : vector<1x16x128xf32> to vector<16x128xf32>
    %c53_298 = arith.constant 53 : index
    %2459 = memref.load %arg1[%c53_298] : memref<196xf32, #tpu.memory_space<smem>>
    %2460 = vector.broadcast %2459 : f32 to vector<16x128xf32>
    %2461 = arith.mulf %2458, %2460 : vector<16x128xf32>
    %2462 = arith.addf %2456, %2461 : vector<16x128xf32>
    %2463 = vector.extract_strided_slice %1377 {offsets = [1, 0, 0], sizes = [1, 16, 128], strides = [1, 1, 1]} : vector<4x16x128xf32> to vector<1x16x128xf32>
    %2464 = vector.shape_cast %2463 : vector<1x16x128xf32> to vector<16x128xf32>
    %c81_299 = arith.constant 81 : index
    %2465 = memref.load %arg1[%c81_299] : memref<196xf32, #tpu.memory_space<smem>>
    %2466 = vector.broadcast %2465 : f32 to vector<16x128xf32>
    %2467 = arith.mulf %2464, %2466 : vector<16x128xf32>
    %2468 = arith.addf %2462, %2467 : vector<16x128xf32>
    %2469 = vector.extract_strided_slice %1378 {offsets = [1, 0, 0], sizes = [1, 16, 128], strides = [1, 1, 1]} : vector<4x16x128xf32> to vector<1x16x128xf32>
    %2470 = vector.shape_cast %2469 : vector<1x16x128xf32> to vector<16x128xf32>
    %c109_300 = arith.constant 109 : index
    %2471 = memref.load %arg1[%c109_300] : memref<196xf32, #tpu.memory_space<smem>>
    %2472 = vector.broadcast %2471 : f32 to vector<16x128xf32>
    %2473 = arith.mulf %2470, %2472 : vector<16x128xf32>
    %2474 = arith.addf %2468, %2473 : vector<16x128xf32>
    %2475 = vector.extract_strided_slice %1379 {offsets = [1, 0, 0], sizes = [1, 16, 128], strides = [1, 1, 1]} : vector<4x16x128xf32> to vector<1x16x128xf32>
    %2476 = vector.shape_cast %2475 : vector<1x16x128xf32> to vector<16x128xf32>
    %c137_301 = arith.constant 137 : index
    %2477 = memref.load %arg1[%c137_301] : memref<196xf32, #tpu.memory_space<smem>>
    %2478 = vector.broadcast %2477 : f32 to vector<16x128xf32>
    %2479 = arith.mulf %2476, %2478 : vector<16x128xf32>
    %2480 = arith.addf %2474, %2479 : vector<16x128xf32>
    %2481 = vector.extract_strided_slice %1380 {offsets = [1, 0, 0], sizes = [1, 16, 128], strides = [1, 1, 1]} : vector<4x16x128xf32> to vector<1x16x128xf32>
    %2482 = vector.shape_cast %2481 : vector<1x16x128xf32> to vector<16x128xf32>
    %c165_302 = arith.constant 165 : index
    %2483 = memref.load %arg1[%c165_302] : memref<196xf32, #tpu.memory_space<smem>>
    %2484 = vector.broadcast %2483 : f32 to vector<16x128xf32>
    %2485 = arith.mulf %2482, %2484 : vector<16x128xf32>
    %2486 = arith.addf %2480, %2485 : vector<16x128xf32>
    %2487 = vector.extract_strided_slice %1381 {offsets = [1, 0, 0], sizes = [1, 16, 128], strides = [1, 1, 1]} : vector<4x16x128xf32> to vector<1x16x128xf32>
    %2488 = vector.shape_cast %2487 : vector<1x16x128xf32> to vector<16x128xf32>
    %c193_303 = arith.constant 193 : index
    %2489 = memref.load %arg1[%c193_303] : memref<196xf32, #tpu.memory_space<smem>>
    %2490 = vector.broadcast %2489 : f32 to vector<16x128xf32>
    %2491 = arith.mulf %2488, %2490 : vector<16x128xf32>
    %2492 = arith.addf %2486, %2491 : vector<16x128xf32>
    %2493 = arith.addf %2323, %2492 : vector<16x128xf32>
    %2494 = vector.extract_strided_slice %1375 {offsets = [2, 0, 0], sizes = [1, 16, 128], strides = [1, 1, 1]} : vector<4x16x128xf32> to vector<1x16x128xf32>
    %2495 = vector.shape_cast %2494 : vector<1x16x128xf32> to vector<16x128xf32>
    %c26_304 = arith.constant 26 : index
    %2496 = memref.load %arg1[%c26_304] : memref<196xf32, #tpu.memory_space<smem>>
    %2497 = vector.broadcast %2496 : f32 to vector<16x128xf32>
    %2498 = arith.mulf %2495, %2497 : vector<16x128xf32>
    %2499 = vector.extract_strided_slice %1376 {offsets = [2, 0, 0], sizes = [1, 16, 128], strides = [1, 1, 1]} : vector<4x16x128xf32> to vector<1x16x128xf32>
    %2500 = vector.shape_cast %2499 : vector<1x16x128xf32> to vector<16x128xf32>
    %c54_305 = arith.constant 54 : index
    %2501 = memref.load %arg1[%c54_305] : memref<196xf32, #tpu.memory_space<smem>>
    %2502 = vector.broadcast %2501 : f32 to vector<16x128xf32>
    %2503 = arith.mulf %2500, %2502 : vector<16x128xf32>
    %2504 = arith.addf %2498, %2503 : vector<16x128xf32>
    %2505 = vector.extract_strided_slice %1377 {offsets = [2, 0, 0], sizes = [1, 16, 128], strides = [1, 1, 1]} : vector<4x16x128xf32> to vector<1x16x128xf32>
    %2506 = vector.shape_cast %2505 : vector<1x16x128xf32> to vector<16x128xf32>
    %c82_306 = arith.constant 82 : index
    %2507 = memref.load %arg1[%c82_306] : memref<196xf32, #tpu.memory_space<smem>>
    %2508 = vector.broadcast %2507 : f32 to vector<16x128xf32>
    %2509 = arith.mulf %2506, %2508 : vector<16x128xf32>
    %2510 = arith.addf %2504, %2509 : vector<16x128xf32>
    %2511 = vector.extract_strided_slice %1378 {offsets = [2, 0, 0], sizes = [1, 16, 128], strides = [1, 1, 1]} : vector<4x16x128xf32> to vector<1x16x128xf32>
    %2512 = vector.shape_cast %2511 : vector<1x16x128xf32> to vector<16x128xf32>
    %c110_307 = arith.constant 110 : index
    %2513 = memref.load %arg1[%c110_307] : memref<196xf32, #tpu.memory_space<smem>>
    %2514 = vector.broadcast %2513 : f32 to vector<16x128xf32>
    %2515 = arith.mulf %2512, %2514 : vector<16x128xf32>
    %2516 = arith.addf %2510, %2515 : vector<16x128xf32>
    %2517 = vector.extract_strided_slice %1379 {offsets = [2, 0, 0], sizes = [1, 16, 128], strides = [1, 1, 1]} : vector<4x16x128xf32> to vector<1x16x128xf32>
    %2518 = vector.shape_cast %2517 : vector<1x16x128xf32> to vector<16x128xf32>
    %c138_308 = arith.constant 138 : index
    %2519 = memref.load %arg1[%c138_308] : memref<196xf32, #tpu.memory_space<smem>>
    %2520 = vector.broadcast %2519 : f32 to vector<16x128xf32>
    %2521 = arith.mulf %2518, %2520 : vector<16x128xf32>
    %2522 = arith.addf %2516, %2521 : vector<16x128xf32>
    %2523 = vector.extract_strided_slice %1380 {offsets = [2, 0, 0], sizes = [1, 16, 128], strides = [1, 1, 1]} : vector<4x16x128xf32> to vector<1x16x128xf32>
    %2524 = vector.shape_cast %2523 : vector<1x16x128xf32> to vector<16x128xf32>
    %c166_309 = arith.constant 166 : index
    %2525 = memref.load %arg1[%c166_309] : memref<196xf32, #tpu.memory_space<smem>>
    %2526 = vector.broadcast %2525 : f32 to vector<16x128xf32>
    %2527 = arith.mulf %2524, %2526 : vector<16x128xf32>
    %2528 = arith.addf %2522, %2527 : vector<16x128xf32>
    %2529 = vector.extract_strided_slice %1381 {offsets = [2, 0, 0], sizes = [1, 16, 128], strides = [1, 1, 1]} : vector<4x16x128xf32> to vector<1x16x128xf32>
    %2530 = vector.shape_cast %2529 : vector<1x16x128xf32> to vector<16x128xf32>
    %c194_310 = arith.constant 194 : index
    %2531 = memref.load %arg1[%c194_310] : memref<196xf32, #tpu.memory_space<smem>>
    %2532 = vector.broadcast %2531 : f32 to vector<16x128xf32>
    %2533 = arith.mulf %2530, %2532 : vector<16x128xf32>
    %2534 = arith.addf %2528, %2533 : vector<16x128xf32>
    %2535 = arith.addf %2366, %2534 : vector<16x128xf32>
    %2536 = vector.extract_strided_slice %1375 {offsets = [3, 0, 0], sizes = [1, 16, 128], strides = [1, 1, 1]} : vector<4x16x128xf32> to vector<1x16x128xf32>
    %2537 = vector.shape_cast %2536 : vector<1x16x128xf32> to vector<16x128xf32>
    %c27_311 = arith.constant 27 : index
    %2538 = memref.load %arg1[%c27_311] : memref<196xf32, #tpu.memory_space<smem>>
    %2539 = vector.broadcast %2538 : f32 to vector<16x128xf32>
    %2540 = arith.mulf %2537, %2539 : vector<16x128xf32>
    %2541 = vector.extract_strided_slice %1376 {offsets = [3, 0, 0], sizes = [1, 16, 128], strides = [1, 1, 1]} : vector<4x16x128xf32> to vector<1x16x128xf32>
    %2542 = vector.shape_cast %2541 : vector<1x16x128xf32> to vector<16x128xf32>
    %c55_312 = arith.constant 55 : index
    %2543 = memref.load %arg1[%c55_312] : memref<196xf32, #tpu.memory_space<smem>>
    %2544 = vector.broadcast %2543 : f32 to vector<16x128xf32>
    %2545 = arith.mulf %2542, %2544 : vector<16x128xf32>
    %2546 = arith.addf %2540, %2545 : vector<16x128xf32>
    %2547 = vector.extract_strided_slice %1377 {offsets = [3, 0, 0], sizes = [1, 16, 128], strides = [1, 1, 1]} : vector<4x16x128xf32> to vector<1x16x128xf32>
    %2548 = vector.shape_cast %2547 : vector<1x16x128xf32> to vector<16x128xf32>
    %c83_313 = arith.constant 83 : index
    %2549 = memref.load %arg1[%c83_313] : memref<196xf32, #tpu.memory_space<smem>>
    %2550 = vector.broadcast %2549 : f32 to vector<16x128xf32>
    %2551 = arith.mulf %2548, %2550 : vector<16x128xf32>
    %2552 = arith.addf %2546, %2551 : vector<16x128xf32>
    %2553 = vector.extract_strided_slice %1378 {offsets = [3, 0, 0], sizes = [1, 16, 128], strides = [1, 1, 1]} : vector<4x16x128xf32> to vector<1x16x128xf32>
    %2554 = vector.shape_cast %2553 : vector<1x16x128xf32> to vector<16x128xf32>
    %c111_314 = arith.constant 111 : index
    %2555 = memref.load %arg1[%c111_314] : memref<196xf32, #tpu.memory_space<smem>>
    %2556 = vector.broadcast %2555 : f32 to vector<16x128xf32>
    %2557 = arith.mulf %2554, %2556 : vector<16x128xf32>
    %2558 = arith.addf %2552, %2557 : vector<16x128xf32>
    %2559 = vector.extract_strided_slice %1379 {offsets = [3, 0, 0], sizes = [1, 16, 128], strides = [1, 1, 1]} : vector<4x16x128xf32> to vector<1x16x128xf32>
    %2560 = vector.shape_cast %2559 : vector<1x16x128xf32> to vector<16x128xf32>
    %c139_315 = arith.constant 139 : index
    %2561 = memref.load %arg1[%c139_315] : memref<196xf32, #tpu.memory_space<smem>>
    %2562 = vector.broadcast %2561 : f32 to vector<16x128xf32>
    %2563 = arith.mulf %2560, %2562 : vector<16x128xf32>
    %2564 = arith.addf %2558, %2563 : vector<16x128xf32>
    %2565 = vector.extract_strided_slice %1380 {offsets = [3, 0, 0], sizes = [1, 16, 128], strides = [1, 1, 1]} : vector<4x16x128xf32> to vector<1x16x128xf32>
    %2566 = vector.shape_cast %2565 : vector<1x16x128xf32> to vector<16x128xf32>
    %c167_316 = arith.constant 167 : index
    %2567 = memref.load %arg1[%c167_316] : memref<196xf32, #tpu.memory_space<smem>>
    %2568 = vector.broadcast %2567 : f32 to vector<16x128xf32>
    %2569 = arith.mulf %2566, %2568 : vector<16x128xf32>
    %2570 = arith.addf %2564, %2569 : vector<16x128xf32>
    %2571 = vector.extract_strided_slice %1381 {offsets = [3, 0, 0], sizes = [1, 16, 128], strides = [1, 1, 1]} : vector<4x16x128xf32> to vector<1x16x128xf32>
    %2572 = vector.shape_cast %2571 : vector<1x16x128xf32> to vector<16x128xf32>
    %c195_317 = arith.constant 195 : index
    %2573 = memref.load %arg1[%c195_317] : memref<196xf32, #tpu.memory_space<smem>>
    %2574 = vector.broadcast %2573 : f32 to vector<16x128xf32>
    %2575 = arith.mulf %2572, %2574 : vector<16x128xf32>
    %2576 = arith.addf %2570, %2575 : vector<16x128xf32>
    %2577 = arith.addf %2409, %2576 : vector<16x128xf32>
    %c0_318 = arith.constant 0 : index
    %2578 = memref.load %arg2[%c0_318] : memref<32xf32, #tpu.memory_space<smem>>
    %2579 = vector.broadcast %2578 : f32 to vector<16x128xf32>
    %2580 = arith.mulf %2451, %2579 : vector<16x128xf32>
    %c8_319 = arith.constant 8 : index
    %2581 = memref.load %arg2[%c8_319] : memref<32xf32, #tpu.memory_space<smem>>
    %2582 = vector.broadcast %2581 : f32 to vector<16x128xf32>
    %2583 = arith.mulf %2493, %2582 : vector<16x128xf32>
    %2584 = arith.addf %2580, %2583 : vector<16x128xf32>
    %c16_320 = arith.constant 16 : index
    %2585 = memref.load %arg2[%c16_320] : memref<32xf32, #tpu.memory_space<smem>>
    %2586 = vector.broadcast %2585 : f32 to vector<16x128xf32>
    %2587 = arith.mulf %2535, %2586 : vector<16x128xf32>
    %2588 = arith.addf %2584, %2587 : vector<16x128xf32>
    %c24_321 = arith.constant 24 : index
    %2589 = memref.load %arg2[%c24_321] : memref<32xf32, #tpu.memory_space<smem>>
    %2590 = vector.broadcast %2589 : f32 to vector<16x128xf32>
    %2591 = arith.mulf %2577, %2590 : vector<16x128xf32>
    %2592 = arith.addf %2588, %2591 : vector<16x128xf32>
    %c0_322 = arith.constant 0 : index
    %2593 = memref.load %arg3[%c0_322] : memref<8xf32, #tpu.memory_space<smem>>
    %2594 = vector.broadcast %2593 : f32 to vector<16x128xf32>
    %2595 = arith.addf %2592, %2594 : vector<16x128xf32>
    %c1_323 = arith.constant 1 : index
    %c0_324 = arith.constant 0 : index
    %c0_325 = arith.constant 0 : index
    %c0_326 = arith.constant 0 : index
    %2596 = vector.load %arg5[%c1_323, %c0_324, %c0_325, %c0_326] : memref<2x8x16x128xf32, #tpu.memory_space<vmem>>, vector<1x1x16x128xf32>
    %2597 = vector.shape_cast %2596 : vector<1x1x16x128xf32> to vector<16x128xf32>
    %2598 = vector.shape_cast %2595 : vector<16x128xf32> to vector<1x1x16x128xf32>
    tpu.vector_store %arg5[%c1_323, %c0_324, %c0_325, %c0_326], %2598 {strides = array<i32>} : memref<2x8x16x128xf32, #tpu.memory_space<vmem>>, vector<1x1x16x128xf32>,
    %c1_327 = arith.constant 1 : index
    %2599 = memref.load %arg2[%c1_327] : memref<32xf32, #tpu.memory_space<smem>>
    %2600 = vector.broadcast %2599 : f32 to vector<16x128xf32>
    %2601 = arith.mulf %2451, %2600 : vector<16x128xf32>
    %c9_328 = arith.constant 9 : index
    %2602 = memref.load %arg2[%c9_328] : memref<32xf32, #tpu.memory_space<smem>>
    %2603 = vector.broadcast %2602 : f32 to vector<16x128xf32>
    %2604 = arith.mulf %2493, %2603 : vector<16x128xf32>
    %2605 = arith.addf %2601, %2604 : vector<16x128xf32>
    %c17_329 = arith.constant 17 : index
    %2606 = memref.load %arg2[%c17_329] : memref<32xf32, #tpu.memory_space<smem>>
    %2607 = vector.broadcast %2606 : f32 to vector<16x128xf32>
    %2608 = arith.mulf %2535, %2607 : vector<16x128xf32>
    %2609 = arith.addf %2605, %2608 : vector<16x128xf32>
    %c25_330 = arith.constant 25 : index
    %2610 = memref.load %arg2[%c25_330] : memref<32xf32, #tpu.memory_space<smem>>
    %2611 = vector.broadcast %2610 : f32 to vector<16x128xf32>
    %2612 = arith.mulf %2577, %2611 : vector<16x128xf32>
    %2613 = arith.addf %2609, %2612 : vector<16x128xf32>
    %c1_331 = arith.constant 1 : index
    %2614 = memref.load %arg3[%c1_331] : memref<8xf32, #tpu.memory_space<smem>>
    %2615 = vector.broadcast %2614 : f32 to vector<16x128xf32>
    %2616 = arith.addf %2613, %2615 : vector<16x128xf32>
    %c1_332 = arith.constant 1 : index
    %c1_333 = arith.constant 1 : index
    %c0_334 = arith.constant 0 : index
    %c0_335 = arith.constant 0 : index
    %2617 = vector.load %arg5[%c1_332, %c1_333, %c0_334, %c0_335] : memref<2x8x16x128xf32, #tpu.memory_space<vmem>>, vector<1x1x16x128xf32>
    %2618 = vector.shape_cast %2617 : vector<1x1x16x128xf32> to vector<16x128xf32>
    %2619 = vector.shape_cast %2616 : vector<16x128xf32> to vector<1x1x16x128xf32>
    tpu.vector_store %arg5[%c1_332, %c1_333, %c0_334, %c0_335], %2619 {strides = array<i32>} : memref<2x8x16x128xf32, #tpu.memory_space<vmem>>, vector<1x1x16x128xf32>,
    %c2_336 = arith.constant 2 : index
    %2620 = memref.load %arg2[%c2_336] : memref<32xf32, #tpu.memory_space<smem>>
    %2621 = vector.broadcast %2620 : f32 to vector<16x128xf32>
    %2622 = arith.mulf %2451, %2621 : vector<16x128xf32>
    %c10_337 = arith.constant 10 : index
    %2623 = memref.load %arg2[%c10_337] : memref<32xf32, #tpu.memory_space<smem>>
    %2624 = vector.broadcast %2623 : f32 to vector<16x128xf32>
    %2625 = arith.mulf %2493, %2624 : vector<16x128xf32>
    %2626 = arith.addf %2622, %2625 : vector<16x128xf32>
    %c18_338 = arith.constant 18 : index
    %2627 = memref.load %arg2[%c18_338] : memref<32xf32, #tpu.memory_space<smem>>
    %2628 = vector.broadcast %2627 : f32 to vector<16x128xf32>
    %2629 = arith.mulf %2535, %2628 : vector<16x128xf32>
    %2630 = arith.addf %2626, %2629 : vector<16x128xf32>
    %c26_339 = arith.constant 26 : index
    %2631 = memref.load %arg2[%c26_339] : memref<32xf32, #tpu.memory_space<smem>>
    %2632 = vector.broadcast %2631 : f32 to vector<16x128xf32>
    %2633 = arith.mulf %2577, %2632 : vector<16x128xf32>
    %2634 = arith.addf %2630, %2633 : vector<16x128xf32>
    %c2_340 = arith.constant 2 : index
    %2635 = memref.load %arg3[%c2_340] : memref<8xf32, #tpu.memory_space<smem>>
    %2636 = vector.broadcast %2635 : f32 to vector<16x128xf32>
    %2637 = arith.addf %2634, %2636 : vector<16x128xf32>
    %c1_341 = arith.constant 1 : index
    %c2_342 = arith.constant 2 : index
    %c0_343 = arith.constant 0 : index
    %c0_344 = arith.constant 0 : index
    %2638 = vector.load %arg5[%c1_341, %c2_342, %c0_343, %c0_344] : memref<2x8x16x128xf32, #tpu.memory_space<vmem>>, vector<1x1x16x128xf32>
    %2639 = vector.shape_cast %2638 : vector<1x1x16x128xf32> to vector<16x128xf32>
    %2640 = vector.shape_cast %2637 : vector<16x128xf32> to vector<1x1x16x128xf32>
    tpu.vector_store %arg5[%c1_341, %c2_342, %c0_343, %c0_344], %2640 {strides = array<i32>} : memref<2x8x16x128xf32, #tpu.memory_space<vmem>>, vector<1x1x16x128xf32>,
    %c3_345 = arith.constant 3 : index
    %2641 = memref.load %arg2[%c3_345] : memref<32xf32, #tpu.memory_space<smem>>
    %2642 = vector.broadcast %2641 : f32 to vector<16x128xf32>
    %2643 = arith.mulf %2451, %2642 : vector<16x128xf32>
    %c11_346 = arith.constant 11 : index
    %2644 = memref.load %arg2[%c11_346] : memref<32xf32, #tpu.memory_space<smem>>
    %2645 = vector.broadcast %2644 : f32 to vector<16x128xf32>
    %2646 = arith.mulf %2493, %2645 : vector<16x128xf32>
    %2647 = arith.addf %2643, %2646 : vector<16x128xf32>
    %c19_347 = arith.constant 19 : index
    %2648 = memref.load %arg2[%c19_347] : memref<32xf32, #tpu.memory_space<smem>>
    %2649 = vector.broadcast %2648 : f32 to vector<16x128xf32>
    %2650 = arith.mulf %2535, %2649 : vector<16x128xf32>
    %2651 = arith.addf %2647, %2650 : vector<16x128xf32>
    %c27_348 = arith.constant 27 : index
    %2652 = memref.load %arg2[%c27_348] : memref<32xf32, #tpu.memory_space<smem>>
    %2653 = vector.broadcast %2652 : f32 to vector<16x128xf32>
    %2654 = arith.mulf %2577, %2653 : vector<16x128xf32>
    %2655 = arith.addf %2651, %2654 : vector<16x128xf32>
    %c3_349 = arith.constant 3 : index
    %2656 = memref.load %arg3[%c3_349] : memref<8xf32, #tpu.memory_space<smem>>
    %2657 = vector.broadcast %2656 : f32 to vector<16x128xf32>
    %2658 = arith.addf %2655, %2657 : vector<16x128xf32>
    %c1_350 = arith.constant 1 : index
    %c3_351 = arith.constant 3 : index
    %c0_352 = arith.constant 0 : index
    %c0_353 = arith.constant 0 : index
    %2659 = vector.load %arg5[%c1_350, %c3_351, %c0_352, %c0_353] : memref<2x8x16x128xf32, #tpu.memory_space<vmem>>, vector<1x1x16x128xf32>
    %2660 = vector.shape_cast %2659 : vector<1x1x16x128xf32> to vector<16x128xf32>
    %2661 = vector.shape_cast %2658 : vector<16x128xf32> to vector<1x1x16x128xf32>
    tpu.vector_store %arg5[%c1_350, %c3_351, %c0_352, %c0_353], %2661 {strides = array<i32>} : memref<2x8x16x128xf32, #tpu.memory_space<vmem>>, vector<1x1x16x128xf32>,
    %c4_354 = arith.constant 4 : index
    %2662 = memref.load %arg2[%c4_354] : memref<32xf32, #tpu.memory_space<smem>>
    %2663 = vector.broadcast %2662 : f32 to vector<16x128xf32>
    %2664 = arith.mulf %2451, %2663 : vector<16x128xf32>
    %c12_355 = arith.constant 12 : index
    %2665 = memref.load %arg2[%c12_355] : memref<32xf32, #tpu.memory_space<smem>>
    %2666 = vector.broadcast %2665 : f32 to vector<16x128xf32>
    %2667 = arith.mulf %2493, %2666 : vector<16x128xf32>
    %2668 = arith.addf %2664, %2667 : vector<16x128xf32>
    %c20_356 = arith.constant 20 : index
    %2669 = memref.load %arg2[%c20_356] : memref<32xf32, #tpu.memory_space<smem>>
    %2670 = vector.broadcast %2669 : f32 to vector<16x128xf32>
    %2671 = arith.mulf %2535, %2670 : vector<16x128xf32>
    %2672 = arith.addf %2668, %2671 : vector<16x128xf32>
    %c28_357 = arith.constant 28 : index
    %2673 = memref.load %arg2[%c28_357] : memref<32xf32, #tpu.memory_space<smem>>
    %2674 = vector.broadcast %2673 : f32 to vector<16x128xf32>
    %2675 = arith.mulf %2577, %2674 : vector<16x128xf32>
    %2676 = arith.addf %2672, %2675 : vector<16x128xf32>
    %c4_358 = arith.constant 4 : index
    %2677 = memref.load %arg3[%c4_358] : memref<8xf32, #tpu.memory_space<smem>>
    %2678 = vector.broadcast %2677 : f32 to vector<16x128xf32>
    %2679 = arith.addf %2676, %2678 : vector<16x128xf32>
    %c1_359 = arith.constant 1 : index
    %c4_360 = arith.constant 4 : index
    %c0_361 = arith.constant 0 : index
    %c0_362 = arith.constant 0 : index
    %2680 = vector.load %arg5[%c1_359, %c4_360, %c0_361, %c0_362] : memref<2x8x16x128xf32, #tpu.memory_space<vmem>>, vector<1x1x16x128xf32>
    %2681 = vector.shape_cast %2680 : vector<1x1x16x128xf32> to vector<16x128xf32>
    %2682 = vector.shape_cast %2679 : vector<16x128xf32> to vector<1x1x16x128xf32>
    tpu.vector_store %arg5[%c1_359, %c4_360, %c0_361, %c0_362], %2682 {strides = array<i32>} : memref<2x8x16x128xf32, #tpu.memory_space<vmem>>, vector<1x1x16x128xf32>,
    %c5_363 = arith.constant 5 : index
    %2683 = memref.load %arg2[%c5_363] : memref<32xf32, #tpu.memory_space<smem>>
    %2684 = vector.broadcast %2683 : f32 to vector<16x128xf32>
    %2685 = arith.mulf %2451, %2684 : vector<16x128xf32>
    %c13_364 = arith.constant 13 : index
    %2686 = memref.load %arg2[%c13_364] : memref<32xf32, #tpu.memory_space<smem>>
    %2687 = vector.broadcast %2686 : f32 to vector<16x128xf32>
    %2688 = arith.mulf %2493, %2687 : vector<16x128xf32>
    %2689 = arith.addf %2685, %2688 : vector<16x128xf32>
    %c21_365 = arith.constant 21 : index
    %2690 = memref.load %arg2[%c21_365] : memref<32xf32, #tpu.memory_space<smem>>
    %2691 = vector.broadcast %2690 : f32 to vector<16x128xf32>
    %2692 = arith.mulf %2535, %2691 : vector<16x128xf32>
    %2693 = arith.addf %2689, %2692 : vector<16x128xf32>
    %c29_366 = arith.constant 29 : index
    %2694 = memref.load %arg2[%c29_366] : memref<32xf32, #tpu.memory_space<smem>>
    %2695 = vector.broadcast %2694 : f32 to vector<16x128xf32>
    %2696 = arith.mulf %2577, %2695 : vector<16x128xf32>
    %2697 = arith.addf %2693, %2696 : vector<16x128xf32>
    %c5_367 = arith.constant 5 : index
    %2698 = memref.load %arg3[%c5_367] : memref<8xf32, #tpu.memory_space<smem>>
    %2699 = vector.broadcast %2698 : f32 to vector<16x128xf32>
    %2700 = arith.addf %2697, %2699 : vector<16x128xf32>
    %c1_368 = arith.constant 1 : index
    %c5_369 = arith.constant 5 : index
    %c0_370 = arith.constant 0 : index
    %c0_371 = arith.constant 0 : index
    %2701 = vector.load %arg5[%c1_368, %c5_369, %c0_370, %c0_371] : memref<2x8x16x128xf32, #tpu.memory_space<vmem>>, vector<1x1x16x128xf32>
    %2702 = vector.shape_cast %2701 : vector<1x1x16x128xf32> to vector<16x128xf32>
    %2703 = vector.shape_cast %2700 : vector<16x128xf32> to vector<1x1x16x128xf32>
    tpu.vector_store %arg5[%c1_368, %c5_369, %c0_370, %c0_371], %2703 {strides = array<i32>} : memref<2x8x16x128xf32, #tpu.memory_space<vmem>>, vector<1x1x16x128xf32>,
    %c6_372 = arith.constant 6 : index
    %2704 = memref.load %arg2[%c6_372] : memref<32xf32, #tpu.memory_space<smem>>
    %2705 = vector.broadcast %2704 : f32 to vector<16x128xf32>
    %2706 = arith.mulf %2451, %2705 : vector<16x128xf32>
    %c14_373 = arith.constant 14 : index
    %2707 = memref.load %arg2[%c14_373] : memref<32xf32, #tpu.memory_space<smem>>
    %2708 = vector.broadcast %2707 : f32 to vector<16x128xf32>
    %2709 = arith.mulf %2493, %2708 : vector<16x128xf32>
    %2710 = arith.addf %2706, %2709 : vector<16x128xf32>
    %c22_374 = arith.constant 22 : index
    %2711 = memref.load %arg2[%c22_374] : memref<32xf32, #tpu.memory_space<smem>>
    %2712 = vector.broadcast %2711 : f32 to vector<16x128xf32>
    %2713 = arith.mulf %2535, %2712 : vector<16x128xf32>
    %2714 = arith.addf %2710, %2713 : vector<16x128xf32>
    %c30_375 = arith.constant 30 : index
    %2715 = memref.load %arg2[%c30_375] : memref<32xf32, #tpu.memory_space<smem>>
    %2716 = vector.broadcast %2715 : f32 to vector<16x128xf32>
    %2717 = arith.mulf %2577, %2716 : vector<16x128xf32>
    %2718 = arith.addf %2714, %2717 : vector<16x128xf32>
    %c6_376 = arith.constant 6 : index
    %2719 = memref.load %arg3[%c6_376] : memref<8xf32, #tpu.memory_space<smem>>
    %2720 = vector.broadcast %2719 : f32 to vector<16x128xf32>
    %2721 = arith.addf %2718, %2720 : vector<16x128xf32>
    %c1_377 = arith.constant 1 : index
    %c6_378 = arith.constant 6 : index
    %c0_379 = arith.constant 0 : index
    %c0_380 = arith.constant 0 : index
    %2722 = vector.load %arg5[%c1_377, %c6_378, %c0_379, %c0_380] : memref<2x8x16x128xf32, #tpu.memory_space<vmem>>, vector<1x1x16x128xf32>
    %2723 = vector.shape_cast %2722 : vector<1x1x16x128xf32> to vector<16x128xf32>
    %2724 = vector.shape_cast %2721 : vector<16x128xf32> to vector<1x1x16x128xf32>
    tpu.vector_store %arg5[%c1_377, %c6_378, %c0_379, %c0_380], %2724 {strides = array<i32>} : memref<2x8x16x128xf32, #tpu.memory_space<vmem>>, vector<1x1x16x128xf32>,
    %c7_381 = arith.constant 7 : index
    %2725 = memref.load %arg2[%c7_381] : memref<32xf32, #tpu.memory_space<smem>>
    %2726 = vector.broadcast %2725 : f32 to vector<16x128xf32>
    %2727 = arith.mulf %2451, %2726 : vector<16x128xf32>
    %c15_382 = arith.constant 15 : index
    %2728 = memref.load %arg2[%c15_382] : memref<32xf32, #tpu.memory_space<smem>>
    %2729 = vector.broadcast %2728 : f32 to vector<16x128xf32>
    %2730 = arith.mulf %2493, %2729 : vector<16x128xf32>
    %2731 = arith.addf %2727, %2730 : vector<16x128xf32>
    %c23_383 = arith.constant 23 : index
    %2732 = memref.load %arg2[%c23_383] : memref<32xf32, #tpu.memory_space<smem>>
    %2733 = vector.broadcast %2732 : f32 to vector<16x128xf32>
    %2734 = arith.mulf %2535, %2733 : vector<16x128xf32>
    %2735 = arith.addf %2731, %2734 : vector<16x128xf32>
    %c31_384 = arith.constant 31 : index
    %2736 = memref.load %arg2[%c31_384] : memref<32xf32, #tpu.memory_space<smem>>
    %2737 = vector.broadcast %2736 : f32 to vector<16x128xf32>
    %2738 = arith.mulf %2577, %2737 : vector<16x128xf32>
    %2739 = arith.addf %2735, %2738 : vector<16x128xf32>
    %c7_385 = arith.constant 7 : index
    %2740 = memref.load %arg3[%c7_385] : memref<8xf32, #tpu.memory_space<smem>>
    %2741 = vector.broadcast %2740 : f32 to vector<16x128xf32>
    %2742 = arith.addf %2739, %2741 : vector<16x128xf32>
    %c1_386 = arith.constant 1 : index
    %c7_387 = arith.constant 7 : index
    %c0_388 = arith.constant 0 : index
    %c0_389 = arith.constant 0 : index
    %2743 = vector.load %arg5[%c1_386, %c7_387, %c0_388, %c0_389] : memref<2x8x16x128xf32, #tpu.memory_space<vmem>>, vector<1x1x16x128xf32>
    %2744 = vector.shape_cast %2743 : vector<1x1x16x128xf32> to vector<16x128xf32>
    %2745 = vector.shape_cast %2742 : vector<16x128xf32> to vector<1x1x16x128xf32>
    tpu.vector_store %arg5[%c1_386, %c7_387, %c0_388, %c0_389], %2745 {strides = array<i32>} : memref<2x8x16x128xf32, #tpu.memory_space<vmem>>, vector<1x1x16x128xf32>,
    return
  }
  func.func @transform_0(%arg0: i32) -> i32 {
    %c0_i32 = arith.constant 0 : i32
    %c0_i32_0 = arith.constant 0 : i32
    return %c0_i32 : i32
  }
  func.func @transform_1(%arg0: i32) -> i32 {
    %c0_i32 = arith.constant 0 : i32
    %c0_i32_0 = arith.constant 0 : i32
    return %c0_i32 : i32
  }
  func.func @transform_2(%arg0: i32) -> i32 {
    %c0_i32 = arith.constant 0 : i32
    %c0_i32_0 = arith.constant 0 : i32
    return %c0_i32 : i32
  }
  func.func @transform_3(%arg0: i32) -> (i32, i32, i32, i32) {
    %c0_i32 = arith.constant 0 : i32
    %c0_i32_0 = arith.constant 0 : i32
    %c0_i32_1 = arith.constant 0 : i32
    %c0_i32_2 = arith.constant 0 : i32
    return %arg0, %c0_i32, %c0_i32_0, %c0_i32_1 : i32, i32, i32, i32
  }
  func.func @transform_4(%arg0: i32) -> (i32, i32, i32, i32) {
    %c0_i32 = arith.constant 0 : i32
    %c0_i32_0 = arith.constant 0 : i32
    %c0_i32_1 = arith.constant 0 : i32
    %c0_i32_2 = arith.constant 0 : i32
    return %arg0, %c0_i32, %c0_i32_0, %c0_i32_1 : i32, i32, i32, i32
  }
}

</mosaic_0001>

<llo_original>
// kernel: tpu_custom_call.1
$region0: #{tpu_custom_call.1}
  #allocation0 [shape = 'u32[]', space=smem, size = 0x4, offset = 0x4, fixed_abs, tag = 'smem constant byte address 0x4 - core index']
  #allocation1 [shape = 'u32[144,128]{1,0:T(1,128)}', space=vmem, size = 0x12000, scoped, tag = 'internal scratch']
  %s0 = inlined_call_operand.hbm [shape: f32[196], index: 0, kind: input, shape index: {}]
  %s1 = inlined_call_operand.vmem [shape: f32[32], index: 1, kind: input, shape index: {}]
  %s2 = inlined_call_operand.vmem [shape: f32[8], index: 2, kind: input, shape index: {}]
  %s3 = inlined_call_operand.hbm [shape: f32[2,4,24,128], index: 3, kind: input, shape index: {}]
  %s4 = inlined_call_operand.hbm [shape: f32[2,8,16,128], index: 4, kind: output, shape index: {}]
  %s5 = sld [smem:[#allocation0]]
  $region42: #{tpu_custom_call.1} parent=0
    _
  %s7 = ssub.s32 1, %s5
  %s8 = scalar_select 0, %s7, %s5
  $region1: #{tpu_custom_call.1} parent=0
    #allocation2 [shape = 'u8[1024]{0}', space=smem, size = 0x400, scoped, tag = 'input window, operand 0, single buffered']
    #allocation3 [shape = 's32[1]{0}', space=sflag, size = 0x4, scoped, tag = 'scoped memory for tpu_custom_call.1']
    #allocation4 [shape = 's32[1]{0}', space=sflag, size = 0x4, scoped, tag = 'scoped memory for tpu_custom_call.1']
    #allocation5 [shape = 's32[1]{0}', space=sflag, size = 0x4, scoped, tag = 'scoped memory for tpu_custom_call.1']
    #allocation6 [shape = 's32[1]{0}', space=sflag, size = 0x4, scoped, tag = 'scoped memory for tpu_custom_call.1']
    #allocation7 [shape = 'u8[512]{0}', space=smem, size = 0x200, scoped, tag = 'input window, operand 1, single buffered']
    #allocation8 [shape = 'u8[512]{0}', space=smem, size = 0x200, scoped, tag = 'input window, operand 2, single buffered']
    #allocation9 [shape = 's32[1]{0}', space=sflag, size = 0x4, scoped, tag = 'scoped memory for tpu_custom_call.1']
    #allocation10 [shape = 'u8[98304]{0}', space=vmem, size = 0x18000, scoped, tag = 'input window, operand 3, single buffered']
    #allocation11 [shape = 'u8[131072]{0}', space=vmem, size = 0x20000, scoped, tag = 'output window, operand 0, single buffered']
    %9 = vsyncpa [#allocation5], 0
    %10 = vsyncpa [#allocation6], 0
    %11 = vsyncpa [#allocation9], 0
    %12 = vsyncpa [#allocation3], 0
    %13 = vsyncpa [#allocation4], 0
    // Predicated region
    $region2: #{tpu_custom_call.1} parent=1 // pred_check
      _
    $region3: #{tpu_custom_call.1} parent=1 // pred_check_branch
      %15 = sbr.rel (0) target = $region5
    $region4: #{tpu_custom_call.1} parent=1 // pred_region
      %s17 = ssub.s32 32, 32
      %18 = vsyncadd [#allocation5], %s17
      %21 = dma.hbm_to_smem %s0, 32, [#allocation2], [#allocation5]
    $region5: #{tpu_custom_call.1} parent=1 // pred_fallthru
      _
    // Predicated region
    $region6: #{tpu_custom_call.1} parent=1 // pred_check
      _
    $region7: #{tpu_custom_call.1} parent=1 // pred_check_branch
      %23 = sbr.rel (0) target = $region9
    $region8: #{tpu_custom_call.1} parent=1 // pred_region
      %s25 = ssub.s32 16, 16
      %26 = vsyncadd [#allocation6], %s25
      %s28 = sshll.u32 %s1, 4
      %s29 = int_to_ptr.vmem [resolvable:$true] %s28
      %31 = dma.vmem_to_smem %s29, 16, [#allocation7], [#allocation6]
    $region9: #{tpu_custom_call.1} parent=1 // pred_fallthru
      _
    // Predicated region
    $region10: #{tpu_custom_call.1} parent=1 // pred_check
      _
    $region11: #{tpu_custom_call.1} parent=1 // pred_check_branch
      %33 = sbr.rel (0) target = $region13
    $region12: #{tpu_custom_call.1} parent=1 // pred_region
      %s35 = ssub.s32 16, 16
      %36 = vsyncadd [#allocation9], %s35
      %s38 = sshll.u32 %s2, 4
      %s39 = int_to_ptr.vmem [resolvable:$true] %s38
      %41 = dma.vmem_to_smem %s39, 16, [#allocation8], [#allocation9]
    $region13: #{tpu_custom_call.1} parent=1 // pred_fallthru
      _
    // Predicated region
    $region14: #{tpu_custom_call.1} parent=1 // pred_check
      _
    $region15: #{tpu_custom_call.1} parent=1 // pred_check_branch
      %43 = sbr.rel (0) target = $region17
    $region16: #{tpu_custom_call.1} parent=1 // pred_region
      %s45 = ssub.s32 3072, 3072
      %46 = vsyncadd [#allocation3], %s45
      %s47 = sshll.u32 [#allocation10], 4
      %s48 = int_to_ptr.vmem [resolvable:$true] %s47
      %53 = dma.hbm_to_vmem [thread:$0]  %s3, 3072, %s48, [#allocation3], 128, 128, 8
    $region17: #{tpu_custom_call.1} parent=1 // pred_fallthru
      _
    // Predicated region
    $region18: #{tpu_custom_call.1} parent=1 // pred_check
      _
    $region19: #{tpu_custom_call.1} parent=1 // pred_check_branch
      %55 = sbr.rel (0) target = $region21
    $region20: #{tpu_custom_call.1} parent=1 // pred_region
      %56 = dma.done [#allocation5], 32
    $region21: #{tpu_custom_call.1} parent=1 // pred_fallthru
      _
    // Predicated region
    $region22: #{tpu_custom_call.1} parent=1 // pred_check
      _
    $region23: #{tpu_custom_call.1} parent=1 // pred_check_branch
      %58 = sbr.rel (0) target = $region25
    $region24: #{tpu_custom_call.1} parent=1 // pred_region
      %59 = dma.done [#allocation6], 16
    $region25: #{tpu_custom_call.1} parent=1 // pred_fallthru
      _
    // Predicated region
    $region26: #{tpu_custom_call.1} parent=1 // pred_check
      _
    $region27: #{tpu_custom_call.1} parent=1 // pred_check_branch
      %61 = sbr.rel (0) target = $region29
    $region28: #{tpu_custom_call.1} parent=1 // pred_region
      %62 = dma.done [#allocation9], 16
    $region29: #{tpu_custom_call.1} parent=1 // pred_fallthru
      _
    // Predicated region
    $region30: #{tpu_custom_call.1} parent=1 // pred_check
      _
    $region31: #{tpu_custom_call.1} parent=1 // pred_check_branch
      %64 = sbr.rel (0) target = $region33
    $region32: #{tpu_custom_call.1} parent=1 // pred_region
      %65 = dma.done [#allocation3], 3072
    $region33: #{tpu_custom_call.1} parent=1 // pred_fallthru
      _
    %66 = sfence
    %v67 = vld [vmem:[#allocation10] sm:$0xff]
    %v68 = vld [vmem:[#allocation10 + $0x8] sm:$0xff]
    %v69 = vld [vmem:[#allocation10 + $0x10] sm:$0xff]
    %v70 = vld [vmem:[#allocation10 + $0x18] sm:$0xff]
    %v71 = vld [vmem:[#allocation10 + $0x20] sm:$0xff]
    %v72 = vld [vmem:[#allocation10 + $0x28] sm:$0xff]
    %v73 = vld [vmem:[#allocation10 + $0x30] sm:$0xff]
    %v74 = vld [vmem:[#allocation10 + $0x38] sm:$0xff]
    %v75 = vld [vmem:[#allocation10 + $0x40] sm:$0xff]
    %v76 = vld [vmem:[#allocation10 + $0x48] sm:$0xff]
    %v77 = vld [vmem:[#allocation10 + $0x50] sm:$0xff]
    %v78 = vld [vmem:[#allocation10 + $0x58] sm:$0xff]
    %s79 = sld [smem:[#allocation2]]
    %v80 = vstv %s79
    %v81 = vmul.f32 %v67, %v80
    %v82 = vmul.f32 %v68, %v80
    %s83 = sld [smem:[#allocation2 + $0x1c]]
    %v84 = vstv %s83
    %v85 = vmul.f32 %v67, %v84
    %v86 = vmul.f32 %v68, %v84
    %v87 = vmul.f32 %v69, %v84
    %vm91 = vcmask 1046528
    %v92 = vrot.slane %v85, 1
    %v93 = vrot.slane %v86, 1
    %v94 = vsel %vm91, %v92, %v93
    %v95 = vrot.slane %v87, 1
    %v96 = vsel %vm91, %v93, %v95
    %v99 = vadd.f32 %v81, %v94
    %v100 = vadd.f32 %v82, %v96
    %s101 = sld [smem:[#allocation2 + $0x38]]
    %v102 = vstv %s101
    %v103 = vmul.f32 %v67, %v102
    %v104 = vmul.f32 %v68, %v102
    %v105 = vmul.f32 %v69, %v102
    %vm109 = vcmask 1045504
    %v110 = vrot.slane %v103, 2
    %v111 = vrot.slane %v104, 2
    %v112 = vsel %vm109, %v110, %v111
    %v113 = vrot.slane %v105, 2
    %v114 = vsel %vm109, %v111, %v113
    %v117 = vadd.f32 %v99, %v112
    %v118 = vadd.f32 %v100, %v114
    %s119 = sld [smem:[#allocation2 + $0x54]]
    %v120 = vstv %s119
    %v121 = vmul.f32 %v67, %v120
    %v122 = vmul.f32 %v68, %v120
    %v123 = vmul.f32 %v69, %v120
    %vm127 = vcmask 1044480
    %v128 = vrot.slane %v121, 3
    %v129 = vrot.slane %v122, 3
    %v130 = vsel %vm127, %v128, %v129
    %v131 = vrot.slane %v123, 3
    %v132 = vsel %vm127, %v129, %v131
    %v135 = vadd.f32 %v117, %v130
    %v136 = vadd.f32 %v118, %v132
    %s137 = sld [smem:[#allocation2 + $0x70]]
    %v138 = vstv %s137
    %v139 = vmul.f32 %v67, %v138
    %v140 = vmul.f32 %v68, %v138
    %v141 = vmul.f32 %v69, %v138
    %vm145 = vcmask 1043456
    %v146 = vrot.slane %v139, 4
    %v147 = vrot.slane %v140, 4
    %v148 = vsel %vm145, %v146, %v147
    %v149 = vrot.slane %v141, 4
    %v150 = vsel %vm145, %v147, %v149
    %v153 = vadd.f32 %v135, %v148
    %v154 = vadd.f32 %v136, %v150
    %s155 = sld [smem:[#allocation2 + $0x8c]]
    %v156 = vstv %s155
    %v157 = vmul.f32 %v67, %v156
    %v158 = vmul.f32 %v68, %v156
    %v159 = vmul.f32 %v69, %v156
    %vm163 = vcmask 1042432
    %v164 = vrot.slane %v157, 5
    %v165 = vrot.slane %v158, 5
    %v166 = vsel %vm163, %v164, %v165
    %v167 = vrot.slane %v159, 5
    %v168 = vsel %vm163, %v165, %v167
    %v171 = vadd.f32 %v153, %v166
    %v172 = vadd.f32 %v154, %v168
    %s173 = sld [smem:[#allocation2 + $0xa8]]
    %v174 = vstv %s173
    %v175 = vmul.f32 %v67, %v174
    %v176 = vmul.f32 %v68, %v174
    %v177 = vmul.f32 %v69, %v174
    %vm181 = vcmask 1041408
    %v182 = vrot.slane %v175, 6
    %v183 = vrot.slane %v176, 6
    %v184 = vsel %vm181, %v182, %v183
    %v185 = vrot.slane %v177, 6
    %v186 = vsel %vm181, %v183, %v185
    %v189 = vadd.f32 %v171, %v184
    %v190 = vadd.f32 %v172, %v186
    %191 = vrot.lane.b32.xlu0 %v189, 6
    %v192 = vpop.permute.xlu0 %191
    %193 = vrot.lane.b32.xlu0 %v190, 6
    %v194 = vpop.permute.xlu0 %193
    %s195 = sld [smem:[#allocation2 + $0x1]]
    %v196 = vstv %s195
    %v197 = vmul.f32 %v70, %v196
    %v198 = vmul.f32 %v71, %v196
    %s199 = sld [smem:[#allocation2 + $0x1d]]
    %v200 = vstv %s199
    %v201 = vmul.f32 %v70, %v200
    %v202 = vmul.f32 %v71, %v200
    %v203 = vmul.f32 %v72, %v200
    %v207 = vrot.slane %v201, 1
    %v208 = vrot.slane %v202, 1
    %v209 = vsel %vm91, %v207, %v208
    %v210 = vrot.slane %v203, 1
    %v211 = vsel %vm91, %v208, %v210
    %v214 = vadd.f32 %v197, %v209
    %v215 = vadd.f32 %v198, %v211
    %s216 = sld [smem:[#allocation2 + $0x39]]
    %v217 = vstv %s216
    %v218 = vmul.f32 %v70, %v217
    %v219 = vmul.f32 %v71, %v217
    %v220 = vmul.f32 %v72, %v217
    %v224 = vrot.slane %v218, 2
    %v225 = vrot.slane %v219, 2
    %v226 = vsel %vm109, %v224, %v225
    %v227 = vrot.slane %v220, 2
    %v228 = vsel %vm109, %v225, %v227
    %v231 = vadd.f32 %v214, %v226
    %v232 = vadd.f32 %v215, %v228
    %s233 = sld [smem:[#allocation2 + $0x55]]
    %v234 = vstv %s233
    %v235 = vmul.f32 %v70, %v234
    %v236 = vmul.f32 %v71, %v234
    %v237 = vmul.f32 %v72, %v234
    %v241 = vrot.slane %v235, 3
    %v242 = vrot.slane %v236, 3
    %v243 = vsel %vm127, %v241, %v242
    %v244 = vrot.slane %v237, 3
    %v245 = vsel %vm127, %v242, %v244
    %v248 = vadd.f32 %v231, %v243
    %v249 = vadd.f32 %v232, %v245
    %s250 = sld [smem:[#allocation2 + $0x71]]
    %v251 = vstv %s250
    %v252 = vmul.f32 %v70, %v251
    %v253 = vmul.f32 %v71, %v251
    %v254 = vmul.f32 %v72, %v251
    %v258 = vrot.slane %v252, 4
    %v259 = vrot.slane %v253, 4
    %v260 = vsel %vm145, %v258, %v259
    %v261 = vrot.slane %v254, 4
    %v262 = vsel %vm145, %v259, %v261
    %v265 = vadd.f32 %v248, %v260
    %v266 = vadd.f32 %v249, %v262
    %s267 = sld [smem:[#allocation2 + $0x8d]]
    %v268 = vstv %s267
    %v269 = vmul.f32 %v70, %v268
    %v270 = vmul.f32 %v71, %v268
    %v271 = vmul.f32 %v72, %v268
    %v275 = vrot.slane %v269, 5
    %v276 = vrot.slane %v270, 5
    %v277 = vsel %vm163, %v275, %v276
    %v278 = vrot.slane %v271, 5
    %v279 = vsel %vm163, %v276, %v278
    %v282 = vadd.f32 %v265, %v277
    %v283 = vadd.f32 %v266, %v279
    %s284 = sld [smem:[#allocation2 + $0xa9]]
    %v285 = vstv %s284
    %v286 = vmul.f32 %v70, %v285
    %v287 = vmul.f32 %v71, %v285
    %v288 = vmul.f32 %v72, %v285
    %v292 = vrot.slane %v286, 6
    %v293 = vrot.slane %v287, 6
    %v294 = vsel %vm181, %v292, %v293
    %v295 = vrot.slane %v288, 6
    %v296 = vsel %vm181, %v293, %v295
    %v299 = vadd.f32 %v282, %v294
    %v300 = vadd.f32 %v283, %v296
    %301 = vrot.lane.b32.xlu0 %v299, 6
    %v302 = vpop.permute.xlu0 %301
    %303 = vrot.lane.b32.xlu0 %v300, 6
    %v304 = vpop.permute.xlu0 %303
    %s305 = sld [smem:[#allocation2 + $0x2]]
    %v306 = vstv %s305
    %v307 = vmul.f32 %v73, %v306
    %v308 = vmul.f32 %v74, %v306
    %s309 = sld [smem:[#allocation2 + $0x1e]]
    %v310 = vstv %s309
    %v311 = vmul.f32 %v73, %v310
    %v312 = vmul.f32 %v74, %v310
    %v313 = vmul.f32 %v75, %v310
    %v317 = vrot.slane %v311, 1
    %v318 = vrot.slane %v312, 1
    %v319 = vsel %vm91, %v317, %v318
    %v320 = vrot.slane %v313, 1
    %v321 = vsel %vm91, %v318, %v320
    %v324 = vadd.f32 %v307, %v319
    %v325 = vadd.f32 %v308, %v321
    %s326 = sld [smem:[#allocation2 + $0x3a]]
    %v327 = vstv %s326
    %v328 = vmul.f32 %v73, %v327
    %v329 = vmul.f32 %v74, %v327
    %v330 = vmul.f32 %v75, %v327
    %v334 = vrot.slane %v328, 2
    %v335 = vrot.slane %v329, 2
    %v336 = vsel %vm109, %v334, %v335
    %v337 = vrot.slane %v330, 2
    %v338 = vsel %vm109, %v335, %v337
    %v341 = vadd.f32 %v324, %v336
    %v342 = vadd.f32 %v325, %v338
    %s343 = sld [smem:[#allocation2 + $0x56]]
    %v344 = vstv %s343
    %v345 = vmul.f32 %v73, %v344
    %v346 = vmul.f32 %v74, %v344
    %v347 = vmul.f32 %v75, %v344
    %v351 = vrot.slane %v345, 3
    %v352 = vrot.slane %v346, 3
    %v353 = vsel %vm127, %v351, %v352
    %v354 = vrot.slane %v347, 3
    %v355 = vsel %vm127, %v352, %v354
    %v358 = vadd.f32 %v341, %v353
    %v359 = vadd.f32 %v342, %v355
    %s360 = sld [smem:[#allocation2 + $0x72]]
    %v361 = vstv %s360
    %v362 = vmul.f32 %v73, %v361
    %v363 = vmul.f32 %v74, %v361
    %v364 = vmul.f32 %v75, %v361
    %v368 = vrot.slane %v362, 4
    %v369 = vrot.slane %v363, 4
    %v370 = vsel %vm145, %v368, %v369
    %v371 = vrot.slane %v364, 4
    %v372 = vsel %vm145, %v369, %v371
    %v375 = vadd.f32 %v358, %v370
    %v376 = vadd.f32 %v359, %v372
    %s377 = sld [smem:[#allocation2 + $0x8e]]
    %v378 = vstv %s377
    %v379 = vmul.f32 %v73, %v378
    %v380 = vmul.f32 %v74, %v378
    %v381 = vmul.f32 %v75, %v378
    %v385 = vrot.slane %v379, 5
    %v386 = vrot.slane %v380, 5
    %v387 = vsel %vm163, %v385, %v386
    %v388 = vrot.slane %v381, 5
    %v389 = vsel %vm163, %v386, %v388
    %v392 = vadd.f32 %v375, %v387
    %v393 = vadd.f32 %v376, %v389
    %s394 = sld [smem:[#allocation2 + $0xaa]]
    %v395 = vstv %s394
    %v396 = vmul.f32 %v73, %v395
    %v397 = vmul.f32 %v74, %v395
    %v398 = vmul.f32 %v75, %v395
    %v402 = vrot.slane %v396, 6
    %v403 = vrot.slane %v397, 6
    %v404 = vsel %vm181, %v402, %v403
    %v405 = vrot.slane %v398, 6
    %v406 = vsel %vm181, %v403, %v405
    %v409 = vadd.f32 %v392, %v404
    %v410 = vadd.f32 %v393, %v406
    %411 = vrot.lane.b32.xlu0 %v409, 6
    %v412 = vpop.permute.xlu0 %411
    %413 = vrot.lane.b32.xlu0 %v410, 6
    %v414 = vpop.permute.xlu0 %413
    %s415 = sld [smem:[#allocation2 + $0x3]]
    %v416 = vstv %s415
    %v417 = vmul.f32 %v76, %v416
    %v418 = vmul.f32 %v77, %v416
    %s419 = sld [smem:[#allocation2 + $0x1f]]
    %v420 = vstv %s419
    %v421 = vmul.f32 %v76, %v420
    %v422 = vmul.f32 %v77, %v420
    %v423 = vmul.f32 %v78, %v420
    %v427 = vrot.slane %v421, 1
    %v428 = vrot.slane %v422, 1
    %v429 = vsel %vm91, %v427, %v428
    %v430 = vrot.slane %v423, 1
    %v431 = vsel %vm91, %v428, %v430
    %v434 = vadd.f32 %v417, %v429
    %v435 = vadd.f32 %v418, %v431
    %s436 = sld [smem:[#allocation2 + $0x3b]]
    %v437 = vstv %s436
    %v438 = vmul.f32 %v76, %v437
    %v439 = vmul.f32 %v77, %v437
    %v440 = vmul.f32 %v78, %v437
    %v444 = vrot.slane %v438, 2
    %v445 = vrot.slane %v439, 2
    %v446 = vsel %vm109, %v444, %v445
    %v447 = vrot.slane %v440, 2
    %v448 = vsel %vm109, %v445, %v447
    %v451 = vadd.f32 %v434, %v446
    %v452 = vadd.f32 %v435, %v448
    %s453 = sld [smem:[#allocation2 + $0x57]]
    %v454 = vstv %s453
    %v455 = vmul.f32 %v76, %v454
    %v456 = vmul.f32 %v77, %v454
    %v457 = vmul.f32 %v78, %v454
    %v461 = vrot.slane %v455, 3
    %v462 = vrot.slane %v456, 3
    %v463 = vsel %vm127, %v461, %v462
    %v464 = vrot.slane %v457, 3
    %v465 = vsel %vm127, %v462, %v464
    %v468 = vadd.f32 %v451, %v463
    %v469 = vadd.f32 %v452, %v465
    %s470 = sld [smem:[#allocation2 + $0x73]]
    %v471 = vstv %s470
    %v472 = vmul.f32 %v76, %v471
    %v473 = vmul.f32 %v77, %v471
    %v474 = vmul.f32 %v78, %v471
    %v478 = vrot.slane %v472, 4
    %v479 = vrot.slane %v473, 4
    %v480 = vsel %vm145, %v478, %v479
    %v481 = vrot.slane %v474, 4
    %v482 = vsel %vm145, %v479, %v481
    %v485 = vadd.f32 %v468, %v480
    %v486 = vadd.f32 %v469, %v482
    %s487 = sld [smem:[#allocation2 + $0x8f]]
    %v488 = vstv %s487
    %v489 = vmul.f32 %v76, %v488
    %v490 = vmul.f32 %v77, %v488
    %v491 = vmul.f32 %v78, %v488
    %v495 = vrot.slane %v489, 5
    %v496 = vrot.slane %v490, 5
    %v497 = vsel %vm163, %v495, %v496
    %v498 = vrot.slane %v491, 5
    %v499 = vsel %vm163, %v496, %v498
    %v502 = vadd.f32 %v485, %v497
    %v503 = vadd.f32 %v486, %v499
    %s504 = sld [smem:[#allocation2 + $0xab]]
    %v505 = vstv %s504
    %v506 = vmul.f32 %v76, %v505
    %v507 = vmul.f32 %v77, %v505
    %v508 = vmul.f32 %v78, %v505
    %v512 = vrot.slane %v506, 6
    %v513 = vrot.slane %v507, 6
    %v514 = vsel %vm181, %v512, %v513
    %v515 = vrot.slane %v508, 6
    %v516 = vsel %vm181, %v513, %v515
    %v519 = vadd.f32 %v502, %v514
    %v520 = vadd.f32 %v503, %v516
    %521 = vrot.lane.b32.xlu0 %v519, 6
    %v522 = vpop.permute.xlu0 %521
    %523 = vrot.lane.b32.xlu0 %v520, 6
    %v524 = vpop.permute.xlu0 %523
    %s525 = sld [smem:[#allocation2 + $0x4]]
    %v526 = vstv %s525
    %v527 = vmul.f32 %v67, %v526
    %v528 = vmul.f32 %v68, %v526
    %s529 = sld [smem:[#allocation2 + $0x20]]
    %v530 = vstv %s529
    %v531 = vmul.f32 %v67, %v530
    %v532 = vmul.f32 %v68, %v530
    %v533 = vmul.f32 %v69, %v530
    %v537 = vrot.slane %v531, 1
    %v538 = vrot.slane %v532, 1
    %v539 = vsel %vm91, %v537, %v538
    %v540 = vrot.slane %v533, 1
    %v541 = vsel %vm91, %v538, %v540
    %v544 = vadd.f32 %v527, %v539
    %v545 = vadd.f32 %v528, %v541
    %s546 = sld [smem:[#allocation2 + $0x3c]]
    %v547 = vstv %s546
    %v548 = vmul.f32 %v67, %v547
    %v549 = vmul.f32 %v68, %v547
    %v550 = vmul.f32 %v69, %v547
    %v554 = vrot.slane %v548, 2
    %v555 = vrot.slane %v549, 2
    %v556 = vsel %vm109, %v554, %v555
    %v557 = vrot.slane %v550, 2
    %v558 = vsel %vm109, %v555, %v557
    %v561 = vadd.f32 %v544, %v556
    %v562 = vadd.f32 %v545, %v558
    %s563 = sld [smem:[#allocation2 + $0x58]]
    %v564 = vstv %s563
    %v565 = vmul.f32 %v67, %v564
    %v566 = vmul.f32 %v68, %v564
    %v567 = vmul.f32 %v69, %v564
    %v571 = vrot.slane %v565, 3
    %v572 = vrot.slane %v566, 3
    %v573 = vsel %vm127, %v571, %v572
    %v574 = vrot.slane %v567, 3
    %v575 = vsel %vm127, %v572, %v574
    %v578 = vadd.f32 %v561, %v573
    %v579 = vadd.f32 %v562, %v575
    %s580 = sld [smem:[#allocation2 + $0x74]]
    %v581 = vstv %s580
    %v582 = vmul.f32 %v67, %v581
    %v583 = vmul.f32 %v68, %v581
    %v584 = vmul.f32 %v69, %v581
    %v588 = vrot.slane %v582, 4
    %v589 = vrot.slane %v583, 4
    %v590 = vsel %vm145, %v588, %v589
    %v591 = vrot.slane %v584, 4
    %v592 = vsel %vm145, %v589, %v591
    %v595 = vadd.f32 %v578, %v590
    %v596 = vadd.f32 %v579, %v592
    %s597 = sld [smem:[#allocation2 + $0x90]]
    %v598 = vstv %s597
    %v599 = vmul.f32 %v67, %v598
    %v600 = vmul.f32 %v68, %v598
    %v601 = vmul.f32 %v69, %v598
    %v605 = vrot.slane %v599, 5
    %v606 = vrot.slane %v600, 5
    %v607 = vsel %vm163, %v605, %v606
    %v608 = vrot.slane %v601, 5
    %v609 = vsel %vm163, %v606, %v608
    %v612 = vadd.f32 %v595, %v607
    %v613 = vadd.f32 %v596, %v609
    %s614 = sld [smem:[#allocation2 + $0xac]]
    %v615 = vstv %s614
    %v616 = vmul.f32 %v67, %v615
    %v617 = vmul.f32 %v68, %v615
    %v618 = vmul.f32 %v69, %v615
    %v622 = vrot.slane %v616, 6
    %v623 = vrot.slane %v617, 6
    %v624 = vsel %vm181, %v622, %v623
    %v625 = vrot.slane %v618, 6
    %v626 = vsel %vm181, %v623, %v625
    %v629 = vadd.f32 %v612, %v624
    %v630 = vadd.f32 %v613, %v626
    %631 = vrot.lane.b32.xlu0 %v629, 5
    %v632 = vpop.permute.xlu0 %631
    %633 = vrot.lane.b32.xlu0 %v630, 5
    %v634 = vpop.permute.xlu0 %633
    %v635 = vadd.f32 %v192, %v632
    %v636 = vadd.f32 %v194, %v634
    %s637 = sld [smem:[#allocation2 + $0x5]]
    %v638 = vstv %s637
    %v639 = vmul.f32 %v70, %v638
    %v640 = vmul.f32 %v71, %v638
    %s641 = sld [smem:[#allocation2 + $0x21]]
    %v642 = vstv %s641
    %v643 = vmul.f32 %v70, %v642
    %v644 = vmul.f32 %v71, %v642
    %v645 = vmul.f32 %v72, %v642
    %v649 = vrot.slane %v643, 1
    %v650 = vrot.slane %v644, 1
    %v651 = vsel %vm91, %v649, %v650
    %v652 = vrot.slane %v645, 1
    %v653 = vsel %vm91, %v650, %v652
    %v656 = vadd.f32 %v639, %v651
    %v657 = vadd.f32 %v640, %v653
    %s658 = sld [smem:[#allocation2 + $0x3d]]
    %v659 = vstv %s658
    %v660 = vmul.f32 %v70, %v659
    %v661 = vmul.f32 %v71, %v659
    %v662 = vmul.f32 %v72, %v659
    %v666 = vrot.slane %v660, 2
    %v667 = vrot.slane %v661, 2
    %v668 = vsel %vm109, %v666, %v667
    %v669 = vrot.slane %v662, 2
    %v670 = vsel %vm109, %v667, %v669
    %v673 = vadd.f32 %v656, %v668
    %v674 = vadd.f32 %v657, %v670
    %s675 = sld [smem:[#allocation2 + $0x59]]
    %v676 = vstv %s675
    %v677 = vmul.f32 %v70, %v676
    %v678 = vmul.f32 %v71, %v676
    %v679 = vmul.f32 %v72, %v676
    %v683 = vrot.slane %v677, 3
    %v684 = vrot.slane %v678, 3
    %v685 = vsel %vm127, %v683, %v684
    %v686 = vrot.slane %v679, 3
    %v687 = vsel %vm127, %v684, %v686
    %v690 = vadd.f32 %v673, %v685
    %v691 = vadd.f32 %v674, %v687
    %s692 = sld [smem:[#allocation2 + $0x75]]
    %v693 = vstv %s692
    %v694 = vmul.f32 %v70, %v693
    %v695 = vmul.f32 %v71, %v693
    %v696 = vmul.f32 %v72, %v693
    %v700 = vrot.slane %v694, 4
    %v701 = vrot.slane %v695, 4
    %v702 = vsel %vm145, %v700, %v701
    %v703 = vrot.slane %v696, 4
    %v704 = vsel %vm145, %v701, %v703
    %v707 = vadd.f32 %v690, %v702
    %v708 = vadd.f32 %v691, %v704
    %s709 = sld [smem:[#allocation2 + $0x91]]
    %v710 = vstv %s709
    %v711 = vmul.f32 %v70, %v710
    %v712 = vmul.f32 %v71, %v710
    %v713 = vmul.f32 %v72, %v710
    %v717 = vrot.slane %v711, 5
    %v718 = vrot.slane %v712, 5
    %v719 = vsel %vm163, %v717, %v718
    %v720 = vrot.slane %v713, 5
    %v721 = vsel %vm163, %v718, %v720
    %v724 = vadd.f32 %v707, %v719
    %v725 = vadd.f32 %v708, %v721
    %s726 = sld [smem:[#allocation2 + $0xad]]
    %v727 = vstv %s726
    %v728 = vmul.f32 %v70, %v727
    %v729 = vmul.f32 %v71, %v727
    %v730 = vmul.f32 %v72, %v727
    %v734 = vrot.slane %v728, 6
    %v735 = vrot.slane %v729, 6
    %v736 = vsel %vm181, %v734, %v735
    %v737 = vrot.slane %v730, 6
    %v738 = vsel %vm181, %v735, %v737
    %v741 = vadd.f32 %v724, %v736
    %v742 = vadd.f32 %v725, %v738
    %743 = vrot.lane.b32.xlu0 %v741, 5
    %v744 = vpop.permute.xlu0 %743
    %745 = vrot.lane.b32.xlu0 %v742, 5
    %v746 = vpop.permute.xlu0 %745
    %v747 = vadd.f32 %v302, %v744
    %v748 = vadd.f32 %v304, %v746
    %s749 = sld [smem:[#allocation2 + $0x6]]
    %v750 = vstv %s749
    %v751 = vmul.f32 %v73, %v750
    %v752 = vmul.f32 %v74, %v750
    %s753 = sld [smem:[#allocation2 + $0x22]]
    %v754 = vstv %s753
    %v755 = vmul.f32 %v73, %v754
    %v756 = vmul.f32 %v74, %v754
    %v757 = vmul.f32 %v75, %v754
    %v761 = vrot.slane %v755, 1
    %v762 = vrot.slane %v756, 1
    %v763 = vsel %vm91, %v761, %v762
    %v764 = vrot.slane %v757, 1
    %v765 = vsel %vm91, %v762, %v764
    %v768 = vadd.f32 %v751, %v763
    %v769 = vadd.f32 %v752, %v765
    %s770 = sld [smem:[#allocation2 + $0x3e]]
    %v771 = vstv %s770
    %v772 = vmul.f32 %v73, %v771
    %v773 = vmul.f32 %v74, %v771
    %v774 = vmul.f32 %v75, %v771
    %v778 = vrot.slane %v772, 2
    %v779 = vrot.slane %v773, 2
    %v780 = vsel %vm109, %v778, %v779
    %v781 = vrot.slane %v774, 2
    %v782 = vsel %vm109, %v779, %v781
    %v785 = vadd.f32 %v768, %v780
    %v786 = vadd.f32 %v769, %v782
    %s787 = sld [smem:[#allocation2 + $0x5a]]
    %v788 = vstv %s787
    %v789 = vmul.f32 %v73, %v788
    %v790 = vmul.f32 %v74, %v788
    %v791 = vmul.f32 %v75, %v788
    %v795 = vrot.slane %v789, 3
    %v796 = vrot.slane %v790, 3
    %v797 = vsel %vm127, %v795, %v796
    %v798 = vrot.slane %v791, 3
    %v799 = vsel %vm127, %v796, %v798
    %v802 = vadd.f32 %v785, %v797
    %v803 = vadd.f32 %v786, %v799
    %s804 = sld [smem:[#allocation2 + $0x76]]
    %v805 = vstv %s804
    %v806 = vmul.f32 %v73, %v805
    %v807 = vmul.f32 %v74, %v805
    %v808 = vmul.f32 %v75, %v805
    %v812 = vrot.slane %v806, 4
    %v813 = vrot.slane %v807, 4
    %v814 = vsel %vm145, %v812, %v813
    %v815 = vrot.slane %v808, 4
    %v816 = vsel %vm145, %v813, %v815
    %v819 = vadd.f32 %v802, %v814
    %v820 = vadd.f32 %v803, %v816
    %s821 = sld [smem:[#allocation2 + $0x92]]
    %v822 = vstv %s821
    %v823 = vmul.f32 %v73, %v822
    %v824 = vmul.f32 %v74, %v822
    %v825 = vmul.f32 %v75, %v822
    %v829 = vrot.slane %v823, 5
    %v830 = vrot.slane %v824, 5
    %v831 = vsel %vm163, %v829, %v830
    %v832 = vrot.slane %v825, 5
    %v833 = vsel %vm163, %v830, %v832
    %v836 = vadd.f32 %v819, %v831
    %v837 = vadd.f32 %v820, %v833
    %s838 = sld [smem:[#allocation2 + $0xae]]
    %v839 = vstv %s838
    %v840 = vmul.f32 %v73, %v839
    %v841 = vmul.f32 %v74, %v839
    %v842 = vmul.f32 %v75, %v839
    %v846 = vrot.slane %v840, 6
    %v847 = vrot.slane %v841, 6
    %v848 = vsel %vm181, %v846, %v847
    %v849 = vrot.slane %v842, 6
    %v850 = vsel %vm181, %v847, %v849
    %v853 = vadd.f32 %v836, %v848
    %v854 = vadd.f32 %v837, %v850
    %855 = vrot.lane.b32.xlu0 %v853, 5
    %v856 = vpop.permute.xlu0 %855
    %857 = vrot.lane.b32.xlu0 %v854, 5
    %v858 = vpop.permute.xlu0 %857
    %v859 = vadd.f32 %v412, %v856
    %v860 = vadd.f32 %v414, %v858
    %s861 = sld [smem:[#allocation2 + $0x7]]
    %v862 = vstv %s861
    %v863 = vmul.f32 %v76, %v862
    %v864 = vmul.f32 %v77, %v862
    %s865 = sld [smem:[#allocation2 + $0x23]]
    %v866 = vstv %s865
    %v867 = vmul.f32 %v76, %v866
    %v868 = vmul.f32 %v77, %v866
    %v869 = vmul.f32 %v78, %v866
    %v873 = vrot.slane %v867, 1
    %v874 = vrot.slane %v868, 1
    %v875 = vsel %vm91, %v873, %v874
    %v876 = vrot.slane %v869, 1
    %v877 = vsel %vm91, %v874, %v876
    %v880 = vadd.f32 %v863, %v875
    %v881 = vadd.f32 %v864, %v877
    %s882 = sld [smem:[#allocation2 + $0x3f]]
    %v883 = vstv %s882
    %v884 = vmul.f32 %v76, %v883
    %v885 = vmul.f32 %v77, %v883
    %v886 = vmul.f32 %v78, %v883
    %v890 = vrot.slane %v884, 2
    %v891 = vrot.slane %v885, 2
    %v892 = vsel %vm109, %v890, %v891
    %v893 = vrot.slane %v886, 2
    %v894 = vsel %vm109, %v891, %v893
    %v897 = vadd.f32 %v880, %v892
    %v898 = vadd.f32 %v881, %v894
    %s899 = sld [smem:[#allocation2 + $0x5b]]
    %v900 = vstv %s899
    %v901 = vmul.f32 %v76, %v900
    %v902 = vmul.f32 %v77, %v900
    %v903 = vmul.f32 %v78, %v900
    %v907 = vrot.slane %v901, 3
    %v908 = vrot.slane %v902, 3
    %v909 = vsel %vm127, %v907, %v908
    %v910 = vrot.slane %v903, 3
    %v911 = vsel %vm127, %v908, %v910
    %v914 = vadd.f32 %v897, %v909
    %v915 = vadd.f32 %v898, %v911
    %s916 = sld [smem:[#allocation2 + $0x77]]
    %v917 = vstv %s916
    %v918 = vmul.f32 %v76, %v917
    %v919 = vmul.f32 %v77, %v917
    %v920 = vmul.f32 %v78, %v917
    %v924 = vrot.slane %v918, 4
    %v925 = vrot.slane %v919, 4
    %v926 = vsel %vm145, %v924, %v925
    %v927 = vrot.slane %v920, 4
    %v928 = vsel %vm145, %v925, %v927
    %v931 = vadd.f32 %v914, %v926
    %v932 = vadd.f32 %v915, %v928
    %s933 = sld [smem:[#allocation2 + $0x93]]
    %v934 = vstv %s933
    %v935 = vmul.f32 %v76, %v934
    %v936 = vmul.f32 %v77, %v934
    %v937 = vmul.f32 %v78, %v934
    %v941 = vrot.slane %v935, 5
    %v942 = vrot.slane %v936, 5
    %v943 = vsel %vm163, %v941, %v942
    %v944 = vrot.slane %v937, 5
    %v945 = vsel %vm163, %v942, %v944
    %v948 = vadd.f32 %v931, %v943
    %v949 = vadd.f32 %v932, %v945
    %s950 = sld [smem:[#allocation2 + $0xaf]]
    %v951 = vstv %s950
    %v952 = vmul.f32 %v76, %v951
    %v953 = vmul.f32 %v77, %v951
    %v954 = vmul.f32 %v78, %v951
    %v958 = vrot.slane %v952, 6
    %v959 = vrot.slane %v953, 6
    %v960 = vsel %vm181, %v958, %v959
    %v961 = vrot.slane %v954, 6
    %v962 = vsel %vm181, %v959, %v961
    %v965 = vadd.f32 %v948, %v960
    %v966 = vadd.f32 %v949, %v962
    %967 = vrot.lane.b32.xlu0 %v965, 5
    %v968 = vpop.permute.xlu0 %967
    %969 = vrot.lane.b32.xlu0 %v966, 5
    %v970 = vpop.permute.xlu0 %969
    %v971 = vadd.f32 %v522, %v968
    %v972 = vadd.f32 %v524, %v970
    %s973 = sld [smem:[#allocation2 + $0x8]]
    %v974 = vstv %s973
    %v975 = vmul.f32 %v67, %v974
    %v976 = vmul.f32 %v68, %v974
    %s977 = sld [smem:[#allocation2 + $0x24]]
    %v978 = vstv %s977
    %v979 = vmul.f32 %v67, %v978
    %v980 = vmul.f32 %v68, %v978
    %v981 = vmul.f32 %v69, %v978
    %v985 = vrot.slane %v979, 1
    %v986 = vrot.slane %v980, 1
    %v987 = vsel %vm91, %v985, %v986
    %v988 = vrot.slane %v981, 1
    %v989 = vsel %vm91, %v986, %v988
    %v992 = vadd.f32 %v975, %v987
    %v993 = vadd.f32 %v976, %v989
    %s994 = sld [smem:[#allocation2 + $0x40]]
    %v995 = vstv %s994
    %v996 = vmul.f32 %v67, %v995
    %v997 = vmul.f32 %v68, %v995
    %v998 = vmul.f32 %v69, %v995
    %v1002 = vrot.slane %v996, 2
    %v1003 = vrot.slane %v997, 2
    %v1004 = vsel %vm109, %v1002, %v1003
    %v1005 = vrot.slane %v998, 2
    %v1006 = vsel %vm109, %v1003, %v1005
    %v1009 = vadd.f32 %v992, %v1004
    %v1010 = vadd.f32 %v993, %v1006
    %s1011 = sld [smem:[#allocation2 + $0x5c]]
    %v1012 = vstv %s1011
    %v1013 = vmul.f32 %v67, %v1012
    %v1014 = vmul.f32 %v68, %v1012
    %v1015 = vmul.f32 %v69, %v1012
    %v1019 = vrot.slane %v1013, 3
    %v1020 = vrot.slane %v1014, 3
    %v1021 = vsel %vm127, %v1019, %v1020
    %v1022 = vrot.slane %v1015, 3
    %v1023 = vsel %vm127, %v1020, %v1022
    %v1026 = vadd.f32 %v1009, %v1021
    %v1027 = vadd.f32 %v1010, %v1023
    %s1028 = sld [smem:[#allocation2 + $0x78]]
    %v1029 = vstv %s1028
    %v1030 = vmul.f32 %v67, %v1029
    %v1031 = vmul.f32 %v68, %v1029
    %v1032 = vmul.f32 %v69, %v1029
    %v1036 = vrot.slane %v1030, 4
    %v1037 = vrot.slane %v1031, 4
    %v1038 = vsel %vm145, %v1036, %v1037
    %v1039 = vrot.slane %v1032, 4
    %v1040 = vsel %vm145, %v1037, %v1039
    %v1043 = vadd.f32 %v1026, %v1038
    %v1044 = vadd.f32 %v1027, %v1040
    %s1045 = sld [smem:[#allocation2 + $0x94]]
    %v1046 = vstv %s1045
    %v1047 = vmul.f32 %v67, %v1046
    %v1048 = vmul.f32 %v68, %v1046
    %v1049 = vmul.f32 %v69, %v1046
    %v1053 = vrot.slane %v1047, 5
    %v1054 = vrot.slane %v1048, 5
    %v1055 = vsel %vm163, %v1053, %v1054
    %v1056 = vrot.slane %v1049, 5
    %v1057 = vsel %vm163, %v1054, %v1056
    %v1060 = vadd.f32 %v1043, %v1055
    %v1061 = vadd.f32 %v1044, %v1057
    %s1062 = sld [smem:[#allocation2 + $0xb0]]
    %v1063 = vstv %s1062
    %v1064 = vmul.f32 %v67, %v1063
    %v1065 = vmul.f32 %v68, %v1063
    %v1066 = vmul.f32 %v69, %v1063
    %v1070 = vrot.slane %v1064, 6
    %v1071 = vrot.slane %v1065, 6
    %v1072 = vsel %vm181, %v1070, %v1071
    %v1073 = vrot.slane %v1066, 6
    %v1074 = vsel %vm181, %v1071, %v1073
    %v1077 = vadd.f32 %v1060, %v1072
    %v1078 = vadd.f32 %v1061, %v1074
    %1079 = vrot.lane.b32.xlu0 %v1077, 4
    %v1080 = vpop.permute.xlu0 %1079
    %1081 = vrot.lane.b32.xlu0 %v1078, 4
    %v1082 = vpop.permute.xlu0 %1081
    %v1083 = vadd.f32 %v635, %v1080
    %v1084 = vadd.f32 %v636, %v1082
    %s1085 = sld [smem:[#allocation2 + $0x9]]
    %v1086 = vstv %s1085
    %v1087 = vmul.f32 %v70, %v1086
    %v1088 = vmul.f32 %v71, %v1086
    %s1089 = sld [smem:[#allocation2 + $0x25]]
    %v1090 = vstv %s1089
    %v1091 = vmul.f32 %v70, %v1090
    %v1092 = vmul.f32 %v71, %v1090
    %v1093 = vmul.f32 %v72, %v1090
    %v1097 = vrot.slane %v1091, 1
    %v1098 = vrot.slane %v1092, 1
    %v1099 = vsel %vm91, %v1097, %v1098
    %v1100 = vrot.slane %v1093, 1
    %v1101 = vsel %vm91, %v1098, %v1100
    %v1104 = vadd.f32 %v1087, %v1099
    %v1105 = vadd.f32 %v1088, %v1101
    %s1106 = sld [smem:[#allocation2 + $0x41]]
    %v1107 = vstv %s1106
    %v1108 = vmul.f32 %v70, %v1107
    %v1109 = vmul.f32 %v71, %v1107
    %v1110 = vmul.f32 %v72, %v1107
    %v1114 = vrot.slane %v1108, 2
    %v1115 = vrot.slane %v1109, 2
    %v1116 = vsel %vm109, %v1114, %v1115
    %v1117 = vrot.slane %v1110, 2
    %v1118 = vsel %vm109, %v1115, %v1117
    %v1121 = vadd.f32 %v1104, %v1116
    %v1122 = vadd.f32 %v1105, %v1118
    %s1123 = sld [smem:[#allocation2 + $0x5d]]
    %v1124 = vstv %s1123
    %v1125 = vmul.f32 %v70, %v1124
    %v1126 = vmul.f32 %v71, %v1124
    %v1127 = vmul.f32 %v72, %v1124
    %v1131 = vrot.slane %v1125, 3
    %v1132 = vrot.slane %v1126, 3
    %v1133 = vsel %vm127, %v1131, %v1132
    %v1134 = vrot.slane %v1127, 3
    %v1135 = vsel %vm127, %v1132, %v1134
    %v1138 = vadd.f32 %v1121, %v1133
    %v1139 = vadd.f32 %v1122, %v1135
    %s1140 = sld [smem:[#allocation2 + $0x79]]
    %v1141 = vstv %s1140
    %v1142 = vmul.f32 %v70, %v1141
    %v1143 = vmul.f32 %v71, %v1141
    %v1144 = vmul.f32 %v72, %v1141
    %v1148 = vrot.slane %v1142, 4
    %v1149 = vrot.slane %v1143, 4
    %v1150 = vsel %vm145, %v1148, %v1149
    %v1151 = vrot.slane %v1144, 4
    %v1152 = vsel %vm145, %v1149, %v1151
    %v1155 = vadd.f32 %v1138, %v1150
    %v1156 = vadd.f32 %v1139, %v1152
    %s1157 = sld [smem:[#allocation2 + $0x95]]
    %v1158 = vstv %s1157
    %v1159 = vmul.f32 %v70, %v1158
    %v1160 = vmul.f32 %v71, %v1158
    %v1161 = vmul.f32 %v72, %v1158
    %v1165 = vrot.slane %v1159, 5
    %v1166 = vrot.slane %v1160, 5
    %v1167 = vsel %vm163, %v1165, %v1166
    %v1168 = vrot.slane %v1161, 5
    %v1169 = vsel %vm163, %v1166, %v1168
    %v1172 = vadd.f32 %v1155, %v1167
    %v1173 = vadd.f32 %v1156, %v1169
    %s1174 = sld [smem:[#allocation2 + $0xb1]]
    %v1175 = vstv %s1174
    %v1176 = vmul.f32 %v70, %v1175
    %v1177 = vmul.f32 %v71, %v1175
    %v1178 = vmul.f32 %v72, %v1175
    %v1182 = vrot.slane %v1176, 6
    %v1183 = vrot.slane %v1177, 6
    %v1184 = vsel %vm181, %v1182, %v1183
    %v1185 = vrot.slane %v1178, 6
    %v1186 = vsel %vm181, %v1183, %v1185
    %v1189 = vadd.f32 %v1172, %v1184
    %v1190 = vadd.f32 %v1173, %v1186
    %1191 = vrot.lane.b32.xlu0 %v1189, 4
    %v1192 = vpop.permute.xlu0 %1191
    %1193 = vrot.lane.b32.xlu0 %v1190, 4
    %v1194 = vpop.permute.xlu0 %1193
    %v1195 = vadd.f32 %v747, %v1192
    %v1196 = vadd.f32 %v748, %v1194
    %s1197 = sld [smem:[#allocation2 + $0xa]]
    %v1198 = vstv %s1197
    %v1199 = vmul.f32 %v73, %v1198
    %v1200 = vmul.f32 %v74, %v1198
    %s1201 = sld [smem:[#allocation2 + $0x26]]
    %v1202 = vstv %s1201
    %v1203 = vmul.f32 %v73, %v1202
    %v1204 = vmul.f32 %v74, %v1202
    %v1205 = vmul.f32 %v75, %v1202
    %v1209 = vrot.slane %v1203, 1
    %v1210 = vrot.slane %v1204, 1
    %v1211 = vsel %vm91, %v1209, %v1210
    %v1212 = vrot.slane %v1205, 1
    %v1213 = vsel %vm91, %v1210, %v1212
    %v1216 = vadd.f32 %v1199, %v1211
    %v1217 = vadd.f32 %v1200, %v1213
    %s1218 = sld [smem:[#allocation2 + $0x42]]
    %v1219 = vstv %s1218
    %v1220 = vmul.f32 %v73, %v1219
    %v1221 = vmul.f32 %v74, %v1219
    %v1222 = vmul.f32 %v75, %v1219
    %v1226 = vrot.slane %v1220, 2
    %v1227 = vrot.slane %v1221, 2
    %v1228 = vsel %vm109, %v1226, %v1227
    %v1229 = vrot.slane %v1222, 2
    %v1230 = vsel %vm109, %v1227, %v1229
    %v1233 = vadd.f32 %v1216, %v1228
    %v1234 = vadd.f32 %v1217, %v1230
    %s1235 = sld [smem:[#allocation2 + $0x5e]]
    %v1236 = vstv %s1235
    %v1237 = vmul.f32 %v73, %v1236
    %v1238 = vmul.f32 %v74, %v1236
    %v1239 = vmul.f32 %v75, %v1236
    %v1243 = vrot.slane %v1237, 3
    %v1244 = vrot.slane %v1238, 3
    %v1245 = vsel %vm127, %v1243, %v1244
    %v1246 = vrot.slane %v1239, 3
    %v1247 = vsel %vm127, %v1244, %v1246
    %v1250 = vadd.f32 %v1233, %v1245
    %v1251 = vadd.f32 %v1234, %v1247
    %s1252 = sld [smem:[#allocation2 + $0x7a]]
    %v1253 = vstv %s1252
    %v1254 = vmul.f32 %v73, %v1253
    %v1255 = vmul.f32 %v74, %v1253
    %v1256 = vmul.f32 %v75, %v1253
    %v1260 = vrot.slane %v1254, 4
    %v1261 = vrot.slane %v1255, 4
    %v1262 = vsel %vm145, %v1260, %v1261
    %v1263 = vrot.slane %v1256, 4
    %v1264 = vsel %vm145, %v1261, %v1263
    %v1267 = vadd.f32 %v1250, %v1262
    %v1268 = vadd.f32 %v1251, %v1264
    %s1269 = sld [smem:[#allocation2 + $0x96]]
    %v1270 = vstv %s1269
    %v1271 = vmul.f32 %v73, %v1270
    %v1272 = vmul.f32 %v74, %v1270
    %v1273 = vmul.f32 %v75, %v1270
    %v1277 = vrot.slane %v1271, 5
    %v1278 = vrot.slane %v1272, 5
    %v1279 = vsel %vm163, %v1277, %v1278
    %v1280 = vrot.slane %v1273, 5
    %v1281 = vsel %vm163, %v1278, %v1280
    %v1284 = vadd.f32 %v1267, %v1279
    %v1285 = vadd.f32 %v1268, %v1281
    %s1286 = sld [smem:[#allocation2 + $0xb2]]
    %v1287 = vstv %s1286
    %v1288 = vmul.f32 %v73, %v1287
    %v1289 = vmul.f32 %v74, %v1287
    %v1290 = vmul.f32 %v75, %v1287
    %v1294 = vrot.slane %v1288, 6
    %v1295 = vrot.slane %v1289, 6
    %v1296 = vsel %vm181, %v1294, %v1295
    %v1297 = vrot.slane %v1290, 6
    %v1298 = vsel %vm181, %v1295, %v1297
    %v1301 = vadd.f32 %v1284, %v1296
    %v1302 = vadd.f32 %v1285, %v1298
    %1303 = vrot.lane.b32.xlu0 %v1301, 4
    %v1304 = vpop.permute.xlu0 %1303
    %1305 = vrot.lane.b32.xlu0 %v1302, 4
    %v1306 = vpop.permute.xlu0 %1305
    %v1307 = vadd.f32 %v859, %v1304
    %v1308 = vadd.f32 %v860, %v1306
    %s1309 = sld [smem:[#allocation2 + $0xb]]
    %v1310 = vstv %s1309
    %v1311 = vmul.f32 %v76, %v1310
    %v1312 = vmul.f32 %v77, %v1310
    %s1313 = sld [smem:[#allocation2 + $0x27]]
    %v1314 = vstv %s1313
    %v1315 = vmul.f32 %v76, %v1314
    %v1316 = vmul.f32 %v77, %v1314
    %v1317 = vmul.f32 %v78, %v1314
    %v1321 = vrot.slane %v1315, 1
    %v1322 = vrot.slane %v1316, 1
    %v1323 = vsel %vm91, %v1321, %v1322
    %v1324 = vrot.slane %v1317, 1
    %v1325 = vsel %vm91, %v1322, %v1324
    %v1328 = vadd.f32 %v1311, %v1323
    %v1329 = vadd.f32 %v1312, %v1325
    %s1330 = sld [smem:[#allocation2 + $0x43]]
    %v1331 = vstv %s1330
    %v1332 = vmul.f32 %v76, %v1331
    %v1333 = vmul.f32 %v77, %v1331
    %v1334 = vmul.f32 %v78, %v1331
    %v1338 = vrot.slane %v1332, 2
    %v1339 = vrot.slane %v1333, 2
    %v1340 = vsel %vm109, %v1338, %v1339
    %v1341 = vrot.slane %v1334, 2
    %v1342 = vsel %vm109, %v1339, %v1341
    %v1345 = vadd.f32 %v1328, %v1340
    %v1346 = vadd.f32 %v1329, %v1342
    %s1347 = sld [smem:[#allocation2 + $0x5f]]
    %v1348 = vstv %s1347
    %v1349 = vmul.f32 %v76, %v1348
    %v1350 = vmul.f32 %v77, %v1348
    %v1351 = vmul.f32 %v78, %v1348
    %v1355 = vrot.slane %v1349, 3
    %v1356 = vrot.slane %v1350, 3
    %v1357 = vsel %vm127, %v1355, %v1356
    %v1358 = vrot.slane %v1351, 3
    %v1359 = vsel %vm127, %v1356, %v1358
    %v1362 = vadd.f32 %v1345, %v1357
    %v1363 = vadd.f32 %v1346, %v1359
    %s1364 = sld [smem:[#allocation2 + $0x7b]]
    %v1365 = vstv %s1364
    %v1366 = vmul.f32 %v76, %v1365
    %v1367 = vmul.f32 %v77, %v1365
    %v1368 = vmul.f32 %v78, %v1365
    %v1372 = vrot.slane %v1366, 4
    %v1373 = vrot.slane %v1367, 4
    %v1374 = vsel %vm145, %v1372, %v1373
    %v1375 = vrot.slane %v1368, 4
    %v1376 = vsel %vm145, %v1373, %v1375
    %v1379 = vadd.f32 %v1362, %v1374
    %v1380 = vadd.f32 %v1363, %v1376
    %s1381 = sld [smem:[#allocation2 + $0x97]]
    %v1382 = vstv %s1381
    %v1383 = vmul.f32 %v76, %v1382
    %v1384 = vmul.f32 %v77, %v1382
    %v1385 = vmul.f32 %v78, %v1382
    %v1389 = vrot.slane %v1383, 5
    %v1390 = vrot.slane %v1384, 5
    %v1391 = vsel %vm163, %v1389, %v1390
    %v1392 = vrot.slane %v1385, 5
    %v1393 = vsel %vm163, %v1390, %v1392
    %v1396 = vadd.f32 %v1379, %v1391
    %v1397 = vadd.f32 %v1380, %v1393
    %s1398 = sld [smem:[#allocation2 + $0xb3]]
    %v1399 = vstv %s1398
    %v1400 = vmul.f32 %v76, %v1399
    %v1401 = vmul.f32 %v77, %v1399
    %v1402 = vmul.f32 %v78, %v1399
    %v1406 = vrot.slane %v1400, 6
    %v1407 = vrot.slane %v1401, 6
    %v1408 = vsel %vm181, %v1406, %v1407
    %v1409 = vrot.slane %v1402, 6
    %v1410 = vsel %vm181, %v1407, %v1409
    %v1413 = vadd.f32 %v1396, %v1408
    %v1414 = vadd.f32 %v1397, %v1410
    %1415 = vrot.lane.b32.xlu0 %v1413, 4
    %v1416 = vpop.permute.xlu0 %1415
    %1417 = vrot.lane.b32.xlu0 %v1414, 4
    %v1418 = vpop.permute.xlu0 %1417
    %v1419 = vadd.f32 %v971, %v1416
    %v1420 = vadd.f32 %v972, %v1418
    %s1421 = sld [smem:[#allocation2 + $0xc]]
    %v1422 = vstv %s1421
    %v1423 = vmul.f32 %v67, %v1422
    %v1424 = vmul.f32 %v68, %v1422
    %s1425 = sld [smem:[#allocation2 + $0x28]]
    %v1426 = vstv %s1425
    %v1427 = vmul.f32 %v67, %v1426
    %v1428 = vmul.f32 %v68, %v1426
    %v1429 = vmul.f32 %v69, %v1426
    %v1433 = vrot.slane %v1427, 1
    %v1434 = vrot.slane %v1428, 1
    %v1435 = vsel %vm91, %v1433, %v1434
    %v1436 = vrot.slane %v1429, 1
    %v1437 = vsel %vm91, %v1434, %v1436
    %v1440 = vadd.f32 %v1423, %v1435
    %v1441 = vadd.f32 %v1424, %v1437
    %s1442 = sld [smem:[#allocation2 + $0x44]]
    %v1443 = vstv %s1442
    %v1444 = vmul.f32 %v67, %v1443
    %v1445 = vmul.f32 %v68, %v1443
    %v1446 = vmul.f32 %v69, %v1443
    %v1450 = vrot.slane %v1444, 2
    %v1451 = vrot.slane %v1445, 2
    %v1452 = vsel %vm109, %v1450, %v1451
    %v1453 = vrot.slane %v1446, 2
    %v1454 = vsel %vm109, %v1451, %v1453
    %v1457 = vadd.f32 %v1440, %v1452
    %v1458 = vadd.f32 %v1441, %v1454
    %s1459 = sld [smem:[#allocation2 + $0x60]]
    %v1460 = vstv %s1459
    %v1461 = vmul.f32 %v67, %v1460
    %v1462 = vmul.f32 %v68, %v1460
    %v1463 = vmul.f32 %v69, %v1460
    %v1467 = vrot.slane %v1461, 3
    %v1468 = vrot.slane %v1462, 3
    %v1469 = vsel %vm127, %v1467, %v1468
    %v1470 = vrot.slane %v1463, 3
    %v1471 = vsel %vm127, %v1468, %v1470
    %v1474 = vadd.f32 %v1457, %v1469
    %v1475 = vadd.f32 %v1458, %v1471
    %s1476 = sld [smem:[#allocation2 + $0x7c]]
    %v1477 = vstv %s1476
    %v1478 = vmul.f32 %v67, %v1477
    %v1479 = vmul.f32 %v68, %v1477
    %v1480 = vmul.f32 %v69, %v1477
    %v1484 = vrot.slane %v1478, 4
    %v1485 = vrot.slane %v1479, 4
    %v1486 = vsel %vm145, %v1484, %v1485
    %v1487 = vrot.slane %v1480, 4
    %v1488 = vsel %vm145, %v1485, %v1487
    %v1491 = vadd.f32 %v1474, %v1486
    %v1492 = vadd.f32 %v1475, %v1488
    %s1493 = sld [smem:[#allocation2 + $0x98]]
    %v1494 = vstv %s1493
    %v1495 = vmul.f32 %v67, %v1494
    %v1496 = vmul.f32 %v68, %v1494
    %v1497 = vmul.f32 %v69, %v1494
    %v1501 = vrot.slane %v1495, 5
    %v1502 = vrot.slane %v1496, 5
    %v1503 = vsel %vm163, %v1501, %v1502
    %v1504 = vrot.slane %v1497, 5
    %v1505 = vsel %vm163, %v1502, %v1504
    %v1508 = vadd.f32 %v1491, %v1503
    %v1509 = vadd.f32 %v1492, %v1505
    %s1510 = sld [smem:[#allocation2 + $0xb4]]
    %v1511 = vstv %s1510
    %v1512 = vmul.f32 %v67, %v1511
    %v1513 = vmul.f32 %v68, %v1511
    %v1514 = vmul.f32 %v69, %v1511
    %v1518 = vrot.slane %v1512, 6
    %v1519 = vrot.slane %v1513, 6
    %v1520 = vsel %vm181, %v1518, %v1519
    %v1521 = vrot.slane %v1514, 6
    %v1522 = vsel %vm181, %v1519, %v1521
    %v1525 = vadd.f32 %v1508, %v1520
    %v1526 = vadd.f32 %v1509, %v1522
    %1527 = vrot.lane.b32.xlu0 %v1525, 3
    %v1528 = vpop.permute.xlu0 %1527
    %1529 = vrot.lane.b32.xlu0 %v1526, 3
    %v1530 = vpop.permute.xlu0 %1529
    %v1531 = vadd.f32 %v1083, %v1528
    %v1532 = vadd.f32 %v1084, %v1530
    %s1533 = sld [smem:[#allocation2 + $0xd]]
    %v1534 = vstv %s1533
    %v1535 = vmul.f32 %v70, %v1534
    %v1536 = vmul.f32 %v71, %v1534
    %s1537 = sld [smem:[#allocation2 + $0x29]]
    %v1538 = vstv %s1537
    %v1539 = vmul.f32 %v70, %v1538
    %v1540 = vmul.f32 %v71, %v1538
    %v1541 = vmul.f32 %v72, %v1538
    %v1545 = vrot.slane %v1539, 1
    %v1546 = vrot.slane %v1540, 1
    %v1547 = vsel %vm91, %v1545, %v1546
    %v1548 = vrot.slane %v1541, 1
    %v1549 = vsel %vm91, %v1546, %v1548
    %v1552 = vadd.f32 %v1535, %v1547
    %v1553 = vadd.f32 %v1536, %v1549
    %s1554 = sld [smem:[#allocation2 + $0x45]]
    %v1555 = vstv %s1554
    %v1556 = vmul.f32 %v70, %v1555
    %v1557 = vmul.f32 %v71, %v1555
    %v1558 = vmul.f32 %v72, %v1555
    %v1562 = vrot.slane %v1556, 2
    %v1563 = vrot.slane %v1557, 2
    %v1564 = vsel %vm109, %v1562, %v1563
    %v1565 = vrot.slane %v1558, 2
    %v1566 = vsel %vm109, %v1563, %v1565
    %v1569 = vadd.f32 %v1552, %v1564
    %v1570 = vadd.f32 %v1553, %v1566
    %s1571 = sld [smem:[#allocation2 + $0x61]]
    %v1572 = vstv %s1571
    %v1573 = vmul.f32 %v70, %v1572
    %v1574 = vmul.f32 %v71, %v1572
    %v1575 = vmul.f32 %v72, %v1572
    %v1579 = vrot.slane %v1573, 3
    %v1580 = vrot.slane %v1574, 3
    %v1581 = vsel %vm127, %v1579, %v1580
    %v1582 = vrot.slane %v1575, 3
    %v1583 = vsel %vm127, %v1580, %v1582
    %v1586 = vadd.f32 %v1569, %v1581
    %v1587 = vadd.f32 %v1570, %v1583
    %s1588 = sld [smem:[#allocation2 + $0x7d]]
    %v1589 = vstv %s1588
    %v1590 = vmul.f32 %v70, %v1589
    %v1591 = vmul.f32 %v71, %v1589
    %v1592 = vmul.f32 %v72, %v1589
    %v1596 = vrot.slane %v1590, 4
    %v1597 = vrot.slane %v1591, 4
    %v1598 = vsel %vm145, %v1596, %v1597
    %v1599 = vrot.slane %v1592, 4
    %v1600 = vsel %vm145, %v1597, %v1599
    %v1603 = vadd.f32 %v1586, %v1598
    %v1604 = vadd.f32 %v1587, %v1600
    %s1605 = sld [smem:[#allocation2 + $0x99]]
    %v1606 = vstv %s1605
    %v1607 = vmul.f32 %v70, %v1606
    %v1608 = vmul.f32 %v71, %v1606
    %v1609 = vmul.f32 %v72, %v1606
    %v1613 = vrot.slane %v1607, 5
    %v1614 = vrot.slane %v1608, 5
    %v1615 = vsel %vm163, %v1613, %v1614
    %v1616 = vrot.slane %v1609, 5
    %v1617 = vsel %vm163, %v1614, %v1616
    %v1620 = vadd.f32 %v1603, %v1615
    %v1621 = vadd.f32 %v1604, %v1617
    %s1622 = sld [smem:[#allocation2 + $0xb5]]
    %v1623 = vstv %s1622
    %v1624 = vmul.f32 %v70, %v1623
    %v1625 = vmul.f32 %v71, %v1623
    %v1626 = vmul.f32 %v72, %v1623
    %v1630 = vrot.slane %v1624, 6
    %v1631 = vrot.slane %v1625, 6
    %v1632 = vsel %vm181, %v1630, %v1631
    %v1633 = vrot.slane %v1626, 6
    %v1634 = vsel %vm181, %v1631, %v1633
    %v1637 = vadd.f32 %v1620, %v1632
    %v1638 = vadd.f32 %v1621, %v1634
    %1639 = vrot.lane.b32.xlu0 %v1637, 3
    %v1640 = vpop.permute.xlu0 %1639
    %1641 = vrot.lane.b32.xlu0 %v1638, 3
    %v1642 = vpop.permute.xlu0 %1641
    %v1643 = vadd.f32 %v1195, %v1640
    %v1644 = vadd.f32 %v1196, %v1642
    %s1645 = sld [smem:[#allocation2 + $0xe]]
    %v1646 = vstv %s1645
    %v1647 = vmul.f32 %v73, %v1646
    %v1648 = vmul.f32 %v74, %v1646
    %s1649 = sld [smem:[#allocation2 + $0x2a]]
    %v1650 = vstv %s1649
    %v1651 = vmul.f32 %v73, %v1650
    %v1652 = vmul.f32 %v74, %v1650
    %v1653 = vmul.f32 %v75, %v1650
    %v1657 = vrot.slane %v1651, 1
    %v1658 = vrot.slane %v1652, 1
    %v1659 = vsel %vm91, %v1657, %v1658
    %v1660 = vrot.slane %v1653, 1
    %v1661 = vsel %vm91, %v1658, %v1660
    %v1664 = vadd.f32 %v1647, %v1659
    %v1665 = vadd.f32 %v1648, %v1661
    %s1666 = sld [smem:[#allocation2 + $0x46]]
    %v1667 = vstv %s1666
    %v1668 = vmul.f32 %v73, %v1667
    %v1669 = vmul.f32 %v74, %v1667
    %v1670 = vmul.f32 %v75, %v1667
    %v1674 = vrot.slane %v1668, 2
    %v1675 = vrot.slane %v1669, 2
    %v1676 = vsel %vm109, %v1674, %v1675
    %v1677 = vrot.slane %v1670, 2
    %v1678 = vsel %vm109, %v1675, %v1677
    %v1681 = vadd.f32 %v1664, %v1676
    %v1682 = vadd.f32 %v1665, %v1678
    %s1683 = sld [smem:[#allocation2 + $0x62]]
    %v1684 = vstv %s1683
    %v1685 = vmul.f32 %v73, %v1684
    %v1686 = vmul.f32 %v74, %v1684
    %v1687 = vmul.f32 %v75, %v1684
    %v1691 = vrot.slane %v1685, 3
    %v1692 = vrot.slane %v1686, 3
    %v1693 = vsel %vm127, %v1691, %v1692
    %v1694 = vrot.slane %v1687, 3
    %v1695 = vsel %vm127, %v1692, %v1694
    %v1698 = vadd.f32 %v1681, %v1693
    %v1699 = vadd.f32 %v1682, %v1695
    %s1700 = sld [smem:[#allocation2 + $0x7e]]
    %v1701 = vstv %s1700
    %v1702 = vmul.f32 %v73, %v1701
    %v1703 = vmul.f32 %v74, %v1701
    %v1704 = vmul.f32 %v75, %v1701
    %v1708 = vrot.slane %v1702, 4
    %v1709 = vrot.slane %v1703, 4
    %v1710 = vsel %vm145, %v1708, %v1709
    %v1711 = vrot.slane %v1704, 4
    %v1712 = vsel %vm145, %v1709, %v1711
    %v1715 = vadd.f32 %v1698, %v1710
    %v1716 = vadd.f32 %v1699, %v1712
    %s1717 = sld [smem:[#allocation2 + $0x9a]]
    %v1718 = vstv %s1717
    %v1719 = vmul.f32 %v73, %v1718
    %v1720 = vmul.f32 %v74, %v1718
    %v1721 = vmul.f32 %v75, %v1718
    %v1725 = vrot.slane %v1719, 5
    %v1726 = vrot.slane %v1720, 5
    %v1727 = vsel %vm163, %v1725, %v1726
    %v1728 = vrot.slane %v1721, 5
    %v1729 = vsel %vm163, %v1726, %v1728
    %v1732 = vadd.f32 %v1715, %v1727
    %v1733 = vadd.f32 %v1716, %v1729
    %s1734 = sld [smem:[#allocation2 + $0xb6]]
    %v1735 = vstv %s1734
    %v1736 = vmul.f32 %v73, %v1735
    %v1737 = vmul.f32 %v74, %v1735
    %v1738 = vmul.f32 %v75, %v1735
    %v1742 = vrot.slane %v1736, 6
    %v1743 = vrot.slane %v1737, 6
    %v1744 = vsel %vm181, %v1742, %v1743
    %v1745 = vrot.slane %v1738, 6
    %v1746 = vsel %vm181, %v1743, %v1745
    %v1749 = vadd.f32 %v1732, %v1744
    %v1750 = vadd.f32 %v1733, %v1746
    %1751 = vrot.lane.b32.xlu0 %v1749, 3
    %v1752 = vpop.permute.xlu0 %1751
    %1753 = vrot.lane.b32.xlu0 %v1750, 3
    %v1754 = vpop.permute.xlu0 %1753
    %v1755 = vadd.f32 %v1307, %v1752
    %v1756 = vadd.f32 %v1308, %v1754
    %s1757 = sld [smem:[#allocation2 + $0xf]]
    %v1758 = vstv %s1757
    %v1759 = vmul.f32 %v76, %v1758
    %v1760 = vmul.f32 %v77, %v1758
    %s1761 = sld [smem:[#allocation2 + $0x2b]]
    %v1762 = vstv %s1761
    %v1763 = vmul.f32 %v76, %v1762
    %v1764 = vmul.f32 %v77, %v1762
    %v1765 = vmul.f32 %v78, %v1762
    %v1769 = vrot.slane %v1763, 1
    %v1770 = vrot.slane %v1764, 1
    %v1771 = vsel %vm91, %v1769, %v1770
    %v1772 = vrot.slane %v1765, 1
    %v1773 = vsel %vm91, %v1770, %v1772
    %v1776 = vadd.f32 %v1759, %v1771
    %v1777 = vadd.f32 %v1760, %v1773
    %s1778 = sld [smem:[#allocation2 + $0x47]]
    %v1779 = vstv %s1778
    %v1780 = vmul.f32 %v76, %v1779
    %v1781 = vmul.f32 %v77, %v1779
    %v1782 = vmul.f32 %v78, %v1779
    %v1786 = vrot.slane %v1780, 2
    %v1787 = vrot.slane %v1781, 2
    %v1788 = vsel %vm109, %v1786, %v1787
    %v1789 = vrot.slane %v1782, 2
    %v1790 = vsel %vm109, %v1787, %v1789
    %v1793 = vadd.f32 %v1776, %v1788
    %v1794 = vadd.f32 %v1777, %v1790
    %s1795 = sld [smem:[#allocation2 + $0x63]]
    %v1796 = vstv %s1795
    %v1797 = vmul.f32 %v76, %v1796
    %v1798 = vmul.f32 %v77, %v1796
    %v1799 = vmul.f32 %v78, %v1796
    %v1803 = vrot.slane %v1797, 3
    %v1804 = vrot.slane %v1798, 3
    %v1805 = vsel %vm127, %v1803, %v1804
    %v1806 = vrot.slane %v1799, 3
    %v1807 = vsel %vm127, %v1804, %v1806
    %v1810 = vadd.f32 %v1793, %v1805
    %v1811 = vadd.f32 %v1794, %v1807
    %s1812 = sld [smem:[#allocation2 + $0x7f]]
    %v1813 = vstv %s1812
    %v1814 = vmul.f32 %v76, %v1813
    %v1815 = vmul.f32 %v77, %v1813
    %v1816 = vmul.f32 %v78, %v1813
    %v1820 = vrot.slane %v1814, 4
    %v1821 = vrot.slane %v1815, 4
    %v1822 = vsel %vm145, %v1820, %v1821
    %v1823 = vrot.slane %v1816, 4
    %v1824 = vsel %vm145, %v1821, %v1823
    %v1827 = vadd.f32 %v1810, %v1822
    %v1828 = vadd.f32 %v1811, %v1824
    %s1829 = sld [smem:[#allocation2 + $0x9b]]
    %v1830 = vstv %s1829
    %v1831 = vmul.f32 %v76, %v1830
    %v1832 = vmul.f32 %v77, %v1830
    %v1833 = vmul.f32 %v78, %v1830
    %v1837 = vrot.slane %v1831, 5
    %v1838 = vrot.slane %v1832, 5
    %v1839 = vsel %vm163, %v1837, %v1838
    %v1840 = vrot.slane %v1833, 5
    %v1841 = vsel %vm163, %v1838, %v1840
    %v1844 = vadd.f32 %v1827, %v1839
    %v1845 = vadd.f32 %v1828, %v1841
    %s1846 = sld [smem:[#allocation2 + $0xb7]]
    %v1847 = vstv %s1846
    %v1848 = vmul.f32 %v76, %v1847
    %v1849 = vmul.f32 %v77, %v1847
    %v1850 = vmul.f32 %v78, %v1847
    %v1854 = vrot.slane %v1848, 6
    %v1855 = vrot.slane %v1849, 6
    %v1856 = vsel %vm181, %v1854, %v1855
    %v1857 = vrot.slane %v1850, 6
    %v1858 = vsel %vm181, %v1855, %v1857
    %v1861 = vadd.f32 %v1844, %v1856
    %v1862 = vadd.f32 %v1845, %v1858
    %1863 = vrot.lane.b32.xlu0 %v1861, 3
    %v1864 = vpop.permute.xlu0 %1863
    %1865 = vrot.lane.b32.xlu0 %v1862, 3
    %v1866 = vpop.permute.xlu0 %1865
    %v1867 = vadd.f32 %v1419, %v1864
    %v1868 = vadd.f32 %v1420, %v1866
    %s1869 = sld [smem:[#allocation2 + $0x10]]
    %v1870 = vstv %s1869
    %v1871 = vmul.f32 %v67, %v1870
    %v1872 = vmul.f32 %v68, %v1870
    %s1873 = sld [smem:[#allocation2 + $0x2c]]
    %v1874 = vstv %s1873
    %v1875 = vmul.f32 %v67, %v1874
    %v1876 = vmul.f32 %v68, %v1874
    %v1877 = vmul.f32 %v69, %v1874
    %v1881 = vrot.slane %v1875, 1
    %v1882 = vrot.slane %v1876, 1
    %v1883 = vsel %vm91, %v1881, %v1882
    %v1884 = vrot.slane %v1877, 1
    %v1885 = vsel %vm91, %v1882, %v1884
    %v1888 = vadd.f32 %v1871, %v1883
    %v1889 = vadd.f32 %v1872, %v1885
    %s1890 = sld [smem:[#allocation2 + $0x48]]
    %v1891 = vstv %s1890
    %v1892 = vmul.f32 %v67, %v1891
    %v1893 = vmul.f32 %v68, %v1891
    %v1894 = vmul.f32 %v69, %v1891
    %v1898 = vrot.slane %v1892, 2
    %v1899 = vrot.slane %v1893, 2
    %v1900 = vsel %vm109, %v1898, %v1899
    %v1901 = vrot.slane %v1894, 2
    %v1902 = vsel %vm109, %v1899, %v1901
    %v1905 = vadd.f32 %v1888, %v1900
    %v1906 = vadd.f32 %v1889, %v1902
    %s1907 = sld [smem:[#allocation2 + $0x64]]
    %v1908 = vstv %s1907
    %v1909 = vmul.f32 %v67, %v1908
    %v1910 = vmul.f32 %v68, %v1908
    %v1911 = vmul.f32 %v69, %v1908
    %v1915 = vrot.slane %v1909, 3
    %v1916 = vrot.slane %v1910, 3
    %v1917 = vsel %vm127, %v1915, %v1916
    %v1918 = vrot.slane %v1911, 3
    %v1919 = vsel %vm127, %v1916, %v1918
    %v1922 = vadd.f32 %v1905, %v1917
    %v1923 = vadd.f32 %v1906, %v1919
    %s1924 = sld [smem:[#allocation2 + $0x80]]
    %v1925 = vstv %s1924
    %v1926 = vmul.f32 %v67, %v1925
    %v1927 = vmul.f32 %v68, %v1925
    %v1928 = vmul.f32 %v69, %v1925
    %v1932 = vrot.slane %v1926, 4
    %v1933 = vrot.slane %v1927, 4
    %v1934 = vsel %vm145, %v1932, %v1933
    %v1935 = vrot.slane %v1928, 4
    %v1936 = vsel %vm145, %v1933, %v1935
    %v1939 = vadd.f32 %v1922, %v1934
    %v1940 = vadd.f32 %v1923, %v1936
    %s1941 = sld [smem:[#allocation2 + $0x9c]]
    %v1942 = vstv %s1941
    %v1943 = vmul.f32 %v67, %v1942
    %v1944 = vmul.f32 %v68, %v1942
    %v1945 = vmul.f32 %v69, %v1942
    %v1949 = vrot.slane %v1943, 5
    %v1950 = vrot.slane %v1944, 5
    %v1951 = vsel %vm163, %v1949, %v1950
    %v1952 = vrot.slane %v1945, 5
    %v1953 = vsel %vm163, %v1950, %v1952
    %v1956 = vadd.f32 %v1939, %v1951
    %v1957 = vadd.f32 %v1940, %v1953
    %s1958 = sld [smem:[#allocation2 + $0xb8]]
    %v1959 = vstv %s1958
    %v1960 = vmul.f32 %v67, %v1959
    %v1961 = vmul.f32 %v68, %v1959
    %v1962 = vmul.f32 %v69, %v1959
    %v1966 = vrot.slane %v1960, 6
    %v1967 = vrot.slane %v1961, 6
    %v1968 = vsel %vm181, %v1966, %v1967
    %v1969 = vrot.slane %v1962, 6
    %v1970 = vsel %vm181, %v1967, %v1969
    %v1973 = vadd.f32 %v1956, %v1968
    %v1974 = vadd.f32 %v1957, %v1970
    %1975 = vrot.lane.b32.xlu0 %v1973, 2
    %v1976 = vpop.permute.xlu0 %1975
    %1977 = vrot.lane.b32.xlu0 %v1974, 2
    %v1978 = vpop.permute.xlu0 %1977
    %v1979 = vadd.f32 %v1531, %v1976
    %v1980 = vadd.f32 %v1532, %v1978
    %s1981 = sld [smem:[#allocation2 + $0x11]]
    %v1982 = vstv %s1981
    %v1983 = vmul.f32 %v70, %v1982
    %v1984 = vmul.f32 %v71, %v1982
    %s1985 = sld [smem:[#allocation2 + $0x2d]]
    %v1986 = vstv %s1985
    %v1987 = vmul.f32 %v70, %v1986
    %v1988 = vmul.f32 %v71, %v1986
    %v1989 = vmul.f32 %v72, %v1986
    %v1993 = vrot.slane %v1987, 1
    %v1994 = vrot.slane %v1988, 1
    %v1995 = vsel %vm91, %v1993, %v1994
    %v1996 = vrot.slane %v1989, 1
    %v1997 = vsel %vm91, %v1994, %v1996
    %v2000 = vadd.f32 %v1983, %v1995
    %v2001 = vadd.f32 %v1984, %v1997
    %s2002 = sld [smem:[#allocation2 + $0x49]]
    %v2003 = vstv %s2002
    %v2004 = vmul.f32 %v70, %v2003
    %v2005 = vmul.f32 %v71, %v2003
    %v2006 = vmul.f32 %v72, %v2003
    %v2010 = vrot.slane %v2004, 2
    %v2011 = vrot.slane %v2005, 2
    %v2012 = vsel %vm109, %v2010, %v2011
    %v2013 = vrot.slane %v2006, 2
    %v2014 = vsel %vm109, %v2011, %v2013
    %v2017 = vadd.f32 %v2000, %v2012
    %v2018 = vadd.f32 %v2001, %v2014
    %s2019 = sld [smem:[#allocation2 + $0x65]]
    %v2020 = vstv %s2019
    %v2021 = vmul.f32 %v70, %v2020
    %v2022 = vmul.f32 %v71, %v2020
    %v2023 = vmul.f32 %v72, %v2020
    %v2027 = vrot.slane %v2021, 3
    %v2028 = vrot.slane %v2022, 3
    %v2029 = vsel %vm127, %v2027, %v2028
    %v2030 = vrot.slane %v2023, 3
    %v2031 = vsel %vm127, %v2028, %v2030
    %v2034 = vadd.f32 %v2017, %v2029
    %v2035 = vadd.f32 %v2018, %v2031
    %s2036 = sld [smem:[#allocation2 + $0x81]]
    %v2037 = vstv %s2036
    %v2038 = vmul.f32 %v70, %v2037
    %v2039 = vmul.f32 %v71, %v2037
    %v2040 = vmul.f32 %v72, %v2037
    %v2044 = vrot.slane %v2038, 4
    %v2045 = vrot.slane %v2039, 4
    %v2046 = vsel %vm145, %v2044, %v2045
    %v2047 = vrot.slane %v2040, 4
    %v2048 = vsel %vm145, %v2045, %v2047
    %v2051 = vadd.f32 %v2034, %v2046
    %v2052 = vadd.f32 %v2035, %v2048
    %s2053 = sld [smem:[#allocation2 + $0x9d]]
    %v2054 = vstv %s2053
    %v2055 = vmul.f32 %v70, %v2054
    %v2056 = vmul.f32 %v71, %v2054
    %v2057 = vmul.f32 %v72, %v2054
    %v2061 = vrot.slane %v2055, 5
    %v2062 = vrot.slane %v2056, 5
    %v2063 = vsel %vm163, %v2061, %v2062
    %v2064 = vrot.slane %v2057, 5
    %v2065 = vsel %vm163, %v2062, %v2064
    %v2068 = vadd.f32 %v2051, %v2063
    %v2069 = vadd.f32 %v2052, %v2065
    %s2070 = sld [smem:[#allocation2 + $0xb9]]
    %v2071 = vstv %s2070
    %v2072 = vmul.f32 %v70, %v2071
    %v2073 = vmul.f32 %v71, %v2071
    %v2074 = vmul.f32 %v72, %v2071
    %v2078 = vrot.slane %v2072, 6
    %v2079 = vrot.slane %v2073, 6
    %v2080 = vsel %vm181, %v2078, %v2079
    %v2081 = vrot.slane %v2074, 6
    %v2082 = vsel %vm181, %v2079, %v2081
    %v2085 = vadd.f32 %v2068, %v2080
    %v2086 = vadd.f32 %v2069, %v2082
    %2087 = vrot.lane.b32.xlu0 %v2085, 2
    %v2088 = vpop.permute.xlu0 %2087
    %2089 = vrot.lane.b32.xlu0 %v2086, 2
    %v2090 = vpop.permute.xlu0 %2089
    %v2091 = vadd.f32 %v1643, %v2088
    %v2092 = vadd.f32 %v1644, %v2090
    %s2093 = sld [smem:[#allocation2 + $0x12]]
    %v2094 = vstv %s2093
    %v2095 = vmul.f32 %v73, %v2094
    %v2096 = vmul.f32 %v74, %v2094
    %s2097 = sld [smem:[#allocation2 + $0x2e]]
    %v2098 = vstv %s2097
    %v2099 = vmul.f32 %v73, %v2098
    %v2100 = vmul.f32 %v74, %v2098
    %v2101 = vmul.f32 %v75, %v2098
    %v2105 = vrot.slane %v2099, 1
    %v2106 = vrot.slane %v2100, 1
    %v2107 = vsel %vm91, %v2105, %v2106
    %v2108 = vrot.slane %v2101, 1
    %v2109 = vsel %vm91, %v2106, %v2108
    %v2112 = vadd.f32 %v2095, %v2107
    %v2113 = vadd.f32 %v2096, %v2109
    %s2114 = sld [smem:[#allocation2 + $0x4a]]
    %v2115 = vstv %s2114
    %v2116 = vmul.f32 %v73, %v2115
    %v2117 = vmul.f32 %v74, %v2115
    %v2118 = vmul.f32 %v75, %v2115
    %v2122 = vrot.slane %v2116, 2
    %v2123 = vrot.slane %v2117, 2
    %v2124 = vsel %vm109, %v2122, %v2123
    %v2125 = vrot.slane %v2118, 2
    %v2126 = vsel %vm109, %v2123, %v2125
    %v2129 = vadd.f32 %v2112, %v2124
    %v2130 = vadd.f32 %v2113, %v2126
    %s2131 = sld [smem:[#allocation2 + $0x66]]
    %v2132 = vstv %s2131
    %v2133 = vmul.f32 %v73, %v2132
    %v2134 = vmul.f32 %v74, %v2132
    %v2135 = vmul.f32 %v75, %v2132
    %v2139 = vrot.slane %v2133, 3
    %v2140 = vrot.slane %v2134, 3
    %v2141 = vsel %vm127, %v2139, %v2140
    %v2142 = vrot.slane %v2135, 3
    %v2143 = vsel %vm127, %v2140, %v2142
    %v2146 = vadd.f32 %v2129, %v2141
    %v2147 = vadd.f32 %v2130, %v2143
    %s2148 = sld [smem:[#allocation2 + $0x82]]
    %v2149 = vstv %s2148
    %v2150 = vmul.f32 %v73, %v2149
    %v2151 = vmul.f32 %v74, %v2149
    %v2152 = vmul.f32 %v75, %v2149
    %v2156 = vrot.slane %v2150, 4
    %v2157 = vrot.slane %v2151, 4
    %v2158 = vsel %vm145, %v2156, %v2157
    %v2159 = vrot.slane %v2152, 4
    %v2160 = vsel %vm145, %v2157, %v2159
    %v2163 = vadd.f32 %v2146, %v2158
    %v2164 = vadd.f32 %v2147, %v2160
    %s2165 = sld [smem:[#allocation2 + $0x9e]]
    %v2166 = vstv %s2165
    %v2167 = vmul.f32 %v73, %v2166
    %v2168 = vmul.f32 %v74, %v2166
    %v2169 = vmul.f32 %v75, %v2166
    %v2173 = vrot.slane %v2167, 5
    %v2174 = vrot.slane %v2168, 5
    %v2175 = vsel %vm163, %v2173, %v2174
    %v2176 = vrot.slane %v2169, 5
    %v2177 = vsel %vm163, %v2174, %v2176
    %v2180 = vadd.f32 %v2163, %v2175
    %v2181 = vadd.f32 %v2164, %v2177
    %s2182 = sld [smem:[#allocation2 + $0xba]]
    %v2183 = vstv %s2182
    %v2184 = vmul.f32 %v73, %v2183
    %v2185 = vmul.f32 %v74, %v2183
    %v2186 = vmul.f32 %v75, %v2183
    %v2190 = vrot.slane %v2184, 6
    %v2191 = vrot.slane %v2185, 6
    %v2192 = vsel %vm181, %v2190, %v2191
    %v2193 = vrot.slane %v2186, 6
    %v2194 = vsel %vm181, %v2191, %v2193
    %v2197 = vadd.f32 %v2180, %v2192
    %v2198 = vadd.f32 %v2181, %v2194
    %2199 = vrot.lane.b32.xlu0 %v2197, 2
    %v2200 = vpop.permute.xlu0 %2199
    %2201 = vrot.lane.b32.xlu0 %v2198, 2
    %v2202 = vpop.permute.xlu0 %2201
    %v2203 = vadd.f32 %v1755, %v2200
    %v2204 = vadd.f32 %v1756, %v2202
    %s2205 = sld [smem:[#allocation2 + $0x13]]
    %v2206 = vstv %s2205
    %v2207 = vmul.f32 %v76, %v2206
    %v2208 = vmul.f32 %v77, %v2206
    %s2209 = sld [smem:[#allocation2 + $0x2f]]
    %v2210 = vstv %s2209
    %v2211 = vmul.f32 %v76, %v2210
    %v2212 = vmul.f32 %v77, %v2210
    %v2213 = vmul.f32 %v78, %v2210
    %v2217 = vrot.slane %v2211, 1
    %v2218 = vrot.slane %v2212, 1
    %v2219 = vsel %vm91, %v2217, %v2218
    %v2220 = vrot.slane %v2213, 1
    %v2221 = vsel %vm91, %v2218, %v2220
    %v2224 = vadd.f32 %v2207, %v2219
    %v2225 = vadd.f32 %v2208, %v2221
    %s2226 = sld [smem:[#allocation2 + $0x4b]]
    %v2227 = vstv %s2226
    %v2228 = vmul.f32 %v76, %v2227
    %v2229 = vmul.f32 %v77, %v2227
    %v2230 = vmul.f32 %v78, %v2227
    %v2234 = vrot.slane %v2228, 2
    %v2235 = vrot.slane %v2229, 2
    %v2236 = vsel %vm109, %v2234, %v2235
    %v2237 = vrot.slane %v2230, 2
    %v2238 = vsel %vm109, %v2235, %v2237
    %v2241 = vadd.f32 %v2224, %v2236
    %v2242 = vadd.f32 %v2225, %v2238
    %s2243 = sld [smem:[#allocation2 + $0x67]]
    %v2244 = vstv %s2243
    %v2245 = vmul.f32 %v76, %v2244
    %v2246 = vmul.f32 %v77, %v2244
    %v2247 = vmul.f32 %v78, %v2244
    %v2251 = vrot.slane %v2245, 3
    %v2252 = vrot.slane %v2246, 3
    %v2253 = vsel %vm127, %v2251, %v2252
    %v2254 = vrot.slane %v2247, 3
    %v2255 = vsel %vm127, %v2252, %v2254
    %v2258 = vadd.f32 %v2241, %v2253
    %v2259 = vadd.f32 %v2242, %v2255
    %s2260 = sld [smem:[#allocation2 + $0x83]]
    %v2261 = vstv %s2260
    %v2262 = vmul.f32 %v76, %v2261
    %v2263 = vmul.f32 %v77, %v2261
    %v2264 = vmul.f32 %v78, %v2261
    %v2268 = vrot.slane %v2262, 4
    %v2269 = vrot.slane %v2263, 4
    %v2270 = vsel %vm145, %v2268, %v2269
    %v2271 = vrot.slane %v2264, 4
    %v2272 = vsel %vm145, %v2269, %v2271
    %v2275 = vadd.f32 %v2258, %v2270
    %v2276 = vadd.f32 %v2259, %v2272
    %s2277 = sld [smem:[#allocation2 + $0x9f]]
    %v2278 = vstv %s2277
    %v2279 = vmul.f32 %v76, %v2278
    %v2280 = vmul.f32 %v77, %v2278
    %v2281 = vmul.f32 %v78, %v2278
    %v2285 = vrot.slane %v2279, 5
    %v2286 = vrot.slane %v2280, 5
    %v2287 = vsel %vm163, %v2285, %v2286
    %v2288 = vrot.slane %v2281, 5
    %v2289 = vsel %vm163, %v2286, %v2288
    %v2292 = vadd.f32 %v2275, %v2287
    %v2293 = vadd.f32 %v2276, %v2289
    %s2294 = sld [smem:[#allocation2 + $0xbb]]
    %v2295 = vstv %s2294
    %v2296 = vmul.f32 %v76, %v2295
    %v2297 = vmul.f32 %v77, %v2295
    %v2298 = vmul.f32 %v78, %v2295
    %v2302 = vrot.slane %v2296, 6
    %v2303 = vrot.slane %v2297, 6
    %v2304 = vsel %vm181, %v2302, %v2303
    %v2305 = vrot.slane %v2298, 6
    %v2306 = vsel %vm181, %v2303, %v2305
    %v2309 = vadd.f32 %v2292, %v2304
    %v2310 = vadd.f32 %v2293, %v2306
    %2311 = vrot.lane.b32.xlu0 %v2309, 2
    %v2312 = vpop.permute.xlu0 %2311
    %2313 = vrot.lane.b32.xlu0 %v2310, 2
    %v2314 = vpop.permute.xlu0 %2313
    %v2315 = vadd.f32 %v1867, %v2312
    %v2316 = vadd.f32 %v1868, %v2314
    %s2317 = sld [smem:[#allocation2 + $0x14]]
    %v2318 = vstv %s2317
    %v2319 = vmul.f32 %v67, %v2318
    %v2320 = vmul.f32 %v68, %v2318
    %s2321 = sld [smem:[#allocation2 + $0x30]]
    %v2322 = vstv %s2321
    %v2323 = vmul.f32 %v67, %v2322
    %v2324 = vmul.f32 %v68, %v2322
    %v2325 = vmul.f32 %v69, %v2322
    %v2329 = vrot.slane %v2323, 1
    %v2330 = vrot.slane %v2324, 1
    %v2331 = vsel %vm91, %v2329, %v2330
    %v2332 = vrot.slane %v2325, 1
    %v2333 = vsel %vm91, %v2330, %v2332
    %v2336 = vadd.f32 %v2319, %v2331
    %v2337 = vadd.f32 %v2320, %v2333
    %s2338 = sld [smem:[#allocation2 + $0x4c]]
    %v2339 = vstv %s2338
    %v2340 = vmul.f32 %v67, %v2339
    %v2341 = vmul.f32 %v68, %v2339
    %v2342 = vmul.f32 %v69, %v2339
    %v2346 = vrot.slane %v2340, 2
    %v2347 = vrot.slane %v2341, 2
    %v2348 = vsel %vm109, %v2346, %v2347
    %v2349 = vrot.slane %v2342, 2
    %v2350 = vsel %vm109, %v2347, %v2349
    %v2353 = vadd.f32 %v2336, %v2348
    %v2354 = vadd.f32 %v2337, %v2350
    %s2355 = sld [smem:[#allocation2 + $0x68]]
    %v2356 = vstv %s2355
    %v2357 = vmul.f32 %v67, %v2356
    %v2358 = vmul.f32 %v68, %v2356
    %v2359 = vmul.f32 %v69, %v2356
    %v2363 = vrot.slane %v2357, 3
    %v2364 = vrot.slane %v2358, 3
    %v2365 = vsel %vm127, %v2363, %v2364
    %v2366 = vrot.slane %v2359, 3
    %v2367 = vsel %vm127, %v2364, %v2366
    %v2370 = vadd.f32 %v2353, %v2365
    %v2371 = vadd.f32 %v2354, %v2367
    %s2372 = sld [smem:[#allocation2 + $0x84]]
    %v2373 = vstv %s2372
    %v2374 = vmul.f32 %v67, %v2373
    %v2375 = vmul.f32 %v68, %v2373
    %v2376 = vmul.f32 %v69, %v2373
    %v2380 = vrot.slane %v2374, 4
    %v2381 = vrot.slane %v2375, 4
    %v2382 = vsel %vm145, %v2380, %v2381
    %v2383 = vrot.slane %v2376, 4
    %v2384 = vsel %vm145, %v2381, %v2383
    %v2387 = vadd.f32 %v2370, %v2382
    %v2388 = vadd.f32 %v2371, %v2384
    %s2389 = sld [smem:[#allocation2 + $0xa0]]
    %v2390 = vstv %s2389
    %v2391 = vmul.f32 %v67, %v2390
    %v2392 = vmul.f32 %v68, %v2390
    %v2393 = vmul.f32 %v69, %v2390
    %v2397 = vrot.slane %v2391, 5
    %v2398 = vrot.slane %v2392, 5
    %v2399 = vsel %vm163, %v2397, %v2398
    %v2400 = vrot.slane %v2393, 5
    %v2401 = vsel %vm163, %v2398, %v2400
    %v2404 = vadd.f32 %v2387, %v2399
    %v2405 = vadd.f32 %v2388, %v2401
    %s2406 = sld [smem:[#allocation2 + $0xbc]]
    %v2407 = vstv %s2406
    %v2408 = vmul.f32 %v67, %v2407
    %v2409 = vmul.f32 %v68, %v2407
    %v2410 = vmul.f32 %v69, %v2407
    %v2414 = vrot.slane %v2408, 6
    %v2415 = vrot.slane %v2409, 6
    %v2416 = vsel %vm181, %v2414, %v2415
    %v2417 = vrot.slane %v2410, 6
    %v2418 = vsel %vm181, %v2415, %v2417
    %v2421 = vadd.f32 %v2404, %v2416
    %v2422 = vadd.f32 %v2405, %v2418
    %2423 = vrot.lane.b32.xlu0 %v2421, 1
    %v2424 = vpop.permute.xlu0 %2423
    %2425 = vrot.lane.b32.xlu0 %v2422, 1
    %v2426 = vpop.permute.xlu0 %2425
    %v2427 = vadd.f32 %v1979, %v2424
    %v2428 = vadd.f32 %v1980, %v2426
    %s2429 = sld [smem:[#allocation2 + $0x15]]
    %v2430 = vstv %s2429
    %v2431 = vmul.f32 %v70, %v2430
    %v2432 = vmul.f32 %v71, %v2430
    %s2433 = sld [smem:[#allocation2 + $0x31]]
    %v2434 = vstv %s2433
    %v2435 = vmul.f32 %v70, %v2434
    %v2436 = vmul.f32 %v71, %v2434
    %v2437 = vmul.f32 %v72, %v2434
    %v2441 = vrot.slane %v2435, 1
    %v2442 = vrot.slane %v2436, 1
    %v2443 = vsel %vm91, %v2441, %v2442
    %v2444 = vrot.slane %v2437, 1
    %v2445 = vsel %vm91, %v2442, %v2444
    %v2448 = vadd.f32 %v2431, %v2443
    %v2449 = vadd.f32 %v2432, %v2445
    %s2450 = sld [smem:[#allocation2 + $0x4d]]
    %v2451 = vstv %s2450
    %v2452 = vmul.f32 %v70, %v2451
    %v2453 = vmul.f32 %v71, %v2451
    %v2454 = vmul.f32 %v72, %v2451
    %v2458 = vrot.slane %v2452, 2
    %v2459 = vrot.slane %v2453, 2
    %v2460 = vsel %vm109, %v2458, %v2459
    %v2461 = vrot.slane %v2454, 2
    %v2462 = vsel %vm109, %v2459, %v2461
    %v2465 = vadd.f32 %v2448, %v2460
    %v2466 = vadd.f32 %v2449, %v2462
    %s2467 = sld [smem:[#allocation2 + $0x69]]
    %v2468 = vstv %s2467
    %v2469 = vmul.f32 %v70, %v2468
    %v2470 = vmul.f32 %v71, %v2468
    %v2471 = vmul.f32 %v72, %v2468
    %v2475 = vrot.slane %v2469, 3
    %v2476 = vrot.slane %v2470, 3
    %v2477 = vsel %vm127, %v2475, %v2476
    %v2478 = vrot.slane %v2471, 3
    %v2479 = vsel %vm127, %v2476, %v2478
    %v2482 = vadd.f32 %v2465, %v2477
    %v2483 = vadd.f32 %v2466, %v2479
    %s2484 = sld [smem:[#allocation2 + $0x85]]
    %v2485 = vstv %s2484
    %v2486 = vmul.f32 %v70, %v2485
    %v2487 = vmul.f32 %v71, %v2485
    %v2488 = vmul.f32 %v72, %v2485
    %v2492 = vrot.slane %v2486, 4
    %v2493 = vrot.slane %v2487, 4
    %v2494 = vsel %vm145, %v2492, %v2493
    %v2495 = vrot.slane %v2488, 4
    %v2496 = vsel %vm145, %v2493, %v2495
    %v2499 = vadd.f32 %v2482, %v2494
    %v2500 = vadd.f32 %v2483, %v2496
    %s2501 = sld [smem:[#allocation2 + $0xa1]]
    %v2502 = vstv %s2501
    %v2503 = vmul.f32 %v70, %v2502
    %v2504 = vmul.f32 %v71, %v2502
    %v2505 = vmul.f32 %v72, %v2502
    %v2509 = vrot.slane %v2503, 5
    %v2510 = vrot.slane %v2504, 5
    %v2511 = vsel %vm163, %v2509, %v2510
    %v2512 = vrot.slane %v2505, 5
    %v2513 = vsel %vm163, %v2510, %v2512
    %v2516 = vadd.f32 %v2499, %v2511
    %v2517 = vadd.f32 %v2500, %v2513
    %s2518 = sld [smem:[#allocation2 + $0xbd]]
    %v2519 = vstv %s2518
    %v2520 = vmul.f32 %v70, %v2519
    %v2521 = vmul.f32 %v71, %v2519
    %v2522 = vmul.f32 %v72, %v2519
    %v2526 = vrot.slane %v2520, 6
    %v2527 = vrot.slane %v2521, 6
    %v2528 = vsel %vm181, %v2526, %v2527
    %v2529 = vrot.slane %v2522, 6
    %v2530 = vsel %vm181, %v2527, %v2529
    %v2533 = vadd.f32 %v2516, %v2528
    %v2534 = vadd.f32 %v2517, %v2530
    %2535 = vrot.lane.b32.xlu0 %v2533, 1
    %v2536 = vpop.permute.xlu0 %2535
    %2537 = vrot.lane.b32.xlu0 %v2534, 1
    %v2538 = vpop.permute.xlu0 %2537
    %v2539 = vadd.f32 %v2091, %v2536
    %v2540 = vadd.f32 %v2092, %v2538
    %s2541 = sld [smem:[#allocation2 + $0x16]]
    %v2542 = vstv %s2541
    %v2543 = vmul.f32 %v73, %v2542
    %v2544 = vmul.f32 %v74, %v2542
    %s2545 = sld [smem:[#allocation2 + $0x32]]
    %v2546 = vstv %s2545
    %v2547 = vmul.f32 %v73, %v2546
    %v2548 = vmul.f32 %v74, %v2546
    %v2549 = vmul.f32 %v75, %v2546
    %v2553 = vrot.slane %v2547, 1
    %v2554 = vrot.slane %v2548, 1
    %v2555 = vsel %vm91, %v2553, %v2554
    %v2556 = vrot.slane %v2549, 1
    %v2557 = vsel %vm91, %v2554, %v2556
    %v2560 = vadd.f32 %v2543, %v2555
    %v2561 = vadd.f32 %v2544, %v2557
    %s2562 = sld [smem:[#allocation2 + $0x4e]]
    %v2563 = vstv %s2562
    %v2564 = vmul.f32 %v73, %v2563
    %v2565 = vmul.f32 %v74, %v2563
    %v2566 = vmul.f32 %v75, %v2563
    %v2570 = vrot.slane %v2564, 2
    %v2571 = vrot.slane %v2565, 2
    %v2572 = vsel %vm109, %v2570, %v2571
    %v2573 = vrot.slane %v2566, 2
    %v2574 = vsel %vm109, %v2571, %v2573
    %v2577 = vadd.f32 %v2560, %v2572
    %v2578 = vadd.f32 %v2561, %v2574
    %s2579 = sld [smem:[#allocation2 + $0x6a]]
    %v2580 = vstv %s2579
    %v2581 = vmul.f32 %v73, %v2580
    %v2582 = vmul.f32 %v74, %v2580
    %v2583 = vmul.f32 %v75, %v2580
    %v2587 = vrot.slane %v2581, 3
    %v2588 = vrot.slane %v2582, 3
    %v2589 = vsel %vm127, %v2587, %v2588
    %v2590 = vrot.slane %v2583, 3
    %v2591 = vsel %vm127, %v2588, %v2590
    %v2594 = vadd.f32 %v2577, %v2589
    %v2595 = vadd.f32 %v2578, %v2591
    %s2596 = sld [smem:[#allocation2 + $0x86]]
    %v2597 = vstv %s2596
    %v2598 = vmul.f32 %v73, %v2597
    %v2599 = vmul.f32 %v74, %v2597
    %v2600 = vmul.f32 %v75, %v2597
    %v2604 = vrot.slane %v2598, 4
    %v2605 = vrot.slane %v2599, 4
    %v2606 = vsel %vm145, %v2604, %v2605
    %v2607 = vrot.slane %v2600, 4
    %v2608 = vsel %vm145, %v2605, %v2607
    %v2611 = vadd.f32 %v2594, %v2606
    %v2612 = vadd.f32 %v2595, %v2608
    %s2613 = sld [smem:[#allocation2 + $0xa2]]
    %v2614 = vstv %s2613
    %v2615 = vmul.f32 %v73, %v2614
    %v2616 = vmul.f32 %v74, %v2614
    %v2617 = vmul.f32 %v75, %v2614
    %v2621 = vrot.slane %v2615, 5
    %v2622 = vrot.slane %v2616, 5
    %v2623 = vsel %vm163, %v2621, %v2622
    %v2624 = vrot.slane %v2617, 5
    %v2625 = vsel %vm163, %v2622, %v2624
    %v2628 = vadd.f32 %v2611, %v2623
    %v2629 = vadd.f32 %v2612, %v2625
    %s2630 = sld [smem:[#allocation2 + $0xbe]]
    %v2631 = vstv %s2630
    %v2632 = vmul.f32 %v73, %v2631
    %v2633 = vmul.f32 %v74, %v2631
    %v2634 = vmul.f32 %v75, %v2631
    %v2638 = vrot.slane %v2632, 6
    %v2639 = vrot.slane %v2633, 6
    %v2640 = vsel %vm181, %v2638, %v2639
    %v2641 = vrot.slane %v2634, 6
    %v2642 = vsel %vm181, %v2639, %v2641
    %v2645 = vadd.f32 %v2628, %v2640
    %v2646 = vadd.f32 %v2629, %v2642
    %2647 = vrot.lane.b32.xlu0 %v2645, 1
    %v2648 = vpop.permute.xlu0 %2647
    %2649 = vrot.lane.b32.xlu0 %v2646, 1
    %v2650 = vpop.permute.xlu0 %2649
    %v2651 = vadd.f32 %v2203, %v2648
    %v2652 = vadd.f32 %v2204, %v2650
    %s2653 = sld [smem:[#allocation2 + $0x17]]
    %v2654 = vstv %s2653
    %v2655 = vmul.f32 %v76, %v2654
    %v2656 = vmul.f32 %v77, %v2654
    %s2657 = sld [smem:[#allocation2 + $0x33]]
    %v2658 = vstv %s2657
    %v2659 = vmul.f32 %v76, %v2658
    %v2660 = vmul.f32 %v77, %v2658
    %v2661 = vmul.f32 %v78, %v2658
    %v2665 = vrot.slane %v2659, 1
    %v2666 = vrot.slane %v2660, 1
    %v2667 = vsel %vm91, %v2665, %v2666
    %v2668 = vrot.slane %v2661, 1
    %v2669 = vsel %vm91, %v2666, %v2668
    %v2672 = vadd.f32 %v2655, %v2667
    %v2673 = vadd.f32 %v2656, %v2669
    %s2674 = sld [smem:[#allocation2 + $0x4f]]
    %v2675 = vstv %s2674
    %v2676 = vmul.f32 %v76, %v2675
    %v2677 = vmul.f32 %v77, %v2675
    %v2678 = vmul.f32 %v78, %v2675
    %v2682 = vrot.slane %v2676, 2
    %v2683 = vrot.slane %v2677, 2
    %v2684 = vsel %vm109, %v2682, %v2683
    %v2685 = vrot.slane %v2678, 2
    %v2686 = vsel %vm109, %v2683, %v2685
    %v2689 = vadd.f32 %v2672, %v2684
    %v2690 = vadd.f32 %v2673, %v2686
    %s2691 = sld [smem:[#allocation2 + $0x6b]]
    %v2692 = vstv %s2691
    %v2693 = vmul.f32 %v76, %v2692
    %v2694 = vmul.f32 %v77, %v2692
    %v2695 = vmul.f32 %v78, %v2692
    %v2699 = vrot.slane %v2693, 3
    %v2700 = vrot.slane %v2694, 3
    %v2701 = vsel %vm127, %v2699, %v2700
    %v2702 = vrot.slane %v2695, 3
    %v2703 = vsel %vm127, %v2700, %v2702
    %v2706 = vadd.f32 %v2689, %v2701
    %v2707 = vadd.f32 %v2690, %v2703
    %s2708 = sld [smem:[#allocation2 + $0x87]]
    %v2709 = vstv %s2708
    %v2710 = vmul.f32 %v76, %v2709
    %v2711 = vmul.f32 %v77, %v2709
    %v2712 = vmul.f32 %v78, %v2709
    %v2716 = vrot.slane %v2710, 4
    %v2717 = vrot.slane %v2711, 4
    %v2718 = vsel %vm145, %v2716, %v2717
    %v2719 = vrot.slane %v2712, 4
    %v2720 = vsel %vm145, %v2717, %v2719
    %v2723 = vadd.f32 %v2706, %v2718
    %v2724 = vadd.f32 %v2707, %v2720
    %s2725 = sld [smem:[#allocation2 + $0xa3]]
    %v2726 = vstv %s2725
    %v2727 = vmul.f32 %v76, %v2726
    %v2728 = vmul.f32 %v77, %v2726
    %v2729 = vmul.f32 %v78, %v2726
    %v2733 = vrot.slane %v2727, 5
    %v2734 = vrot.slane %v2728, 5
    %v2735 = vsel %vm163, %v2733, %v2734
    %v2736 = vrot.slane %v2729, 5
    %v2737 = vsel %vm163, %v2734, %v2736
    %v2740 = vadd.f32 %v2723, %v2735
    %v2741 = vadd.f32 %v2724, %v2737
    %s2742 = sld [smem:[#allocation2 + $0xbf]]
    %v2743 = vstv %s2742
    %v2744 = vmul.f32 %v76, %v2743
    %v2745 = vmul.f32 %v77, %v2743
    %v2746 = vmul.f32 %v78, %v2743
    %v2750 = vrot.slane %v2744, 6
    %v2751 = vrot.slane %v2745, 6
    %v2752 = vsel %vm181, %v2750, %v2751
    %v2753 = vrot.slane %v2746, 6
    %v2754 = vsel %vm181, %v2751, %v2753
    %v2757 = vadd.f32 %v2740, %v2752
    %v2758 = vadd.f32 %v2741, %v2754
    %2759 = vrot.lane.b32.xlu0 %v2757, 1
    %v2760 = vpop.permute.xlu0 %2759
    %2761 = vrot.lane.b32.xlu0 %v2758, 1
    %v2762 = vpop.permute.xlu0 %2761
    %v2763 = vadd.f32 %v2315, %v2760
    %v2764 = vadd.f32 %v2316, %v2762
    %s2765 = sld [smem:[#allocation2 + $0x18]]
    %v2766 = vstv %s2765
    %v2767 = vmul.f32 %v67, %v2766
    %v2768 = vmul.f32 %v68, %v2766
    %s2769 = sld [smem:[#allocation2 + $0x34]]
    %v2770 = vstv %s2769
    %v2771 = vmul.f32 %v67, %v2770
    %v2772 = vmul.f32 %v68, %v2770
    %v2773 = vmul.f32 %v69, %v2770
    %v2777 = vrot.slane %v2771, 1
    %v2778 = vrot.slane %v2772, 1
    %v2779 = vsel %vm91, %v2777, %v2778
    %v2780 = vrot.slane %v2773, 1
    %v2781 = vsel %vm91, %v2778, %v2780
    %v2784 = vadd.f32 %v2767, %v2779
    %v2785 = vadd.f32 %v2768, %v2781
    %s2786 = sld [smem:[#allocation2 + $0x50]]
    %v2787 = vstv %s2786
    %v2788 = vmul.f32 %v67, %v2787
    %v2789 = vmul.f32 %v68, %v2787
    %v2790 = vmul.f32 %v69, %v2787
    %v2794 = vrot.slane %v2788, 2
    %v2795 = vrot.slane %v2789, 2
    %v2796 = vsel %vm109, %v2794, %v2795
    %v2797 = vrot.slane %v2790, 2
    %v2798 = vsel %vm109, %v2795, %v2797
    %v2801 = vadd.f32 %v2784, %v2796
    %v2802 = vadd.f32 %v2785, %v2798
    %s2803 = sld [smem:[#allocation2 + $0x6c]]
    %v2804 = vstv %s2803
    %v2805 = vmul.f32 %v67, %v2804
    %v2806 = vmul.f32 %v68, %v2804
    %v2807 = vmul.f32 %v69, %v2804
    %v2811 = vrot.slane %v2805, 3
    %v2812 = vrot.slane %v2806, 3
    %v2813 = vsel %vm127, %v2811, %v2812
    %v2814 = vrot.slane %v2807, 3
    %v2815 = vsel %vm127, %v2812, %v2814
    %v2818 = vadd.f32 %v2801, %v2813
    %v2819 = vadd.f32 %v2802, %v2815
    %s2820 = sld [smem:[#allocation2 + $0x88]]
    %v2821 = vstv %s2820
    %v2822 = vmul.f32 %v67, %v2821
    %v2823 = vmul.f32 %v68, %v2821
    %v2824 = vmul.f32 %v69, %v2821
    %v2828 = vrot.slane %v2822, 4
    %v2829 = vrot.slane %v2823, 4
    %v2830 = vsel %vm145, %v2828, %v2829
    %v2831 = vrot.slane %v2824, 4
    %v2832 = vsel %vm145, %v2829, %v2831
    %v2835 = vadd.f32 %v2818, %v2830
    %v2836 = vadd.f32 %v2819, %v2832
    %s2837 = sld [smem:[#allocation2 + $0xa4]]
    %v2838 = vstv %s2837
    %v2839 = vmul.f32 %v67, %v2838
    %v2840 = vmul.f32 %v68, %v2838
    %v2841 = vmul.f32 %v69, %v2838
    %v2845 = vrot.slane %v2839, 5
    %v2846 = vrot.slane %v2840, 5
    %v2847 = vsel %vm163, %v2845, %v2846
    %v2848 = vrot.slane %v2841, 5
    %v2849 = vsel %vm163, %v2846, %v2848
    %v2852 = vadd.f32 %v2835, %v2847
    %v2853 = vadd.f32 %v2836, %v2849
    %s2854 = sld [smem:[#allocation2 + $0xc0]]
    %v2855 = vstv %s2854
    %v2856 = vmul.f32 %v67, %v2855
    %v2857 = vmul.f32 %v68, %v2855
    %v2858 = vmul.f32 %v69, %v2855
    %v2862 = vrot.slane %v2856, 6
    %v2863 = vrot.slane %v2857, 6
    %v2864 = vsel %vm181, %v2862, %v2863
    %v2865 = vrot.slane %v2858, 6
    %v2866 = vsel %vm181, %v2863, %v2865
    %v2869 = vadd.f32 %v2852, %v2864
    %v2870 = vadd.f32 %v2853, %v2866
    %v2871 = vadd.f32 %v2427, %v2869
    %v2872 = vadd.f32 %v2428, %v2870
    %s2873 = sld [smem:[#allocation2 + $0x19]]
    %v2874 = vstv %s2873
    %v2875 = vmul.f32 %v70, %v2874
    %v2876 = vmul.f32 %v71, %v2874
    %s2877 = sld [smem:[#allocation2 + $0x35]]
    %v2878 = vstv %s2877
    %v2879 = vmul.f32 %v70, %v2878
    %v2880 = vmul.f32 %v71, %v2878
    %v2881 = vmul.f32 %v72, %v2878
    %v2885 = vrot.slane %v2879, 1
    %v2886 = vrot.slane %v2880, 1
    %v2887 = vsel %vm91, %v2885, %v2886
    %v2888 = vrot.slane %v2881, 1
    %v2889 = vsel %vm91, %v2886, %v2888
    %v2892 = vadd.f32 %v2875, %v2887
    %v2893 = vadd.f32 %v2876, %v2889
    %s2894 = sld [smem:[#allocation2 + $0x51]]
    %v2895 = vstv %s2894
    %v2896 = vmul.f32 %v70, %v2895
    %v2897 = vmul.f32 %v71, %v2895
    %v2898 = vmul.f32 %v72, %v2895
    %v2902 = vrot.slane %v2896, 2
    %v2903 = vrot.slane %v2897, 2
    %v2904 = vsel %vm109, %v2902, %v2903
    %v2905 = vrot.slane %v2898, 2
    %v2906 = vsel %vm109, %v2903, %v2905
    %v2909 = vadd.f32 %v2892, %v2904
    %v2910 = vadd.f32 %v2893, %v2906
    %s2911 = sld [smem:[#allocation2 + $0x6d]]
    %v2912 = vstv %s2911
    %v2913 = vmul.f32 %v70, %v2912
    %v2914 = vmul.f32 %v71, %v2912
    %v2915 = vmul.f32 %v72, %v2912
    %v2919 = vrot.slane %v2913, 3
    %v2920 = vrot.slane %v2914, 3
    %v2921 = vsel %vm127, %v2919, %v2920
    %v2922 = vrot.slane %v2915, 3
    %v2923 = vsel %vm127, %v2920, %v2922
    %v2926 = vadd.f32 %v2909, %v2921
    %v2927 = vadd.f32 %v2910, %v2923
    %s2928 = sld [smem:[#allocation2 + $0x89]]
    %v2929 = vstv %s2928
    %v2930 = vmul.f32 %v70, %v2929
    %v2931 = vmul.f32 %v71, %v2929
    %v2932 = vmul.f32 %v72, %v2929
    %v2936 = vrot.slane %v2930, 4
    %v2937 = vrot.slane %v2931, 4
    %v2938 = vsel %vm145, %v2936, %v2937
    %v2939 = vrot.slane %v2932, 4
    %v2940 = vsel %vm145, %v2937, %v2939
    %v2943 = vadd.f32 %v2926, %v2938
    %v2944 = vadd.f32 %v2927, %v2940
    %s2945 = sld [smem:[#allocation2 + $0xa5]]
    %v2946 = vstv %s2945
    %v2947 = vmul.f32 %v70, %v2946
    %v2948 = vmul.f32 %v71, %v2946
    %v2949 = vmul.f32 %v72, %v2946
    %v2953 = vrot.slane %v2947, 5
    %v2954 = vrot.slane %v2948, 5
    %v2955 = vsel %vm163, %v2953, %v2954
    %v2956 = vrot.slane %v2949, 5
    %v2957 = vsel %vm163, %v2954, %v2956
    %v2960 = vadd.f32 %v2943, %v2955
    %v2961 = vadd.f32 %v2944, %v2957
    %s2962 = sld [smem:[#allocation2 + $0xc1]]
    %v2963 = vstv %s2962
    %v2964 = vmul.f32 %v70, %v2963
    %v2965 = vmul.f32 %v71, %v2963
    %v2966 = vmul.f32 %v72, %v2963
    %v2970 = vrot.slane %v2964, 6
    %v2971 = vrot.slane %v2965, 6
    %v2972 = vsel %vm181, %v2970, %v2971
    %v2973 = vrot.slane %v2966, 6
    %v2974 = vsel %vm181, %v2971, %v2973
    %v2977 = vadd.f32 %v2960, %v2972
    %v2978 = vadd.f32 %v2961, %v2974
    %v2979 = vadd.f32 %v2539, %v2977
    %v2980 = vadd.f32 %v2540, %v2978
    %s2981 = sld [smem:[#allocation2 + $0x1a]]
    %v2982 = vstv %s2981
    %v2983 = vmul.f32 %v73, %v2982
    %v2984 = vmul.f32 %v74, %v2982
    %s2985 = sld [smem:[#allocation2 + $0x36]]
    %v2986 = vstv %s2985
    %v2987 = vmul.f32 %v73, %v2986
    %v2988 = vmul.f32 %v74, %v2986
    %v2989 = vmul.f32 %v75, %v2986
    %v2993 = vrot.slane %v2987, 1
    %v2994 = vrot.slane %v2988, 1
    %v2995 = vsel %vm91, %v2993, %v2994
    %v2996 = vrot.slane %v2989, 1
    %v2997 = vsel %vm91, %v2994, %v2996
    %v3000 = vadd.f32 %v2983, %v2995
    %v3001 = vadd.f32 %v2984, %v2997
    %s3002 = sld [smem:[#allocation2 + $0x52]]
    %v3003 = vstv %s3002
    %v3004 = vmul.f32 %v73, %v3003
    %v3005 = vmul.f32 %v74, %v3003
    %v3006 = vmul.f32 %v75, %v3003
    %v3010 = vrot.slane %v3004, 2
    %v3011 = vrot.slane %v3005, 2
    %v3012 = vsel %vm109, %v3010, %v3011
    %v3013 = vrot.slane %v3006, 2
    %v3014 = vsel %vm109, %v3011, %v3013
    %v3017 = vadd.f32 %v3000, %v3012
    %v3018 = vadd.f32 %v3001, %v3014
    %s3019 = sld [smem:[#allocation2 + $0x6e]]
    %v3020 = vstv %s3019
    %v3021 = vmul.f32 %v73, %v3020
    %v3022 = vmul.f32 %v74, %v3020
    %v3023 = vmul.f32 %v75, %v3020
    %v3027 = vrot.slane %v3021, 3
    %v3028 = vrot.slane %v3022, 3
    %v3029 = vsel %vm127, %v3027, %v3028
    %v3030 = vrot.slane %v3023, 3
    %v3031 = vsel %vm127, %v3028, %v3030
    %v3034 = vadd.f32 %v3017, %v3029
    %v3035 = vadd.f32 %v3018, %v3031
    %s3036 = sld [smem:[#allocation2 + $0x8a]]
    %v3037 = vstv %s3036
    %v3038 = vmul.f32 %v73, %v3037
    %v3039 = vmul.f32 %v74, %v3037
    %v3040 = vmul.f32 %v75, %v3037
    %v3044 = vrot.slane %v3038, 4
    %v3045 = vrot.slane %v3039, 4
    %v3046 = vsel %vm145, %v3044, %v3045
    %v3047 = vrot.slane %v3040, 4
    %v3048 = vsel %vm145, %v3045, %v3047
    %v3051 = vadd.f32 %v3034, %v3046
    %v3052 = vadd.f32 %v3035, %v3048
    %s3053 = sld [smem:[#allocation2 + $0xa6]]
    %v3054 = vstv %s3053
    %v3055 = vmul.f32 %v73, %v3054
    %v3056 = vmul.f32 %v74, %v3054
    %v3057 = vmul.f32 %v75, %v3054
    %v3061 = vrot.slane %v3055, 5
    %v3062 = vrot.slane %v3056, 5
    %v3063 = vsel %vm163, %v3061, %v3062
    %v3064 = vrot.slane %v3057, 5
    %v3065 = vsel %vm163, %v3062, %v3064
    %v3068 = vadd.f32 %v3051, %v3063
    %v3069 = vadd.f32 %v3052, %v3065
    %s3070 = sld [smem:[#allocation2 + $0xc2]]
    %v3071 = vstv %s3070
    %v3072 = vmul.f32 %v73, %v3071
    %v3073 = vmul.f32 %v74, %v3071
    %v3074 = vmul.f32 %v75, %v3071
    %v3078 = vrot.slane %v3072, 6
    %v3079 = vrot.slane %v3073, 6
    %v3080 = vsel %vm181, %v3078, %v3079
    %v3081 = vrot.slane %v3074, 6
    %v3082 = vsel %vm181, %v3079, %v3081
    %v3085 = vadd.f32 %v3068, %v3080
    %v3086 = vadd.f32 %v3069, %v3082
    %v3087 = vadd.f32 %v2651, %v3085
    %v3088 = vadd.f32 %v2652, %v3086
    %s3089 = sld [smem:[#allocation2 + $0x1b]]
    %v3090 = vstv %s3089
    %v3091 = vmul.f32 %v76, %v3090
    %v3092 = vmul.f32 %v77, %v3090
    %s3093 = sld [smem:[#allocation2 + $0x37]]
    %v3094 = vstv %s3093
    %v3095 = vmul.f32 %v76, %v3094
    %v3096 = vmul.f32 %v77, %v3094
    %v3097 = vmul.f32 %v78, %v3094
    %v3101 = vrot.slane %v3095, 1
    %v3102 = vrot.slane %v3096, 1
    %v3103 = vsel %vm91, %v3101, %v3102
    %v3104 = vrot.slane %v3097, 1
    %v3105 = vsel %vm91, %v3102, %v3104
    %v3108 = vadd.f32 %v3091, %v3103
    %v3109 = vadd.f32 %v3092, %v3105
    %s3110 = sld [smem:[#allocation2 + $0x53]]
    %v3111 = vstv %s3110
    %v3112 = vmul.f32 %v76, %v3111
    %v3113 = vmul.f32 %v77, %v3111
    %v3114 = vmul.f32 %v78, %v3111
    %v3118 = vrot.slane %v3112, 2
    %v3119 = vrot.slane %v3113, 2
    %v3120 = vsel %vm109, %v3118, %v3119
    %v3121 = vrot.slane %v3114, 2
    %v3122 = vsel %vm109, %v3119, %v3121
    %v3125 = vadd.f32 %v3108, %v3120
    %v3126 = vadd.f32 %v3109, %v3122
    %s3127 = sld [smem:[#allocation2 + $0x6f]]
    %v3128 = vstv %s3127
    %v3129 = vmul.f32 %v76, %v3128
    %v3130 = vmul.f32 %v77, %v3128
    %v3131 = vmul.f32 %v78, %v3128
    %v3135 = vrot.slane %v3129, 3
    %v3136 = vrot.slane %v3130, 3
    %v3137 = vsel %vm127, %v3135, %v3136
    %v3138 = vrot.slane %v3131, 3
    %v3139 = vsel %vm127, %v3136, %v3138
    %v3142 = vadd.f32 %v3125, %v3137
    %v3143 = vadd.f32 %v3126, %v3139
    %s3144 = sld [smem:[#allocation2 + $0x8b]]
    %v3145 = vstv %s3144
    %v3146 = vmul.f32 %v76, %v3145
    %v3147 = vmul.f32 %v77, %v3145
    %v3148 = vmul.f32 %v78, %v3145
    %v3152 = vrot.slane %v3146, 4
    %v3153 = vrot.slane %v3147, 4
    %v3154 = vsel %vm145, %v3152, %v3153
    %v3155 = vrot.slane %v3148, 4
    %v3156 = vsel %vm145, %v3153, %v3155
    %v3159 = vadd.f32 %v3142, %v3154
    %v3160 = vadd.f32 %v3143, %v3156
    %s3161 = sld [smem:[#allocation2 + $0xa7]]
    %v3162 = vstv %s3161
    %v3163 = vmul.f32 %v76, %v3162
    %v3164 = vmul.f32 %v77, %v3162
    %v3165 = vmul.f32 %v78, %v3162
    %v3169 = vrot.slane %v3163, 5
    %v3170 = vrot.slane %v3164, 5
    %v3171 = vsel %vm163, %v3169, %v3170
    %v3172 = vrot.slane %v3165, 5
    %v3173 = vsel %vm163, %v3170, %v3172
    %v3176 = vadd.f32 %v3159, %v3171
    %v3177 = vadd.f32 %v3160, %v3173
    %s3178 = sld [smem:[#allocation2 + $0xc3]]
    %v3179 = vstv %s3178
    %v3180 = vmul.f32 %v76, %v3179
    %v3181 = vmul.f32 %v77, %v3179
    %v3182 = vmul.f32 %v78, %v3179
    %v3186 = vrot.slane %v3180, 6
    %v3187 = vrot.slane %v3181, 6
    %v3188 = vsel %vm181, %v3186, %v3187
    %v3189 = vrot.slane %v3182, 6
    %v3190 = vsel %vm181, %v3187, %v3189
    %v3193 = vadd.f32 %v3176, %v3188
    %v3194 = vadd.f32 %v3177, %v3190
    %v3195 = vadd.f32 %v2763, %v3193
    %v3196 = vadd.f32 %v2764, %v3194
    %s3197 = sld [smem:[#allocation7]]
    %v3198 = vstv %s3197
    %v3199 = vmul.f32 %v2871, %v3198
    %v3200 = vmul.f32 %v2872, %v3198
    %s3201 = sld [smem:[#allocation7 + $0x8]]
    %v3202 = vstv %s3201
    %v3203 = vmul.f32 %v2979, %v3202
    %v3204 = vmul.f32 %v2980, %v3202
    %v3205 = vadd.f32 %v3199, %v3203
    %v3206 = vadd.f32 %v3200, %v3204
    %s3207 = sld [smem:[#allocation7 + $0x10]]
    %v3208 = vstv %s3207
    %v3209 = vmul.f32 %v3087, %v3208
    %v3210 = vmul.f32 %v3088, %v3208
    %v3211 = vadd.f32 %v3205, %v3209
    %v3212 = vadd.f32 %v3206, %v3210
    %s3213 = sld [smem:[#allocation7 + $0x18]]
    %v3214 = vstv %s3213
    %v3215 = vmul.f32 %v3195, %v3214
    %v3216 = vmul.f32 %v3196, %v3214
    %v3217 = vadd.f32 %v3211, %v3215
    %v3218 = vadd.f32 %v3212, %v3216
    %s3219 = sld [smem:[#allocation8]]
    %v3220 = vstv %s3219
    %v3221 = vadd.f32 %v3217, %v3220
    %v3222 = vadd.f32 %v3218, %v3220
    %3223 = vst [vmem:[#allocation11] sm:$0xff] %v3221
    %3224 = vst [vmem:[#allocation11 + $0x8] sm:$0xff] %v3222
    %s3225 = sld [smem:[#allocation7 + $0x1]]
    %v3226 = vstv %s3225
    %v3227 = vmul.f32 %v2871, %v3226
    %v3228 = vmul.f32 %v2872, %v3226
    %s3229 = sld [smem:[#allocation7 + $0x9]]
    %v3230 = vstv %s3229
    %v3231 = vmul.f32 %v2979, %v3230
    %v3232 = vmul.f32 %v2980, %v3230
    %v3233 = vadd.f32 %v3227, %v3231
    %v3234 = vadd.f32 %v3228, %v3232
    %s3235 = sld [smem:[#allocation7 + $0x11]]
    %v3236 = vstv %s3235
    %v3237 = vmul.f32 %v3087, %v3236
    %v3238 = vmul.f32 %v3088, %v3236
    %v3239 = vadd.f32 %v3233, %v3237
    %v3240 = vadd.f32 %v3234, %v3238
    %s3241 = sld [smem:[#allocation7 + $0x19]]
    %v3242 = vstv %s3241
    %v3243 = vmul.f32 %v3195, %v3242
    %v3244 = vmul.f32 %v3196, %v3242
    %v3245 = vadd.f32 %v3239, %v3243
    %v3246 = vadd.f32 %v3240, %v3244
    %s3247 = sld [smem:[#allocation8 + $0x1]]
    %v3248 = vstv %s3247
    %v3249 = vadd.f32 %v3245, %v3248
    %v3250 = vadd.f32 %v3246, %v3248
    %s3251 = scalar_lea.vmem [#allocation11], 16
    %3252 = vst [vmem:[%s3251] sm:$0xff] %v3249
    %3253 = vst [vmem:[%s3251 + $0x8] sm:$0xff] %v3250
    %s3254 = sld [smem:[#allocation7 + $0x2]]
    %v3255 = vstv %s3254
    %v3256 = vmul.f32 %v2871, %v3255
    %v3257 = vmul.f32 %v2872, %v3255
    %s3258 = sld [smem:[#allocation7 + $0xa]]
    %v3259 = vstv %s3258
    %v3260 = vmul.f32 %v2979, %v3259
    %v3261 = vmul.f32 %v2980, %v3259
    %v3262 = vadd.f32 %v3256, %v3260
    %v3263 = vadd.f32 %v3257, %v3261
    %s3264 = sld [smem:[#allocation7 + $0x12]]
    %v3265 = vstv %s3264
    %v3266 = vmul.f32 %v3087, %v3265
    %v3267 = vmul.f32 %v3088, %v3265
    %v3268 = vadd.f32 %v3262, %v3266
    %v3269 = vadd.f32 %v3263, %v3267
    %s3270 = sld [smem:[#allocation7 + $0x1a]]
    %v3271 = vstv %s3270
    %v3272 = vmul.f32 %v3195, %v3271
    %v3273 = vmul.f32 %v3196, %v3271
    %v3274 = vadd.f32 %v3268, %v3272
    %v3275 = vadd.f32 %v3269, %v3273
    %s3276 = sld [smem:[#allocation8 + $0x2]]
    %v3277 = vstv %s3276
    %v3278 = vadd.f32 %v3274, %v3277
    %v3279 = vadd.f32 %v3275, %v3277
    %s3280 = scalar_lea.vmem [#allocation11], 32
    %3281 = vst [vmem:[%s3280] sm:$0xff] %v3278
    %3282 = vst [vmem:[%s3280 + $0x8] sm:$0xff] %v3279
    %s3283 = sld [smem:[#allocation7 + $0x3]]
    %v3284 = vstv %s3283
    %v3285 = vmul.f32 %v2871, %v3284
    %v3286 = vmul.f32 %v2872, %v3284
    %s3287 = sld [smem:[#allocation7 + $0xb]]
    %v3288 = vstv %s3287
    %v3289 = vmul.f32 %v2979, %v3288
    %v3290 = vmul.f32 %v2980, %v3288
    %v3291 = vadd.f32 %v3285, %v3289
    %v3292 = vadd.f32 %v3286, %v3290
    %s3293 = sld [smem:[#allocation7 + $0x13]]
    %v3294 = vstv %s3293
    %v3295 = vmul.f32 %v3087, %v3294
    %v3296 = vmul.f32 %v3088, %v3294
    %v3297 = vadd.f32 %v3291, %v3295
    %v3298 = vadd.f32 %v3292, %v3296
    %s3299 = sld [smem:[#allocation7 + $0x1b]]
    %v3300 = vstv %s3299
    %v3301 = vmul.f32 %v3195, %v3300
    %v3302 = vmul.f32 %v3196, %v3300
    %v3303 = vadd.f32 %v3297, %v3301
    %v3304 = vadd.f32 %v3298, %v3302
    %s3305 = sld [smem:[#allocation8 + $0x3]]
    %v3306 = vstv %s3305
    %v3307 = vadd.f32 %v3303, %v3306
    %v3308 = vadd.f32 %v3304, %v3306
    %s3309 = scalar_lea.vmem [#allocation11], 48
    %3310 = vst [vmem:[%s3309] sm:$0xff] %v3307
    %3311 = vst [vmem:[%s3309 + $0x8] sm:$0xff] %v3308
    %s3312 = sld [smem:[#allocation7 + $0x4]]
    %v3313 = vstv %s3312
    %v3314 = vmul.f32 %v2871, %v3313
    %v3315 = vmul.f32 %v2872, %v3313
    %s3316 = sld [smem:[#allocation7 + $0xc]]
    %v3317 = vstv %s3316
    %v3318 = vmul.f32 %v2979, %v3317
    %v3319 = vmul.f32 %v2980, %v3317
    %v3320 = vadd.f32 %v3314, %v3318
    %v3321 = vadd.f32 %v3315, %v3319
    %s3322 = sld [smem:[#allocation7 + $0x14]]
    %v3323 = vstv %s3322
    %v3324 = vmul.f32 %v3087, %v3323
    %v3325 = vmul.f32 %v3088, %v3323
    %v3326 = vadd.f32 %v3320, %v3324
    %v3327 = vadd.f32 %v3321, %v3325
    %s3328 = sld [smem:[#allocation7 + $0x1c]]
    %v3329 = vstv %s3328
    %v3330 = vmul.f32 %v3195, %v3329
    %v3331 = vmul.f32 %v3196, %v3329
    %v3332 = vadd.f32 %v3326, %v3330
    %v3333 = vadd.f32 %v3327, %v3331
    %s3334 = sld [smem:[#allocation8 + $0x4]]
    %v3335 = vstv %s3334
    %v3336 = vadd.f32 %v3332, %v3335
    %v3337 = vadd.f32 %v3333, %v3335
    %s3338 = scalar_lea.vmem [#allocation11], 64
    %3339 = vst [vmem:[%s3338] sm:$0xff] %v3336
    %3340 = vst [vmem:[%s3338 + $0x8] sm:$0xff] %v3337
    %s3341 = sld [smem:[#allocation7 + $0x5]]
    %v3342 = vstv %s3341
    %v3343 = vmul.f32 %v2871, %v3342
    %v3344 = vmul.f32 %v2872, %v3342
    %s3345 = sld [smem:[#allocation7 + $0xd]]
    %v3346 = vstv %s3345
    %v3347 = vmul.f32 %v2979, %v3346
    %v3348 = vmul.f32 %v2980, %v3346
    %v3349 = vadd.f32 %v3343, %v3347
    %v3350 = vadd.f32 %v3344, %v3348
    %s3351 = sld [smem:[#allocation7 + $0x15]]
    %v3352 = vstv %s3351
    %v3353 = vmul.f32 %v3087, %v3352
    %v3354 = vmul.f32 %v3088, %v3352
    %v3355 = vadd.f32 %v3349, %v3353
    %v3356 = vadd.f32 %v3350, %v3354
    %s3357 = sld [smem:[#allocation7 + $0x1d]]
    %v3358 = vstv %s3357
    %v3359 = vmul.f32 %v3195, %v3358
    %v3360 = vmul.f32 %v3196, %v3358
    %v3361 = vadd.f32 %v3355, %v3359
    %v3362 = vadd.f32 %v3356, %v3360
    %s3363 = sld [smem:[#allocation8 + $0x5]]
    %v3364 = vstv %s3363
    %v3365 = vadd.f32 %v3361, %v3364
    %v3366 = vadd.f32 %v3362, %v3364
    %s3367 = scalar_lea.vmem [#allocation11], 80
    %3368 = vst [vmem:[%s3367] sm:$0xff] %v3365
    %3369 = vst [vmem:[%s3367 + $0x8] sm:$0xff] %v3366
    %s3370 = sld [smem:[#allocation7 + $0x6]]
    %v3371 = vstv %s3370
    %v3372 = vmul.f32 %v2871, %v3371
    %v3373 = vmul.f32 %v2872, %v3371
    %s3374 = sld [smem:[#allocation7 + $0xe]]
    %v3375 = vstv %s3374
    %v3376 = vmul.f32 %v2979, %v3375
    %v3377 = vmul.f32 %v2980, %v3375
    %v3378 = vadd.f32 %v3372, %v3376
    %v3379 = vadd.f32 %v3373, %v3377
    %s3380 = sld [smem:[#allocation7 + $0x16]]
    %v3381 = vstv %s3380
    %v3382 = vmul.f32 %v3087, %v3381
    %v3383 = vmul.f32 %v3088, %v3381
    %v3384 = vadd.f32 %v3378, %v3382
    %v3385 = vadd.f32 %v3379, %v3383
    %s3386 = sld [smem:[#allocation7 + $0x1e]]
    %v3387 = vstv %s3386
    %v3388 = vmul.f32 %v3195, %v3387
    %v3389 = vmul.f32 %v3196, %v3387
    %v3390 = vadd.f32 %v3384, %v3388
    %v3391 = vadd.f32 %v3385, %v3389
    %s3392 = sld [smem:[#allocation8 + $0x6]]
    %v3393 = vstv %s3392
    %v3394 = vadd.f32 %v3390, %v3393
    %v3395 = vadd.f32 %v3391, %v3393
    %s3396 = scalar_lea.vmem [#allocation11], 96
    %3397 = vst [vmem:[%s3396] sm:$0xff] %v3394
    %3398 = vst [vmem:[%s3396 + $0x8] sm:$0xff] %v3395
    %s3399 = sld [smem:[#allocation7 + $0x7]]
    %v3400 = vstv %s3399
    %v3401 = vmul.f32 %v2871, %v3400
    %v3402 = vmul.f32 %v2872, %v3400
    %s3403 = sld [smem:[#allocation7 + $0xf]]
    %v3404 = vstv %s3403
    %v3405 = vmul.f32 %v2979, %v3404
    %v3406 = vmul.f32 %v2980, %v3404
    %v3407 = vadd.f32 %v3401, %v3405
    %v3408 = vadd.f32 %v3402, %v3406
    %s3409 = sld [smem:[#allocation7 + $0x17]]
    %v3410 = vstv %s3409
    %v3411 = vmul.f32 %v3087, %v3410
    %v3412 = vmul.f32 %v3088, %v3410
    %v3413 = vadd.f32 %v3407, %v3411
    %v3414 = vadd.f32 %v3408, %v3412
    %s3415 = sld [smem:[#allocation7 + $0x1f]]
    %v3416 = vstv %s3415
    %v3417 = vmul.f32 %v3195, %v3416
    %v3418 = vmul.f32 %v3196, %v3416
    %v3419 = vadd.f32 %v3413, %v3417
    %v3420 = vadd.f32 %v3414, %v3418
    %s3421 = sld [smem:[#allocation8 + $0x7]]
    %v3422 = vstv %s3421
    %v3423 = vadd.f32 %v3419, %v3422
    %v3424 = vadd.f32 %v3420, %v3422
    %s3425 = scalar_lea.vmem [#allocation11], 112
    %3426 = vst [vmem:[%s3425] sm:$0xff] %v3423
    %3427 = vst [vmem:[%s3425 + $0x8] sm:$0xff] %v3424
    %s3428 = scalar_lea.vmem [#allocation10], 96
    %v3429 = vld [vmem:[%s3428] sm:$0xff]
    %v3430 = vld [vmem:[%s3428 + $0x8] sm:$0xff]
    %v3431 = vld [vmem:[%s3428 + $0x10] sm:$0xff]
    %v3432 = vld [vmem:[%s3428 + $0x18] sm:$0xff]
    %v3433 = vld [vmem:[%s3428 + $0x20] sm:$0xff]
    %v3434 = vld [vmem:[%s3428 + $0x28] sm:$0xff]
    %v3435 = vld [vmem:[%s3428 + $0x30] sm:$0xff]
    %v3436 = vld [vmem:[%s3428 + $0x38] sm:$0xff]
    %v3437 = vld [vmem:[%s3428 + $0x40] sm:$0xff]
    %v3438 = vld [vmem:[%s3428 + $0x48] sm:$0xff]
    %v3439 = vld [vmem:[%s3428 + $0x50] sm:$0xff]
    %v3440 = vld [vmem:[%s3428 + $0x58] sm:$0xff]
    %s3441 = sld [smem:[#allocation2]]
    %v3442 = vstv %s3441
    %v3443 = vmul.f32 %v3429, %v3442
    %v3444 = vmul.f32 %v3430, %v3442
    %s3445 = sld [smem:[#allocation2 + $0x1c]]
    %v3446 = vstv %s3445
    %v3447 = vmul.f32 %v3429, %v3446
    %v3448 = vmul.f32 %v3430, %v3446
    %v3449 = vmul.f32 %v3431, %v3446
    %v3453 = vrot.slane %v3447, 1
    %v3454 = vrot.slane %v3448, 1
    %v3455 = vsel %vm91, %v3453, %v3454
    %v3456 = vrot.slane %v3449, 1
    %v3457 = vsel %vm91, %v3454, %v3456
    %v3460 = vadd.f32 %v3443, %v3455
    %v3461 = vadd.f32 %v3444, %v3457
    %s3462 = sld [smem:[#allocation2 + $0x38]]
    %v3463 = vstv %s3462
    %v3464 = vmul.f32 %v3429, %v3463
    %v3465 = vmul.f32 %v3430, %v3463
    %v3466 = vmul.f32 %v3431, %v3463
    %v3470 = vrot.slane %v3464, 2
    %v3471 = vrot.slane %v3465, 2
    %v3472 = vsel %vm109, %v3470, %v3471
    %v3473 = vrot.slane %v3466, 2
    %v3474 = vsel %vm109, %v3471, %v3473
    %v3477 = vadd.f32 %v3460, %v3472
    %v3478 = vadd.f32 %v3461, %v3474
    %s3479 = sld [smem:[#allocation2 + $0x54]]
    %v3480 = vstv %s3479
    %v3481 = vmul.f32 %v3429, %v3480
    %v3482 = vmul.f32 %v3430, %v3480
    %v3483 = vmul.f32 %v3431, %v3480
    %v3487 = vrot.slane %v3481, 3
    %v3488 = vrot.slane %v3482, 3
    %v3489 = vsel %vm127, %v3487, %v3488
    %v3490 = vrot.slane %v3483, 3
    %v3491 = vsel %vm127, %v3488, %v3490
    %v3494 = vadd.f32 %v3477, %v3489
    %v3495 = vadd.f32 %v3478, %v3491
    %s3496 = sld [smem:[#allocation2 + $0x70]]
    %v3497 = vstv %s3496
    %v3498 = vmul.f32 %v3429, %v3497
    %v3499 = vmul.f32 %v3430, %v3497
    %v3500 = vmul.f32 %v3431, %v3497
    %v3504 = vrot.slane %v3498, 4
    %v3505 = vrot.slane %v3499, 4
    %v3506 = vsel %vm145, %v3504, %v3505
    %v3507 = vrot.slane %v3500, 4
    %v3508 = vsel %vm145, %v3505, %v3507
    %v3511 = vadd.f32 %v3494, %v3506
    %v3512 = vadd.f32 %v3495, %v3508
    %s3513 = sld [smem:[#allocation2 + $0x8c]]
    %v3514 = vstv %s3513
    %v3515 = vmul.f32 %v3429, %v3514
    %v3516 = vmul.f32 %v3430, %v3514
    %v3517 = vmul.f32 %v3431, %v3514
    %v3521 = vrot.slane %v3515, 5
    %v3522 = vrot.slane %v3516, 5
    %v3523 = vsel %vm163, %v3521, %v3522
    %v3524 = vrot.slane %v3517, 5
    %v3525 = vsel %vm163, %v3522, %v3524
    %v3528 = vadd.f32 %v3511, %v3523
    %v3529 = vadd.f32 %v3512, %v3525
    %s3530 = sld [smem:[#allocation2 + $0xa8]]
    %v3531 = vstv %s3530
    %v3532 = vmul.f32 %v3429, %v3531
    %v3533 = vmul.f32 %v3430, %v3531
    %v3534 = vmul.f32 %v3431, %v3531
    %v3538 = vrot.slane %v3532, 6
    %v3539 = vrot.slane %v3533, 6
    %v3540 = vsel %vm181, %v3538, %v3539
    %v3541 = vrot.slane %v3534, 6
    %v3542 = vsel %vm181, %v3539, %v3541
    %v3545 = vadd.f32 %v3528, %v3540
    %v3546 = vadd.f32 %v3529, %v3542
    %3547 = vrot.lane.b32.xlu0 %v3545, 6
    %v3548 = vpop.permute.xlu0 %3547
    %3549 = vrot.lane.b32.xlu0 %v3546, 6
    %v3550 = vpop.permute.xlu0 %3549
    %s3551 = sld [smem:[#allocation2 + $0x1]]
    %v3552 = vstv %s3551
    %v3553 = vmul.f32 %v3432, %v3552
    %v3554 = vmul.f32 %v3433, %v3552
    %s3555 = sld [smem:[#allocation2 + $0x1d]]
    %v3556 = vstv %s3555
    %v3557 = vmul.f32 %v3432, %v3556
    %v3558 = vmul.f32 %v3433, %v3556
    %v3559 = vmul.f32 %v3434, %v3556
    %v3563 = vrot.slane %v3557, 1
    %v3564 = vrot.slane %v3558, 1
    %v3565 = vsel %vm91, %v3563, %v3564
    %v3566 = vrot.slane %v3559, 1
    %v3567 = vsel %vm91, %v3564, %v3566
    %v3570 = vadd.f32 %v3553, %v3565
    %v3571 = vadd.f32 %v3554, %v3567
    %s3572 = sld [smem:[#allocation2 + $0x39]]
    %v3573 = vstv %s3572
    %v3574 = vmul.f32 %v3432, %v3573
    %v3575 = vmul.f32 %v3433, %v3573
    %v3576 = vmul.f32 %v3434, %v3573
    %v3580 = vrot.slane %v3574, 2
    %v3581 = vrot.slane %v3575, 2
    %v3582 = vsel %vm109, %v3580, %v3581
    %v3583 = vrot.slane %v3576, 2
    %v3584 = vsel %vm109, %v3581, %v3583
    %v3587 = vadd.f32 %v3570, %v3582
    %v3588 = vadd.f32 %v3571, %v3584
    %s3589 = sld [smem:[#allocation2 + $0x55]]
    %v3590 = vstv %s3589
    %v3591 = vmul.f32 %v3432, %v3590
    %v3592 = vmul.f32 %v3433, %v3590
    %v3593 = vmul.f32 %v3434, %v3590
    %v3597 = vrot.slane %v3591, 3
    %v3598 = vrot.slane %v3592, 3
    %v3599 = vsel %vm127, %v3597, %v3598
    %v3600 = vrot.slane %v3593, 3
    %v3601 = vsel %vm127, %v3598, %v3600
    %v3604 = vadd.f32 %v3587, %v3599
    %v3605 = vadd.f32 %v3588, %v3601
    %s3606 = sld [smem:[#allocation2 + $0x71]]
    %v3607 = vstv %s3606
    %v3608 = vmul.f32 %v3432, %v3607
    %v3609 = vmul.f32 %v3433, %v3607
    %v3610 = vmul.f32 %v3434, %v3607
    %v3614 = vrot.slane %v3608, 4
    %v3615 = vrot.slane %v3609, 4
    %v3616 = vsel %vm145, %v3614, %v3615
    %v3617 = vrot.slane %v3610, 4
    %v3618 = vsel %vm145, %v3615, %v3617
    %v3621 = vadd.f32 %v3604, %v3616
    %v3622 = vadd.f32 %v3605, %v3618
    %s3623 = sld [smem:[#allocation2 + $0x8d]]
    %v3624 = vstv %s3623
    %v3625 = vmul.f32 %v3432, %v3624
    %v3626 = vmul.f32 %v3433, %v3624
    %v3627 = vmul.f32 %v3434, %v3624
    %v3631 = vrot.slane %v3625, 5
    %v3632 = vrot.slane %v3626, 5
    %v3633 = vsel %vm163, %v3631, %v3632
    %v3634 = vrot.slane %v3627, 5
    %v3635 = vsel %vm163, %v3632, %v3634
    %v3638 = vadd.f32 %v3621, %v3633
    %v3639 = vadd.f32 %v3622, %v3635
    %s3640 = sld [smem:[#allocation2 + $0xa9]]
    %v3641 = vstv %s3640
    %v3642 = vmul.f32 %v3432, %v3641
    %v3643 = vmul.f32 %v3433, %v3641
    %v3644 = vmul.f32 %v3434, %v3641
    %v3648 = vrot.slane %v3642, 6
    %v3649 = vrot.slane %v3643, 6
    %v3650 = vsel %vm181, %v3648, %v3649
    %v3651 = vrot.slane %v3644, 6
    %v3652 = vsel %vm181, %v3649, %v3651
    %v3655 = vadd.f32 %v3638, %v3650
    %v3656 = vadd.f32 %v3639, %v3652
    %3657 = vrot.lane.b32.xlu0 %v3655, 6
    %v3658 = vpop.permute.xlu0 %3657
    %3659 = vrot.lane.b32.xlu0 %v3656, 6
    %v3660 = vpop.permute.xlu0 %3659
    %s3661 = sld [smem:[#allocation2 + $0x2]]
    %v3662 = vstv %s3661
    %v3663 = vmul.f32 %v3435, %v3662
    %v3664 = vmul.f32 %v3436, %v3662
    %s3665 = sld [smem:[#allocation2 + $0x1e]]
    %v3666 = vstv %s3665
    %v3667 = vmul.f32 %v3435, %v3666
    %v3668 = vmul.f32 %v3436, %v3666
    %v3669 = vmul.f32 %v3437, %v3666
    %v3673 = vrot.slane %v3667, 1
    %v3674 = vrot.slane %v3668, 1
    %v3675 = vsel %vm91, %v3673, %v3674
    %v3676 = vrot.slane %v3669, 1
    %v3677 = vsel %vm91, %v3674, %v3676
    %v3680 = vadd.f32 %v3663, %v3675
    %v3681 = vadd.f32 %v3664, %v3677
    %s3682 = sld [smem:[#allocation2 + $0x3a]]
    %v3683 = vstv %s3682
    %v3684 = vmul.f32 %v3435, %v3683
    %v3685 = vmul.f32 %v3436, %v3683
    %v3686 = vmul.f32 %v3437, %v3683
    %v3690 = vrot.slane %v3684, 2
    %v3691 = vrot.slane %v3685, 2
    %v3692 = vsel %vm109, %v3690, %v3691
    %v3693 = vrot.slane %v3686, 2
    %v3694 = vsel %vm109, %v3691, %v3693
    %v3697 = vadd.f32 %v3680, %v3692
    %v3698 = vadd.f32 %v3681, %v3694
    %s3699 = sld [smem:[#allocation2 + $0x56]]
    %v3700 = vstv %s3699
    %v3701 = vmul.f32 %v3435, %v3700
    %v3702 = vmul.f32 %v3436, %v3700
    %v3703 = vmul.f32 %v3437, %v3700
    %v3707 = vrot.slane %v3701, 3
    %v3708 = vrot.slane %v3702, 3
    %v3709 = vsel %vm127, %v3707, %v3708
    %v3710 = vrot.slane %v3703, 3
    %v3711 = vsel %vm127, %v3708, %v3710
    %v3714 = vadd.f32 %v3697, %v3709
    %v3715 = vadd.f32 %v3698, %v3711
    %s3716 = sld [smem:[#allocation2 + $0x72]]
    %v3717 = vstv %s3716
    %v3718 = vmul.f32 %v3435, %v3717
    %v3719 = vmul.f32 %v3436, %v3717
    %v3720 = vmul.f32 %v3437, %v3717
    %v3724 = vrot.slane %v3718, 4
    %v3725 = vrot.slane %v3719, 4
    %v3726 = vsel %vm145, %v3724, %v3725
    %v3727 = vrot.slane %v3720, 4
    %v3728 = vsel %vm145, %v3725, %v3727
    %v3731 = vadd.f32 %v3714, %v3726
    %v3732 = vadd.f32 %v3715, %v3728
    %s3733 = sld [smem:[#allocation2 + $0x8e]]
    %v3734 = vstv %s3733
    %v3735 = vmul.f32 %v3435, %v3734
    %v3736 = vmul.f32 %v3436, %v3734
    %v3737 = vmul.f32 %v3437, %v3734
    %v3741 = vrot.slane %v3735, 5
    %v3742 = vrot.slane %v3736, 5
    %v3743 = vsel %vm163, %v3741, %v3742
    %v3744 = vrot.slane %v3737, 5
    %v3745 = vsel %vm163, %v3742, %v3744
    %v3748 = vadd.f32 %v3731, %v3743
    %v3749 = vadd.f32 %v3732, %v3745
    %s3750 = sld [smem:[#allocation2 + $0xaa]]
    %v3751 = vstv %s3750
    %v3752 = vmul.f32 %v3435, %v3751
    %v3753 = vmul.f32 %v3436, %v3751
    %v3754 = vmul.f32 %v3437, %v3751
    %v3758 = vrot.slane %v3752, 6
    %v3759 = vrot.slane %v3753, 6
    %v3760 = vsel %vm181, %v3758, %v3759
    %v3761 = vrot.slane %v3754, 6
    %v3762 = vsel %vm181, %v3759, %v3761
    %v3765 = vadd.f32 %v3748, %v3760
    %v3766 = vadd.f32 %v3749, %v3762
    %3767 = vrot.lane.b32.xlu0 %v3765, 6
    %v3768 = vpop.permute.xlu0 %3767
    %3769 = vrot.lane.b32.xlu0 %v3766, 6
    %v3770 = vpop.permute.xlu0 %3769
    %s3771 = sld [smem:[#allocation2 + $0x3]]
    %v3772 = vstv %s3771
    %v3773 = vmul.f32 %v3438, %v3772
    %v3774 = vmul.f32 %v3439, %v3772
    %s3775 = sld [smem:[#allocation2 + $0x1f]]
    %v3776 = vstv %s3775
    %v3777 = vmul.f32 %v3438, %v3776
    %v3778 = vmul.f32 %v3439, %v3776
    %v3779 = vmul.f32 %v3440, %v3776
    %v3783 = vrot.slane %v3777, 1
    %v3784 = vrot.slane %v3778, 1
    %v3785 = vsel %vm91, %v3783, %v3784
    %v3786 = vrot.slane %v3779, 1
    %v3787 = vsel %vm91, %v3784, %v3786
    %v3790 = vadd.f32 %v3773, %v3785
    %v3791 = vadd.f32 %v3774, %v3787
    %s3792 = sld [smem:[#allocation2 + $0x3b]]
    %v3793 = vstv %s3792
    %v3794 = vmul.f32 %v3438, %v3793
    %v3795 = vmul.f32 %v3439, %v3793
    %v3796 = vmul.f32 %v3440, %v3793
    %v3800 = vrot.slane %v3794, 2
    %v3801 = vrot.slane %v3795, 2
    %v3802 = vsel %vm109, %v3800, %v3801
    %v3803 = vrot.slane %v3796, 2
    %v3804 = vsel %vm109, %v3801, %v3803
    %v3807 = vadd.f32 %v3790, %v3802
    %v3808 = vadd.f32 %v3791, %v3804
    %s3809 = sld [smem:[#allocation2 + $0x57]]
    %v3810 = vstv %s3809
    %v3811 = vmul.f32 %v3438, %v3810
    %v3812 = vmul.f32 %v3439, %v3810
    %v3813 = vmul.f32 %v3440, %v3810
    %v3817 = vrot.slane %v3811, 3
    %v3818 = vrot.slane %v3812, 3
    %v3819 = vsel %vm127, %v3817, %v3818
    %v3820 = vrot.slane %v3813, 3
    %v3821 = vsel %vm127, %v3818, %v3820
    %v3824 = vadd.f32 %v3807, %v3819
    %v3825 = vadd.f32 %v3808, %v3821
    %s3826 = sld [smem:[#allocation2 + $0x73]]
    %v3827 = vstv %s3826
    %v3828 = vmul.f32 %v3438, %v3827
    %v3829 = vmul.f32 %v3439, %v3827
    %v3830 = vmul.f32 %v3440, %v3827
    %v3834 = vrot.slane %v3828, 4
    %v3835 = vrot.slane %v3829, 4
    %v3836 = vsel %vm145, %v3834, %v3835
    %v3837 = vrot.slane %v3830, 4
    %v3838 = vsel %vm145, %v3835, %v3837
    %v3841 = vadd.f32 %v3824, %v3836
    %v3842 = vadd.f32 %v3825, %v3838
    %s3843 = sld [smem:[#allocation2 + $0x8f]]
    %v3844 = vstv %s3843
    %v3845 = vmul.f32 %v3438, %v3844
    %v3846 = vmul.f32 %v3439, %v3844
    %v3847 = vmul.f32 %v3440, %v3844
    %v3851 = vrot.slane %v3845, 5
    %v3852 = vrot.slane %v3846, 5
    %v3853 = vsel %vm163, %v3851, %v3852
    %v3854 = vrot.slane %v3847, 5
    %v3855 = vsel %vm163, %v3852, %v3854
    %v3858 = vadd.f32 %v3841, %v3853
    %v3859 = vadd.f32 %v3842, %v3855
    %s3860 = sld [smem:[#allocation2 + $0xab]]
    %v3861 = vstv %s3860
    %v3862 = vmul.f32 %v3438, %v3861
    %v3863 = vmul.f32 %v3439, %v3861
    %v3864 = vmul.f32 %v3440, %v3861
    %v3868 = vrot.slane %v3862, 6
    %v3869 = vrot.slane %v3863, 6
    %v3870 = vsel %vm181, %v3868, %v3869
    %v3871 = vrot.slane %v3864, 6
    %v3872 = vsel %vm181, %v3869, %v3871
    %v3875 = vadd.f32 %v3858, %v3870
    %v3876 = vadd.f32 %v3859, %v3872
    %3877 = vrot.lane.b32.xlu0 %v3875, 6
    %v3878 = vpop.permute.xlu0 %3877
    %3879 = vrot.lane.b32.xlu0 %v3876, 6
    %v3880 = vpop.permute.xlu0 %3879
    %s3881 = sld [smem:[#allocation2 + $0x4]]
    %v3882 = vstv %s3881
    %v3883 = vmul.f32 %v3429, %v3882
    %v3884 = vmul.f32 %v3430, %v3882
    %s3885 = sld [smem:[#allocation2 + $0x20]]
    %v3886 = vstv %s3885
    %v3887 = vmul.f32 %v3429, %v3886
    %v3888 = vmul.f32 %v3430, %v3886
    %v3889 = vmul.f32 %v3431, %v3886
    %v3893 = vrot.slane %v3887, 1
    %v3894 = vrot.slane %v3888, 1
    %v3895 = vsel %vm91, %v3893, %v3894
    %v3896 = vrot.slane %v3889, 1
    %v3897 = vsel %vm91, %v3894, %v3896
    %v3900 = vadd.f32 %v3883, %v3895
    %v3901 = vadd.f32 %v3884, %v3897
    %s3902 = sld [smem:[#allocation2 + $0x3c]]
    %v3903 = vstv %s3902
    %v3904 = vmul.f32 %v3429, %v3903
    %v3905 = vmul.f32 %v3430, %v3903
    %v3906 = vmul.f32 %v3431, %v3903
    %v3910 = vrot.slane %v3904, 2
    %v3911 = vrot.slane %v3905, 2
    %v3912 = vsel %vm109, %v3910, %v3911
    %v3913 = vrot.slane %v3906, 2
    %v3914 = vsel %vm109, %v3911, %v3913
    %v3917 = vadd.f32 %v3900, %v3912
    %v3918 = vadd.f32 %v3901, %v3914
    %s3919 = sld [smem:[#allocation2 + $0x58]]
    %v3920 = vstv %s3919
    %v3921 = vmul.f32 %v3429, %v3920
    %v3922 = vmul.f32 %v3430, %v3920
    %v3923 = vmul.f32 %v3431, %v3920
    %v3927 = vrot.slane %v3921, 3
    %v3928 = vrot.slane %v3922, 3
    %v3929 = vsel %vm127, %v3927, %v3928
    %v3930 = vrot.slane %v3923, 3
    %v3931 = vsel %vm127, %v3928, %v3930
    %v3934 = vadd.f32 %v3917, %v3929
    %v3935 = vadd.f32 %v3918, %v3931
    %s3936 = sld [smem:[#allocation2 + $0x74]]
    %v3937 = vstv %s3936
    %v3938 = vmul.f32 %v3429, %v3937
    %v3939 = vmul.f32 %v3430, %v3937
    %v3940 = vmul.f32 %v3431, %v3937
    %v3944 = vrot.slane %v3938, 4
    %v3945 = vrot.slane %v3939, 4
    %v3946 = vsel %vm145, %v3944, %v3945
    %v3947 = vrot.slane %v3940, 4
    %v3948 = vsel %vm145, %v3945, %v3947
    %v3951 = vadd.f32 %v3934, %v3946
    %v3952 = vadd.f32 %v3935, %v3948
    %s3953 = sld [smem:[#allocation2 + $0x90]]
    %v3954 = vstv %s3953
    %v3955 = vmul.f32 %v3429, %v3954
    %v3956 = vmul.f32 %v3430, %v3954
    %v3957 = vmul.f32 %v3431, %v3954
    %v3961 = vrot.slane %v3955, 5
    %v3962 = vrot.slane %v3956, 5
    %v3963 = vsel %vm163, %v3961, %v3962
    %v3964 = vrot.slane %v3957, 5
    %v3965 = vsel %vm163, %v3962, %v3964
    %v3968 = vadd.f32 %v3951, %v3963
    %v3969 = vadd.f32 %v3952, %v3965
    %s3970 = sld [smem:[#allocation2 + $0xac]]
    %v3971 = vstv %s3970
    %v3972 = vmul.f32 %v3429, %v3971
    %v3973 = vmul.f32 %v3430, %v3971
    %v3974 = vmul.f32 %v3431, %v3971
    %v3978 = vrot.slane %v3972, 6
    %v3979 = vrot.slane %v3973, 6
    %v3980 = vsel %vm181, %v3978, %v3979
    %v3981 = vrot.slane %v3974, 6
    %v3982 = vsel %vm181, %v3979, %v3981
    %v3985 = vadd.f32 %v3968, %v3980
    %v3986 = vadd.f32 %v3969, %v3982
    %3987 = vrot.lane.b32.xlu0 %v3985, 5
    %v3988 = vpop.permute.xlu0 %3987
    %3989 = vrot.lane.b32.xlu0 %v3986, 5
    %v3990 = vpop.permute.xlu0 %3989
    %v3991 = vadd.f32 %v3548, %v3988
    %v3992 = vadd.f32 %v3550, %v3990
    %s3993 = sld [smem:[#allocation2 + $0x5]]
    %v3994 = vstv %s3993
    %v3995 = vmul.f32 %v3432, %v3994
    %v3996 = vmul.f32 %v3433, %v3994
    %s3997 = sld [smem:[#allocation2 + $0x21]]
    %v3998 = vstv %s3997
    %v3999 = vmul.f32 %v3432, %v3998
    %v4000 = vmul.f32 %v3433, %v3998
    %v4001 = vmul.f32 %v3434, %v3998
    %v4005 = vrot.slane %v3999, 1
    %v4006 = vrot.slane %v4000, 1
    %v4007 = vsel %vm91, %v4005, %v4006
    %v4008 = vrot.slane %v4001, 1
    %v4009 = vsel %vm91, %v4006, %v4008
    %v4012 = vadd.f32 %v3995, %v4007
    %v4013 = vadd.f32 %v3996, %v4009
    %s4014 = sld [smem:[#allocation2 + $0x3d]]
    %v4015 = vstv %s4014
    %v4016 = vmul.f32 %v3432, %v4015
    %v4017 = vmul.f32 %v3433, %v4015
    %v4018 = vmul.f32 %v3434, %v4015
    %v4022 = vrot.slane %v4016, 2
    %v4023 = vrot.slane %v4017, 2
    %v4024 = vsel %vm109, %v4022, %v4023
    %v4025 = vrot.slane %v4018, 2
    %v4026 = vsel %vm109, %v4023, %v4025
    %v4029 = vadd.f32 %v4012, %v4024
    %v4030 = vadd.f32 %v4013, %v4026
    %s4031 = sld [smem:[#allocation2 + $0x59]]
    %v4032 = vstv %s4031
    %v4033 = vmul.f32 %v3432, %v4032
    %v4034 = vmul.f32 %v3433, %v4032
    %v4035 = vmul.f32 %v3434, %v4032
    %v4039 = vrot.slane %v4033, 3
    %v4040 = vrot.slane %v4034, 3
    %v4041 = vsel %vm127, %v4039, %v4040
    %v4042 = vrot.slane %v4035, 3
    %v4043 = vsel %vm127, %v4040, %v4042
    %v4046 = vadd.f32 %v4029, %v4041
    %v4047 = vadd.f32 %v4030, %v4043
    %s4048 = sld [smem:[#allocation2 + $0x75]]
    %v4049 = vstv %s4048
    %v4050 = vmul.f32 %v3432, %v4049
    %v4051 = vmul.f32 %v3433, %v4049
    %v4052 = vmul.f32 %v3434, %v4049
    %v4056 = vrot.slane %v4050, 4
    %v4057 = vrot.slane %v4051, 4
    %v4058 = vsel %vm145, %v4056, %v4057
    %v4059 = vrot.slane %v4052, 4
    %v4060 = vsel %vm145, %v4057, %v4059
    %v4063 = vadd.f32 %v4046, %v4058
    %v4064 = vadd.f32 %v4047, %v4060
    %s4065 = sld [smem:[#allocation2 + $0x91]]
    %v4066 = vstv %s4065
    %v4067 = vmul.f32 %v3432, %v4066
    %v4068 = vmul.f32 %v3433, %v4066
    %v4069 = vmul.f32 %v3434, %v4066
    %v4073 = vrot.slane %v4067, 5
    %v4074 = vrot.slane %v4068, 5
    %v4075 = vsel %vm163, %v4073, %v4074
    %v4076 = vrot.slane %v4069, 5
    %v4077 = vsel %vm163, %v4074, %v4076
    %v4080 = vadd.f32 %v4063, %v4075
    %v4081 = vadd.f32 %v4064, %v4077
    %s4082 = sld [smem:[#allocation2 + $0xad]]
    %v4083 = vstv %s4082
    %v4084 = vmul.f32 %v3432, %v4083
    %v4085 = vmul.f32 %v3433, %v4083
    %v4086 = vmul.f32 %v3434, %v4083
    %v4090 = vrot.slane %v4084, 6
    %v4091 = vrot.slane %v4085, 6
    %v4092 = vsel %vm181, %v4090, %v4091
    %v4093 = vrot.slane %v4086, 6
    %v4094 = vsel %vm181, %v4091, %v4093
    %v4097 = vadd.f32 %v4080, %v4092
    %v4098 = vadd.f32 %v4081, %v4094
    %4099 = vrot.lane.b32.xlu0 %v4097, 5
    %v4100 = vpop.permute.xlu0 %4099
    %4101 = vrot.lane.b32.xlu0 %v4098, 5
    %v4102 = vpop.permute.xlu0 %4101
    %v4103 = vadd.f32 %v3658, %v4100
    %v4104 = vadd.f32 %v3660, %v4102
    %s4105 = sld [smem:[#allocation2 + $0x6]]
    %v4106 = vstv %s4105
    %v4107 = vmul.f32 %v3435, %v4106
    %v4108 = vmul.f32 %v3436, %v4106
    %s4109 = sld [smem:[#allocation2 + $0x22]]
    %v4110 = vstv %s4109
    %v4111 = vmul.f32 %v3435, %v4110
    %v4112 = vmul.f32 %v3436, %v4110
    %v4113 = vmul.f32 %v3437, %v4110
    %v4117 = vrot.slane %v4111, 1
    %v4118 = vrot.slane %v4112, 1
    %v4119 = vsel %vm91, %v4117, %v4118
    %v4120 = vrot.slane %v4113, 1
    %v4121 = vsel %vm91, %v4118, %v4120
    %v4124 = vadd.f32 %v4107, %v4119
    %v4125 = vadd.f32 %v4108, %v4121
    %s4126 = sld [smem:[#allocation2 + $0x3e]]
    %v4127 = vstv %s4126
    %v4128 = vmul.f32 %v3435, %v4127
    %v4129 = vmul.f32 %v3436, %v4127
    %v4130 = vmul.f32 %v3437, %v4127
    %v4134 = vrot.slane %v4128, 2
    %v4135 = vrot.slane %v4129, 2
    %v4136 = vsel %vm109, %v4134, %v4135
    %v4137 = vrot.slane %v4130, 2
    %v4138 = vsel %vm109, %v4135, %v4137
    %v4141 = vadd.f32 %v4124, %v4136
    %v4142 = vadd.f32 %v4125, %v4138
    %s4143 = sld [smem:[#allocation2 + $0x5a]]
    %v4144 = vstv %s4143
    %v4145 = vmul.f32 %v3435, %v4144
    %v4146 = vmul.f32 %v3436, %v4144
    %v4147 = vmul.f32 %v3437, %v4144
    %v4151 = vrot.slane %v4145, 3
    %v4152 = vrot.slane %v4146, 3
    %v4153 = vsel %vm127, %v4151, %v4152
    %v4154 = vrot.slane %v4147, 3
    %v4155 = vsel %vm127, %v4152, %v4154
    %v4158 = vadd.f32 %v4141, %v4153
    %v4159 = vadd.f32 %v4142, %v4155
    %s4160 = sld [smem:[#allocation2 + $0x76]]
    %v4161 = vstv %s4160
    %v4162 = vmul.f32 %v3435, %v4161
    %v4163 = vmul.f32 %v3436, %v4161
    %v4164 = vmul.f32 %v3437, %v4161
    %v4168 = vrot.slane %v4162, 4
    %v4169 = vrot.slane %v4163, 4
    %v4170 = vsel %vm145, %v4168, %v4169
    %v4171 = vrot.slane %v4164, 4
    %v4172 = vsel %vm145, %v4169, %v4171
    %v4175 = vadd.f32 %v4158, %v4170
    %v4176 = vadd.f32 %v4159, %v4172
    %s4177 = sld [smem:[#allocation2 + $0x92]]
    %v4178 = vstv %s4177
    %v4179 = vmul.f32 %v3435, %v4178
    %v4180 = vmul.f32 %v3436, %v4178
    %v4181 = vmul.f32 %v3437, %v4178
    %v4185 = vrot.slane %v4179, 5
    %v4186 = vrot.slane %v4180, 5
    %v4187 = vsel %vm163, %v4185, %v4186
    %v4188 = vrot.slane %v4181, 5
    %v4189 = vsel %vm163, %v4186, %v4188
    %v4192 = vadd.f32 %v4175, %v4187
    %v4193 = vadd.f32 %v4176, %v4189
    %s4194 = sld [smem:[#allocation2 + $0xae]]
    %v4195 = vstv %s4194
    %v4196 = vmul.f32 %v3435, %v4195
    %v4197 = vmul.f32 %v3436, %v4195
    %v4198 = vmul.f32 %v3437, %v4195
    %v4202 = vrot.slane %v4196, 6
    %v4203 = vrot.slane %v4197, 6
    %v4204 = vsel %vm181, %v4202, %v4203
    %v4205 = vrot.slane %v4198, 6
    %v4206 = vsel %vm181, %v4203, %v4205
    %v4209 = vadd.f32 %v4192, %v4204
    %v4210 = vadd.f32 %v4193, %v4206
    %4211 = vrot.lane.b32.xlu0 %v4209, 5
    %v4212 = vpop.permute.xlu0 %4211
    %4213 = vrot.lane.b32.xlu0 %v4210, 5
    %v4214 = vpop.permute.xlu0 %4213
    %v4215 = vadd.f32 %v3768, %v4212
    %v4216 = vadd.f32 %v3770, %v4214
    %s4217 = sld [smem:[#allocation2 + $0x7]]
    %v4218 = vstv %s4217
    %v4219 = vmul.f32 %v3438, %v4218
    %v4220 = vmul.f32 %v3439, %v4218
    %s4221 = sld [smem:[#allocation2 + $0x23]]
    %v4222 = vstv %s4221
    %v4223 = vmul.f32 %v3438, %v4222
    %v4224 = vmul.f32 %v3439, %v4222
    %v4225 = vmul.f32 %v3440, %v4222
    %v4229 = vrot.slane %v4223, 1
    %v4230 = vrot.slane %v4224, 1
    %v4231 = vsel %vm91, %v4229, %v4230
    %v4232 = vrot.slane %v4225, 1
    %v4233 = vsel %vm91, %v4230, %v4232
    %v4236 = vadd.f32 %v4219, %v4231
    %v4237 = vadd.f32 %v4220, %v4233
    %s4238 = sld [smem:[#allocation2 + $0x3f]]
    %v4239 = vstv %s4238
    %v4240 = vmul.f32 %v3438, %v4239
    %v4241 = vmul.f32 %v3439, %v4239
    %v4242 = vmul.f32 %v3440, %v4239
    %v4246 = vrot.slane %v4240, 2
    %v4247 = vrot.slane %v4241, 2
    %v4248 = vsel %vm109, %v4246, %v4247
    %v4249 = vrot.slane %v4242, 2
    %v4250 = vsel %vm109, %v4247, %v4249
    %v4253 = vadd.f32 %v4236, %v4248
    %v4254 = vadd.f32 %v4237, %v4250
    %s4255 = sld [smem:[#allocation2 + $0x5b]]
    %v4256 = vstv %s4255
    %v4257 = vmul.f32 %v3438, %v4256
    %v4258 = vmul.f32 %v3439, %v4256
    %v4259 = vmul.f32 %v3440, %v4256
    %v4263 = vrot.slane %v4257, 3
    %v4264 = vrot.slane %v4258, 3
    %v4265 = vsel %vm127, %v4263, %v4264
    %v4266 = vrot.slane %v4259, 3
    %v4267 = vsel %vm127, %v4264, %v4266
    %v4270 = vadd.f32 %v4253, %v4265
    %v4271 = vadd.f32 %v4254, %v4267
    %s4272 = sld [smem:[#allocation2 + $0x77]]
    %v4273 = vstv %s4272
    %v4274 = vmul.f32 %v3438, %v4273
    %v4275 = vmul.f32 %v3439, %v4273
    %v4276 = vmul.f32 %v3440, %v4273
    %v4280 = vrot.slane %v4274, 4
    %v4281 = vrot.slane %v4275, 4
    %v4282 = vsel %vm145, %v4280, %v4281
    %v4283 = vrot.slane %v4276, 4
    %v4284 = vsel %vm145, %v4281, %v4283
    %v4287 = vadd.f32 %v4270, %v4282
    %v4288 = vadd.f32 %v4271, %v4284
    %s4289 = sld [smem:[#allocation2 + $0x93]]
    %v4290 = vstv %s4289
    %v4291 = vmul.f32 %v3438, %v4290
    %v4292 = vmul.f32 %v3439, %v4290
    %v4293 = vmul.f32 %v3440, %v4290
    %v4297 = vrot.slane %v4291, 5
    %v4298 = vrot.slane %v4292, 5
    %v4299 = vsel %vm163, %v4297, %v4298
    %v4300 = vrot.slane %v4293, 5
    %v4301 = vsel %vm163, %v4298, %v4300
    %v4304 = vadd.f32 %v4287, %v4299
    %v4305 = vadd.f32 %v4288, %v4301
    %s4306 = sld [smem:[#allocation2 + $0xaf]]
    %v4307 = vstv %s4306
    %v4308 = vmul.f32 %v3438, %v4307
    %v4309 = vmul.f32 %v3439, %v4307
    %v4310 = vmul.f32 %v3440, %v4307
    %v4314 = vrot.slane %v4308, 6
    %v4315 = vrot.slane %v4309, 6
    %v4316 = vsel %vm181, %v4314, %v4315
    %v4317 = vrot.slane %v4310, 6
    %v4318 = vsel %vm181, %v4315, %v4317
    %v4321 = vadd.f32 %v4304, %v4316
    %v4322 = vadd.f32 %v4305, %v4318
    %4323 = vrot.lane.b32.xlu0 %v4321, 5
    %v4324 = vpop.permute.xlu0 %4323
    %4325 = vrot.lane.b32.xlu0 %v4322, 5
    %v4326 = vpop.permute.xlu0 %4325
    %v4327 = vadd.f32 %v3878, %v4324
    %v4328 = vadd.f32 %v3880, %v4326
    %s4329 = sld [smem:[#allocation2 + $0x8]]
    %v4330 = vstv %s4329
    %v4331 = vmul.f32 %v3429, %v4330
    %v4332 = vmul.f32 %v3430, %v4330
    %s4333 = sld [smem:[#allocation2 + $0x24]]
    %v4334 = vstv %s4333
    %v4335 = vmul.f32 %v3429, %v4334
    %v4336 = vmul.f32 %v3430, %v4334
    %v4337 = vmul.f32 %v3431, %v4334
    %v4341 = vrot.slane %v4335, 1
    %v4342 = vrot.slane %v4336, 1
    %v4343 = vsel %vm91, %v4341, %v4342
    %v4344 = vrot.slane %v4337, 1
    %v4345 = vsel %vm91, %v4342, %v4344
    %v4348 = vadd.f32 %v4331, %v4343
    %v4349 = vadd.f32 %v4332, %v4345
    %s4350 = sld [smem:[#allocation2 + $0x40]]
    %v4351 = vstv %s4350
    %v4352 = vmul.f32 %v3429, %v4351
    %v4353 = vmul.f32 %v3430, %v4351
    %v4354 = vmul.f32 %v3431, %v4351
    %v4358 = vrot.slane %v4352, 2
    %v4359 = vrot.slane %v4353, 2
    %v4360 = vsel %vm109, %v4358, %v4359
    %v4361 = vrot.slane %v4354, 2
    %v4362 = vsel %vm109, %v4359, %v4361
    %v4365 = vadd.f32 %v4348, %v4360
    %v4366 = vadd.f32 %v4349, %v4362
    %s4367 = sld [smem:[#allocation2 + $0x5c]]
    %v4368 = vstv %s4367
    %v4369 = vmul.f32 %v3429, %v4368
    %v4370 = vmul.f32 %v3430, %v4368
    %v4371 = vmul.f32 %v3431, %v4368
    %v4375 = vrot.slane %v4369, 3
    %v4376 = vrot.slane %v4370, 3
    %v4377 = vsel %vm127, %v4375, %v4376
    %v4378 = vrot.slane %v4371, 3
    %v4379 = vsel %vm127, %v4376, %v4378
    %v4382 = vadd.f32 %v4365, %v4377
    %v4383 = vadd.f32 %v4366, %v4379
    %s4384 = sld [smem:[#allocation2 + $0x78]]
    %v4385 = vstv %s4384
    %v4386 = vmul.f32 %v3429, %v4385
    %v4387 = vmul.f32 %v3430, %v4385
    %v4388 = vmul.f32 %v3431, %v4385
    %v4392 = vrot.slane %v4386, 4
    %v4393 = vrot.slane %v4387, 4
    %v4394 = vsel %vm145, %v4392, %v4393
    %v4395 = vrot.slane %v4388, 4
    %v4396 = vsel %vm145, %v4393, %v4395
    %v4399 = vadd.f32 %v4382, %v4394
    %v4400 = vadd.f32 %v4383, %v4396
    %s4401 = sld [smem:[#allocation2 + $0x94]]
    %v4402 = vstv %s4401
    %v4403 = vmul.f32 %v3429, %v4402
    %v4404 = vmul.f32 %v3430, %v4402
    %v4405 = vmul.f32 %v3431, %v4402
    %v4409 = vrot.slane %v4403, 5
    %v4410 = vrot.slane %v4404, 5
    %v4411 = vsel %vm163, %v4409, %v4410
    %v4412 = vrot.slane %v4405, 5
    %v4413 = vsel %vm163, %v4410, %v4412
    %v4416 = vadd.f32 %v4399, %v4411
    %v4417 = vadd.f32 %v4400, %v4413
    %s4418 = sld [smem:[#allocation2 + $0xb0]]
    %v4419 = vstv %s4418
    %v4420 = vmul.f32 %v3429, %v4419
    %v4421 = vmul.f32 %v3430, %v4419
    %v4422 = vmul.f32 %v3431, %v4419
    %v4426 = vrot.slane %v4420, 6
    %v4427 = vrot.slane %v4421, 6
    %v4428 = vsel %vm181, %v4426, %v4427
    %v4429 = vrot.slane %v4422, 6
    %v4430 = vsel %vm181, %v4427, %v4429
    %v4433 = vadd.f32 %v4416, %v4428
    %v4434 = vadd.f32 %v4417, %v4430
    %4435 = vrot.lane.b32.xlu0 %v4433, 4
    %v4436 = vpop.permute.xlu0 %4435
    %4437 = vrot.lane.b32.xlu0 %v4434, 4
    %v4438 = vpop.permute.xlu0 %4437
    %v4439 = vadd.f32 %v3991, %v4436
    %v4440 = vadd.f32 %v3992, %v4438
    %s4441 = sld [smem:[#allocation2 + $0x9]]
    %v4442 = vstv %s4441
    %v4443 = vmul.f32 %v3432, %v4442
    %v4444 = vmul.f32 %v3433, %v4442
    %s4445 = sld [smem:[#allocation2 + $0x25]]
    %v4446 = vstv %s4445
    %v4447 = vmul.f32 %v3432, %v4446
    %v4448 = vmul.f32 %v3433, %v4446
    %v4449 = vmul.f32 %v3434, %v4446
    %v4453 = vrot.slane %v4447, 1
    %v4454 = vrot.slane %v4448, 1
    %v4455 = vsel %vm91, %v4453, %v4454
    %v4456 = vrot.slane %v4449, 1
    %v4457 = vsel %vm91, %v4454, %v4456
    %v4460 = vadd.f32 %v4443, %v4455
    %v4461 = vadd.f32 %v4444, %v4457
    %s4462 = sld [smem:[#allocation2 + $0x41]]
    %v4463 = vstv %s4462
    %v4464 = vmul.f32 %v3432, %v4463
    %v4465 = vmul.f32 %v3433, %v4463
    %v4466 = vmul.f32 %v3434, %v4463
    %v4470 = vrot.slane %v4464, 2
    %v4471 = vrot.slane %v4465, 2
    %v4472 = vsel %vm109, %v4470, %v4471
    %v4473 = vrot.slane %v4466, 2
    %v4474 = vsel %vm109, %v4471, %v4473
    %v4477 = vadd.f32 %v4460, %v4472
    %v4478 = vadd.f32 %v4461, %v4474
    %s4479 = sld [smem:[#allocation2 + $0x5d]]
    %v4480 = vstv %s4479
    %v4481 = vmul.f32 %v3432, %v4480
    %v4482 = vmul.f32 %v3433, %v4480
    %v4483 = vmul.f32 %v3434, %v4480
    %v4487 = vrot.slane %v4481, 3
    %v4488 = vrot.slane %v4482, 3
    %v4489 = vsel %vm127, %v4487, %v4488
    %v4490 = vrot.slane %v4483, 3
    %v4491 = vsel %vm127, %v4488, %v4490
    %v4494 = vadd.f32 %v4477, %v4489
    %v4495 = vadd.f32 %v4478, %v4491
    %s4496 = sld [smem:[#allocation2 + $0x79]]
    %v4497 = vstv %s4496
    %v4498 = vmul.f32 %v3432, %v4497
    %v4499 = vmul.f32 %v3433, %v4497
    %v4500 = vmul.f32 %v3434, %v4497
    %v4504 = vrot.slane %v4498, 4
    %v4505 = vrot.slane %v4499, 4
    %v4506 = vsel %vm145, %v4504, %v4505
    %v4507 = vrot.slane %v4500, 4
    %v4508 = vsel %vm145, %v4505, %v4507
    %v4511 = vadd.f32 %v4494, %v4506
    %v4512 = vadd.f32 %v4495, %v4508
    %s4513 = sld [smem:[#allocation2 + $0x95]]
    %v4514 = vstv %s4513
    %v4515 = vmul.f32 %v3432, %v4514
    %v4516 = vmul.f32 %v3433, %v4514
    %v4517 = vmul.f32 %v3434, %v4514
    %v4521 = vrot.slane %v4515, 5
    %v4522 = vrot.slane %v4516, 5
    %v4523 = vsel %vm163, %v4521, %v4522
    %v4524 = vrot.slane %v4517, 5
    %v4525 = vsel %vm163, %v4522, %v4524
    %v4528 = vadd.f32 %v4511, %v4523
    %v4529 = vadd.f32 %v4512, %v4525
    %s4530 = sld [smem:[#allocation2 + $0xb1]]
    %v4531 = vstv %s4530
    %v4532 = vmul.f32 %v3432, %v4531
    %v4533 = vmul.f32 %v3433, %v4531
    %v4534 = vmul.f32 %v3434, %v4531
    %v4538 = vrot.slane %v4532, 6
    %v4539 = vrot.slane %v4533, 6
    %v4540 = vsel %vm181, %v4538, %v4539
    %v4541 = vrot.slane %v4534, 6
    %v4542 = vsel %vm181, %v4539, %v4541
    %v4545 = vadd.f32 %v4528, %v4540
    %v4546 = vadd.f32 %v4529, %v4542
    %4547 = vrot.lane.b32.xlu0 %v4545, 4
    %v4548 = vpop.permute.xlu0 %4547
    %4549 = vrot.lane.b32.xlu0 %v4546, 4
    %v4550 = vpop.permute.xlu0 %4549
    %v4551 = vadd.f32 %v4103, %v4548
    %v4552 = vadd.f32 %v4104, %v4550
    %s4553 = sld [smem:[#allocation2 + $0xa]]
    %v4554 = vstv %s4553
    %v4555 = vmul.f32 %v3435, %v4554
    %v4556 = vmul.f32 %v3436, %v4554
    %s4557 = sld [smem:[#allocation2 + $0x26]]
    %v4558 = vstv %s4557
    %v4559 = vmul.f32 %v3435, %v4558
    %v4560 = vmul.f32 %v3436, %v4558
    %v4561 = vmul.f32 %v3437, %v4558
    %v4565 = vrot.slane %v4559, 1
    %v4566 = vrot.slane %v4560, 1
    %v4567 = vsel %vm91, %v4565, %v4566
    %v4568 = vrot.slane %v4561, 1
    %v4569 = vsel %vm91, %v4566, %v4568
    %v4572 = vadd.f32 %v4555, %v4567
    %v4573 = vadd.f32 %v4556, %v4569
    %s4574 = sld [smem:[#allocation2 + $0x42]]
    %v4575 = vstv %s4574
    %v4576 = vmul.f32 %v3435, %v4575
    %v4577 = vmul.f32 %v3436, %v4575
    %v4578 = vmul.f32 %v3437, %v4575
    %v4582 = vrot.slane %v4576, 2
    %v4583 = vrot.slane %v4577, 2
    %v4584 = vsel %vm109, %v4582, %v4583
    %v4585 = vrot.slane %v4578, 2
    %v4586 = vsel %vm109, %v4583, %v4585
    %v4589 = vadd.f32 %v4572, %v4584
    %v4590 = vadd.f32 %v4573, %v4586
    %s4591 = sld [smem:[#allocation2 + $0x5e]]
    %v4592 = vstv %s4591
    %v4593 = vmul.f32 %v3435, %v4592
    %v4594 = vmul.f32 %v3436, %v4592
    %v4595 = vmul.f32 %v3437, %v4592
    %v4599 = vrot.slane %v4593, 3
    %v4600 = vrot.slane %v4594, 3
    %v4601 = vsel %vm127, %v4599, %v4600
    %v4602 = vrot.slane %v4595, 3
    %v4603 = vsel %vm127, %v4600, %v4602
    %v4606 = vadd.f32 %v4589, %v4601
    %v4607 = vadd.f32 %v4590, %v4603
    %s4608 = sld [smem:[#allocation2 + $0x7a]]
    %v4609 = vstv %s4608
    %v4610 = vmul.f32 %v3435, %v4609
    %v4611 = vmul.f32 %v3436, %v4609
    %v4612 = vmul.f32 %v3437, %v4609
    %v4616 = vrot.slane %v4610, 4
    %v4617 = vrot.slane %v4611, 4
    %v4618 = vsel %vm145, %v4616, %v4617
    %v4619 = vrot.slane %v4612, 4
    %v4620 = vsel %vm145, %v4617, %v4619
    %v4623 = vadd.f32 %v4606, %v4618
    %v4624 = vadd.f32 %v4607, %v4620
    %s4625 = sld [smem:[#allocation2 + $0x96]]
    %v4626 = vstv %s4625
    %v4627 = vmul.f32 %v3435, %v4626
    %v4628 = vmul.f32 %v3436, %v4626
    %v4629 = vmul.f32 %v3437, %v4626
    %v4633 = vrot.slane %v4627, 5
    %v4634 = vrot.slane %v4628, 5
    %v4635 = vsel %vm163, %v4633, %v4634
    %v4636 = vrot.slane %v4629, 5
    %v4637 = vsel %vm163, %v4634, %v4636
    %v4640 = vadd.f32 %v4623, %v4635
    %v4641 = vadd.f32 %v4624, %v4637
    %s4642 = sld [smem:[#allocation2 + $0xb2]]
    %v4643 = vstv %s4642
    %v4644 = vmul.f32 %v3435, %v4643
    %v4645 = vmul.f32 %v3436, %v4643
    %v4646 = vmul.f32 %v3437, %v4643
    %v4650 = vrot.slane %v4644, 6
    %v4651 = vrot.slane %v4645, 6
    %v4652 = vsel %vm181, %v4650, %v4651
    %v4653 = vrot.slane %v4646, 6
    %v4654 = vsel %vm181, %v4651, %v4653
    %v4657 = vadd.f32 %v4640, %v4652
    %v4658 = vadd.f32 %v4641, %v4654
    %4659 = vrot.lane.b32.xlu0 %v4657, 4
    %v4660 = vpop.permute.xlu0 %4659
    %4661 = vrot.lane.b32.xlu0 %v4658, 4
    %v4662 = vpop.permute.xlu0 %4661
    %v4663 = vadd.f32 %v4215, %v4660
    %v4664 = vadd.f32 %v4216, %v4662
    %s4665 = sld [smem:[#allocation2 + $0xb]]
    %v4666 = vstv %s4665
    %v4667 = vmul.f32 %v3438, %v4666
    %v4668 = vmul.f32 %v3439, %v4666
    %s4669 = sld [smem:[#allocation2 + $0x27]]
    %v4670 = vstv %s4669
    %v4671 = vmul.f32 %v3438, %v4670
    %v4672 = vmul.f32 %v3439, %v4670
    %v4673 = vmul.f32 %v3440, %v4670
    %v4677 = vrot.slane %v4671, 1
    %v4678 = vrot.slane %v4672, 1
    %v4679 = vsel %vm91, %v4677, %v4678
    %v4680 = vrot.slane %v4673, 1
    %v4681 = vsel %vm91, %v4678, %v4680
    %v4684 = vadd.f32 %v4667, %v4679
    %v4685 = vadd.f32 %v4668, %v4681
    %s4686 = sld [smem:[#allocation2 + $0x43]]
    %v4687 = vstv %s4686
    %v4688 = vmul.f32 %v3438, %v4687
    %v4689 = vmul.f32 %v3439, %v4687
    %v4690 = vmul.f32 %v3440, %v4687
    %v4694 = vrot.slane %v4688, 2
    %v4695 = vrot.slane %v4689, 2
    %v4696 = vsel %vm109, %v4694, %v4695
    %v4697 = vrot.slane %v4690, 2
    %v4698 = vsel %vm109, %v4695, %v4697
    %v4701 = vadd.f32 %v4684, %v4696
    %v4702 = vadd.f32 %v4685, %v4698
    %s4703 = sld [smem:[#allocation2 + $0x5f]]
    %v4704 = vstv %s4703
    %v4705 = vmul.f32 %v3438, %v4704
    %v4706 = vmul.f32 %v3439, %v4704
    %v4707 = vmul.f32 %v3440, %v4704
    %v4711 = vrot.slane %v4705, 3
    %v4712 = vrot.slane %v4706, 3
    %v4713 = vsel %vm127, %v4711, %v4712
    %v4714 = vrot.slane %v4707, 3
    %v4715 = vsel %vm127, %v4712, %v4714
    %v4718 = vadd.f32 %v4701, %v4713
    %v4719 = vadd.f32 %v4702, %v4715
    %s4720 = sld [smem:[#allocation2 + $0x7b]]
    %v4721 = vstv %s4720
    %v4722 = vmul.f32 %v3438, %v4721
    %v4723 = vmul.f32 %v3439, %v4721
    %v4724 = vmul.f32 %v3440, %v4721
    %v4728 = vrot.slane %v4722, 4
    %v4729 = vrot.slane %v4723, 4
    %v4730 = vsel %vm145, %v4728, %v4729
    %v4731 = vrot.slane %v4724, 4
    %v4732 = vsel %vm145, %v4729, %v4731
    %v4735 = vadd.f32 %v4718, %v4730
    %v4736 = vadd.f32 %v4719, %v4732
    %s4737 = sld [smem:[#allocation2 + $0x97]]
    %v4738 = vstv %s4737
    %v4739 = vmul.f32 %v3438, %v4738
    %v4740 = vmul.f32 %v3439, %v4738
    %v4741 = vmul.f32 %v3440, %v4738
    %v4745 = vrot.slane %v4739, 5
    %v4746 = vrot.slane %v4740, 5
    %v4747 = vsel %vm163, %v4745, %v4746
    %v4748 = vrot.slane %v4741, 5
    %v4749 = vsel %vm163, %v4746, %v4748
    %v4752 = vadd.f32 %v4735, %v4747
    %v4753 = vadd.f32 %v4736, %v4749
    %s4754 = sld [smem:[#allocation2 + $0xb3]]
    %v4755 = vstv %s4754
    %v4756 = vmul.f32 %v3438, %v4755
    %v4757 = vmul.f32 %v3439, %v4755
    %v4758 = vmul.f32 %v3440, %v4755
    %v4762 = vrot.slane %v4756, 6
    %v4763 = vrot.slane %v4757, 6
    %v4764 = vsel %vm181, %v4762, %v4763
    %v4765 = vrot.slane %v4758, 6
    %v4766 = vsel %vm181, %v4763, %v4765
    %v4769 = vadd.f32 %v4752, %v4764
    %v4770 = vadd.f32 %v4753, %v4766
    %4771 = vrot.lane.b32.xlu0 %v4769, 4
    %v4772 = vpop.permute.xlu0 %4771
    %4773 = vrot.lane.b32.xlu0 %v4770, 4
    %v4774 = vpop.permute.xlu0 %4773
    %v4775 = vadd.f32 %v4327, %v4772
    %v4776 = vadd.f32 %v4328, %v4774
    %s4777 = sld [smem:[#allocation2 + $0xc]]
    %v4778 = vstv %s4777
    %v4779 = vmul.f32 %v3429, %v4778
    %v4780 = vmul.f32 %v3430, %v4778
    %s4781 = sld [smem:[#allocation2 + $0x28]]
    %v4782 = vstv %s4781
    %v4783 = vmul.f32 %v3429, %v4782
    %v4784 = vmul.f32 %v3430, %v4782
    %v4785 = vmul.f32 %v3431, %v4782
    %v4789 = vrot.slane %v4783, 1
    %v4790 = vrot.slane %v4784, 1
    %v4791 = vsel %vm91, %v4789, %v4790
    %v4792 = vrot.slane %v4785, 1
    %v4793 = vsel %vm91, %v4790, %v4792
    %v4796 = vadd.f32 %v4779, %v4791
    %v4797 = vadd.f32 %v4780, %v4793
    %s4798 = sld [smem:[#allocation2 + $0x44]]
    %v4799 = vstv %s4798
    %v4800 = vmul.f32 %v3429, %v4799
    %v4801 = vmul.f32 %v3430, %v4799
    %v4802 = vmul.f32 %v3431, %v4799
    %v4806 = vrot.slane %v4800, 2
    %v4807 = vrot.slane %v4801, 2
    %v4808 = vsel %vm109, %v4806, %v4807
    %v4809 = vrot.slane %v4802, 2
    %v4810 = vsel %vm109, %v4807, %v4809
    %v4813 = vadd.f32 %v4796, %v4808
    %v4814 = vadd.f32 %v4797, %v4810
    %s4815 = sld [smem:[#allocation2 + $0x60]]
    %v4816 = vstv %s4815
    %v4817 = vmul.f32 %v3429, %v4816
    %v4818 = vmul.f32 %v3430, %v4816
    %v4819 = vmul.f32 %v3431, %v4816
    %v4823 = vrot.slane %v4817, 3
    %v4824 = vrot.slane %v4818, 3
    %v4825 = vsel %vm127, %v4823, %v4824
    %v4826 = vrot.slane %v4819, 3
    %v4827 = vsel %vm127, %v4824, %v4826
    %v4830 = vadd.f32 %v4813, %v4825
    %v4831 = vadd.f32 %v4814, %v4827
    %s4832 = sld [smem:[#allocation2 + $0x7c]]
    %v4833 = vstv %s4832
    %v4834 = vmul.f32 %v3429, %v4833
    %v4835 = vmul.f32 %v3430, %v4833
    %v4836 = vmul.f32 %v3431, %v4833
    %v4840 = vrot.slane %v4834, 4
    %v4841 = vrot.slane %v4835, 4
    %v4842 = vsel %vm145, %v4840, %v4841
    %v4843 = vrot.slane %v4836, 4
    %v4844 = vsel %vm145, %v4841, %v4843
    %v4847 = vadd.f32 %v4830, %v4842
    %v4848 = vadd.f32 %v4831, %v4844
    %s4849 = sld [smem:[#allocation2 + $0x98]]
    %v4850 = vstv %s4849
    %v4851 = vmul.f32 %v3429, %v4850
    %v4852 = vmul.f32 %v3430, %v4850
    %v4853 = vmul.f32 %v3431, %v4850
    %v4857 = vrot.slane %v4851, 5
    %v4858 = vrot.slane %v4852, 5
    %v4859 = vsel %vm163, %v4857, %v4858
    %v4860 = vrot.slane %v4853, 5
    %v4861 = vsel %vm163, %v4858, %v4860
    %v4864 = vadd.f32 %v4847, %v4859
    %v4865 = vadd.f32 %v4848, %v4861
    %s4866 = sld [smem:[#allocation2 + $0xb4]]
    %v4867 = vstv %s4866
    %v4868 = vmul.f32 %v3429, %v4867
    %v4869 = vmul.f32 %v3430, %v4867
    %v4870 = vmul.f32 %v3431, %v4867
    %v4874 = vrot.slane %v4868, 6
    %v4875 = vrot.slane %v4869, 6
    %v4876 = vsel %vm181, %v4874, %v4875
    %v4877 = vrot.slane %v4870, 6
    %v4878 = vsel %vm181, %v4875, %v4877
    %v4881 = vadd.f32 %v4864, %v4876
    %v4882 = vadd.f32 %v4865, %v4878
    %4883 = vrot.lane.b32.xlu0 %v4881, 3
    %v4884 = vpop.permute.xlu0 %4883
    %4885 = vrot.lane.b32.xlu0 %v4882, 3
    %v4886 = vpop.permute.xlu0 %4885
    %v4887 = vadd.f32 %v4439, %v4884
    %v4888 = vadd.f32 %v4440, %v4886
    %s4889 = sld [smem:[#allocation2 + $0xd]]
    %v4890 = vstv %s4889
    %v4891 = vmul.f32 %v3432, %v4890
    %v4892 = vmul.f32 %v3433, %v4890
    %s4893 = sld [smem:[#allocation2 + $0x29]]
    %v4894 = vstv %s4893
    %v4895 = vmul.f32 %v3432, %v4894
    %v4896 = vmul.f32 %v3433, %v4894
    %v4897 = vmul.f32 %v3434, %v4894
    %v4901 = vrot.slane %v4895, 1
    %v4902 = vrot.slane %v4896, 1
    %v4903 = vsel %vm91, %v4901, %v4902
    %v4904 = vrot.slane %v4897, 1
    %v4905 = vsel %vm91, %v4902, %v4904
    %v4908 = vadd.f32 %v4891, %v4903
    %v4909 = vadd.f32 %v4892, %v4905
    %s4910 = sld [smem:[#allocation2 + $0x45]]
    %v4911 = vstv %s4910
    %v4912 = vmul.f32 %v3432, %v4911
    %v4913 = vmul.f32 %v3433, %v4911
    %v4914 = vmul.f32 %v3434, %v4911
    %v4918 = vrot.slane %v4912, 2
    %v4919 = vrot.slane %v4913, 2
    %v4920 = vsel %vm109, %v4918, %v4919
    %v4921 = vrot.slane %v4914, 2
    %v4922 = vsel %vm109, %v4919, %v4921
    %v4925 = vadd.f32 %v4908, %v4920
    %v4926 = vadd.f32 %v4909, %v4922
    %s4927 = sld [smem:[#allocation2 + $0x61]]
    %v4928 = vstv %s4927
    %v4929 = vmul.f32 %v3432, %v4928
    %v4930 = vmul.f32 %v3433, %v4928
    %v4931 = vmul.f32 %v3434, %v4928
    %v4935 = vrot.slane %v4929, 3
    %v4936 = vrot.slane %v4930, 3
    %v4937 = vsel %vm127, %v4935, %v4936
    %v4938 = vrot.slane %v4931, 3
    %v4939 = vsel %vm127, %v4936, %v4938
    %v4942 = vadd.f32 %v4925, %v4937
    %v4943 = vadd.f32 %v4926, %v4939
    %s4944 = sld [smem:[#allocation2 + $0x7d]]
    %v4945 = vstv %s4944
    %v4946 = vmul.f32 %v3432, %v4945
    %v4947 = vmul.f32 %v3433, %v4945
    %v4948 = vmul.f32 %v3434, %v4945
    %v4952 = vrot.slane %v4946, 4
    %v4953 = vrot.slane %v4947, 4
    %v4954 = vsel %vm145, %v4952, %v4953
    %v4955 = vrot.slane %v4948, 4
    %v4956 = vsel %vm145, %v4953, %v4955
    %v4959 = vadd.f32 %v4942, %v4954
    %v4960 = vadd.f32 %v4943, %v4956
    %s4961 = sld [smem:[#allocation2 + $0x99]]
    %v4962 = vstv %s4961
    %v4963 = vmul.f32 %v3432, %v4962
    %v4964 = vmul.f32 %v3433, %v4962
    %v4965 = vmul.f32 %v3434, %v4962
    %v4969 = vrot.slane %v4963, 5
    %v4970 = vrot.slane %v4964, 5
    %v4971 = vsel %vm163, %v4969, %v4970
    %v4972 = vrot.slane %v4965, 5
    %v4973 = vsel %vm163, %v4970, %v4972
    %v4976 = vadd.f32 %v4959, %v4971
    %v4977 = vadd.f32 %v4960, %v4973
    %s4978 = sld [smem:[#allocation2 + $0xb5]]
    %v4979 = vstv %s4978
    %v4980 = vmul.f32 %v3432, %v4979
    %v4981 = vmul.f32 %v3433, %v4979
    %v4982 = vmul.f32 %v3434, %v4979
    %v4986 = vrot.slane %v4980, 6
    %v4987 = vrot.slane %v4981, 6
    %v4988 = vsel %vm181, %v4986, %v4987
    %v4989 = vrot.slane %v4982, 6
    %v4990 = vsel %vm181, %v4987, %v4989
    %v4993 = vadd.f32 %v4976, %v4988
    %v4994 = vadd.f32 %v4977, %v4990
    %4995 = vrot.lane.b32.xlu0 %v4993, 3
    %v4996 = vpop.permute.xlu0 %4995
    %4997 = vrot.lane.b32.xlu0 %v4994, 3
    %v4998 = vpop.permute.xlu0 %4997
    %v4999 = vadd.f32 %v4551, %v4996
    %v5000 = vadd.f32 %v4552, %v4998
    %s5001 = sld [smem:[#allocation2 + $0xe]]
    %v5002 = vstv %s5001
    %v5003 = vmul.f32 %v3435, %v5002
    %v5004 = vmul.f32 %v3436, %v5002
    %s5005 = sld [smem:[#allocation2 + $0x2a]]
    %v5006 = vstv %s5005
    %v5007 = vmul.f32 %v3435, %v5006
    %v5008 = vmul.f32 %v3436, %v5006
    %v5009 = vmul.f32 %v3437, %v5006
    %v5013 = vrot.slane %v5007, 1
    %v5014 = vrot.slane %v5008, 1
    %v5015 = vsel %vm91, %v5013, %v5014
    %v5016 = vrot.slane %v5009, 1
    %v5017 = vsel %vm91, %v5014, %v5016
    %v5020 = vadd.f32 %v5003, %v5015
    %v5021 = vadd.f32 %v5004, %v5017
    %s5022 = sld [smem:[#allocation2 + $0x46]]
    %v5023 = vstv %s5022
    %v5024 = vmul.f32 %v3435, %v5023
    %v5025 = vmul.f32 %v3436, %v5023
    %v5026 = vmul.f32 %v3437, %v5023
    %v5030 = vrot.slane %v5024, 2
    %v5031 = vrot.slane %v5025, 2
    %v5032 = vsel %vm109, %v5030, %v5031
    %v5033 = vrot.slane %v5026, 2
    %v5034 = vsel %vm109, %v5031, %v5033
    %v5037 = vadd.f32 %v5020, %v5032
    %v5038 = vadd.f32 %v5021, %v5034
    %s5039 = sld [smem:[#allocation2 + $0x62]]
    %v5040 = vstv %s5039
    %v5041 = vmul.f32 %v3435, %v5040
    %v5042 = vmul.f32 %v3436, %v5040
    %v5043 = vmul.f32 %v3437, %v5040
    %v5047 = vrot.slane %v5041, 3
    %v5048 = vrot.slane %v5042, 3
    %v5049 = vsel %vm127, %v5047, %v5048
    %v5050 = vrot.slane %v5043, 3
    %v5051 = vsel %vm127, %v5048, %v5050
    %v5054 = vadd.f32 %v5037, %v5049
    %v5055 = vadd.f32 %v5038, %v5051
    %s5056 = sld [smem:[#allocation2 + $0x7e]]
    %v5057 = vstv %s5056
    %v5058 = vmul.f32 %v3435, %v5057
    %v5059 = vmul.f32 %v3436, %v5057
    %v5060 = vmul.f32 %v3437, %v5057
    %v5064 = vrot.slane %v5058, 4
    %v5065 = vrot.slane %v5059, 4
    %v5066 = vsel %vm145, %v5064, %v5065
    %v5067 = vrot.slane %v5060, 4
    %v5068 = vsel %vm145, %v5065, %v5067
    %v5071 = vadd.f32 %v5054, %v5066
    %v5072 = vadd.f32 %v5055, %v5068
    %s5073 = sld [smem:[#allocation2 + $0x9a]]
    %v5074 = vstv %s5073
    %v5075 = vmul.f32 %v3435, %v5074
    %v5076 = vmul.f32 %v3436, %v5074
    %v5077 = vmul.f32 %v3437, %v5074
    %v5081 = vrot.slane %v5075, 5
    %v5082 = vrot.slane %v5076, 5
    %v5083 = vsel %vm163, %v5081, %v5082
    %v5084 = vrot.slane %v5077, 5
    %v5085 = vsel %vm163, %v5082, %v5084
    %v5088 = vadd.f32 %v5071, %v5083
    %v5089 = vadd.f32 %v5072, %v5085
    %s5090 = sld [smem:[#allocation2 + $0xb6]]
    %v5091 = vstv %s5090
    %v5092 = vmul.f32 %v3435, %v5091
    %v5093 = vmul.f32 %v3436, %v5091
    %v5094 = vmul.f32 %v3437, %v5091
    %v5098 = vrot.slane %v5092, 6
    %v5099 = vrot.slane %v5093, 6
    %v5100 = vsel %vm181, %v5098, %v5099
    %v5101 = vrot.slane %v5094, 6
    %v5102 = vsel %vm181, %v5099, %v5101
    %v5105 = vadd.f32 %v5088, %v5100
    %v5106 = vadd.f32 %v5089, %v5102
    %5107 = vrot.lane.b32.xlu0 %v5105, 3
    %v5108 = vpop.permute.xlu0 %5107
    %5109 = vrot.lane.b32.xlu0 %v5106, 3
    %v5110 = vpop.permute.xlu0 %5109
    %v5111 = vadd.f32 %v4663, %v5108
    %v5112 = vadd.f32 %v4664, %v5110
    %s5113 = sld [smem:[#allocation2 + $0xf]]
    %v5114 = vstv %s5113
    %v5115 = vmul.f32 %v3438, %v5114
    %v5116 = vmul.f32 %v3439, %v5114
    %s5117 = sld [smem:[#allocation2 + $0x2b]]
    %v5118 = vstv %s5117
    %v5119 = vmul.f32 %v3438, %v5118
    %v5120 = vmul.f32 %v3439, %v5118
    %v5121 = vmul.f32 %v3440, %v5118
    %v5125 = vrot.slane %v5119, 1
    %v5126 = vrot.slane %v5120, 1
    %v5127 = vsel %vm91, %v5125, %v5126
    %v5128 = vrot.slane %v5121, 1
    %v5129 = vsel %vm91, %v5126, %v5128
    %v5132 = vadd.f32 %v5115, %v5127
    %v5133 = vadd.f32 %v5116, %v5129
    %s5134 = sld [smem:[#allocation2 + $0x47]]
    %v5135 = vstv %s5134
    %v5136 = vmul.f32 %v3438, %v5135
    %v5137 = vmul.f32 %v3439, %v5135
    %v5138 = vmul.f32 %v3440, %v5135
    %v5142 = vrot.slane %v5136, 2
    %v5143 = vrot.slane %v5137, 2
    %v5144 = vsel %vm109, %v5142, %v5143
    %v5145 = vrot.slane %v5138, 2
    %v5146 = vsel %vm109, %v5143, %v5145
    %v5149 = vadd.f32 %v5132, %v5144
    %v5150 = vadd.f32 %v5133, %v5146
    %s5151 = sld [smem:[#allocation2 + $0x63]]
    %v5152 = vstv %s5151
    %v5153 = vmul.f32 %v3438, %v5152
    %v5154 = vmul.f32 %v3439, %v5152
    %v5155 = vmul.f32 %v3440, %v5152
    %v5159 = vrot.slane %v5153, 3
    %v5160 = vrot.slane %v5154, 3
    %v5161 = vsel %vm127, %v5159, %v5160
    %v5162 = vrot.slane %v5155, 3
    %v5163 = vsel %vm127, %v5160, %v5162
    %v5166 = vadd.f32 %v5149, %v5161
    %v5167 = vadd.f32 %v5150, %v5163
    %s5168 = sld [smem:[#allocation2 + $0x7f]]
    %v5169 = vstv %s5168
    %v5170 = vmul.f32 %v3438, %v5169
    %v5171 = vmul.f32 %v3439, %v5169
    %v5172 = vmul.f32 %v3440, %v5169
    %v5176 = vrot.slane %v5170, 4
    %v5177 = vrot.slane %v5171, 4
    %v5178 = vsel %vm145, %v5176, %v5177
    %v5179 = vrot.slane %v5172, 4
    %v5180 = vsel %vm145, %v5177, %v5179
    %v5183 = vadd.f32 %v5166, %v5178
    %v5184 = vadd.f32 %v5167, %v5180
    %s5185 = sld [smem:[#allocation2 + $0x9b]]
    %v5186 = vstv %s5185
    %v5187 = vmul.f32 %v3438, %v5186
    %v5188 = vmul.f32 %v3439, %v5186
    %v5189 = vmul.f32 %v3440, %v5186
    %v5193 = vrot.slane %v5187, 5
    %v5194 = vrot.slane %v5188, 5
    %v5195 = vsel %vm163, %v5193, %v5194
    %v5196 = vrot.slane %v5189, 5
    %v5197 = vsel %vm163, %v5194, %v5196
    %v5200 = vadd.f32 %v5183, %v5195
    %v5201 = vadd.f32 %v5184, %v5197
    %s5202 = sld [smem:[#allocation2 + $0xb7]]
    %v5203 = vstv %s5202
    %v5204 = vmul.f32 %v3438, %v5203
    %v5205 = vmul.f32 %v3439, %v5203
    %v5206 = vmul.f32 %v3440, %v5203
    %v5210 = vrot.slane %v5204, 6
    %v5211 = vrot.slane %v5205, 6
    %v5212 = vsel %vm181, %v5210, %v5211
    %v5213 = vrot.slane %v5206, 6
    %v5214 = vsel %vm181, %v5211, %v5213
    %v5217 = vadd.f32 %v5200, %v5212
    %v5218 = vadd.f32 %v5201, %v5214
    %5219 = vrot.lane.b32.xlu0 %v5217, 3
    %v5220 = vpop.permute.xlu0 %5219
    %5221 = vrot.lane.b32.xlu0 %v5218, 3
    %v5222 = vpop.permute.xlu0 %5221
    %v5223 = vadd.f32 %v4775, %v5220
    %v5224 = vadd.f32 %v4776, %v5222
    %s5225 = sld [smem:[#allocation2 + $0x10]]
    %v5226 = vstv %s5225
    %v5227 = vmul.f32 %v3429, %v5226
    %v5228 = vmul.f32 %v3430, %v5226
    %s5229 = sld [smem:[#allocation2 + $0x2c]]
    %v5230 = vstv %s5229
    %v5231 = vmul.f32 %v3429, %v5230
    %v5232 = vmul.f32 %v3430, %v5230
    %v5233 = vmul.f32 %v3431, %v5230
    %v5237 = vrot.slane %v5231, 1
    %v5238 = vrot.slane %v5232, 1
    %v5239 = vsel %vm91, %v5237, %v5238
    %v5240 = vrot.slane %v5233, 1
    %v5241 = vsel %vm91, %v5238, %v5240
    %v5244 = vadd.f32 %v5227, %v5239
    %v5245 = vadd.f32 %v5228, %v5241
    %s5246 = sld [smem:[#allocation2 + $0x48]]
    %v5247 = vstv %s5246
    %v5248 = vmul.f32 %v3429, %v5247
    %v5249 = vmul.f32 %v3430, %v5247
    %v5250 = vmul.f32 %v3431, %v5247
    %v5254 = vrot.slane %v5248, 2
    %v5255 = vrot.slane %v5249, 2
    %v5256 = vsel %vm109, %v5254, %v5255
    %v5257 = vrot.slane %v5250, 2
    %v5258 = vsel %vm109, %v5255, %v5257
    %v5261 = vadd.f32 %v5244, %v5256
    %v5262 = vadd.f32 %v5245, %v5258
    %s5263 = sld [smem:[#allocation2 + $0x64]]
    %v5264 = vstv %s5263
    %v5265 = vmul.f32 %v3429, %v5264
    %v5266 = vmul.f32 %v3430, %v5264
    %v5267 = vmul.f32 %v3431, %v5264
    %v5271 = vrot.slane %v5265, 3
    %v5272 = vrot.slane %v5266, 3
    %v5273 = vsel %vm127, %v5271, %v5272
    %v5274 = vrot.slane %v5267, 3
    %v5275 = vsel %vm127, %v5272, %v5274
    %v5278 = vadd.f32 %v5261, %v5273
    %v5279 = vadd.f32 %v5262, %v5275
    %s5280 = sld [smem:[#allocation2 + $0x80]]
    %v5281 = vstv %s5280
    %v5282 = vmul.f32 %v3429, %v5281
    %v5283 = vmul.f32 %v3430, %v5281
    %v5284 = vmul.f32 %v3431, %v5281
    %v5288 = vrot.slane %v5282, 4
    %v5289 = vrot.slane %v5283, 4
    %v5290 = vsel %vm145, %v5288, %v5289
    %v5291 = vrot.slane %v5284, 4
    %v5292 = vsel %vm145, %v5289, %v5291
    %v5295 = vadd.f32 %v5278, %v5290
    %v5296 = vadd.f32 %v5279, %v5292
    %s5297 = sld [smem:[#allocation2 + $0x9c]]
    %v5298 = vstv %s5297
    %v5299 = vmul.f32 %v3429, %v5298
    %v5300 = vmul.f32 %v3430, %v5298
    %v5301 = vmul.f32 %v3431, %v5298
    %v5305 = vrot.slane %v5299, 5
    %v5306 = vrot.slane %v5300, 5
    %v5307 = vsel %vm163, %v5305, %v5306
    %v5308 = vrot.slane %v5301, 5
    %v5309 = vsel %vm163, %v5306, %v5308
    %v5312 = vadd.f32 %v5295, %v5307
    %v5313 = vadd.f32 %v5296, %v5309
    %s5314 = sld [smem:[#allocation2 + $0xb8]]
    %v5315 = vstv %s5314
    %v5316 = vmul.f32 %v3429, %v5315
    %v5317 = vmul.f32 %v3430, %v5315
    %v5318 = vmul.f32 %v3431, %v5315
    %v5322 = vrot.slane %v5316, 6
    %v5323 = vrot.slane %v5317, 6
    %v5324 = vsel %vm181, %v5322, %v5323
    %v5325 = vrot.slane %v5318, 6
    %v5326 = vsel %vm181, %v5323, %v5325
    %v5329 = vadd.f32 %v5312, %v5324
    %v5330 = vadd.f32 %v5313, %v5326
    %5331 = vrot.lane.b32.xlu0 %v5329, 2
    %v5332 = vpop.permute.xlu0 %5331
    %5333 = vrot.lane.b32.xlu0 %v5330, 2
    %v5334 = vpop.permute.xlu0 %5333
    %v5335 = vadd.f32 %v4887, %v5332
    %v5336 = vadd.f32 %v4888, %v5334
    %s5337 = sld [smem:[#allocation2 + $0x11]]
    %v5338 = vstv %s5337
    %v5339 = vmul.f32 %v3432, %v5338
    %v5340 = vmul.f32 %v3433, %v5338
    %s5341 = sld [smem:[#allocation2 + $0x2d]]
    %v5342 = vstv %s5341
    %v5343 = vmul.f32 %v3432, %v5342
    %v5344 = vmul.f32 %v3433, %v5342
    %v5345 = vmul.f32 %v3434, %v5342
    %v5349 = vrot.slane %v5343, 1
    %v5350 = vrot.slane %v5344, 1
    %v5351 = vsel %vm91, %v5349, %v5350
    %v5352 = vrot.slane %v5345, 1
    %v5353 = vsel %vm91, %v5350, %v5352
    %v5356 = vadd.f32 %v5339, %v5351
    %v5357 = vadd.f32 %v5340, %v5353
    %s5358 = sld [smem:[#allocation2 + $0x49]]
    %v5359 = vstv %s5358
    %v5360 = vmul.f32 %v3432, %v5359
    %v5361 = vmul.f32 %v3433, %v5359
    %v5362 = vmul.f32 %v3434, %v5359
    %v5366 = vrot.slane %v5360, 2
    %v5367 = vrot.slane %v5361, 2
    %v5368 = vsel %vm109, %v5366, %v5367
    %v5369 = vrot.slane %v5362, 2
    %v5370 = vsel %vm109, %v5367, %v5369
    %v5373 = vadd.f32 %v5356, %v5368
    %v5374 = vadd.f32 %v5357, %v5370
    %s5375 = sld [smem:[#allocation2 + $0x65]]
    %v5376 = vstv %s5375
    %v5377 = vmul.f32 %v3432, %v5376
    %v5378 = vmul.f32 %v3433, %v5376
    %v5379 = vmul.f32 %v3434, %v5376
    %v5383 = vrot.slane %v5377, 3
    %v5384 = vrot.slane %v5378, 3
    %v5385 = vsel %vm127, %v5383, %v5384
    %v5386 = vrot.slane %v5379, 3
    %v5387 = vsel %vm127, %v5384, %v5386
    %v5390 = vadd.f32 %v5373, %v5385
    %v5391 = vadd.f32 %v5374, %v5387
    %s5392 = sld [smem:[#allocation2 + $0x81]]
    %v5393 = vstv %s5392
    %v5394 = vmul.f32 %v3432, %v5393
    %v5395 = vmul.f32 %v3433, %v5393
    %v5396 = vmul.f32 %v3434, %v5393
    %v5400 = vrot.slane %v5394, 4
    %v5401 = vrot.slane %v5395, 4
    %v5402 = vsel %vm145, %v5400, %v5401
    %v5403 = vrot.slane %v5396, 4
    %v5404 = vsel %vm145, %v5401, %v5403
    %v5407 = vadd.f32 %v5390, %v5402
    %v5408 = vadd.f32 %v5391, %v5404
    %s5409 = sld [smem:[#allocation2 + $0x9d]]
    %v5410 = vstv %s5409
    %v5411 = vmul.f32 %v3432, %v5410
    %v5412 = vmul.f32 %v3433, %v5410
    %v5413 = vmul.f32 %v3434, %v5410
    %v5417 = vrot.slane %v5411, 5
    %v5418 = vrot.slane %v5412, 5
    %v5419 = vsel %vm163, %v5417, %v5418
    %v5420 = vrot.slane %v5413, 5
    %v5421 = vsel %vm163, %v5418, %v5420
    %v5424 = vadd.f32 %v5407, %v5419
    %v5425 = vadd.f32 %v5408, %v5421
    %s5426 = sld [smem:[#allocation2 + $0xb9]]
    %v5427 = vstv %s5426
    %v5428 = vmul.f32 %v3432, %v5427
    %v5429 = vmul.f32 %v3433, %v5427
    %v5430 = vmul.f32 %v3434, %v5427
    %v5434 = vrot.slane %v5428, 6
    %v5435 = vrot.slane %v5429, 6
    %v5436 = vsel %vm181, %v5434, %v5435
    %v5437 = vrot.slane %v5430, 6
    %v5438 = vsel %vm181, %v5435, %v5437
    %v5441 = vadd.f32 %v5424, %v5436
    %v5442 = vadd.f32 %v5425, %v5438
    %5443 = vrot.lane.b32.xlu0 %v5441, 2
    %v5444 = vpop.permute.xlu0 %5443
    %5445 = vrot.lane.b32.xlu0 %v5442, 2
    %v5446 = vpop.permute.xlu0 %5445
    %v5447 = vadd.f32 %v4999, %v5444
    %v5448 = vadd.f32 %v5000, %v5446
    %s5449 = sld [smem:[#allocation2 + $0x12]]
    %v5450 = vstv %s5449
    %v5451 = vmul.f32 %v3435, %v5450
    %v5452 = vmul.f32 %v3436, %v5450
    %s5453 = sld [smem:[#allocation2 + $0x2e]]
    %v5454 = vstv %s5453
    %v5455 = vmul.f32 %v3435, %v5454
    %v5456 = vmul.f32 %v3436, %v5454
    %v5457 = vmul.f32 %v3437, %v5454
    %v5461 = vrot.slane %v5455, 1
    %v5462 = vrot.slane %v5456, 1
    %v5463 = vsel %vm91, %v5461, %v5462
    %v5464 = vrot.slane %v5457, 1
    %v5465 = vsel %vm91, %v5462, %v5464
    %v5468 = vadd.f32 %v5451, %v5463
    %v5469 = vadd.f32 %v5452, %v5465
    %s5470 = sld [smem:[#allocation2 + $0x4a]]
    %v5471 = vstv %s5470
    %v5472 = vmul.f32 %v3435, %v5471
    %v5473 = vmul.f32 %v3436, %v5471
    %v5474 = vmul.f32 %v3437, %v5471
    %v5478 = vrot.slane %v5472, 2
    %v5479 = vrot.slane %v5473, 2
    %v5480 = vsel %vm109, %v5478, %v5479
    %v5481 = vrot.slane %v5474, 2
    %v5482 = vsel %vm109, %v5479, %v5481
    %v5485 = vadd.f32 %v5468, %v5480
    %v5486 = vadd.f32 %v5469, %v5482
    %s5487 = sld [smem:[#allocation2 + $0x66]]
    %v5488 = vstv %s5487
    %v5489 = vmul.f32 %v3435, %v5488
    %v5490 = vmul.f32 %v3436, %v5488
    %v5491 = vmul.f32 %v3437, %v5488
    %v5495 = vrot.slane %v5489, 3
    %v5496 = vrot.slane %v5490, 3
    %v5497 = vsel %vm127, %v5495, %v5496
    %v5498 = vrot.slane %v5491, 3
    %v5499 = vsel %vm127, %v5496, %v5498
    %v5502 = vadd.f32 %v5485, %v5497
    %v5503 = vadd.f32 %v5486, %v5499
    %s5504 = sld [smem:[#allocation2 + $0x82]]
    %v5505 = vstv %s5504
    %v5506 = vmul.f32 %v3435, %v5505
    %v5507 = vmul.f32 %v3436, %v5505
    %v5508 = vmul.f32 %v3437, %v5505
    %v5512 = vrot.slane %v5506, 4
    %v5513 = vrot.slane %v5507, 4
    %v5514 = vsel %vm145, %v5512, %v5513
    %v5515 = vrot.slane %v5508, 4
    %v5516 = vsel %vm145, %v5513, %v5515
    %v5519 = vadd.f32 %v5502, %v5514
    %v5520 = vadd.f32 %v5503, %v5516
    %s5521 = sld [smem:[#allocation2 + $0x9e]]
    %v5522 = vstv %s5521
    %v5523 = vmul.f32 %v3435, %v5522
    %v5524 = vmul.f32 %v3436, %v5522
    %v5525 = vmul.f32 %v3437, %v5522
    %v5529 = vrot.slane %v5523, 5
    %v5530 = vrot.slane %v5524, 5
    %v5531 = vsel %vm163, %v5529, %v5530
    %v5532 = vrot.slane %v5525, 5
    %v5533 = vsel %vm163, %v5530, %v5532
    %v5536 = vadd.f32 %v5519, %v5531
    %v5537 = vadd.f32 %v5520, %v5533
    %s5538 = sld [smem:[#allocation2 + $0xba]]
    %v5539 = vstv %s5538
    %v5540 = vmul.f32 %v3435, %v5539
    %v5541 = vmul.f32 %v3436, %v5539
    %v5542 = vmul.f32 %v3437, %v5539
    %v5546 = vrot.slane %v5540, 6
    %v5547 = vrot.slane %v5541, 6
    %v5548 = vsel %vm181, %v5546, %v5547
    %v5549 = vrot.slane %v5542, 6
    %v5550 = vsel %vm181, %v5547, %v5549
    %v5553 = vadd.f32 %v5536, %v5548
    %v5554 = vadd.f32 %v5537, %v5550
    %5555 = vrot.lane.b32.xlu0 %v5553, 2
    %v5556 = vpop.permute.xlu0 %5555
    %5557 = vrot.lane.b32.xlu0 %v5554, 2
    %v5558 = vpop.permute.xlu0 %5557
    %v5559 = vadd.f32 %v5111, %v5556
    %v5560 = vadd.f32 %v5112, %v5558
    %s5561 = sld [smem:[#allocation2 + $0x13]]
    %v5562 = vstv %s5561
    %v5563 = vmul.f32 %v3438, %v5562
    %v5564 = vmul.f32 %v3439, %v5562
    %s5565 = sld [smem:[#allocation2 + $0x2f]]
    %v5566 = vstv %s5565
    %v5567 = vmul.f32 %v3438, %v5566
    %v5568 = vmul.f32 %v3439, %v5566
    %v5569 = vmul.f32 %v3440, %v5566
    %v5573 = vrot.slane %v5567, 1
    %v5574 = vrot.slane %v5568, 1
    %v5575 = vsel %vm91, %v5573, %v5574
    %v5576 = vrot.slane %v5569, 1
    %v5577 = vsel %vm91, %v5574, %v5576
    %v5580 = vadd.f32 %v5563, %v5575
    %v5581 = vadd.f32 %v5564, %v5577
    %s5582 = sld [smem:[#allocation2 + $0x4b]]
    %v5583 = vstv %s5582
    %v5584 = vmul.f32 %v3438, %v5583
    %v5585 = vmul.f32 %v3439, %v5583
    %v5586 = vmul.f32 %v3440, %v5583
    %v5590 = vrot.slane %v5584, 2
    %v5591 = vrot.slane %v5585, 2
    %v5592 = vsel %vm109, %v5590, %v5591
    %v5593 = vrot.slane %v5586, 2
    %v5594 = vsel %vm109, %v5591, %v5593
    %v5597 = vadd.f32 %v5580, %v5592
    %v5598 = vadd.f32 %v5581, %v5594
    %s5599 = sld [smem:[#allocation2 + $0x67]]
    %v5600 = vstv %s5599
    %v5601 = vmul.f32 %v3438, %v5600
    %v5602 = vmul.f32 %v3439, %v5600
    %v5603 = vmul.f32 %v3440, %v5600
    %v5607 = vrot.slane %v5601, 3
    %v5608 = vrot.slane %v5602, 3
    %v5609 = vsel %vm127, %v5607, %v5608
    %v5610 = vrot.slane %v5603, 3
    %v5611 = vsel %vm127, %v5608, %v5610
    %v5614 = vadd.f32 %v5597, %v5609
    %v5615 = vadd.f32 %v5598, %v5611
    %s5616 = sld [smem:[#allocation2 + $0x83]]
    %v5617 = vstv %s5616
    %v5618 = vmul.f32 %v3438, %v5617
    %v5619 = vmul.f32 %v3439, %v5617
    %v5620 = vmul.f32 %v3440, %v5617
    %v5624 = vrot.slane %v5618, 4
    %v5625 = vrot.slane %v5619, 4
    %v5626 = vsel %vm145, %v5624, %v5625
    %v5627 = vrot.slane %v5620, 4
    %v5628 = vsel %vm145, %v5625, %v5627
    %v5631 = vadd.f32 %v5614, %v5626
    %v5632 = vadd.f32 %v5615, %v5628
    %s5633 = sld [smem:[#allocation2 + $0x9f]]
    %v5634 = vstv %s5633
    %v5635 = vmul.f32 %v3438, %v5634
    %v5636 = vmul.f32 %v3439, %v5634
    %v5637 = vmul.f32 %v3440, %v5634
    %v5641 = vrot.slane %v5635, 5
    %v5642 = vrot.slane %v5636, 5
    %v5643 = vsel %vm163, %v5641, %v5642
    %v5644 = vrot.slane %v5637, 5
    %v5645 = vsel %vm163, %v5642, %v5644
    %v5648 = vadd.f32 %v5631, %v5643
    %v5649 = vadd.f32 %v5632, %v5645
    %s5650 = sld [smem:[#allocation2 + $0xbb]]
    %v5651 = vstv %s5650
    %v5652 = vmul.f32 %v3438, %v5651
    %v5653 = vmul.f32 %v3439, %v5651
    %v5654 = vmul.f32 %v3440, %v5651
    %v5658 = vrot.slane %v5652, 6
    %v5659 = vrot.slane %v5653, 6
    %v5660 = vsel %vm181, %v5658, %v5659
    %v5661 = vrot.slane %v5654, 6
    %v5662 = vsel %vm181, %v5659, %v5661
    %v5665 = vadd.f32 %v5648, %v5660
    %v5666 = vadd.f32 %v5649, %v5662
    %5667 = vrot.lane.b32.xlu0 %v5665, 2
    %v5668 = vpop.permute.xlu0 %5667
    %5669 = vrot.lane.b32.xlu0 %v5666, 2
    %v5670 = vpop.permute.xlu0 %5669
    %v5671 = vadd.f32 %v5223, %v5668
    %v5672 = vadd.f32 %v5224, %v5670
    %s5673 = sld [smem:[#allocation2 + $0x14]]
    %v5674 = vstv %s5673
    %v5675 = vmul.f32 %v3429, %v5674
    %v5676 = vmul.f32 %v3430, %v5674
    %s5677 = sld [smem:[#allocation2 + $0x30]]
    %v5678 = vstv %s5677
    %v5679 = vmul.f32 %v3429, %v5678
    %v5680 = vmul.f32 %v3430, %v5678
    %v5681 = vmul.f32 %v3431, %v5678
    %v5685 = vrot.slane %v5679, 1
    %v5686 = vrot.slane %v5680, 1
    %v5687 = vsel %vm91, %v5685, %v5686
    %v5688 = vrot.slane %v5681, 1
    %v5689 = vsel %vm91, %v5686, %v5688
    %v5692 = vadd.f32 %v5675, %v5687
    %v5693 = vadd.f32 %v5676, %v5689
    %s5694 = sld [smem:[#allocation2 + $0x4c]]
    %v5695 = vstv %s5694
    %v5696 = vmul.f32 %v3429, %v5695
    %v5697 = vmul.f32 %v3430, %v5695
    %v5698 = vmul.f32 %v3431, %v5695
    %v5702 = vrot.slane %v5696, 2
    %v5703 = vrot.slane %v5697, 2
    %v5704 = vsel %vm109, %v5702, %v5703
    %v5705 = vrot.slane %v5698, 2
    %v5706 = vsel %vm109, %v5703, %v5705
    %v5709 = vadd.f32 %v5692, %v5704
    %v5710 = vadd.f32 %v5693, %v5706
    %s5711 = sld [smem:[#allocation2 + $0x68]]
    %v5712 = vstv %s5711
    %v5713 = vmul.f32 %v3429, %v5712
    %v5714 = vmul.f32 %v3430, %v5712
    %v5715 = vmul.f32 %v3431, %v5712
    %v5719 = vrot.slane %v5713, 3
    %v5720 = vrot.slane %v5714, 3
    %v5721 = vsel %vm127, %v5719, %v5720
    %v5722 = vrot.slane %v5715, 3
    %v5723 = vsel %vm127, %v5720, %v5722
    %v5726 = vadd.f32 %v5709, %v5721
    %v5727 = vadd.f32 %v5710, %v5723
    %s5728 = sld [smem:[#allocation2 + $0x84]]
    %v5729 = vstv %s5728
    %v5730 = vmul.f32 %v3429, %v5729
    %v5731 = vmul.f32 %v3430, %v5729
    %v5732 = vmul.f32 %v3431, %v5729
    %v5736 = vrot.slane %v5730, 4
    %v5737 = vrot.slane %v5731, 4
    %v5738 = vsel %vm145, %v5736, %v5737
    %v5739 = vrot.slane %v5732, 4
    %v5740 = vsel %vm145, %v5737, %v5739
    %v5743 = vadd.f32 %v5726, %v5738
    %v5744 = vadd.f32 %v5727, %v5740
    %s5745 = sld [smem:[#allocation2 + $0xa0]]
    %v5746 = vstv %s5745
    %v5747 = vmul.f32 %v3429, %v5746
    %v5748 = vmul.f32 %v3430, %v5746
    %v5749 = vmul.f32 %v3431, %v5746
    %v5753 = vrot.slane %v5747, 5
    %v5754 = vrot.slane %v5748, 5
    %v5755 = vsel %vm163, %v5753, %v5754
    %v5756 = vrot.slane %v5749, 5
    %v5757 = vsel %vm163, %v5754, %v5756
    %v5760 = vadd.f32 %v5743, %v5755
    %v5761 = vadd.f32 %v5744, %v5757
    %s5762 = sld [smem:[#allocation2 + $0xbc]]
    %v5763 = vstv %s5762
    %v5764 = vmul.f32 %v3429, %v5763
    %v5765 = vmul.f32 %v3430, %v5763
    %v5766 = vmul.f32 %v3431, %v5763
    %v5770 = vrot.slane %v5764, 6
    %v5771 = vrot.slane %v5765, 6
    %v5772 = vsel %vm181, %v5770, %v5771
    %v5773 = vrot.slane %v5766, 6
    %v5774 = vsel %vm181, %v5771, %v5773
    %v5777 = vadd.f32 %v5760, %v5772
    %v5778 = vadd.f32 %v5761, %v5774
    %5779 = vrot.lane.b32.xlu0 %v5777, 1
    %v5780 = vpop.permute.xlu0 %5779
    %5781 = vrot.lane.b32.xlu0 %v5778, 1
    %v5782 = vpop.permute.xlu0 %5781
    %v5783 = vadd.f32 %v5335, %v5780
    %v5784 = vadd.f32 %v5336, %v5782
    %s5785 = sld [smem:[#allocation2 + $0x15]]
    %v5786 = vstv %s5785
    %v5787 = vmul.f32 %v3432, %v5786
    %v5788 = vmul.f32 %v3433, %v5786
    %s5789 = sld [smem:[#allocation2 + $0x31]]
    %v5790 = vstv %s5789
    %v5791 = vmul.f32 %v3432, %v5790
    %v5792 = vmul.f32 %v3433, %v5790
    %v5793 = vmul.f32 %v3434, %v5790
    %v5797 = vrot.slane %v5791, 1
    %v5798 = vrot.slane %v5792, 1
    %v5799 = vsel %vm91, %v5797, %v5798
    %v5800 = vrot.slane %v5793, 1
    %v5801 = vsel %vm91, %v5798, %v5800
    %v5804 = vadd.f32 %v5787, %v5799
    %v5805 = vadd.f32 %v5788, %v5801
    %s5806 = sld [smem:[#allocation2 + $0x4d]]
    %v5807 = vstv %s5806
    %v5808 = vmul.f32 %v3432, %v5807
    %v5809 = vmul.f32 %v3433, %v5807
    %v5810 = vmul.f32 %v3434, %v5807
    %v5814 = vrot.slane %v5808, 2
    %v5815 = vrot.slane %v5809, 2
    %v5816 = vsel %vm109, %v5814, %v5815
    %v5817 = vrot.slane %v5810, 2
    %v5818 = vsel %vm109, %v5815, %v5817
    %v5821 = vadd.f32 %v5804, %v5816
    %v5822 = vadd.f32 %v5805, %v5818
    %s5823 = sld [smem:[#allocation2 + $0x69]]
    %v5824 = vstv %s5823
    %v5825 = vmul.f32 %v3432, %v5824
    %v5826 = vmul.f32 %v3433, %v5824
    %v5827 = vmul.f32 %v3434, %v5824
    %v5831 = vrot.slane %v5825, 3
    %v5832 = vrot.slane %v5826, 3
    %v5833 = vsel %vm127, %v5831, %v5832
    %v5834 = vrot.slane %v5827, 3
    %v5835 = vsel %vm127, %v5832, %v5834
    %v5838 = vadd.f32 %v5821, %v5833
    %v5839 = vadd.f32 %v5822, %v5835
    %s5840 = sld [smem:[#allocation2 + $0x85]]
    %v5841 = vstv %s5840
    %v5842 = vmul.f32 %v3432, %v5841
    %v5843 = vmul.f32 %v3433, %v5841
    %v5844 = vmul.f32 %v3434, %v5841
    %v5848 = vrot.slane %v5842, 4
    %v5849 = vrot.slane %v5843, 4
    %v5850 = vsel %vm145, %v5848, %v5849
    %v5851 = vrot.slane %v5844, 4
    %v5852 = vsel %vm145, %v5849, %v5851
    %v5855 = vadd.f32 %v5838, %v5850
    %v5856 = vadd.f32 %v5839, %v5852
    %s5857 = sld [smem:[#allocation2 + $0xa1]]
    %v5858 = vstv %s5857
    %v5859 = vmul.f32 %v3432, %v5858
    %v5860 = vmul.f32 %v3433, %v5858
    %v5861 = vmul.f32 %v3434, %v5858
    %v5865 = vrot.slane %v5859, 5
    %v5866 = vrot.slane %v5860, 5
    %v5867 = vsel %vm163, %v5865, %v5866
    %v5868 = vrot.slane %v5861, 5
    %v5869 = vsel %vm163, %v5866, %v5868
    %v5872 = vadd.f32 %v5855, %v5867
    %v5873 = vadd.f32 %v5856, %v5869
    %s5874 = sld [smem:[#allocation2 + $0xbd]]
    %v5875 = vstv %s5874
    %v5876 = vmul.f32 %v3432, %v5875
    %v5877 = vmul.f32 %v3433, %v5875
    %v5878 = vmul.f32 %v3434, %v5875
    %v5882 = vrot.slane %v5876, 6
    %v5883 = vrot.slane %v5877, 6
    %v5884 = vsel %vm181, %v5882, %v5883
    %v5885 = vrot.slane %v5878, 6
    %v5886 = vsel %vm181, %v5883, %v5885
    %v5889 = vadd.f32 %v5872, %v5884
    %v5890 = vadd.f32 %v5873, %v5886
    %5891 = vrot.lane.b32.xlu0 %v5889, 1
    %v5892 = vpop.permute.xlu0 %5891
    %5893 = vrot.lane.b32.xlu0 %v5890, 1
    %v5894 = vpop.permute.xlu0 %5893
    %v5895 = vadd.f32 %v5447, %v5892
    %v5896 = vadd.f32 %v5448, %v5894
    %s5897 = sld [smem:[#allocation2 + $0x16]]
    %v5898 = vstv %s5897
    %v5899 = vmul.f32 %v3435, %v5898
    %v5900 = vmul.f32 %v3436, %v5898
    %s5901 = sld [smem:[#allocation2 + $0x32]]
    %v5902 = vstv %s5901
    %v5903 = vmul.f32 %v3435, %v5902
    %v5904 = vmul.f32 %v3436, %v5902
    %v5905 = vmul.f32 %v3437, %v5902
    %v5909 = vrot.slane %v5903, 1
    %v5910 = vrot.slane %v5904, 1
    %v5911 = vsel %vm91, %v5909, %v5910
    %v5912 = vrot.slane %v5905, 1
    %v5913 = vsel %vm91, %v5910, %v5912
    %v5916 = vadd.f32 %v5899, %v5911
    %v5917 = vadd.f32 %v5900, %v5913
    %s5918 = sld [smem:[#allocation2 + $0x4e]]
    %v5919 = vstv %s5918
    %v5920 = vmul.f32 %v3435, %v5919
    %v5921 = vmul.f32 %v3436, %v5919
    %v5922 = vmul.f32 %v3437, %v5919
    %v5926 = vrot.slane %v5920, 2
    %v5927 = vrot.slane %v5921, 2
    %v5928 = vsel %vm109, %v5926, %v5927
    %v5929 = vrot.slane %v5922, 2
    %v5930 = vsel %vm109, %v5927, %v5929
    %v5933 = vadd.f32 %v5916, %v5928
    %v5934 = vadd.f32 %v5917, %v5930
    %s5935 = sld [smem:[#allocation2 + $0x6a]]
    %v5936 = vstv %s5935
    %v5937 = vmul.f32 %v3435, %v5936
    %v5938 = vmul.f32 %v3436, %v5936
    %v5939 = vmul.f32 %v3437, %v5936
    %v5943 = vrot.slane %v5937, 3
    %v5944 = vrot.slane %v5938, 3
    %v5945 = vsel %vm127, %v5943, %v5944
    %v5946 = vrot.slane %v5939, 3
    %v5947 = vsel %vm127, %v5944, %v5946
    %v5950 = vadd.f32 %v5933, %v5945
    %v5951 = vadd.f32 %v5934, %v5947
    %s5952 = sld [smem:[#allocation2 + $0x86]]
    %v5953 = vstv %s5952
    %v5954 = vmul.f32 %v3435, %v5953
    %v5955 = vmul.f32 %v3436, %v5953
    %v5956 = vmul.f32 %v3437, %v5953
    %v5960 = vrot.slane %v5954, 4
    %v5961 = vrot.slane %v5955, 4
    %v5962 = vsel %vm145, %v5960, %v5961
    %v5963 = vrot.slane %v5956, 4
    %v5964 = vsel %vm145, %v5961, %v5963
    %v5967 = vadd.f32 %v5950, %v5962
    %v5968 = vadd.f32 %v5951, %v5964
    %s5969 = sld [smem:[#allocation2 + $0xa2]]
    %v5970 = vstv %s5969
    %v5971 = vmul.f32 %v3435, %v5970
    %v5972 = vmul.f32 %v3436, %v5970
    %v5973 = vmul.f32 %v3437, %v5970
    %v5977 = vrot.slane %v5971, 5
    %v5978 = vrot.slane %v5972, 5
    %v5979 = vsel %vm163, %v5977, %v5978
    %v5980 = vrot.slane %v5973, 5
    %v5981 = vsel %vm163, %v5978, %v5980
    %v5984 = vadd.f32 %v5967, %v5979
    %v5985 = vadd.f32 %v5968, %v5981
    %s5986 = sld [smem:[#allocation2 + $0xbe]]
    %v5987 = vstv %s5986
    %v5988 = vmul.f32 %v3435, %v5987
    %v5989 = vmul.f32 %v3436, %v5987
    %v5990 = vmul.f32 %v3437, %v5987
    %v5994 = vrot.slane %v5988, 6
    %v5995 = vrot.slane %v5989, 6
    %v5996 = vsel %vm181, %v5994, %v5995
    %v5997 = vrot.slane %v5990, 6
    %v5998 = vsel %vm181, %v5995, %v5997
    %v6001 = vadd.f32 %v5984, %v5996
    %v6002 = vadd.f32 %v5985, %v5998
    %6003 = vrot.lane.b32.xlu0 %v6001, 1
    %v6004 = vpop.permute.xlu0 %6003
    %6005 = vrot.lane.b32.xlu0 %v6002, 1
    %v6006 = vpop.permute.xlu0 %6005
    %v6007 = vadd.f32 %v5559, %v6004
    %v6008 = vadd.f32 %v5560, %v6006
    %s6009 = sld [smem:[#allocation2 + $0x17]]
    %v6010 = vstv %s6009
    %v6011 = vmul.f32 %v3438, %v6010
    %v6012 = vmul.f32 %v3439, %v6010
    %s6013 = sld [smem:[#allocation2 + $0x33]]
    %v6014 = vstv %s6013
    %v6015 = vmul.f32 %v3438, %v6014
    %v6016 = vmul.f32 %v3439, %v6014
    %v6017 = vmul.f32 %v3440, %v6014
    %v6021 = vrot.slane %v6015, 1
    %v6022 = vrot.slane %v6016, 1
    %v6023 = vsel %vm91, %v6021, %v6022
    %v6024 = vrot.slane %v6017, 1
    %v6025 = vsel %vm91, %v6022, %v6024
    %v6028 = vadd.f32 %v6011, %v6023
    %v6029 = vadd.f32 %v6012, %v6025
    %s6030 = sld [smem:[#allocation2 + $0x4f]]
    %v6031 = vstv %s6030
    %v6032 = vmul.f32 %v3438, %v6031
    %v6033 = vmul.f32 %v3439, %v6031
    %v6034 = vmul.f32 %v3440, %v6031
    %v6038 = vrot.slane %v6032, 2
    %v6039 = vrot.slane %v6033, 2
    %v6040 = vsel %vm109, %v6038, %v6039
    %v6041 = vrot.slane %v6034, 2
    %v6042 = vsel %vm109, %v6039, %v6041
    %v6045 = vadd.f32 %v6028, %v6040
    %v6046 = vadd.f32 %v6029, %v6042
    %s6047 = sld [smem:[#allocation2 + $0x6b]]
    %v6048 = vstv %s6047
    %v6049 = vmul.f32 %v3438, %v6048
    %v6050 = vmul.f32 %v3439, %v6048
    %v6051 = vmul.f32 %v3440, %v6048
    %v6055 = vrot.slane %v6049, 3
    %v6056 = vrot.slane %v6050, 3
    %v6057 = vsel %vm127, %v6055, %v6056
    %v6058 = vrot.slane %v6051, 3
    %v6059 = vsel %vm127, %v6056, %v6058
    %v6062 = vadd.f32 %v6045, %v6057
    %v6063 = vadd.f32 %v6046, %v6059
    %s6064 = sld [smem:[#allocation2 + $0x87]]
    %v6065 = vstv %s6064
    %v6066 = vmul.f32 %v3438, %v6065
    %v6067 = vmul.f32 %v3439, %v6065
    %v6068 = vmul.f32 %v3440, %v6065
    %v6072 = vrot.slane %v6066, 4
    %v6073 = vrot.slane %v6067, 4
    %v6074 = vsel %vm145, %v6072, %v6073
    %v6075 = vrot.slane %v6068, 4
    %v6076 = vsel %vm145, %v6073, %v6075
    %v6079 = vadd.f32 %v6062, %v6074
    %v6080 = vadd.f32 %v6063, %v6076
    %s6081 = sld [smem:[#allocation2 + $0xa3]]
    %v6082 = vstv %s6081
    %v6083 = vmul.f32 %v3438, %v6082
    %v6084 = vmul.f32 %v3439, %v6082
    %v6085 = vmul.f32 %v3440, %v6082
    %v6089 = vrot.slane %v6083, 5
    %v6090 = vrot.slane %v6084, 5
    %v6091 = vsel %vm163, %v6089, %v6090
    %v6092 = vrot.slane %v6085, 5
    %v6093 = vsel %vm163, %v6090, %v6092
    %v6096 = vadd.f32 %v6079, %v6091
    %v6097 = vadd.f32 %v6080, %v6093
    %s6098 = sld [smem:[#allocation2 + $0xbf]]
    %v6099 = vstv %s6098
    %v6100 = vmul.f32 %v3438, %v6099
    %v6101 = vmul.f32 %v3439, %v6099
    %v6102 = vmul.f32 %v3440, %v6099
    %v6106 = vrot.slane %v6100, 6
    %v6107 = vrot.slane %v6101, 6
    %v6108 = vsel %vm181, %v6106, %v6107
    %v6109 = vrot.slane %v6102, 6
    %v6110 = vsel %vm181, %v6107, %v6109
    %v6113 = vadd.f32 %v6096, %v6108
    %v6114 = vadd.f32 %v6097, %v6110
    %6115 = vrot.lane.b32.xlu0 %v6113, 1
    %v6116 = vpop.permute.xlu0 %6115
    %6117 = vrot.lane.b32.xlu0 %v6114, 1
    %v6118 = vpop.permute.xlu0 %6117
    %v6119 = vadd.f32 %v5671, %v6116
    %v6120 = vadd.f32 %v5672, %v6118
    %s6121 = sld [smem:[#allocation2 + $0x18]]
    %v6122 = vstv %s6121
    %v6123 = vmul.f32 %v3429, %v6122
    %v6124 = vmul.f32 %v3430, %v6122
    %s6125 = sld [smem:[#allocation2 + $0x34]]
    %v6126 = vstv %s6125
    %v6127 = vmul.f32 %v3429, %v6126
    %v6128 = vmul.f32 %v3430, %v6126
    %v6129 = vmul.f32 %v3431, %v6126
    %v6133 = vrot.slane %v6127, 1
    %v6134 = vrot.slane %v6128, 1
    %v6135 = vsel %vm91, %v6133, %v6134
    %v6136 = vrot.slane %v6129, 1
    %v6137 = vsel %vm91, %v6134, %v6136
    %v6140 = vadd.f32 %v6123, %v6135
    %v6141 = vadd.f32 %v6124, %v6137
    %s6142 = sld [smem:[#allocation2 + $0x50]]
    %v6143 = vstv %s6142
    %v6144 = vmul.f32 %v3429, %v6143
    %v6145 = vmul.f32 %v3430, %v6143
    %v6146 = vmul.f32 %v3431, %v6143
    %v6150 = vrot.slane %v6144, 2
    %v6151 = vrot.slane %v6145, 2
    %v6152 = vsel %vm109, %v6150, %v6151
    %v6153 = vrot.slane %v6146, 2
    %v6154 = vsel %vm109, %v6151, %v6153
    %v6157 = vadd.f32 %v6140, %v6152
    %v6158 = vadd.f32 %v6141, %v6154
    %s6159 = sld [smem:[#allocation2 + $0x6c]]
    %v6160 = vstv %s6159
    %v6161 = vmul.f32 %v3429, %v6160
    %v6162 = vmul.f32 %v3430, %v6160
    %v6163 = vmul.f32 %v3431, %v6160
    %v6167 = vrot.slane %v6161, 3
    %v6168 = vrot.slane %v6162, 3
    %v6169 = vsel %vm127, %v6167, %v6168
    %v6170 = vrot.slane %v6163, 3
    %v6171 = vsel %vm127, %v6168, %v6170
    %v6174 = vadd.f32 %v6157, %v6169
    %v6175 = vadd.f32 %v6158, %v6171
    %s6176 = sld [smem:[#allocation2 + $0x88]]
    %v6177 = vstv %s6176
    %v6178 = vmul.f32 %v3429, %v6177
    %v6179 = vmul.f32 %v3430, %v6177
    %v6180 = vmul.f32 %v3431, %v6177
    %v6184 = vrot.slane %v6178, 4
    %v6185 = vrot.slane %v6179, 4
    %v6186 = vsel %vm145, %v6184, %v6185
    %v6187 = vrot.slane %v6180, 4
    %v6188 = vsel %vm145, %v6185, %v6187
    %v6191 = vadd.f32 %v6174, %v6186
    %v6192 = vadd.f32 %v6175, %v6188
    %s6193 = sld [smem:[#allocation2 + $0xa4]]
    %v6194 = vstv %s6193
    %v6195 = vmul.f32 %v3429, %v6194
    %v6196 = vmul.f32 %v3430, %v6194
    %v6197 = vmul.f32 %v3431, %v6194
    %v6201 = vrot.slane %v6195, 5
    %v6202 = vrot.slane %v6196, 5
    %v6203 = vsel %vm163, %v6201, %v6202
    %v6204 = vrot.slane %v6197, 5
    %v6205 = vsel %vm163, %v6202, %v6204
    %v6208 = vadd.f32 %v6191, %v6203
    %v6209 = vadd.f32 %v6192, %v6205
    %s6210 = sld [smem:[#allocation2 + $0xc0]]
    %v6211 = vstv %s6210
    %v6212 = vmul.f32 %v3429, %v6211
    %v6213 = vmul.f32 %v3430, %v6211
    %v6214 = vmul.f32 %v3431, %v6211
    %v6218 = vrot.slane %v6212, 6
    %v6219 = vrot.slane %v6213, 6
    %v6220 = vsel %vm181, %v6218, %v6219
    %v6221 = vrot.slane %v6214, 6
    %v6222 = vsel %vm181, %v6219, %v6221
    %v6225 = vadd.f32 %v6208, %v6220
    %v6226 = vadd.f32 %v6209, %v6222
    %v6227 = vadd.f32 %v5783, %v6225
    %v6228 = vadd.f32 %v5784, %v6226
    %s6229 = sld [smem:[#allocation2 + $0x19]]
    %v6230 = vstv %s6229
    %v6231 = vmul.f32 %v3432, %v6230
    %v6232 = vmul.f32 %v3433, %v6230
    %s6233 = sld [smem:[#allocation2 + $0x35]]
    %v6234 = vstv %s6233
    %v6235 = vmul.f32 %v3432, %v6234
    %v6236 = vmul.f32 %v3433, %v6234
    %v6237 = vmul.f32 %v3434, %v6234
    %v6241 = vrot.slane %v6235, 1
    %v6242 = vrot.slane %v6236, 1
    %v6243 = vsel %vm91, %v6241, %v6242
    %v6244 = vrot.slane %v6237, 1
    %v6245 = vsel %vm91, %v6242, %v6244
    %v6248 = vadd.f32 %v6231, %v6243
    %v6249 = vadd.f32 %v6232, %v6245
    %s6250 = sld [smem:[#allocation2 + $0x51]]
    %v6251 = vstv %s6250
    %v6252 = vmul.f32 %v3432, %v6251
    %v6253 = vmul.f32 %v3433, %v6251
    %v6254 = vmul.f32 %v3434, %v6251
    %v6258 = vrot.slane %v6252, 2
    %v6259 = vrot.slane %v6253, 2
    %v6260 = vsel %vm109, %v6258, %v6259
    %v6261 = vrot.slane %v6254, 2
    %v6262 = vsel %vm109, %v6259, %v6261
    %v6265 = vadd.f32 %v6248, %v6260
    %v6266 = vadd.f32 %v6249, %v6262
    %s6267 = sld [smem:[#allocation2 + $0x6d]]
    %v6268 = vstv %s6267
    %v6269 = vmul.f32 %v3432, %v6268
    %v6270 = vmul.f32 %v3433, %v6268
    %v6271 = vmul.f32 %v3434, %v6268
    %v6275 = vrot.slane %v6269, 3
    %v6276 = vrot.slane %v6270, 3
    %v6277 = vsel %vm127, %v6275, %v6276
    %v6278 = vrot.slane %v6271, 3
    %v6279 = vsel %vm127, %v6276, %v6278
    %v6282 = vadd.f32 %v6265, %v6277
    %v6283 = vadd.f32 %v6266, %v6279
    %s6284 = sld [smem:[#allocation2 + $0x89]]
    %v6285 = vstv %s6284
    %v6286 = vmul.f32 %v3432, %v6285
    %v6287 = vmul.f32 %v3433, %v6285
    %v6288 = vmul.f32 %v3434, %v6285
    %v6292 = vrot.slane %v6286, 4
    %v6293 = vrot.slane %v6287, 4
    %v6294 = vsel %vm145, %v6292, %v6293
    %v6295 = vrot.slane %v6288, 4
    %v6296 = vsel %vm145, %v6293, %v6295
    %v6299 = vadd.f32 %v6282, %v6294
    %v6300 = vadd.f32 %v6283, %v6296
    %s6301 = sld [smem:[#allocation2 + $0xa5]]
    %v6302 = vstv %s6301
    %v6303 = vmul.f32 %v3432, %v6302
    %v6304 = vmul.f32 %v3433, %v6302
    %v6305 = vmul.f32 %v3434, %v6302
    %v6309 = vrot.slane %v6303, 5
    %v6310 = vrot.slane %v6304, 5
    %v6311 = vsel %vm163, %v6309, %v6310
    %v6312 = vrot.slane %v6305, 5
    %v6313 = vsel %vm163, %v6310, %v6312
    %v6316 = vadd.f32 %v6299, %v6311
    %v6317 = vadd.f32 %v6300, %v6313
    %s6318 = sld [smem:[#allocation2 + $0xc1]]
    %v6319 = vstv %s6318
    %v6320 = vmul.f32 %v3432, %v6319
    %v6321 = vmul.f32 %v3433, %v6319
    %v6322 = vmul.f32 %v3434, %v6319
    %v6326 = vrot.slane %v6320, 6
    %v6327 = vrot.slane %v6321, 6
    %v6328 = vsel %vm181, %v6326, %v6327
    %v6329 = vrot.slane %v6322, 6
    %v6330 = vsel %vm181, %v6327, %v6329
    %v6333 = vadd.f32 %v6316, %v6328
    %v6334 = vadd.f32 %v6317, %v6330
    %v6335 = vadd.f32 %v5895, %v6333
    %v6336 = vadd.f32 %v5896, %v6334
    %s6337 = sld [smem:[#allocation2 + $0x1a]]
    %v6338 = vstv %s6337
    %v6339 = vmul.f32 %v3435, %v6338
    %v6340 = vmul.f32 %v3436, %v6338
    %s6341 = sld [smem:[#allocation2 + $0x36]]
    %v6342 = vstv %s6341
    %v6343 = vmul.f32 %v3435, %v6342
    %v6344 = vmul.f32 %v3436, %v6342
    %v6345 = vmul.f32 %v3437, %v6342
    %v6349 = vrot.slane %v6343, 1
    %v6350 = vrot.slane %v6344, 1
    %v6351 = vsel %vm91, %v6349, %v6350
    %v6352 = vrot.slane %v6345, 1
    %v6353 = vsel %vm91, %v6350, %v6352
    %v6356 = vadd.f32 %v6339, %v6351
    %v6357 = vadd.f32 %v6340, %v6353
    %s6358 = sld [smem:[#allocation2 + $0x52]]
    %v6359 = vstv %s6358
    %v6360 = vmul.f32 %v3435, %v6359
    %v6361 = vmul.f32 %v3436, %v6359
    %v6362 = vmul.f32 %v3437, %v6359
    %v6366 = vrot.slane %v6360, 2
    %v6367 = vrot.slane %v6361, 2
    %v6368 = vsel %vm109, %v6366, %v6367
    %v6369 = vrot.slane %v6362, 2
    %v6370 = vsel %vm109, %v6367, %v6369
    %v6373 = vadd.f32 %v6356, %v6368
    %v6374 = vadd.f32 %v6357, %v6370
    %s6375 = sld [smem:[#allocation2 + $0x6e]]
    %v6376 = vstv %s6375
    %v6377 = vmul.f32 %v3435, %v6376
    %v6378 = vmul.f32 %v3436, %v6376
    %v6379 = vmul.f32 %v3437, %v6376
    %v6383 = vrot.slane %v6377, 3
    %v6384 = vrot.slane %v6378, 3
    %v6385 = vsel %vm127, %v6383, %v6384
    %v6386 = vrot.slane %v6379, 3
    %v6387 = vsel %vm127, %v6384, %v6386
    %v6390 = vadd.f32 %v6373, %v6385
    %v6391 = vadd.f32 %v6374, %v6387
    %s6392 = sld [smem:[#allocation2 + $0x8a]]
    %v6393 = vstv %s6392
    %v6394 = vmul.f32 %v3435, %v6393
    %v6395 = vmul.f32 %v3436, %v6393
    %v6396 = vmul.f32 %v3437, %v6393
    %v6400 = vrot.slane %v6394, 4
    %v6401 = vrot.slane %v6395, 4
    %v6402 = vsel %vm145, %v6400, %v6401
    %v6403 = vrot.slane %v6396, 4
    %v6404 = vsel %vm145, %v6401, %v6403
    %v6407 = vadd.f32 %v6390, %v6402
    %v6408 = vadd.f32 %v6391, %v6404
    %s6409 = sld [smem:[#allocation2 + $0xa6]]
    %v6410 = vstv %s6409
    %v6411 = vmul.f32 %v3435, %v6410
    %v6412 = vmul.f32 %v3436, %v6410
    %v6413 = vmul.f32 %v3437, %v6410
    %v6417 = vrot.slane %v6411, 5
    %v6418 = vrot.slane %v6412, 5
    %v6419 = vsel %vm163, %v6417, %v6418
    %v6420 = vrot.slane %v6413, 5
    %v6421 = vsel %vm163, %v6418, %v6420
    %v6424 = vadd.f32 %v6407, %v6419
    %v6425 = vadd.f32 %v6408, %v6421
    %s6426 = sld [smem:[#allocation2 + $0xc2]]
    %v6427 = vstv %s6426
    %v6428 = vmul.f32 %v3435, %v6427
    %v6429 = vmul.f32 %v3436, %v6427
    %v6430 = vmul.f32 %v3437, %v6427
    %v6434 = vrot.slane %v6428, 6
    %v6435 = vrot.slane %v6429, 6
    %v6436 = vsel %vm181, %v6434, %v6435
    %v6437 = vrot.slane %v6430, 6
    %v6438 = vsel %vm181, %v6435, %v6437
    %v6441 = vadd.f32 %v6424, %v6436
    %v6442 = vadd.f32 %v6425, %v6438
    %v6443 = vadd.f32 %v6007, %v6441
    %v6444 = vadd.f32 %v6008, %v6442
    %s6445 = sld [smem:[#allocation2 + $0x1b]]
    %v6446 = vstv %s6445
    %v6447 = vmul.f32 %v3438, %v6446
    %v6448 = vmul.f32 %v3439, %v6446
    %s6449 = sld [smem:[#allocation2 + $0x37]]
    %v6450 = vstv %s6449
    %v6451 = vmul.f32 %v3438, %v6450
    %v6452 = vmul.f32 %v3439, %v6450
    %v6453 = vmul.f32 %v3440, %v6450
    %v6457 = vrot.slane %v6451, 1
    %v6458 = vrot.slane %v6452, 1
    %v6459 = vsel %vm91, %v6457, %v6458
    %v6460 = vrot.slane %v6453, 1
    %v6461 = vsel %vm91, %v6458, %v6460
    %v6464 = vadd.f32 %v6447, %v6459
    %v6465 = vadd.f32 %v6448, %v6461
    %s6466 = sld [smem:[#allocation2 + $0x53]]
    %v6467 = vstv %s6466
    %v6468 = vmul.f32 %v3438, %v6467
    %v6469 = vmul.f32 %v3439, %v6467
    %v6470 = vmul.f32 %v3440, %v6467
    %v6474 = vrot.slane %v6468, 2
    %v6475 = vrot.slane %v6469, 2
    %v6476 = vsel %vm109, %v6474, %v6475
    %v6477 = vrot.slane %v6470, 2
    %v6478 = vsel %vm109, %v6475, %v6477
    %v6481 = vadd.f32 %v6464, %v6476
    %v6482 = vadd.f32 %v6465, %v6478
    %s6483 = sld [smem:[#allocation2 + $0x6f]]
    %v6484 = vstv %s6483
    %v6485 = vmul.f32 %v3438, %v6484
    %v6486 = vmul.f32 %v3439, %v6484
    %v6487 = vmul.f32 %v3440, %v6484
    %v6491 = vrot.slane %v6485, 3
    %v6492 = vrot.slane %v6486, 3
    %v6493 = vsel %vm127, %v6491, %v6492
    %v6494 = vrot.slane %v6487, 3
    %v6495 = vsel %vm127, %v6492, %v6494
    %v6498 = vadd.f32 %v6481, %v6493
    %v6499 = vadd.f32 %v6482, %v6495
    %s6500 = sld [smem:[#allocation2 + $0x8b]]
    %v6501 = vstv %s6500
    %v6502 = vmul.f32 %v3438, %v6501
    %v6503 = vmul.f32 %v3439, %v6501
    %v6504 = vmul.f32 %v3440, %v6501
    %v6508 = vrot.slane %v6502, 4
    %v6509 = vrot.slane %v6503, 4
    %v6510 = vsel %vm145, %v6508, %v6509
    %v6511 = vrot.slane %v6504, 4
    %v6512 = vsel %vm145, %v6509, %v6511
    %v6515 = vadd.f32 %v6498, %v6510
    %v6516 = vadd.f32 %v6499, %v6512
    %s6517 = sld [smem:[#allocation2 + $0xa7]]
    %v6518 = vstv %s6517
    %v6519 = vmul.f32 %v3438, %v6518
    %v6520 = vmul.f32 %v3439, %v6518
    %v6521 = vmul.f32 %v3440, %v6518
    %v6525 = vrot.slane %v6519, 5
    %v6526 = vrot.slane %v6520, 5
    %v6527 = vsel %vm163, %v6525, %v6526
    %v6528 = vrot.slane %v6521, 5
    %v6529 = vsel %vm163, %v6526, %v6528
    %v6532 = vadd.f32 %v6515, %v6527
    %v6533 = vadd.f32 %v6516, %v6529
    %s6534 = sld [smem:[#allocation2 + $0xc3]]
    %v6535 = vstv %s6534
    %v6536 = vmul.f32 %v3438, %v6535
    %v6537 = vmul.f32 %v3439, %v6535
    %v6538 = vmul.f32 %v3440, %v6535
    %v6542 = vrot.slane %v6536, 6
    %v6543 = vrot.slane %v6537, 6
    %v6544 = vsel %vm181, %v6542, %v6543
    %v6545 = vrot.slane %v6538, 6
    %v6546 = vsel %vm181, %v6543, %v6545
    %v6549 = vadd.f32 %v6532, %v6544
    %v6550 = vadd.f32 %v6533, %v6546
    %v6551 = vadd.f32 %v6119, %v6549
    %v6552 = vadd.f32 %v6120, %v6550
    %s6553 = sld [smem:[#allocation7]]
    %v6554 = vstv %s6553
    %v6555 = vmul.f32 %v6227, %v6554
    %v6556 = vmul.f32 %v6228, %v6554
    %s6557 = sld [smem:[#allocation7 + $0x8]]
    %v6558 = vstv %s6557
    %v6559 = vmul.f32 %v6335, %v6558
    %v6560 = vmul.f32 %v6336, %v6558
    %v6561 = vadd.f32 %v6555, %v6559
    %v6562 = vadd.f32 %v6556, %v6560
    %s6563 = sld [smem:[#allocation7 + $0x10]]
    %v6564 = vstv %s6563
    %v6565 = vmul.f32 %v6443, %v6564
    %v6566 = vmul.f32 %v6444, %v6564
    %v6567 = vadd.f32 %v6561, %v6565
    %v6568 = vadd.f32 %v6562, %v6566
    %s6569 = sld [smem:[#allocation7 + $0x18]]
    %v6570 = vstv %s6569
    %v6571 = vmul.f32 %v6551, %v6570
    %v6572 = vmul.f32 %v6552, %v6570
    %v6573 = vadd.f32 %v6567, %v6571
    %v6574 = vadd.f32 %v6568, %v6572
    %s6575 = sld [smem:[#allocation8]]
    %v6576 = vstv %s6575
    %v6577 = vadd.f32 %v6573, %v6576
    %v6578 = vadd.f32 %v6574, %v6576
    %s6579 = scalar_lea.vmem [#allocation11], 128
    %6580 = vst [vmem:[%s6579] sm:$0xff] %v6577
    %6581 = vst [vmem:[%s6579 + $0x8] sm:$0xff] %v6578
    %s6582 = sld [smem:[#allocation7 + $0x1]]
    %v6583 = vstv %s6582
    %v6584 = vmul.f32 %v6227, %v6583
    %v6585 = vmul.f32 %v6228, %v6583
    %s6586 = sld [smem:[#allocation7 + $0x9]]
    %v6587 = vstv %s6586
    %v6588 = vmul.f32 %v6335, %v6587
    %v6589 = vmul.f32 %v6336, %v6587
    %v6590 = vadd.f32 %v6584, %v6588
    %v6591 = vadd.f32 %v6585, %v6589
    %s6592 = sld [smem:[#allocation7 + $0x11]]
    %v6593 = vstv %s6592
    %v6594 = vmul.f32 %v6443, %v6593
    %v6595 = vmul.f32 %v6444, %v6593
    %v6596 = vadd.f32 %v6590, %v6594
    %v6597 = vadd.f32 %v6591, %v6595
    %s6598 = sld [smem:[#allocation7 + $0x19]]
    %v6599 = vstv %s6598
    %v6600 = vmul.f32 %v6551, %v6599
    %v6601 = vmul.f32 %v6552, %v6599
    %v6602 = vadd.f32 %v6596, %v6600
    %v6603 = vadd.f32 %v6597, %v6601
    %s6604 = sld [smem:[#allocation8 + $0x1]]
    %v6605 = vstv %s6604
    %v6606 = vadd.f32 %v6602, %v6605
    %v6607 = vadd.f32 %v6603, %v6605
    %s6608 = scalar_lea.vmem [#allocation11], 144
    %6609 = vst [vmem:[%s6608] sm:$0xff] %v6606
    %6610 = vst [vmem:[%s6608 + $0x8] sm:$0xff] %v6607
    %s6611 = sld [smem:[#allocation7 + $0x2]]
    %v6612 = vstv %s6611
    %v6613 = vmul.f32 %v6227, %v6612
    %v6614 = vmul.f32 %v6228, %v6612
    %s6615 = sld [smem:[#allocation7 + $0xa]]
    %v6616 = vstv %s6615
    %v6617 = vmul.f32 %v6335, %v6616
    %v6618 = vmul.f32 %v6336, %v6616
    %v6619 = vadd.f32 %v6613, %v6617
    %v6620 = vadd.f32 %v6614, %v6618
    %s6621 = sld [smem:[#allocation7 + $0x12]]
    %v6622 = vstv %s6621
    %v6623 = vmul.f32 %v6443, %v6622
    %v6624 = vmul.f32 %v6444, %v6622
    %v6625 = vadd.f32 %v6619, %v6623
    %v6626 = vadd.f32 %v6620, %v6624
    %s6627 = sld [smem:[#allocation7 + $0x1a]]
    %v6628 = vstv %s6627
    %v6629 = vmul.f32 %v6551, %v6628
    %v6630 = vmul.f32 %v6552, %v6628
    %v6631 = vadd.f32 %v6625, %v6629
    %v6632 = vadd.f32 %v6626, %v6630
    %s6633 = sld [smem:[#allocation8 + $0x2]]
    %v6634 = vstv %s6633
    %v6635 = vadd.f32 %v6631, %v6634
    %v6636 = vadd.f32 %v6632, %v6634
    %s6637 = scalar_lea.vmem [#allocation11], 160
    %6638 = vst [vmem:[%s6637] sm:$0xff] %v6635
    %6639 = vst [vmem:[%s6637 + $0x8] sm:$0xff] %v6636
    %s6640 = sld [smem:[#allocation7 + $0x3]]
    %v6641 = vstv %s6640
    %v6642 = vmul.f32 %v6227, %v6641
    %v6643 = vmul.f32 %v6228, %v6641
    %s6644 = sld [smem:[#allocation7 + $0xb]]
    %v6645 = vstv %s6644
    %v6646 = vmul.f32 %v6335, %v6645
    %v6647 = vmul.f32 %v6336, %v6645
    %v6648 = vadd.f32 %v6642, %v6646
    %v6649 = vadd.f32 %v6643, %v6647
    %s6650 = sld [smem:[#allocation7 + $0x13]]
    %v6651 = vstv %s6650
    %v6652 = vmul.f32 %v6443, %v6651
    %v6653 = vmul.f32 %v6444, %v6651
    %v6654 = vadd.f32 %v6648, %v6652
    %v6655 = vadd.f32 %v6649, %v6653
    %s6656 = sld [smem:[#allocation7 + $0x1b]]
    %v6657 = vstv %s6656
    %v6658 = vmul.f32 %v6551, %v6657
    %v6659 = vmul.f32 %v6552, %v6657
    %v6660 = vadd.f32 %v6654, %v6658
    %v6661 = vadd.f32 %v6655, %v6659
    %s6662 = sld [smem:[#allocation8 + $0x3]]
    %v6663 = vstv %s6662
    %v6664 = vadd.f32 %v6660, %v6663
    %v6665 = vadd.f32 %v6661, %v6663
    %s6666 = scalar_lea.vmem [#allocation11], 176
    %6667 = vst [vmem:[%s6666] sm:$0xff] %v6664
    %6668 = vst [vmem:[%s6666 + $0x8] sm:$0xff] %v6665
    %s6669 = sld [smem:[#allocation7 + $0x4]]
    %v6670 = vstv %s6669
    %v6671 = vmul.f32 %v6227, %v6670
    %v6672 = vmul.f32 %v6228, %v6670
    %s6673 = sld [smem:[#allocation7 + $0xc]]
    %v6674 = vstv %s6673
    %v6675 = vmul.f32 %v6335, %v6674
    %v6676 = vmul.f32 %v6336, %v6674
    %v6677 = vadd.f32 %v6671, %v6675
    %v6678 = vadd.f32 %v6672, %v6676
    %s6679 = sld [smem:[#allocation7 + $0x14]]
    %v6680 = vstv %s6679
    %v6681 = vmul.f32 %v6443, %v6680
    %v6682 = vmul.f32 %v6444, %v6680
    %v6683 = vadd.f32 %v6677, %v6681
    %v6684 = vadd.f32 %v6678, %v6682
    %s6685 = sld [smem:[#allocation7 + $0x1c]]
    %v6686 = vstv %s6685
    %v6687 = vmul.f32 %v6551, %v6686
    %v6688 = vmul.f32 %v6552, %v6686
    %v6689 = vadd.f32 %v6683, %v6687
    %v6690 = vadd.f32 %v6684, %v6688
    %s6691 = sld [smem:[#allocation8 + $0x4]]
    %v6692 = vstv %s6691
    %v6693 = vadd.f32 %v6689, %v6692
    %v6694 = vadd.f32 %v6690, %v6692
    %s6695 = scalar_lea.vmem [#allocation11], 192
    %6696 = vst [vmem:[%s6695] sm:$0xff] %v6693
    %6697 = vst [vmem:[%s6695 + $0x8] sm:$0xff] %v6694
    %s6698 = sld [smem:[#allocation7 + $0x5]]
    %v6699 = vstv %s6698
    %v6700 = vmul.f32 %v6227, %v6699
    %v6701 = vmul.f32 %v6228, %v6699
    %s6702 = sld [smem:[#allocation7 + $0xd]]
    %v6703 = vstv %s6702
    %v6704 = vmul.f32 %v6335, %v6703
    %v6705 = vmul.f32 %v6336, %v6703
    %v6706 = vadd.f32 %v6700, %v6704
    %v6707 = vadd.f32 %v6701, %v6705
    %s6708 = sld [smem:[#allocation7 + $0x15]]
    %v6709 = vstv %s6708
    %v6710 = vmul.f32 %v6443, %v6709
    %v6711 = vmul.f32 %v6444, %v6709
    %v6712 = vadd.f32 %v6706, %v6710
    %v6713 = vadd.f32 %v6707, %v6711
    %s6714 = sld [smem:[#allocation7 + $0x1d]]
    %v6715 = vstv %s6714
    %v6716 = vmul.f32 %v6551, %v6715
    %v6717 = vmul.f32 %v6552, %v6715
    %v6718 = vadd.f32 %v6712, %v6716
    %v6719 = vadd.f32 %v6713, %v6717
    %s6720 = sld [smem:[#allocation8 + $0x5]]
    %v6721 = vstv %s6720
    %v6722 = vadd.f32 %v6718, %v6721
    %v6723 = vadd.f32 %v6719, %v6721
    %s6724 = scalar_lea.vmem [#allocation11], 208
    %6725 = vst [vmem:[%s6724] sm:$0xff] %v6722
    %6726 = vst [vmem:[%s6724 + $0x8] sm:$0xff] %v6723
    %s6727 = sld [smem:[#allocation7 + $0x6]]
    %v6728 = vstv %s6727
    %v6729 = vmul.f32 %v6227, %v6728
    %v6730 = vmul.f32 %v6228, %v6728
    %s6731 = sld [smem:[#allocation7 + $0xe]]
    %v6732 = vstv %s6731
    %v6733 = vmul.f32 %v6335, %v6732
    %v6734 = vmul.f32 %v6336, %v6732
    %v6735 = vadd.f32 %v6729, %v6733
    %v6736 = vadd.f32 %v6730, %v6734
    %s6737 = sld [smem:[#allocation7 + $0x16]]
    %v6738 = vstv %s6737
    %v6739 = vmul.f32 %v6443, %v6738
    %v6740 = vmul.f32 %v6444, %v6738
    %v6741 = vadd.f32 %v6735, %v6739
    %v6742 = vadd.f32 %v6736, %v6740
    %s6743 = sld [smem:[#allocation7 + $0x1e]]
    %v6744 = vstv %s6743
    %v6745 = vmul.f32 %v6551, %v6744
    %v6746 = vmul.f32 %v6552, %v6744
    %v6747 = vadd.f32 %v6741, %v6745
    %v6748 = vadd.f32 %v6742, %v6746
    %s6749 = sld [smem:[#allocation8 + $0x6]]
    %v6750 = vstv %s6749
    %v6751 = vadd.f32 %v6747, %v6750
    %v6752 = vadd.f32 %v6748, %v6750
    %s6753 = scalar_lea.vmem [#allocation11], 224
    %6754 = vst [vmem:[%s6753] sm:$0xff] %v6751
    %6755 = vst [vmem:[%s6753 + $0x8] sm:$0xff] %v6752
    %s6756 = sld [smem:[#allocation7 + $0x7]]
    %v6757 = vstv %s6756
    %v6758 = vmul.f32 %v6227, %v6757
    %v6759 = vmul.f32 %v6228, %v6757
    %s6760 = sld [smem:[#allocation7 + $0xf]]
    %v6761 = vstv %s6760
    %v6762 = vmul.f32 %v6335, %v6761
    %v6763 = vmul.f32 %v6336, %v6761
    %v6764 = vadd.f32 %v6758, %v6762
    %v6765 = vadd.f32 %v6759, %v6763
    %s6766 = sld [smem:[#allocation7 + $0x17]]
    %v6767 = vstv %s6766
    %v6768 = vmul.f32 %v6443, %v6767
    %v6769 = vmul.f32 %v6444, %v6767
    %v6770 = vadd.f32 %v6764, %v6768
    %v6771 = vadd.f32 %v6765, %v6769
    %s6772 = sld [smem:[#allocation7 + $0x1f]]
    %v6773 = vstv %s6772
    %v6774 = vmul.f32 %v6551, %v6773
    %v6775 = vmul.f32 %v6552, %v6773
    %v6776 = vadd.f32 %v6770, %v6774
    %v6777 = vadd.f32 %v6771, %v6775
    %s6778 = sld [smem:[#allocation8 + $0x7]]
    %v6779 = vstv %s6778
    %v6780 = vadd.f32 %v6776, %v6779
    %v6781 = vadd.f32 %v6777, %v6779
    %s6782 = scalar_lea.vmem [#allocation11], 240
    %6783 = vst [vmem:[%s6782] sm:$0xff] %v6780
    %6784 = vst [vmem:[%s6782 + $0x8] sm:$0xff] %v6781
    // Predicated region
    $region34: #{tpu_custom_call.1} parent=1 // pred_check
      _
    $region35: #{tpu_custom_call.1} parent=1 // pred_check_branch
      %6786 = sbr.rel (0) target = $region37
    $region36: #{tpu_custom_call.1} parent=1 // pred_region
      %s6788 = ssub.s32 4096, 4096
      %6789 = vsyncadd [#allocation4], %s6788
      %s6790 = sshll.u32 [#allocation11], 4
      %s6791 = int_to_ptr.vmem [resolvable:$true] %s6790
      %6796 = dma.vmem_to_hbm [thread:$0]  %s6791, 4096, %s4, [#allocation4], 128, 128, 8
    $region37: #{tpu_custom_call.1} parent=1 // pred_fallthru
      _
    // Predicated region
    $region38: #{tpu_custom_call.1} parent=1 // pred_check
      _
    $region39: #{tpu_custom_call.1} parent=1 // pred_check_branch
      %6798 = sbr.rel (0) target = $region41
    $region40: #{tpu_custom_call.1} parent=1 // pred_region
      %6799 = dma.done [#allocation4], 4096
    $region41: #{tpu_custom_call.1} parent=1 // pred_fallthru
      _
    %6800 = vsyncpa [#allocation3], 1
    %6801 = vsyncpa [#allocation4], 1
    %6802 = vsyncpa [#allocation5], 1
    %6803 = vsyncpa [#allocation6], 1
    %6804 = vsyncpa [#allocation9], 1

</llo_original>
